<compile_context>
chip_gen: v7x
topology: tpu7x:2x2x1
jax: 0.10.0
libtpu: 0.0.40
codegen_flags: <defaults>
</compile_context>

<pallas_src>
import functools

import jax
import jax.numpy as jnp
from jax.experimental import pallas as pl
from jax.experimental.pallas import tpu as pltpu


# ----------------------------------------------------------------------------
# Pallas kernel: fused, direction-interleaved GRU recurrence.
# grid = (num_chunks,); both directions' hidden states live in VMEM scratch.
# ----------------------------------------------------------------------------
def _gru_recurrence_kernel(len_ref, gif_ref, gib_ref, whf_ref, whb_ref,
                           bf_ref, bb_ref, bnf_ref, bnb_ref,
                           outf_ref, outb_ref, hnf_ref, hnb_ref,
                           hf_scr, hb_scr, *, hidden_size, time_chunk):
    """One grid step = `time_chunk` timesteps of BOTH directions, interleaved.

    gif_ref / gib_ref : (Tc, B, 3H) precomputed x@W_ih chunks (fwd chunk c,
                         bwd chunk nc-1-c; bias NOT yet added)
    whf_ref / whb_ref : (H, 3H)  recurrent weights
    bf_ref  / bb_ref  : (1, 3H)  folded bias = b_ih + b_hh[r,z gates]
    bnf_ref / bnb_ref : (1, H)   n-gate b_hh (stays inside r*(...))
    outf_ref/outb_ref : (Tc, B, H) per-step outputs of this chunk
    hnf_ref / hnb_ref : (B, H)   final hidden (resident; written on last chunk)
    hf_scr  / hb_scr  : (B, H)   hidden states carried across chunks
    """
    H = hidden_size
    Tc = time_chunk
    B = hf_scr.shape[0]
    c = pl.program_id(0)
    nc = pl.num_programs(0)

    @pl.when(c == 0)
    def _():
        hf_scr[...] = jnp.zeros_like(hf_scr)
        hb_scr[...] = jnp.zeros_like(hb_scr)

    # Per-chunk constants hoisted out of the unrolled loop (no per-step
    # broadcast_in_dim re-emission).
    whh_f = whf_ref[...]                                         # (H, 3H)
    whh_b = whb_ref[...]
    bias_f = jnp.broadcast_to(bf_ref[...], (B, 3 * H)).astype(jnp.float32)
    bias_b = jnp.broadcast_to(bb_ref[...], (B, 3 * H)).astype(jnp.float32)
    bn_f = jnp.broadcast_to(bnf_ref[...], (B, H)).astype(jnp.float32)
    bn_b = jnp.broadcast_to(bnb_ref[...], (B, H)).astype(jnp.float32)
    len_b = jnp.broadcast_to(len_ref[...], (B, H))               # int32

    base_f = c * Tc                    # absolute start time of the fwd chunk
    base_b = (nc - 1 - c) * Tc         # absolute start time of the bwd chunk

    h_f = hf_scr[...]
    h_b = hb_scr[...]

    def cell(gi, h, whh, bn):
        gh = jnp.dot(h.astype(whh.dtype), whh,
                     preferred_element_type=jnp.float32)         # (B, 3H)
        r = jax.nn.sigmoid(gi[:, 0:H] + gh[:, 0:H])
        z = jax.nn.sigmoid(gi[:, H:2 * H] + gh[:, H:2 * H])
        n = jnp.tanh(gi[:, 2 * H:] + r * (gh[:, 2 * H:] + bn))
        return (1.0 - z) * n + z * h

    # Static in-chunk indices; the two independent direction chains sit in the
    # same basic block so the scheduler overlaps their MXU/EUP latency.
    for i in range(Tc):
        jf = i
        jb = Tc - 1 - i
        gi_f = gif_ref[jf].astype(jnp.float32) + bias_f          # (B, 3H)
        gi_b = gib_ref[jb].astype(jnp.float32) + bias_b
        hf_new = cell(gi_f, h_f, whh_f, bn_f)
        hb_new = cell(gi_b, h_b, whh_b, bn_b)
        valid_f = (base_f + jf) < len_b                          # (B, H) mask
        valid_b = (base_b + jb) < len_b
        h_f = jnp.where(valid_f, hf_new, h_f)
        h_b = jnp.where(valid_b, hb_new, h_b)
        outf_ref[jf] = jnp.where(valid_f, hf_new, 0.0).astype(outf_ref.dtype)
        outb_ref[jb] = jnp.where(valid_b, hb_new, 0.0).astype(outb_ref.dtype)

    hf_scr[...] = h_f
    hb_scr[...] = h_b

    @pl.when(c == nc - 1)                # single (B,H) store instead of per-chunk
    def _():
        hnf_ref[...] = hf_scr[...]
        hnb_ref[...] = hb_scr[...]


# ----------------------------------------------------------------------------
# One bidirectional layer: pallas_call wrapper.
# ----------------------------------------------------------------------------
def gru_bidir_layer(gi_st, lengths_b1, whh_f, whh_b, bias_f, bias_b,
                    bhhn_f, bhhn_b, hidden_size, time_chunk, out_dtype):
    """gi_st: (2, T_pad, B, 3H) precomputed input gates, [fwd, bwd] stacked."""
    _, T_pad, B, G = gi_st.shape
    H = hidden_size
    Tc = time_chunk
    nc = T_pad // Tc

    # VMEM budget (double-buffered chunk inputs/outputs + weights + scratch),
    # generous headroom; keeps Tc sizing honest on v7x's 64 MiB VMEM.
    gi_bytes = jnp.dtype(gi_st.dtype).itemsize
    out_bytes = jnp.dtype(out_dtype).itemsize
    w_bytes = jnp.dtype(whh_f.dtype).itemsize
    budget = (2 * 2 * Tc * B * G * gi_bytes          # gi fwd+bwd chunks
              + 2 * 2 * Tc * B * H * out_bytes       # out fwd+bwd chunks
              + 2 * 2 * H * 3 * H * w_bytes          # W_hh fwd+bwd
              + 8 * B * H * 4                        # hn outputs + scratch
              + 4 * (3 * H + H + B) * 4)             # biases, lengths
    vmem_limit = int(min(max(2 * budget + (4 << 20), 32 << 20), 100 << 20))

    kernel = functools.partial(_gru_recurrence_kernel,
                               hidden_size=H, time_chunk=Tc)

    out_f, out_b, hn_f, hn_b = pl.pallas_call(
        kernel,
        out_shape=(jax.ShapeDtypeStruct((T_pad, B, H), out_dtype),
                   jax.ShapeDtypeStruct((T_pad, B, H), out_dtype),
                   jax.ShapeDtypeStruct((B, H), jnp.float32),
                   jax.ShapeDtypeStruct((B, H), jnp.float32)),
        grid=(nc,),
        in_specs=[
            pl.BlockSpec((B, 1), lambda c: (0, 0)),                        # lengths
            pl.BlockSpec((None, Tc, B, G), lambda c: (0, c, 0, 0)),        # gi fwd
            pl.BlockSpec((None, Tc, B, G), lambda c: (1, nc - 1 - c, 0, 0)),  # gi bwd
            pl.BlockSpec((H, 3 * H), lambda c: (0, 0)),                    # W_hh fwd
            pl.BlockSpec((H, 3 * H), lambda c: (0, 0)),                    # W_hh bwd
            pl.BlockSpec((1, 3 * H), lambda c: (0, 0)),                    # bias fwd
            pl.BlockSpec((1, 3 * H), lambda c: (0, 0)),                    # bias bwd
            pl.BlockSpec((1, H), lambda c: (0, 0)),                        # b_hh n fwd
            pl.BlockSpec((1, H), lambda c: (0, 0)),                        # b_hh n bwd
        ],
        out_specs=(pl.BlockSpec((Tc, B, H), lambda c: (c, 0, 0)),          # out fwd
                   pl.BlockSpec((Tc, B, H), lambda c: (nc - 1 - c, 0, 0)), # out bwd
                   pl.BlockSpec((B, H), lambda c: (0, 0)),                 # hn fwd
                   pl.BlockSpec((B, H), lambda c: (0, 0))),                # hn bwd
        scratch_shapes=[pltpu.VMEM((B, H), jnp.float32),
                        pltpu.VMEM((B, H), jnp.float32)],
        compiler_params=pltpu.CompilerParams(
            dimension_semantics=("arbitrary",),      # chunk axis carries state
            vmem_limit_bytes=vmem_limit),
    )(lengths_b1, gi_st, gi_st, whh_f, whh_b, bias_f, bias_b, bhhn_f, bhhn_b)
    return out_f, out_b, hn_f, hn_b


# ----------------------------------------------------------------------------
# Full module forward (multi-layer, bidirectional, sum of directions).
# ----------------------------------------------------------------------------
def gru_encoder_forward(src_emb, input_lengths, params, hidden_size, num_layers,
                        time_chunk=32, storage_dtype=jnp.float32):
    B, T, _ = src_emb.shape
    H = hidden_size
    Tc = time_chunk
    T_pad = pl.cdiv(T, Tc) * Tc
    lengths = input_lengths.astype(jnp.int32).reshape(B, 1)

    x0 = src_emb.astype(storage_dtype)
    if T_pad != T:
        # padded timesteps are masked out by `lengths` inside the kernel
        x0 = jnp.pad(x0, ((0, 0), (0, T_pad - T), (0, 0)))

    x_parts = None        # (out_fwd, out_bwd) of previous layer, each (T_pad,B,H)
    hiddens = []
    for layer in range(num_layers):
        wih_f, whh_f, bih_f, bhh_f = params[(layer, 0)]
        wih_b, whh_b, bih_b, bhh_b = params[(layer, 1)]
        wih_st = jnp.stack([wih_f, wih_b], axis=0).astype(storage_dtype)  # (2,Ein,3H)

        def fold(bih, bhh):   # b_ih (all gates) + b_hh (r,z gates only)
            return bih + jnp.concatenate(
                [bhh[:, :2 * H], jnp.zeros_like(bhh[:, 2 * H:])], axis=-1)

        bias_f, bias_b = fold(bih_f, bhh_f), fold(bih_b, bhh_b)           # (1,3H)
        bn_f, bn_b = bhh_f[:, 2 * H:], bhh_b[:, 2 * H:]                   # (1,H)

        if layer == 0:
            # one large MXU matmul over all timesteps & both directions;
            # produces the time-major layout directly (no explicit transpose)
            gi_st = jnp.einsum('bte,deg->dtbg', x0, wih_st,
                               preferred_element_type=jnp.float32)
        else:
            of, ob = x_parts
            # split W_ih -> no (T, B, 2H) concatenate between layers
            gi_st = (jnp.einsum('tbh,dhg->dtbg', of, wih_st[:, :H],
                                preferred_element_type=jnp.float32) +
                     jnp.einsum('tbh,dhg->dtbg', ob, wih_st[:, H:],
                                preferred_element_type=jnp.float32))
        gi_st = gi_st.astype(storage_dtype)    # biggest tensor; bf16-able

        out_f, out_b, hn_f, hn_b = gru_bidir_layer(
            gi_st, lengths,
            whh_f.astype(storage_dtype), whh_b.astype(storage_dtype),
            bias_f, bias_b, bn_f, bn_b, H, Tc, storage_dtype)
        x_parts = (out_f, out_b)
        hiddens.append(hn_f + hn_b)                         # sum of directions

    outputs = (x_parts[0].astype(jnp.float32)
               + x_parts[1].astype(jnp.float32))[:T]        # (T, B, H)
    outputs = jnp.transpose(outputs, (1, 0, 2))             # (B, T, H)
    hidden = jnp.stack(hiddens, axis=0)                     # (L, B, H)
    return outputs, hidden


# ----------------------------------------------------------------------------
# Deterministic parameter init (PyTorch GRU layout, gate order r,z,n; weights
# stored transposed: (in, 3H)).
# ----------------------------------------------------------------------------
def init_params(key, embed_size, hidden_size, num_layers):
    params = {}
    k = 1.0 / float(hidden_size) ** 0.5
    for layer in range(num_layers):
        in_size = embed_size if layer == 0 else 2 * hidden_size
        for d in range(2):  # 0 = forward, 1 = reverse
            key, k0, k1, k2, k3 = jax.random.split(key, 5)
            wih = jax.random.uniform(k0, (in_size, 3 * hidden_size),
                                     jnp.float32, -k, k)
            whh = jax.random.uniform(k1, (hidden_size, 3 * hidden_size),
                                     jnp.float32, -k, k)
            bih = jax.random.uniform(k2, (1, 3 * hidden_size),
                                     jnp.float32, -k, k)
            bhh = jax.random.uniform(k3, (1, 3 * hidden_size),
                                     jnp.float32, -k, k)
            params[(layer, d)] = (wih, whh, bih, bhh)
    return params


# ----------------------------------------------------------------------------
# Pure-JAX reference (lax.scan) used only to sanity-check the Pallas kernels.
# ----------------------------------------------------------------------------
def _ref_gru_dir(x_tbe, lengths, wih, whh, bih, bhh, H, reverse):
    T, B, _ = x_tbe.shape

    def cell(h, inp):
        x_t, t = inp
        gi = x_t @ wih + bih
        gh = h @ whh + bhh
        r = jax.nn.sigmoid(gi[:, :H] + gh[:, :H])
        z = jax.nn.sigmoid(gi[:, H:2 * H] + gh[:, H:2 * H])
        n = jnp.tanh(gi[:, 2 * H:] + r * gh[:, 2 * H:])
        h_new = (1.0 - z) * n + z * h
        valid = t < lengths.reshape(B, 1)
        h_next = jnp.where(valid, h_new, h)
        out = jnp.where(valid, h_new, 0.0)
        return h_next, out

    ts = jnp.arange(T)
    xs = x_tbe
    if reverse:
        xs, ts = xs[::-1], ts[::-1]
    h0 = jnp.zeros((B, H), jnp.float32)
    hN, outs = jax.lax.scan(cell, h0, (xs, ts))
    if reverse:
        outs = outs[::-1]
    return outs, hN


def _ref_forward(src_emb, lengths, params, H, L):
    x = jnp.transpose(src_emb.astype(jnp.float32), (1, 0, 2))
    hs = []
    for layer in range(L):
        of, hf = _ref_gru_dir(x, lengths, *params[(layer, 0)], H, False)
        ob, hb = _ref_gru_dir(x, lengths, *params[(layer, 1)], H, True)
        x = jnp.concatenate([of, ob], axis=-1)
        hs.append(hf + hb)
    outs = jnp.transpose(x[:, :, :H] + x[:, :, H:], (1, 0, 2))
    return outs, jnp.stack(hs, axis=0)


if __name__ == "__main__":
    # T=40, Tc=16 -> T_pad=48: exercises multi-chunk hidden-state carry,
    # chunk padding and per-sequence length masking.
    B, T, E, H, L = 4, 40, 16, 32, 2
    Tc = 16

    key = jax.random.PRNGKey(0)
    key, k_emb = jax.random.split(key)
    src_emb = jax.random.normal(k_emb, (B, T, E), jnp.float32)
    input_lengths = jnp.array([40, 23, 17, 5], dtype=jnp.int32)   # max == T

    key, k_par = jax.random.split(key)
    params = init_params(k_par, E, H, L)

    ref_out, ref_hid = _ref_forward(src_emb, input_lengths, params, H, L)

    # f32 path: must match the reference tightly.
    fwd32 = jax.jit(functools.partial(gru_encoder_forward, hidden_size=H,
                                      num_layers=L, time_chunk=Tc,
                                      storage_dtype=jnp.float32))
    out32, hid32 = fwd32(src_emb, input_lengths, params)
    jax.block_until_ready((out32, hid32))
    assert out32.shape == (B, T, H), out32.shape
    assert hid32.shape == (L, B, H), hid32.shape
    assert jnp.allclose(out32, ref_out, atol=1e-4, rtol=1e-4), \
        float(jnp.max(jnp.abs(out32 - ref_out)))
    assert jnp.allclose(hid32, ref_hid, atol=1e-4, rtol=1e-4), \
        float(jnp.max(jnp.abs(hid32 - ref_hid)))

    # bf16-storage path (production setting from the perf review): loose check.
    fwd16 = jax.jit(functools.partial(gru_encoder_forward, hidden_size=H,
                                      num_layers=L, time_chunk=Tc,
                                      storage_dtype=jnp.bfloat16))
    out16, hid16 = fwd16(src_emb, input_lengths, params)
    jax.block_until_ready((out16, hid16))
    err_o = float(jnp.max(jnp.abs(out16.astype(jnp.float32) - ref_out)))
    err_h = float(jnp.max(jnp.abs(hid16.astype(jnp.float32) - ref_hid)))
    assert err_o < 0.25 and err_h < 0.25, (err_o, err_h)

    print("KERNEL_OK")
</pallas_src>

<mosaic_0001>
module attributes {stable_mosaic.version = 11 : i64} {
  func.func @_gru_recurrence_kernel(%arg0: i32, %arg1: memref<4x1xi32, #tpu.memory_space<vmem>>, %arg2: memref<1x16x4x96xf32, #tpu.memory_space<vmem>>, %arg3: memref<1x16x4x96xf32, #tpu.memory_space<vmem>>, %arg4: memref<32x96xf32, #tpu.memory_space<vmem>>, %arg5: memref<32x96xf32, #tpu.memory_space<vmem>>, %arg6: memref<1x96xf32, #tpu.memory_space<vmem>>, %arg7: memref<1x96xf32, #tpu.memory_space<vmem>>, %arg8: memref<1x32xf32, #tpu.memory_space<vmem>>, %arg9: memref<1x32xf32, #tpu.memory_space<vmem>>, %arg10: memref<16x4x32xf32, #tpu.memory_space<vmem>>, %arg11: memref<16x4x32xf32, #tpu.memory_space<vmem>>, %arg12: memref<4x32xf32, #tpu.memory_space<vmem>>, %arg13: memref<4x32xf32, #tpu.memory_space<vmem>>, %arg14: memref<4x32xf32, #tpu.memory_space<vmem>>, %arg15: memref<4x32xf32, #tpu.memory_space<vmem>>) attributes {dimension_semantics = [#tpu.dimension_semantics<arbitrary>], iteration_bounds = array<i64: 3>, scalar_prefetch = 0 : i64, scratch_operands = 2 : i64, tpu.core_type = #tpu.core_type<tc>, window_params = [{pipeline_mode = #tpu.pipeline_mode<synchronous>, transform_indices = @transform_0, window_bounds = array<i64: 4, 1>}, {transform_indices = @transform_1, window_bounds = array<i64: 1, 16, 4, 96>}, {transform_indices = @transform_2, window_bounds = array<i64: 1, 16, 4, 96>}, {pipeline_mode = #tpu.pipeline_mode<synchronous>, transform_indices = @transform_3, window_bounds = array<i64: 32, 96>}, {pipeline_mode = #tpu.pipeline_mode<synchronous>, transform_indices = @transform_4, window_bounds = array<i64: 32, 96>}, {pipeline_mode = #tpu.pipeline_mode<synchronous>, transform_indices = @transform_5, window_bounds = array<i64: 1, 96>}, {pipeline_mode = #tpu.pipeline_mode<synchronous>, transform_indices = @transform_6, window_bounds = array<i64: 1, 96>}, {pipeline_mode = #tpu.pipeline_mode<synchronous>, transform_indices = @transform_7, window_bounds = array<i64: 1, 32>}, {pipeline_mode = #tpu.pipeline_mode<synchronous>, transform_indices = @transform_8, window_bounds = array<i64: 1, 32>}, {transform_indices = @transform_9, window_bounds = array<i64: 16, 4, 32>}, {transform_indices = @transform_10, window_bounds = array<i64: 16, 4, 32>}, {pipeline_mode = #tpu.pipeline_mode<synchronous>, transform_indices = @transform_11, window_bounds = array<i64: 4, 32>}, {pipeline_mode = #tpu.pipeline_mode<synchronous>, transform_indices = @transform_12, window_bounds = array<i64: 4, 32>}]} {
    %c0_i32 = arith.constant 0 : i32
    %0 = arith.cmpi eq, %arg0, %c0_i32 : i32
    %1 = arith.extui %0 : i1 to i32
    %c0_i32_0 = arith.constant 0 : i32
    %2 = arith.cmpi ne, %1, %c0_i32_0 : i32
    scf.if %2 {
      %cst_411 = arith.constant 0.000000e+00 : f32
      %1310 = vector.broadcast %cst_411 : f32 to vector<4x32xf32>
      %c0_412 = arith.constant 0 : index
      %c0_413 = arith.constant 0 : index
      %1311 = vector.load %arg14[%c0_412, %c0_413] : memref<4x32xf32, #tpu.memory_space<vmem>>, vector<4x32xf32>
      tpu.vector_store %arg14[%c0_412, %c0_413], %1310 {strides = array<i32>} : memref<4x32xf32, #tpu.memory_space<vmem>>, vector<4x32xf32>,
      %cst_414 = arith.constant 0.000000e+00 : f32
      %1312 = vector.broadcast %cst_414 : f32 to vector<4x32xf32>
      %c0_415 = arith.constant 0 : index
      %c0_416 = arith.constant 0 : index
      %1313 = vector.load %arg15[%c0_415, %c0_416] : memref<4x32xf32, #tpu.memory_space<vmem>>, vector<4x32xf32>
      tpu.vector_store %arg15[%c0_415, %c0_416], %1312 {strides = array<i32>} : memref<4x32xf32, #tpu.memory_space<vmem>>, vector<4x32xf32>,
    } else {
    }
    %c0 = arith.constant 0 : index
    %c0_1 = arith.constant 0 : index
    %3 = vector.load %arg4[%c0, %c0_1] : memref<32x96xf32, #tpu.memory_space<vmem>>, vector<32x96xf32>
    %c0_2 = arith.constant 0 : index
    %c0_3 = arith.constant 0 : index
    %4 = vector.load %arg5[%c0_2, %c0_3] : memref<32x96xf32, #tpu.memory_space<vmem>>, vector<32x96xf32>
    %c0_4 = arith.constant 0 : index
    %c0_5 = arith.constant 0 : index
    %5 = vector.load %arg6[%c0_4, %c0_5] : memref<1x96xf32, #tpu.memory_space<vmem>>, vector<1x96xf32>
    %6 = vector.shape_cast %5 : vector<1x96xf32> to vector<1x96xf32>
    %7 = vector.broadcast %6 : vector<1x96xf32> to vector<4x96xf32>
    %c0_6 = arith.constant 0 : index
    %c0_7 = arith.constant 0 : index
    %8 = vector.load %arg7[%c0_6, %c0_7] : memref<1x96xf32, #tpu.memory_space<vmem>>, vector<1x96xf32>
    %9 = vector.shape_cast %8 : vector<1x96xf32> to vector<1x96xf32>
    %10 = vector.broadcast %9 : vector<1x96xf32> to vector<4x96xf32>
    %c0_8 = arith.constant 0 : index
    %c0_9 = arith.constant 0 : index
    %11 = vector.load %arg8[%c0_8, %c0_9] : memref<1x32xf32, #tpu.memory_space<vmem>>, vector<1x32xf32>
    %12 = vector.shape_cast %11 : vector<1x32xf32> to vector<1x32xf32>
    %13 = vector.broadcast %12 : vector<1x32xf32> to vector<4x32xf32>
    %c0_10 = arith.constant 0 : index
    %c0_11 = arith.constant 0 : index
    %14 = vector.load %arg9[%c0_10, %c0_11] : memref<1x32xf32, #tpu.memory_space<vmem>>, vector<1x32xf32>
    %15 = vector.shape_cast %14 : vector<1x32xf32> to vector<1x32xf32>
    %16 = vector.broadcast %15 : vector<1x32xf32> to vector<4x32xf32>
    %c0_12 = arith.constant 0 : index
    %c0_13 = arith.constant 0 : index
    %17 = vector.load %arg1[%c0_12, %c0_13] : memref<4x1xi32, #tpu.memory_space<vmem>>, vector<4x1xi32>
    %18 = vector.shape_cast %17 : vector<4x1xi32> to vector<4x1xi32>
    %19 = vector.broadcast %18 : vector<4x1xi32> to vector<4x32xi32>
    %c16_i32 = arith.constant 16 : i32
    %20 = arith.muli %arg0, %c16_i32 : i32
    %c2_i32 = arith.constant 2 : i32
    %21 = arith.subi %c2_i32, %arg0 : i32
    %c16_i32_14 = arith.constant 16 : i32
    %22 = arith.muli %21, %c16_i32_14 : i32
    %c0_15 = arith.constant 0 : index
    %c0_16 = arith.constant 0 : index
    %23 = vector.load %arg14[%c0_15, %c0_16] : memref<4x32xf32, #tpu.memory_space<vmem>>, vector<4x32xf32>
    %c0_17 = arith.constant 0 : index
    %c0_18 = arith.constant 0 : index
    %24 = vector.load %arg15[%c0_17, %c0_18] : memref<4x32xf32, #tpu.memory_space<vmem>>, vector<4x32xf32>
    %c0_19 = arith.constant 0 : index
    %c0_20 = arith.constant 0 : index
    %c0_21 = arith.constant 0 : index
    %c0_22 = arith.constant 0 : index
    %25 = vector.load %arg2[%c0_19, %c0_20, %c0_21, %c0_22] : memref<1x16x4x96xf32, #tpu.memory_space<vmem>>, vector<1x1x4x96xf32>
    %26 = vector.shape_cast %25 : vector<1x1x4x96xf32> to vector<4x96xf32>
    %27 = arith.addf %26, %7 : vector<4x96xf32>
    %c0_23 = arith.constant 0 : index
    %c15 = arith.constant 15 : index
    %c0_24 = arith.constant 0 : index
    %c0_25 = arith.constant 0 : index
    %28 = vector.load %arg3[%c0_23, %c15, %c0_24, %c0_25] : memref<1x16x4x96xf32, #tpu.memory_space<vmem>>, vector<1x1x4x96xf32>
    %29 = vector.shape_cast %28 : vector<1x1x4x96xf32> to vector<4x96xf32>
    %30 = arith.addf %29, %10 : vector<4x96xf32>
    %cst = arith.constant dense<0.000000e+00> : vector<4x96xf32>
    %31 = tpu.matmul %23, %3, %cst {dimension_numbers = #tpu.dot_dimension_numbers<[1], [0], [0], [1], [0, 0, 1, 1], [], []>} : vector<4x32xf32>, vector<32x96xf32>, vector<4x96xf32> -> vector<4x96xf32>
    %32 = vector.extract_strided_slice %27 {offsets = [0, 0], sizes = [4, 32], strides = [1, 1]} : vector<4x96xf32> to vector<4x32xf32>
    %33 = vector.extract_strided_slice %31 {offsets = [0, 0], sizes = [4, 32], strides = [1, 1]} : vector<4x96xf32> to vector<4x32xf32>
    %34 = arith.addf %32, %33 : vector<4x32xf32>
    %35 = arith.negf %34 : vector<4x32xf32>
    %36 = math.exp %35 : vector<4x32xf32>
    %cst_26 = arith.constant 1.000000e+00 : f32
    %37 = vector.broadcast %cst_26 : f32 to vector<4x32xf32>
    %38 = arith.addf %37, %36 : vector<4x32xf32>
    %39 = arith.divf %37, %38 : vector<4x32xf32>
    %40 = vector.extract_strided_slice %27 {offsets = [0, 32], sizes = [4, 32], strides = [1, 1]} : vector<4x96xf32> to vector<4x32xf32>
    %41 = vector.extract_strided_slice %31 {offsets = [0, 32], sizes = [4, 32], strides = [1, 1]} : vector<4x96xf32> to vector<4x32xf32>
    %42 = arith.addf %40, %41 : vector<4x32xf32>
    %43 = arith.negf %42 : vector<4x32xf32>
    %44 = math.exp %43 : vector<4x32xf32>
    %cst_27 = arith.constant 1.000000e+00 : f32
    %45 = vector.broadcast %cst_27 : f32 to vector<4x32xf32>
    %46 = arith.addf %45, %44 : vector<4x32xf32>
    %47 = arith.divf %45, %46 : vector<4x32xf32>
    %48 = vector.extract_strided_slice %27 {offsets = [0, 64], sizes = [4, 32], strides = [1, 1]} : vector<4x96xf32> to vector<4x32xf32>
    %49 = vector.extract_strided_slice %31 {offsets = [0, 64], sizes = [4, 32], strides = [1, 1]} : vector<4x96xf32> to vector<4x32xf32>
    %50 = arith.addf %49, %13 : vector<4x32xf32>
    %51 = arith.mulf %39, %50 : vector<4x32xf32>
    %52 = arith.addf %48, %51 : vector<4x32xf32>
    %53 = math.tanh %52 : vector<4x32xf32>
    %cst_28 = arith.constant 1.000000e+00 : f32
    %54 = vector.broadcast %cst_28 : f32 to vector<4x32xf32>
    %55 = arith.subf %54, %47 : vector<4x32xf32>
    %56 = arith.mulf %55, %53 : vector<4x32xf32>
    %57 = arith.mulf %47, %23 : vector<4x32xf32>
    %58 = arith.addf %56, %57 : vector<4x32xf32>
    %cst_29 = arith.constant dense<0.000000e+00> : vector<4x96xf32>
    %59 = tpu.matmul %24, %4, %cst_29 {dimension_numbers = #tpu.dot_dimension_numbers<[1], [0], [0], [1], [0, 0, 1, 1], [], []>} : vector<4x32xf32>, vector<32x96xf32>, vector<4x96xf32> -> vector<4x96xf32>
    %60 = vector.extract_strided_slice %30 {offsets = [0, 0], sizes = [4, 32], strides = [1, 1]} : vector<4x96xf32> to vector<4x32xf32>
    %61 = vector.extract_strided_slice %59 {offsets = [0, 0], sizes = [4, 32], strides = [1, 1]} : vector<4x96xf32> to vector<4x32xf32>
    %62 = arith.addf %60, %61 : vector<4x32xf32>
    %63 = arith.negf %62 : vector<4x32xf32>
    %64 = math.exp %63 : vector<4x32xf32>
    %cst_30 = arith.constant 1.000000e+00 : f32
    %65 = vector.broadcast %cst_30 : f32 to vector<4x32xf32>
    %66 = arith.addf %65, %64 : vector<4x32xf32>
    %67 = arith.divf %65, %66 : vector<4x32xf32>
    %68 = vector.extract_strided_slice %30 {offsets = [0, 32], sizes = [4, 32], strides = [1, 1]} : vector<4x96xf32> to vector<4x32xf32>
    %69 = vector.extract_strided_slice %59 {offsets = [0, 32], sizes = [4, 32], strides = [1, 1]} : vector<4x96xf32> to vector<4x32xf32>
    %70 = arith.addf %68, %69 : vector<4x32xf32>
    %71 = arith.negf %70 : vector<4x32xf32>
    %72 = math.exp %71 : vector<4x32xf32>
    %cst_31 = arith.constant 1.000000e+00 : f32
    %73 = vector.broadcast %cst_31 : f32 to vector<4x32xf32>
    %74 = arith.addf %73, %72 : vector<4x32xf32>
    %75 = arith.divf %73, %74 : vector<4x32xf32>
    %76 = vector.extract_strided_slice %30 {offsets = [0, 64], sizes = [4, 32], strides = [1, 1]} : vector<4x96xf32> to vector<4x32xf32>
    %77 = vector.extract_strided_slice %59 {offsets = [0, 64], sizes = [4, 32], strides = [1, 1]} : vector<4x96xf32> to vector<4x32xf32>
    %78 = arith.addf %77, %16 : vector<4x32xf32>
    %79 = arith.mulf %67, %78 : vector<4x32xf32>
    %80 = arith.addf %76, %79 : vector<4x32xf32>
    %81 = math.tanh %80 : vector<4x32xf32>
    %cst_32 = arith.constant 1.000000e+00 : f32
    %82 = vector.broadcast %cst_32 : f32 to vector<4x32xf32>
    %83 = arith.subf %82, %75 : vector<4x32xf32>
    %84 = arith.mulf %83, %81 : vector<4x32xf32>
    %85 = arith.mulf %75, %24 : vector<4x32xf32>
    %86 = arith.addf %84, %85 : vector<4x32xf32>
    %c0_i32_33 = arith.constant 0 : i32
    %87 = arith.addi %20, %c0_i32_33 : i32
    %88 = vector.broadcast %87 : i32 to vector<4x32xi32>
    %89 = arith.cmpi slt, %88, %19 : vector<4x32xi32>
    %c15_i32 = arith.constant 15 : i32
    %90 = arith.addi %22, %c15_i32 : i32
    %91 = vector.broadcast %90 : i32 to vector<4x32xi32>
    %92 = arith.cmpi slt, %91, %19 : vector<4x32xi32>
    %93 = arith.select %89, %58, %23 : vector<4x32xi1>, vector<4x32xf32>
    %94 = arith.select %92, %86, %24 : vector<4x32xi1>, vector<4x32xf32>
    %cst_34 = arith.constant 0.000000e+00 : f32
    %95 = vector.broadcast %cst_34 : f32 to vector<4x32xf32>
    %96 = arith.select %89, %58, %95 : vector<4x32xi1>, vector<4x32xf32>
    %c0_35 = arith.constant 0 : index
    %c0_36 = arith.constant 0 : index
    %c0_37 = arith.constant 0 : index
    %97 = vector.load %arg10[%c0_35, %c0_36, %c0_37] : memref<16x4x32xf32, #tpu.memory_space<vmem>>, vector<1x4x32xf32>
    %98 = vector.shape_cast %97 : vector<1x4x32xf32> to vector<4x32xf32>
    %99 = vector.shape_cast %96 : vector<4x32xf32> to vector<1x4x32xf32>
    tpu.vector_store %arg10[%c0_35, %c0_36, %c0_37], %99 {strides = array<i32>} : memref<16x4x32xf32, #tpu.memory_space<vmem>>, vector<1x4x32xf32>,
    %cst_38 = arith.constant 0.000000e+00 : f32
    %100 = vector.broadcast %cst_38 : f32 to vector<4x32xf32>
    %101 = arith.select %92, %86, %100 : vector<4x32xi1>, vector<4x32xf32>
    %c15_39 = arith.constant 15 : index
    %c0_40 = arith.constant 0 : index
    %c0_41 = arith.constant 0 : index
    %102 = vector.load %arg11[%c15_39, %c0_40, %c0_41] : memref<16x4x32xf32, #tpu.memory_space<vmem>>, vector<1x4x32xf32>
    %103 = vector.shape_cast %102 : vector<1x4x32xf32> to vector<4x32xf32>
    %104 = vector.shape_cast %101 : vector<4x32xf32> to vector<1x4x32xf32>
    tpu.vector_store %arg11[%c15_39, %c0_40, %c0_41], %104 {strides = array<i32>} : memref<16x4x32xf32, #tpu.memory_space<vmem>>, vector<1x4x32xf32>,
    %c0_42 = arith.constant 0 : index
    %c1 = arith.constant 1 : index
    %c0_43 = arith.constant 0 : index
    %c0_44 = arith.constant 0 : index
    %105 = vector.load %arg2[%c0_42, %c1, %c0_43, %c0_44] : memref<1x16x4x96xf32, #tpu.memory_space<vmem>>, vector<1x1x4x96xf32>
    %106 = vector.shape_cast %105 : vector<1x1x4x96xf32> to vector<4x96xf32>
    %107 = arith.addf %106, %7 : vector<4x96xf32>
    %c0_45 = arith.constant 0 : index
    %c14 = arith.constant 14 : index
    %c0_46 = arith.constant 0 : index
    %c0_47 = arith.constant 0 : index
    %108 = vector.load %arg3[%c0_45, %c14, %c0_46, %c0_47] : memref<1x16x4x96xf32, #tpu.memory_space<vmem>>, vector<1x1x4x96xf32>
    %109 = vector.shape_cast %108 : vector<1x1x4x96xf32> to vector<4x96xf32>
    %110 = arith.addf %109, %10 : vector<4x96xf32>
    %cst_48 = arith.constant dense<0.000000e+00> : vector<4x96xf32>
    %111 = tpu.matmul %93, %3, %cst_48 {dimension_numbers = #tpu.dot_dimension_numbers<[1], [0], [0], [1], [0, 0, 1, 1], [], []>} : vector<4x32xf32>, vector<32x96xf32>, vector<4x96xf32> -> vector<4x96xf32>
    %112 = vector.extract_strided_slice %107 {offsets = [0, 0], sizes = [4, 32], strides = [1, 1]} : vector<4x96xf32> to vector<4x32xf32>
    %113 = vector.extract_strided_slice %111 {offsets = [0, 0], sizes = [4, 32], strides = [1, 1]} : vector<4x96xf32> to vector<4x32xf32>
    %114 = arith.addf %112, %113 : vector<4x32xf32>
    %115 = arith.negf %114 : vector<4x32xf32>
    %116 = math.exp %115 : vector<4x32xf32>
    %cst_49 = arith.constant 1.000000e+00 : f32
    %117 = vector.broadcast %cst_49 : f32 to vector<4x32xf32>
    %118 = arith.addf %117, %116 : vector<4x32xf32>
    %119 = arith.divf %117, %118 : vector<4x32xf32>
    %120 = vector.extract_strided_slice %107 {offsets = [0, 32], sizes = [4, 32], strides = [1, 1]} : vector<4x96xf32> to vector<4x32xf32>
    %121 = vector.extract_strided_slice %111 {offsets = [0, 32], sizes = [4, 32], strides = [1, 1]} : vector<4x96xf32> to vector<4x32xf32>
    %122 = arith.addf %120, %121 : vector<4x32xf32>
    %123 = arith.negf %122 : vector<4x32xf32>
    %124 = math.exp %123 : vector<4x32xf32>
    %cst_50 = arith.constant 1.000000e+00 : f32
    %125 = vector.broadcast %cst_50 : f32 to vector<4x32xf32>
    %126 = arith.addf %125, %124 : vector<4x32xf32>
    %127 = arith.divf %125, %126 : vector<4x32xf32>
    %128 = vector.extract_strided_slice %107 {offsets = [0, 64], sizes = [4, 32], strides = [1, 1]} : vector<4x96xf32> to vector<4x32xf32>
    %129 = vector.extract_strided_slice %111 {offsets = [0, 64], sizes = [4, 32], strides = [1, 1]} : vector<4x96xf32> to vector<4x32xf32>
    %130 = arith.addf %129, %13 : vector<4x32xf32>
    %131 = arith.mulf %119, %130 : vector<4x32xf32>
    %132 = arith.addf %128, %131 : vector<4x32xf32>
    %133 = math.tanh %132 : vector<4x32xf32>
    %cst_51 = arith.constant 1.000000e+00 : f32
    %134 = vector.broadcast %cst_51 : f32 to vector<4x32xf32>
    %135 = arith.subf %134, %127 : vector<4x32xf32>
    %136 = arith.mulf %135, %133 : vector<4x32xf32>
    %137 = arith.mulf %127, %93 : vector<4x32xf32>
    %138 = arith.addf %136, %137 : vector<4x32xf32>
    %cst_52 = arith.constant dense<0.000000e+00> : vector<4x96xf32>
    %139 = tpu.matmul %94, %4, %cst_52 {dimension_numbers = #tpu.dot_dimension_numbers<[1], [0], [0], [1], [0, 0, 1, 1], [], []>} : vector<4x32xf32>, vector<32x96xf32>, vector<4x96xf32> -> vector<4x96xf32>
    %140 = vector.extract_strided_slice %110 {offsets = [0, 0], sizes = [4, 32], strides = [1, 1]} : vector<4x96xf32> to vector<4x32xf32>
    %141 = vector.extract_strided_slice %139 {offsets = [0, 0], sizes = [4, 32], strides = [1, 1]} : vector<4x96xf32> to vector<4x32xf32>
    %142 = arith.addf %140, %141 : vector<4x32xf32>
    %143 = arith.negf %142 : vector<4x32xf32>
    %144 = math.exp %143 : vector<4x32xf32>
    %cst_53 = arith.constant 1.000000e+00 : f32
    %145 = vector.broadcast %cst_53 : f32 to vector<4x32xf32>
    %146 = arith.addf %145, %144 : vector<4x32xf32>
    %147 = arith.divf %145, %146 : vector<4x32xf32>
    %148 = vector.extract_strided_slice %110 {offsets = [0, 32], sizes = [4, 32], strides = [1, 1]} : vector<4x96xf32> to vector<4x32xf32>
    %149 = vector.extract_strided_slice %139 {offsets = [0, 32], sizes = [4, 32], strides = [1, 1]} : vector<4x96xf32> to vector<4x32xf32>
    %150 = arith.addf %148, %149 : vector<4x32xf32>
    %151 = arith.negf %150 : vector<4x32xf32>
    %152 = math.exp %151 : vector<4x32xf32>
    %cst_54 = arith.constant 1.000000e+00 : f32
    %153 = vector.broadcast %cst_54 : f32 to vector<4x32xf32>
    %154 = arith.addf %153, %152 : vector<4x32xf32>
    %155 = arith.divf %153, %154 : vector<4x32xf32>
    %156 = vector.extract_strided_slice %110 {offsets = [0, 64], sizes = [4, 32], strides = [1, 1]} : vector<4x96xf32> to vector<4x32xf32>
    %157 = vector.extract_strided_slice %139 {offsets = [0, 64], sizes = [4, 32], strides = [1, 1]} : vector<4x96xf32> to vector<4x32xf32>
    %158 = arith.addf %157, %16 : vector<4x32xf32>
    %159 = arith.mulf %147, %158 : vector<4x32xf32>
    %160 = arith.addf %156, %159 : vector<4x32xf32>
    %161 = math.tanh %160 : vector<4x32xf32>
    %cst_55 = arith.constant 1.000000e+00 : f32
    %162 = vector.broadcast %cst_55 : f32 to vector<4x32xf32>
    %163 = arith.subf %162, %155 : vector<4x32xf32>
    %164 = arith.mulf %163, %161 : vector<4x32xf32>
    %165 = arith.mulf %155, %94 : vector<4x32xf32>
    %166 = arith.addf %164, %165 : vector<4x32xf32>
    %c1_i32 = arith.constant 1 : i32
    %167 = arith.addi %20, %c1_i32 : i32
    %168 = vector.broadcast %167 : i32 to vector<4x32xi32>
    %169 = arith.cmpi slt, %168, %19 : vector<4x32xi32>
    %c14_i32 = arith.constant 14 : i32
    %170 = arith.addi %22, %c14_i32 : i32
    %171 = vector.broadcast %170 : i32 to vector<4x32xi32>
    %172 = arith.cmpi slt, %171, %19 : vector<4x32xi32>
    %173 = arith.select %169, %138, %93 : vector<4x32xi1>, vector<4x32xf32>
    %174 = arith.select %172, %166, %94 : vector<4x32xi1>, vector<4x32xf32>
    %cst_56 = arith.constant 0.000000e+00 : f32
    %175 = vector.broadcast %cst_56 : f32 to vector<4x32xf32>
    %176 = arith.select %169, %138, %175 : vector<4x32xi1>, vector<4x32xf32>
    %c1_57 = arith.constant 1 : index
    %c0_58 = arith.constant 0 : index
    %c0_59 = arith.constant 0 : index
    %177 = vector.load %arg10[%c1_57, %c0_58, %c0_59] : memref<16x4x32xf32, #tpu.memory_space<vmem>>, vector<1x4x32xf32>
    %178 = vector.shape_cast %177 : vector<1x4x32xf32> to vector<4x32xf32>
    %179 = vector.shape_cast %176 : vector<4x32xf32> to vector<1x4x32xf32>
    tpu.vector_store %arg10[%c1_57, %c0_58, %c0_59], %179 {strides = array<i32>} : memref<16x4x32xf32, #tpu.memory_space<vmem>>, vector<1x4x32xf32>,
    %cst_60 = arith.constant 0.000000e+00 : f32
    %180 = vector.broadcast %cst_60 : f32 to vector<4x32xf32>
    %181 = arith.select %172, %166, %180 : vector<4x32xi1>, vector<4x32xf32>
    %c14_61 = arith.constant 14 : index
    %c0_62 = arith.constant 0 : index
    %c0_63 = arith.constant 0 : index
    %182 = vector.load %arg11[%c14_61, %c0_62, %c0_63] : memref<16x4x32xf32, #tpu.memory_space<vmem>>, vector<1x4x32xf32>
    %183 = vector.shape_cast %182 : vector<1x4x32xf32> to vector<4x32xf32>
    %184 = vector.shape_cast %181 : vector<4x32xf32> to vector<1x4x32xf32>
    tpu.vector_store %arg11[%c14_61, %c0_62, %c0_63], %184 {strides = array<i32>} : memref<16x4x32xf32, #tpu.memory_space<vmem>>, vector<1x4x32xf32>,
    %c0_64 = arith.constant 0 : index
    %c2 = arith.constant 2 : index
    %c0_65 = arith.constant 0 : index
    %c0_66 = arith.constant 0 : index
    %185 = vector.load %arg2[%c0_64, %c2, %c0_65, %c0_66] : memref<1x16x4x96xf32, #tpu.memory_space<vmem>>, vector<1x1x4x96xf32>
    %186 = vector.shape_cast %185 : vector<1x1x4x96xf32> to vector<4x96xf32>
    %187 = arith.addf %186, %7 : vector<4x96xf32>
    %c0_67 = arith.constant 0 : index
    %c13 = arith.constant 13 : index
    %c0_68 = arith.constant 0 : index
    %c0_69 = arith.constant 0 : index
    %188 = vector.load %arg3[%c0_67, %c13, %c0_68, %c0_69] : memref<1x16x4x96xf32, #tpu.memory_space<vmem>>, vector<1x1x4x96xf32>
    %189 = vector.shape_cast %188 : vector<1x1x4x96xf32> to vector<4x96xf32>
    %190 = arith.addf %189, %10 : vector<4x96xf32>
    %cst_70 = arith.constant dense<0.000000e+00> : vector<4x96xf32>
    %191 = tpu.matmul %173, %3, %cst_70 {dimension_numbers = #tpu.dot_dimension_numbers<[1], [0], [0], [1], [0, 0, 1, 1], [], []>} : vector<4x32xf32>, vector<32x96xf32>, vector<4x96xf32> -> vector<4x96xf32>
    %192 = vector.extract_strided_slice %187 {offsets = [0, 0], sizes = [4, 32], strides = [1, 1]} : vector<4x96xf32> to vector<4x32xf32>
    %193 = vector.extract_strided_slice %191 {offsets = [0, 0], sizes = [4, 32], strides = [1, 1]} : vector<4x96xf32> to vector<4x32xf32>
    %194 = arith.addf %192, %193 : vector<4x32xf32>
    %195 = arith.negf %194 : vector<4x32xf32>
    %196 = math.exp %195 : vector<4x32xf32>
    %cst_71 = arith.constant 1.000000e+00 : f32
    %197 = vector.broadcast %cst_71 : f32 to vector<4x32xf32>
    %198 = arith.addf %197, %196 : vector<4x32xf32>
    %199 = arith.divf %197, %198 : vector<4x32xf32>
    %200 = vector.extract_strided_slice %187 {offsets = [0, 32], sizes = [4, 32], strides = [1, 1]} : vector<4x96xf32> to vector<4x32xf32>
    %201 = vector.extract_strided_slice %191 {offsets = [0, 32], sizes = [4, 32], strides = [1, 1]} : vector<4x96xf32> to vector<4x32xf32>
    %202 = arith.addf %200, %201 : vector<4x32xf32>
    %203 = arith.negf %202 : vector<4x32xf32>
    %204 = math.exp %203 : vector<4x32xf32>
    %cst_72 = arith.constant 1.000000e+00 : f32
    %205 = vector.broadcast %cst_72 : f32 to vector<4x32xf32>
    %206 = arith.addf %205, %204 : vector<4x32xf32>
    %207 = arith.divf %205, %206 : vector<4x32xf32>
    %208 = vector.extract_strided_slice %187 {offsets = [0, 64], sizes = [4, 32], strides = [1, 1]} : vector<4x96xf32> to vector<4x32xf32>
    %209 = vector.extract_strided_slice %191 {offsets = [0, 64], sizes = [4, 32], strides = [1, 1]} : vector<4x96xf32> to vector<4x32xf32>
    %210 = arith.addf %209, %13 : vector<4x32xf32>
    %211 = arith.mulf %199, %210 : vector<4x32xf32>
    %212 = arith.addf %208, %211 : vector<4x32xf32>
    %213 = math.tanh %212 : vector<4x32xf32>
    %cst_73 = arith.constant 1.000000e+00 : f32
    %214 = vector.broadcast %cst_73 : f32 to vector<4x32xf32>
    %215 = arith.subf %214, %207 : vector<4x32xf32>
    %216 = arith.mulf %215, %213 : vector<4x32xf32>
    %217 = arith.mulf %207, %173 : vector<4x32xf32>
    %218 = arith.addf %216, %217 : vector<4x32xf32>
    %cst_74 = arith.constant dense<0.000000e+00> : vector<4x96xf32>
    %219 = tpu.matmul %174, %4, %cst_74 {dimension_numbers = #tpu.dot_dimension_numbers<[1], [0], [0], [1], [0, 0, 1, 1], [], []>} : vector<4x32xf32>, vector<32x96xf32>, vector<4x96xf32> -> vector<4x96xf32>
    %220 = vector.extract_strided_slice %190 {offsets = [0, 0], sizes = [4, 32], strides = [1, 1]} : vector<4x96xf32> to vector<4x32xf32>
    %221 = vector.extract_strided_slice %219 {offsets = [0, 0], sizes = [4, 32], strides = [1, 1]} : vector<4x96xf32> to vector<4x32xf32>
    %222 = arith.addf %220, %221 : vector<4x32xf32>
    %223 = arith.negf %222 : vector<4x32xf32>
    %224 = math.exp %223 : vector<4x32xf32>
    %cst_75 = arith.constant 1.000000e+00 : f32
    %225 = vector.broadcast %cst_75 : f32 to vector<4x32xf32>
    %226 = arith.addf %225, %224 : vector<4x32xf32>
    %227 = arith.divf %225, %226 : vector<4x32xf32>
    %228 = vector.extract_strided_slice %190 {offsets = [0, 32], sizes = [4, 32], strides = [1, 1]} : vector<4x96xf32> to vector<4x32xf32>
    %229 = vector.extract_strided_slice %219 {offsets = [0, 32], sizes = [4, 32], strides = [1, 1]} : vector<4x96xf32> to vector<4x32xf32>
    %230 = arith.addf %228, %229 : vector<4x32xf32>
    %231 = arith.negf %230 : vector<4x32xf32>
    %232 = math.exp %231 : vector<4x32xf32>
    %cst_76 = arith.constant 1.000000e+00 : f32
    %233 = vector.broadcast %cst_76 : f32 to vector<4x32xf32>
    %234 = arith.addf %233, %232 : vector<4x32xf32>
    %235 = arith.divf %233, %234 : vector<4x32xf32>
    %236 = vector.extract_strided_slice %190 {offsets = [0, 64], sizes = [4, 32], strides = [1, 1]} : vector<4x96xf32> to vector<4x32xf32>
    %237 = vector.extract_strided_slice %219 {offsets = [0, 64], sizes = [4, 32], strides = [1, 1]} : vector<4x96xf32> to vector<4x32xf32>
    %238 = arith.addf %237, %16 : vector<4x32xf32>
    %239 = arith.mulf %227, %238 : vector<4x32xf32>
    %240 = arith.addf %236, %239 : vector<4x32xf32>
    %241 = math.tanh %240 : vector<4x32xf32>
    %cst_77 = arith.constant 1.000000e+00 : f32
    %242 = vector.broadcast %cst_77 : f32 to vector<4x32xf32>
    %243 = arith.subf %242, %235 : vector<4x32xf32>
    %244 = arith.mulf %243, %241 : vector<4x32xf32>
    %245 = arith.mulf %235, %174 : vector<4x32xf32>
    %246 = arith.addf %244, %245 : vector<4x32xf32>
    %c2_i32_78 = arith.constant 2 : i32
    %247 = arith.addi %20, %c2_i32_78 : i32
    %248 = vector.broadcast %247 : i32 to vector<4x32xi32>
    %249 = arith.cmpi slt, %248, %19 : vector<4x32xi32>
    %c13_i32 = arith.constant 13 : i32
    %250 = arith.addi %22, %c13_i32 : i32
    %251 = vector.broadcast %250 : i32 to vector<4x32xi32>
    %252 = arith.cmpi slt, %251, %19 : vector<4x32xi32>
    %253 = arith.select %249, %218, %173 : vector<4x32xi1>, vector<4x32xf32>
    %254 = arith.select %252, %246, %174 : vector<4x32xi1>, vector<4x32xf32>
    %cst_79 = arith.constant 0.000000e+00 : f32
    %255 = vector.broadcast %cst_79 : f32 to vector<4x32xf32>
    %256 = arith.select %249, %218, %255 : vector<4x32xi1>, vector<4x32xf32>
    %c2_80 = arith.constant 2 : index
    %c0_81 = arith.constant 0 : index
    %c0_82 = arith.constant 0 : index
    %257 = vector.load %arg10[%c2_80, %c0_81, %c0_82] : memref<16x4x32xf32, #tpu.memory_space<vmem>>, vector<1x4x32xf32>
    %258 = vector.shape_cast %257 : vector<1x4x32xf32> to vector<4x32xf32>
    %259 = vector.shape_cast %256 : vector<4x32xf32> to vector<1x4x32xf32>
    tpu.vector_store %arg10[%c2_80, %c0_81, %c0_82], %259 {strides = array<i32>} : memref<16x4x32xf32, #tpu.memory_space<vmem>>, vector<1x4x32xf32>,
    %cst_83 = arith.constant 0.000000e+00 : f32
    %260 = vector.broadcast %cst_83 : f32 to vector<4x32xf32>
    %261 = arith.select %252, %246, %260 : vector<4x32xi1>, vector<4x32xf32>
    %c13_84 = arith.constant 13 : index
    %c0_85 = arith.constant 0 : index
    %c0_86 = arith.constant 0 : index
    %262 = vector.load %arg11[%c13_84, %c0_85, %c0_86] : memref<16x4x32xf32, #tpu.memory_space<vmem>>, vector<1x4x32xf32>
    %263 = vector.shape_cast %262 : vector<1x4x32xf32> to vector<4x32xf32>
    %264 = vector.shape_cast %261 : vector<4x32xf32> to vector<1x4x32xf32>
    tpu.vector_store %arg11[%c13_84, %c0_85, %c0_86], %264 {strides = array<i32>} : memref<16x4x32xf32, #tpu.memory_space<vmem>>, vector<1x4x32xf32>,
    %c0_87 = arith.constant 0 : index
    %c3 = arith.constant 3 : index
    %c0_88 = arith.constant 0 : index
    %c0_89 = arith.constant 0 : index
    %265 = vector.load %arg2[%c0_87, %c3, %c0_88, %c0_89] : memref<1x16x4x96xf32, #tpu.memory_space<vmem>>, vector<1x1x4x96xf32>
    %266 = vector.shape_cast %265 : vector<1x1x4x96xf32> to vector<4x96xf32>
    %267 = arith.addf %266, %7 : vector<4x96xf32>
    %c0_90 = arith.constant 0 : index
    %c12 = arith.constant 12 : index
    %c0_91 = arith.constant 0 : index
    %c0_92 = arith.constant 0 : index
    %268 = vector.load %arg3[%c0_90, %c12, %c0_91, %c0_92] : memref<1x16x4x96xf32, #tpu.memory_space<vmem>>, vector<1x1x4x96xf32>
    %269 = vector.shape_cast %268 : vector<1x1x4x96xf32> to vector<4x96xf32>
    %270 = arith.addf %269, %10 : vector<4x96xf32>
    %cst_93 = arith.constant dense<0.000000e+00> : vector<4x96xf32>
    %271 = tpu.matmul %253, %3, %cst_93 {dimension_numbers = #tpu.dot_dimension_numbers<[1], [0], [0], [1], [0, 0, 1, 1], [], []>} : vector<4x32xf32>, vector<32x96xf32>, vector<4x96xf32> -> vector<4x96xf32>
    %272 = vector.extract_strided_slice %267 {offsets = [0, 0], sizes = [4, 32], strides = [1, 1]} : vector<4x96xf32> to vector<4x32xf32>
    %273 = vector.extract_strided_slice %271 {offsets = [0, 0], sizes = [4, 32], strides = [1, 1]} : vector<4x96xf32> to vector<4x32xf32>
    %274 = arith.addf %272, %273 : vector<4x32xf32>
    %275 = arith.negf %274 : vector<4x32xf32>
    %276 = math.exp %275 : vector<4x32xf32>
    %cst_94 = arith.constant 1.000000e+00 : f32
    %277 = vector.broadcast %cst_94 : f32 to vector<4x32xf32>
    %278 = arith.addf %277, %276 : vector<4x32xf32>
    %279 = arith.divf %277, %278 : vector<4x32xf32>
    %280 = vector.extract_strided_slice %267 {offsets = [0, 32], sizes = [4, 32], strides = [1, 1]} : vector<4x96xf32> to vector<4x32xf32>
    %281 = vector.extract_strided_slice %271 {offsets = [0, 32], sizes = [4, 32], strides = [1, 1]} : vector<4x96xf32> to vector<4x32xf32>
    %282 = arith.addf %280, %281 : vector<4x32xf32>
    %283 = arith.negf %282 : vector<4x32xf32>
    %284 = math.exp %283 : vector<4x32xf32>
    %cst_95 = arith.constant 1.000000e+00 : f32
    %285 = vector.broadcast %cst_95 : f32 to vector<4x32xf32>
    %286 = arith.addf %285, %284 : vector<4x32xf32>
    %287 = arith.divf %285, %286 : vector<4x32xf32>
    %288 = vector.extract_strided_slice %267 {offsets = [0, 64], sizes = [4, 32], strides = [1, 1]} : vector<4x96xf32> to vector<4x32xf32>
    %289 = vector.extract_strided_slice %271 {offsets = [0, 64], sizes = [4, 32], strides = [1, 1]} : vector<4x96xf32> to vector<4x32xf32>
    %290 = arith.addf %289, %13 : vector<4x32xf32>
    %291 = arith.mulf %279, %290 : vector<4x32xf32>
    %292 = arith.addf %288, %291 : vector<4x32xf32>
    %293 = math.tanh %292 : vector<4x32xf32>
    %cst_96 = arith.constant 1.000000e+00 : f32
    %294 = vector.broadcast %cst_96 : f32 to vector<4x32xf32>
    %295 = arith.subf %294, %287 : vector<4x32xf32>
    %296 = arith.mulf %295, %293 : vector<4x32xf32>
    %297 = arith.mulf %287, %253 : vector<4x32xf32>
    %298 = arith.addf %296, %297 : vector<4x32xf32>
    %cst_97 = arith.constant dense<0.000000e+00> : vector<4x96xf32>
    %299 = tpu.matmul %254, %4, %cst_97 {dimension_numbers = #tpu.dot_dimension_numbers<[1], [0], [0], [1], [0, 0, 1, 1], [], []>} : vector<4x32xf32>, vector<32x96xf32>, vector<4x96xf32> -> vector<4x96xf32>
    %300 = vector.extract_strided_slice %270 {offsets = [0, 0], sizes = [4, 32], strides = [1, 1]} : vector<4x96xf32> to vector<4x32xf32>
    %301 = vector.extract_strided_slice %299 {offsets = [0, 0], sizes = [4, 32], strides = [1, 1]} : vector<4x96xf32> to vector<4x32xf32>
    %302 = arith.addf %300, %301 : vector<4x32xf32>
    %303 = arith.negf %302 : vector<4x32xf32>
    %304 = math.exp %303 : vector<4x32xf32>
    %cst_98 = arith.constant 1.000000e+00 : f32
    %305 = vector.broadcast %cst_98 : f32 to vector<4x32xf32>
    %306 = arith.addf %305, %304 : vector<4x32xf32>
    %307 = arith.divf %305, %306 : vector<4x32xf32>
    %308 = vector.extract_strided_slice %270 {offsets = [0, 32], sizes = [4, 32], strides = [1, 1]} : vector<4x96xf32> to vector<4x32xf32>
    %309 = vector.extract_strided_slice %299 {offsets = [0, 32], sizes = [4, 32], strides = [1, 1]} : vector<4x96xf32> to vector<4x32xf32>
    %310 = arith.addf %308, %309 : vector<4x32xf32>
    %311 = arith.negf %310 : vector<4x32xf32>
    %312 = math.exp %311 : vector<4x32xf32>
    %cst_99 = arith.constant 1.000000e+00 : f32
    %313 = vector.broadcast %cst_99 : f32 to vector<4x32xf32>
    %314 = arith.addf %313, %312 : vector<4x32xf32>
    %315 = arith.divf %313, %314 : vector<4x32xf32>
    %316 = vector.extract_strided_slice %270 {offsets = [0, 64], sizes = [4, 32], strides = [1, 1]} : vector<4x96xf32> to vector<4x32xf32>
    %317 = vector.extract_strided_slice %299 {offsets = [0, 64], sizes = [4, 32], strides = [1, 1]} : vector<4x96xf32> to vector<4x32xf32>
    %318 = arith.addf %317, %16 : vector<4x32xf32>
    %319 = arith.mulf %307, %318 : vector<4x32xf32>
    %320 = arith.addf %316, %319 : vector<4x32xf32>
    %321 = math.tanh %320 : vector<4x32xf32>
    %cst_100 = arith.constant 1.000000e+00 : f32
    %322 = vector.broadcast %cst_100 : f32 to vector<4x32xf32>
    %323 = arith.subf %322, %315 : vector<4x32xf32>
    %324 = arith.mulf %323, %321 : vector<4x32xf32>
    %325 = arith.mulf %315, %254 : vector<4x32xf32>
    %326 = arith.addf %324, %325 : vector<4x32xf32>
    %c3_i32 = arith.constant 3 : i32
    %327 = arith.addi %20, %c3_i32 : i32
    %328 = vector.broadcast %327 : i32 to vector<4x32xi32>
    %329 = arith.cmpi slt, %328, %19 : vector<4x32xi32>
    %c12_i32 = arith.constant 12 : i32
    %330 = arith.addi %22, %c12_i32 : i32
    %331 = vector.broadcast %330 : i32 to vector<4x32xi32>
    %332 = arith.cmpi slt, %331, %19 : vector<4x32xi32>
    %333 = arith.select %329, %298, %253 : vector<4x32xi1>, vector<4x32xf32>
    %334 = arith.select %332, %326, %254 : vector<4x32xi1>, vector<4x32xf32>
    %cst_101 = arith.constant 0.000000e+00 : f32
    %335 = vector.broadcast %cst_101 : f32 to vector<4x32xf32>
    %336 = arith.select %329, %298, %335 : vector<4x32xi1>, vector<4x32xf32>
    %c3_102 = arith.constant 3 : index
    %c0_103 = arith.constant 0 : index
    %c0_104 = arith.constant 0 : index
    %337 = vector.load %arg10[%c3_102, %c0_103, %c0_104] : memref<16x4x32xf32, #tpu.memory_space<vmem>>, vector<1x4x32xf32>
    %338 = vector.shape_cast %337 : vector<1x4x32xf32> to vector<4x32xf32>
    %339 = vector.shape_cast %336 : vector<4x32xf32> to vector<1x4x32xf32>
    tpu.vector_store %arg10[%c3_102, %c0_103, %c0_104], %339 {strides = array<i32>} : memref<16x4x32xf32, #tpu.memory_space<vmem>>, vector<1x4x32xf32>,
    %cst_105 = arith.constant 0.000000e+00 : f32
    %340 = vector.broadcast %cst_105 : f32 to vector<4x32xf32>
    %341 = arith.select %332, %326, %340 : vector<4x32xi1>, vector<4x32xf32>
    %c12_106 = arith.constant 12 : index
    %c0_107 = arith.constant 0 : index
    %c0_108 = arith.constant 0 : index
    %342 = vector.load %arg11[%c12_106, %c0_107, %c0_108] : memref<16x4x32xf32, #tpu.memory_space<vmem>>, vector<1x4x32xf32>
    %343 = vector.shape_cast %342 : vector<1x4x32xf32> to vector<4x32xf32>
    %344 = vector.shape_cast %341 : vector<4x32xf32> to vector<1x4x32xf32>
    tpu.vector_store %arg11[%c12_106, %c0_107, %c0_108], %344 {strides = array<i32>} : memref<16x4x32xf32, #tpu.memory_space<vmem>>, vector<1x4x32xf32>,
    %c0_109 = arith.constant 0 : index
    %c4 = arith.constant 4 : index
    %c0_110 = arith.constant 0 : index
    %c0_111 = arith.constant 0 : index
    %345 = vector.load %arg2[%c0_109, %c4, %c0_110, %c0_111] : memref<1x16x4x96xf32, #tpu.memory_space<vmem>>, vector<1x1x4x96xf32>
    %346 = vector.shape_cast %345 : vector<1x1x4x96xf32> to vector<4x96xf32>
    %347 = arith.addf %346, %7 : vector<4x96xf32>
    %c0_112 = arith.constant 0 : index
    %c11 = arith.constant 11 : index
    %c0_113 = arith.constant 0 : index
    %c0_114 = arith.constant 0 : index
    %348 = vector.load %arg3[%c0_112, %c11, %c0_113, %c0_114] : memref<1x16x4x96xf32, #tpu.memory_space<vmem>>, vector<1x1x4x96xf32>
    %349 = vector.shape_cast %348 : vector<1x1x4x96xf32> to vector<4x96xf32>
    %350 = arith.addf %349, %10 : vector<4x96xf32>
    %cst_115 = arith.constant dense<0.000000e+00> : vector<4x96xf32>
    %351 = tpu.matmul %333, %3, %cst_115 {dimension_numbers = #tpu.dot_dimension_numbers<[1], [0], [0], [1], [0, 0, 1, 1], [], []>} : vector<4x32xf32>, vector<32x96xf32>, vector<4x96xf32> -> vector<4x96xf32>
    %352 = vector.extract_strided_slice %347 {offsets = [0, 0], sizes = [4, 32], strides = [1, 1]} : vector<4x96xf32> to vector<4x32xf32>
    %353 = vector.extract_strided_slice %351 {offsets = [0, 0], sizes = [4, 32], strides = [1, 1]} : vector<4x96xf32> to vector<4x32xf32>
    %354 = arith.addf %352, %353 : vector<4x32xf32>
    %355 = arith.negf %354 : vector<4x32xf32>
    %356 = math.exp %355 : vector<4x32xf32>
    %cst_116 = arith.constant 1.000000e+00 : f32
    %357 = vector.broadcast %cst_116 : f32 to vector<4x32xf32>
    %358 = arith.addf %357, %356 : vector<4x32xf32>
    %359 = arith.divf %357, %358 : vector<4x32xf32>
    %360 = vector.extract_strided_slice %347 {offsets = [0, 32], sizes = [4, 32], strides = [1, 1]} : vector<4x96xf32> to vector<4x32xf32>
    %361 = vector.extract_strided_slice %351 {offsets = [0, 32], sizes = [4, 32], strides = [1, 1]} : vector<4x96xf32> to vector<4x32xf32>
    %362 = arith.addf %360, %361 : vector<4x32xf32>
    %363 = arith.negf %362 : vector<4x32xf32>
    %364 = math.exp %363 : vector<4x32xf32>
    %cst_117 = arith.constant 1.000000e+00 : f32
    %365 = vector.broadcast %cst_117 : f32 to vector<4x32xf32>
    %366 = arith.addf %365, %364 : vector<4x32xf32>
    %367 = arith.divf %365, %366 : vector<4x32xf32>
    %368 = vector.extract_strided_slice %347 {offsets = [0, 64], sizes = [4, 32], strides = [1, 1]} : vector<4x96xf32> to vector<4x32xf32>
    %369 = vector.extract_strided_slice %351 {offsets = [0, 64], sizes = [4, 32], strides = [1, 1]} : vector<4x96xf32> to vector<4x32xf32>
    %370 = arith.addf %369, %13 : vector<4x32xf32>
    %371 = arith.mulf %359, %370 : vector<4x32xf32>
    %372 = arith.addf %368, %371 : vector<4x32xf32>
    %373 = math.tanh %372 : vector<4x32xf32>
    %cst_118 = arith.constant 1.000000e+00 : f32
    %374 = vector.broadcast %cst_118 : f32 to vector<4x32xf32>
    %375 = arith.subf %374, %367 : vector<4x32xf32>
    %376 = arith.mulf %375, %373 : vector<4x32xf32>
    %377 = arith.mulf %367, %333 : vector<4x32xf32>
    %378 = arith.addf %376, %377 : vector<4x32xf32>
    %cst_119 = arith.constant dense<0.000000e+00> : vector<4x96xf32>
    %379 = tpu.matmul %334, %4, %cst_119 {dimension_numbers = #tpu.dot_dimension_numbers<[1], [0], [0], [1], [0, 0, 1, 1], [], []>} : vector<4x32xf32>, vector<32x96xf32>, vector<4x96xf32> -> vector<4x96xf32>
    %380 = vector.extract_strided_slice %350 {offsets = [0, 0], sizes = [4, 32], strides = [1, 1]} : vector<4x96xf32> to vector<4x32xf32>
    %381 = vector.extract_strided_slice %379 {offsets = [0, 0], sizes = [4, 32], strides = [1, 1]} : vector<4x96xf32> to vector<4x32xf32>
    %382 = arith.addf %380, %381 : vector<4x32xf32>
    %383 = arith.negf %382 : vector<4x32xf32>
    %384 = math.exp %383 : vector<4x32xf32>
    %cst_120 = arith.constant 1.000000e+00 : f32
    %385 = vector.broadcast %cst_120 : f32 to vector<4x32xf32>
    %386 = arith.addf %385, %384 : vector<4x32xf32>
    %387 = arith.divf %385, %386 : vector<4x32xf32>
    %388 = vector.extract_strided_slice %350 {offsets = [0, 32], sizes = [4, 32], strides = [1, 1]} : vector<4x96xf32> to vector<4x32xf32>
    %389 = vector.extract_strided_slice %379 {offsets = [0, 32], sizes = [4, 32], strides = [1, 1]} : vector<4x96xf32> to vector<4x32xf32>
    %390 = arith.addf %388, %389 : vector<4x32xf32>
    %391 = arith.negf %390 : vector<4x32xf32>
    %392 = math.exp %391 : vector<4x32xf32>
    %cst_121 = arith.constant 1.000000e+00 : f32
    %393 = vector.broadcast %cst_121 : f32 to vector<4x32xf32>
    %394 = arith.addf %393, %392 : vector<4x32xf32>
    %395 = arith.divf %393, %394 : vector<4x32xf32>
    %396 = vector.extract_strided_slice %350 {offsets = [0, 64], sizes = [4, 32], strides = [1, 1]} : vector<4x96xf32> to vector<4x32xf32>
    %397 = vector.extract_strided_slice %379 {offsets = [0, 64], sizes = [4, 32], strides = [1, 1]} : vector<4x96xf32> to vector<4x32xf32>
    %398 = arith.addf %397, %16 : vector<4x32xf32>
    %399 = arith.mulf %387, %398 : vector<4x32xf32>
    %400 = arith.addf %396, %399 : vector<4x32xf32>
    %401 = math.tanh %400 : vector<4x32xf32>
    %cst_122 = arith.constant 1.000000e+00 : f32
    %402 = vector.broadcast %cst_122 : f32 to vector<4x32xf32>
    %403 = arith.subf %402, %395 : vector<4x32xf32>
    %404 = arith.mulf %403, %401 : vector<4x32xf32>
    %405 = arith.mulf %395, %334 : vector<4x32xf32>
    %406 = arith.addf %404, %405 : vector<4x32xf32>
    %c4_i32 = arith.constant 4 : i32
    %407 = arith.addi %20, %c4_i32 : i32
    %408 = vector.broadcast %407 : i32 to vector<4x32xi32>
    %409 = arith.cmpi slt, %408, %19 : vector<4x32xi32>
    %c11_i32 = arith.constant 11 : i32
    %410 = arith.addi %22, %c11_i32 : i32
    %411 = vector.broadcast %410 : i32 to vector<4x32xi32>
    %412 = arith.cmpi slt, %411, %19 : vector<4x32xi32>
    %413 = arith.select %409, %378, %333 : vector<4x32xi1>, vector<4x32xf32>
    %414 = arith.select %412, %406, %334 : vector<4x32xi1>, vector<4x32xf32>
    %cst_123 = arith.constant 0.000000e+00 : f32
    %415 = vector.broadcast %cst_123 : f32 to vector<4x32xf32>
    %416 = arith.select %409, %378, %415 : vector<4x32xi1>, vector<4x32xf32>
    %c4_124 = arith.constant 4 : index
    %c0_125 = arith.constant 0 : index
    %c0_126 = arith.constant 0 : index
    %417 = vector.load %arg10[%c4_124, %c0_125, %c0_126] : memref<16x4x32xf32, #tpu.memory_space<vmem>>, vector<1x4x32xf32>
    %418 = vector.shape_cast %417 : vector<1x4x32xf32> to vector<4x32xf32>
    %419 = vector.shape_cast %416 : vector<4x32xf32> to vector<1x4x32xf32>
    tpu.vector_store %arg10[%c4_124, %c0_125, %c0_126], %419 {strides = array<i32>} : memref<16x4x32xf32, #tpu.memory_space<vmem>>, vector<1x4x32xf32>,
    %cst_127 = arith.constant 0.000000e+00 : f32
    %420 = vector.broadcast %cst_127 : f32 to vector<4x32xf32>
    %421 = arith.select %412, %406, %420 : vector<4x32xi1>, vector<4x32xf32>
    %c11_128 = arith.constant 11 : index
    %c0_129 = arith.constant 0 : index
    %c0_130 = arith.constant 0 : index
    %422 = vector.load %arg11[%c11_128, %c0_129, %c0_130] : memref<16x4x32xf32, #tpu.memory_space<vmem>>, vector<1x4x32xf32>
    %423 = vector.shape_cast %422 : vector<1x4x32xf32> to vector<4x32xf32>
    %424 = vector.shape_cast %421 : vector<4x32xf32> to vector<1x4x32xf32>
    tpu.vector_store %arg11[%c11_128, %c0_129, %c0_130], %424 {strides = array<i32>} : memref<16x4x32xf32, #tpu.memory_space<vmem>>, vector<1x4x32xf32>,
    %c0_131 = arith.constant 0 : index
    %c5 = arith.constant 5 : index
    %c0_132 = arith.constant 0 : index
    %c0_133 = arith.constant 0 : index
    %425 = vector.load %arg2[%c0_131, %c5, %c0_132, %c0_133] : memref<1x16x4x96xf32, #tpu.memory_space<vmem>>, vector<1x1x4x96xf32>
    %426 = vector.shape_cast %425 : vector<1x1x4x96xf32> to vector<4x96xf32>
    %427 = arith.addf %426, %7 : vector<4x96xf32>
    %c0_134 = arith.constant 0 : index
    %c10 = arith.constant 10 : index
    %c0_135 = arith.constant 0 : index
    %c0_136 = arith.constant 0 : index
    %428 = vector.load %arg3[%c0_134, %c10, %c0_135, %c0_136] : memref<1x16x4x96xf32, #tpu.memory_space<vmem>>, vector<1x1x4x96xf32>
    %429 = vector.shape_cast %428 : vector<1x1x4x96xf32> to vector<4x96xf32>
    %430 = arith.addf %429, %10 : vector<4x96xf32>
    %cst_137 = arith.constant dense<0.000000e+00> : vector<4x96xf32>
    %431 = tpu.matmul %413, %3, %cst_137 {dimension_numbers = #tpu.dot_dimension_numbers<[1], [0], [0], [1], [0, 0, 1, 1], [], []>} : vector<4x32xf32>, vector<32x96xf32>, vector<4x96xf32> -> vector<4x96xf32>
    %432 = vector.extract_strided_slice %427 {offsets = [0, 0], sizes = [4, 32], strides = [1, 1]} : vector<4x96xf32> to vector<4x32xf32>
    %433 = vector.extract_strided_slice %431 {offsets = [0, 0], sizes = [4, 32], strides = [1, 1]} : vector<4x96xf32> to vector<4x32xf32>
    %434 = arith.addf %432, %433 : vector<4x32xf32>
    %435 = arith.negf %434 : vector<4x32xf32>
    %436 = math.exp %435 : vector<4x32xf32>
    %cst_138 = arith.constant 1.000000e+00 : f32
    %437 = vector.broadcast %cst_138 : f32 to vector<4x32xf32>
    %438 = arith.addf %437, %436 : vector<4x32xf32>
    %439 = arith.divf %437, %438 : vector<4x32xf32>
    %440 = vector.extract_strided_slice %427 {offsets = [0, 32], sizes = [4, 32], strides = [1, 1]} : vector<4x96xf32> to vector<4x32xf32>
    %441 = vector.extract_strided_slice %431 {offsets = [0, 32], sizes = [4, 32], strides = [1, 1]} : vector<4x96xf32> to vector<4x32xf32>
    %442 = arith.addf %440, %441 : vector<4x32xf32>
    %443 = arith.negf %442 : vector<4x32xf32>
    %444 = math.exp %443 : vector<4x32xf32>
    %cst_139 = arith.constant 1.000000e+00 : f32
    %445 = vector.broadcast %cst_139 : f32 to vector<4x32xf32>
    %446 = arith.addf %445, %444 : vector<4x32xf32>
    %447 = arith.divf %445, %446 : vector<4x32xf32>
    %448 = vector.extract_strided_slice %427 {offsets = [0, 64], sizes = [4, 32], strides = [1, 1]} : vector<4x96xf32> to vector<4x32xf32>
    %449 = vector.extract_strided_slice %431 {offsets = [0, 64], sizes = [4, 32], strides = [1, 1]} : vector<4x96xf32> to vector<4x32xf32>
    %450 = arith.addf %449, %13 : vector<4x32xf32>
    %451 = arith.mulf %439, %450 : vector<4x32xf32>
    %452 = arith.addf %448, %451 : vector<4x32xf32>
    %453 = math.tanh %452 : vector<4x32xf32>
    %cst_140 = arith.constant 1.000000e+00 : f32
    %454 = vector.broadcast %cst_140 : f32 to vector<4x32xf32>
    %455 = arith.subf %454, %447 : vector<4x32xf32>
    %456 = arith.mulf %455, %453 : vector<4x32xf32>
    %457 = arith.mulf %447, %413 : vector<4x32xf32>
    %458 = arith.addf %456, %457 : vector<4x32xf32>
    %cst_141 = arith.constant dense<0.000000e+00> : vector<4x96xf32>
    %459 = tpu.matmul %414, %4, %cst_141 {dimension_numbers = #tpu.dot_dimension_numbers<[1], [0], [0], [1], [0, 0, 1, 1], [], []>} : vector<4x32xf32>, vector<32x96xf32>, vector<4x96xf32> -> vector<4x96xf32>
    %460 = vector.extract_strided_slice %430 {offsets = [0, 0], sizes = [4, 32], strides = [1, 1]} : vector<4x96xf32> to vector<4x32xf32>
    %461 = vector.extract_strided_slice %459 {offsets = [0, 0], sizes = [4, 32], strides = [1, 1]} : vector<4x96xf32> to vector<4x32xf32>
    %462 = arith.addf %460, %461 : vector<4x32xf32>
    %463 = arith.negf %462 : vector<4x32xf32>
    %464 = math.exp %463 : vector<4x32xf32>
    %cst_142 = arith.constant 1.000000e+00 : f32
    %465 = vector.broadcast %cst_142 : f32 to vector<4x32xf32>
    %466 = arith.addf %465, %464 : vector<4x32xf32>
    %467 = arith.divf %465, %466 : vector<4x32xf32>
    %468 = vector.extract_strided_slice %430 {offsets = [0, 32], sizes = [4, 32], strides = [1, 1]} : vector<4x96xf32> to vector<4x32xf32>
    %469 = vector.extract_strided_slice %459 {offsets = [0, 32], sizes = [4, 32], strides = [1, 1]} : vector<4x96xf32> to vector<4x32xf32>
    %470 = arith.addf %468, %469 : vector<4x32xf32>
    %471 = arith.negf %470 : vector<4x32xf32>
    %472 = math.exp %471 : vector<4x32xf32>
    %cst_143 = arith.constant 1.000000e+00 : f32
    %473 = vector.broadcast %cst_143 : f32 to vector<4x32xf32>
    %474 = arith.addf %473, %472 : vector<4x32xf32>
    %475 = arith.divf %473, %474 : vector<4x32xf32>
    %476 = vector.extract_strided_slice %430 {offsets = [0, 64], sizes = [4, 32], strides = [1, 1]} : vector<4x96xf32> to vector<4x32xf32>
    %477 = vector.extract_strided_slice %459 {offsets = [0, 64], sizes = [4, 32], strides = [1, 1]} : vector<4x96xf32> to vector<4x32xf32>
    %478 = arith.addf %477, %16 : vector<4x32xf32>
    %479 = arith.mulf %467, %478 : vector<4x32xf32>
    %480 = arith.addf %476, %479 : vector<4x32xf32>
    %481 = math.tanh %480 : vector<4x32xf32>
    %cst_144 = arith.constant 1.000000e+00 : f32
    %482 = vector.broadcast %cst_144 : f32 to vector<4x32xf32>
    %483 = arith.subf %482, %475 : vector<4x32xf32>
    %484 = arith.mulf %483, %481 : vector<4x32xf32>
    %485 = arith.mulf %475, %414 : vector<4x32xf32>
    %486 = arith.addf %484, %485 : vector<4x32xf32>
    %c5_i32 = arith.constant 5 : i32
    %487 = arith.addi %20, %c5_i32 : i32
    %488 = vector.broadcast %487 : i32 to vector<4x32xi32>
    %489 = arith.cmpi slt, %488, %19 : vector<4x32xi32>
    %c10_i32 = arith.constant 10 : i32
    %490 = arith.addi %22, %c10_i32 : i32
    %491 = vector.broadcast %490 : i32 to vector<4x32xi32>
    %492 = arith.cmpi slt, %491, %19 : vector<4x32xi32>
    %493 = arith.select %489, %458, %413 : vector<4x32xi1>, vector<4x32xf32>
    %494 = arith.select %492, %486, %414 : vector<4x32xi1>, vector<4x32xf32>
    %cst_145 = arith.constant 0.000000e+00 : f32
    %495 = vector.broadcast %cst_145 : f32 to vector<4x32xf32>
    %496 = arith.select %489, %458, %495 : vector<4x32xi1>, vector<4x32xf32>
    %c5_146 = arith.constant 5 : index
    %c0_147 = arith.constant 0 : index
    %c0_148 = arith.constant 0 : index
    %497 = vector.load %arg10[%c5_146, %c0_147, %c0_148] : memref<16x4x32xf32, #tpu.memory_space<vmem>>, vector<1x4x32xf32>
    %498 = vector.shape_cast %497 : vector<1x4x32xf32> to vector<4x32xf32>
    %499 = vector.shape_cast %496 : vector<4x32xf32> to vector<1x4x32xf32>
    tpu.vector_store %arg10[%c5_146, %c0_147, %c0_148], %499 {strides = array<i32>} : memref<16x4x32xf32, #tpu.memory_space<vmem>>, vector<1x4x32xf32>,
    %cst_149 = arith.constant 0.000000e+00 : f32
    %500 = vector.broadcast %cst_149 : f32 to vector<4x32xf32>
    %501 = arith.select %492, %486, %500 : vector<4x32xi1>, vector<4x32xf32>
    %c10_150 = arith.constant 10 : index
    %c0_151 = arith.constant 0 : index
    %c0_152 = arith.constant 0 : index
    %502 = vector.load %arg11[%c10_150, %c0_151, %c0_152] : memref<16x4x32xf32, #tpu.memory_space<vmem>>, vector<1x4x32xf32>
    %503 = vector.shape_cast %502 : vector<1x4x32xf32> to vector<4x32xf32>
    %504 = vector.shape_cast %501 : vector<4x32xf32> to vector<1x4x32xf32>
    tpu.vector_store %arg11[%c10_150, %c0_151, %c0_152], %504 {strides = array<i32>} : memref<16x4x32xf32, #tpu.memory_space<vmem>>, vector<1x4x32xf32>,
    %c0_153 = arith.constant 0 : index
    %c6 = arith.constant 6 : index
    %c0_154 = arith.constant 0 : index
    %c0_155 = arith.constant 0 : index
    %505 = vector.load %arg2[%c0_153, %c6, %c0_154, %c0_155] : memref<1x16x4x96xf32, #tpu.memory_space<vmem>>, vector<1x1x4x96xf32>
    %506 = vector.shape_cast %505 : vector<1x1x4x96xf32> to vector<4x96xf32>
    %507 = arith.addf %506, %7 : vector<4x96xf32>
    %c0_156 = arith.constant 0 : index
    %c9 = arith.constant 9 : index
    %c0_157 = arith.constant 0 : index
    %c0_158 = arith.constant 0 : index
    %508 = vector.load %arg3[%c0_156, %c9, %c0_157, %c0_158] : memref<1x16x4x96xf32, #tpu.memory_space<vmem>>, vector<1x1x4x96xf32>
    %509 = vector.shape_cast %508 : vector<1x1x4x96xf32> to vector<4x96xf32>
    %510 = arith.addf %509, %10 : vector<4x96xf32>
    %cst_159 = arith.constant dense<0.000000e+00> : vector<4x96xf32>
    %511 = tpu.matmul %493, %3, %cst_159 {dimension_numbers = #tpu.dot_dimension_numbers<[1], [0], [0], [1], [0, 0, 1, 1], [], []>} : vector<4x32xf32>, vector<32x96xf32>, vector<4x96xf32> -> vector<4x96xf32>
    %512 = vector.extract_strided_slice %507 {offsets = [0, 0], sizes = [4, 32], strides = [1, 1]} : vector<4x96xf32> to vector<4x32xf32>
    %513 = vector.extract_strided_slice %511 {offsets = [0, 0], sizes = [4, 32], strides = [1, 1]} : vector<4x96xf32> to vector<4x32xf32>
    %514 = arith.addf %512, %513 : vector<4x32xf32>
    %515 = arith.negf %514 : vector<4x32xf32>
    %516 = math.exp %515 : vector<4x32xf32>
    %cst_160 = arith.constant 1.000000e+00 : f32
    %517 = vector.broadcast %cst_160 : f32 to vector<4x32xf32>
    %518 = arith.addf %517, %516 : vector<4x32xf32>
    %519 = arith.divf %517, %518 : vector<4x32xf32>
    %520 = vector.extract_strided_slice %507 {offsets = [0, 32], sizes = [4, 32], strides = [1, 1]} : vector<4x96xf32> to vector<4x32xf32>
    %521 = vector.extract_strided_slice %511 {offsets = [0, 32], sizes = [4, 32], strides = [1, 1]} : vector<4x96xf32> to vector<4x32xf32>
    %522 = arith.addf %520, %521 : vector<4x32xf32>
    %523 = arith.negf %522 : vector<4x32xf32>
    %524 = math.exp %523 : vector<4x32xf32>
    %cst_161 = arith.constant 1.000000e+00 : f32
    %525 = vector.broadcast %cst_161 : f32 to vector<4x32xf32>
    %526 = arith.addf %525, %524 : vector<4x32xf32>
    %527 = arith.divf %525, %526 : vector<4x32xf32>
    %528 = vector.extract_strided_slice %507 {offsets = [0, 64], sizes = [4, 32], strides = [1, 1]} : vector<4x96xf32> to vector<4x32xf32>
    %529 = vector.extract_strided_slice %511 {offsets = [0, 64], sizes = [4, 32], strides = [1, 1]} : vector<4x96xf32> to vector<4x32xf32>
    %530 = arith.addf %529, %13 : vector<4x32xf32>
    %531 = arith.mulf %519, %530 : vector<4x32xf32>
    %532 = arith.addf %528, %531 : vector<4x32xf32>
    %533 = math.tanh %532 : vector<4x32xf32>
    %cst_162 = arith.constant 1.000000e+00 : f32
    %534 = vector.broadcast %cst_162 : f32 to vector<4x32xf32>
    %535 = arith.subf %534, %527 : vector<4x32xf32>
    %536 = arith.mulf %535, %533 : vector<4x32xf32>
    %537 = arith.mulf %527, %493 : vector<4x32xf32>
    %538 = arith.addf %536, %537 : vector<4x32xf32>
    %cst_163 = arith.constant dense<0.000000e+00> : vector<4x96xf32>
    %539 = tpu.matmul %494, %4, %cst_163 {dimension_numbers = #tpu.dot_dimension_numbers<[1], [0], [0], [1], [0, 0, 1, 1], [], []>} : vector<4x32xf32>, vector<32x96xf32>, vector<4x96xf32> -> vector<4x96xf32>
    %540 = vector.extract_strided_slice %510 {offsets = [0, 0], sizes = [4, 32], strides = [1, 1]} : vector<4x96xf32> to vector<4x32xf32>
    %541 = vector.extract_strided_slice %539 {offsets = [0, 0], sizes = [4, 32], strides = [1, 1]} : vector<4x96xf32> to vector<4x32xf32>
    %542 = arith.addf %540, %541 : vector<4x32xf32>
    %543 = arith.negf %542 : vector<4x32xf32>
    %544 = math.exp %543 : vector<4x32xf32>
    %cst_164 = arith.constant 1.000000e+00 : f32
    %545 = vector.broadcast %cst_164 : f32 to vector<4x32xf32>
    %546 = arith.addf %545, %544 : vector<4x32xf32>
    %547 = arith.divf %545, %546 : vector<4x32xf32>
    %548 = vector.extract_strided_slice %510 {offsets = [0, 32], sizes = [4, 32], strides = [1, 1]} : vector<4x96xf32> to vector<4x32xf32>
    %549 = vector.extract_strided_slice %539 {offsets = [0, 32], sizes = [4, 32], strides = [1, 1]} : vector<4x96xf32> to vector<4x32xf32>
    %550 = arith.addf %548, %549 : vector<4x32xf32>
    %551 = arith.negf %550 : vector<4x32xf32>
    %552 = math.exp %551 : vector<4x32xf32>
    %cst_165 = arith.constant 1.000000e+00 : f32
    %553 = vector.broadcast %cst_165 : f32 to vector<4x32xf32>
    %554 = arith.addf %553, %552 : vector<4x32xf32>
    %555 = arith.divf %553, %554 : vector<4x32xf32>
    %556 = vector.extract_strided_slice %510 {offsets = [0, 64], sizes = [4, 32], strides = [1, 1]} : vector<4x96xf32> to vector<4x32xf32>
    %557 = vector.extract_strided_slice %539 {offsets = [0, 64], sizes = [4, 32], strides = [1, 1]} : vector<4x96xf32> to vector<4x32xf32>
    %558 = arith.addf %557, %16 : vector<4x32xf32>
    %559 = arith.mulf %547, %558 : vector<4x32xf32>
    %560 = arith.addf %556, %559 : vector<4x32xf32>
    %561 = math.tanh %560 : vector<4x32xf32>
    %cst_166 = arith.constant 1.000000e+00 : f32
    %562 = vector.broadcast %cst_166 : f32 to vector<4x32xf32>
    %563 = arith.subf %562, %555 : vector<4x32xf32>
    %564 = arith.mulf %563, %561 : vector<4x32xf32>
    %565 = arith.mulf %555, %494 : vector<4x32xf32>
    %566 = arith.addf %564, %565 : vector<4x32xf32>
    %c6_i32 = arith.constant 6 : i32
    %567 = arith.addi %20, %c6_i32 : i32
    %568 = vector.broadcast %567 : i32 to vector<4x32xi32>
    %569 = arith.cmpi slt, %568, %19 : vector<4x32xi32>
    %c9_i32 = arith.constant 9 : i32
    %570 = arith.addi %22, %c9_i32 : i32
    %571 = vector.broadcast %570 : i32 to vector<4x32xi32>
    %572 = arith.cmpi slt, %571, %19 : vector<4x32xi32>
    %573 = arith.select %569, %538, %493 : vector<4x32xi1>, vector<4x32xf32>
    %574 = arith.select %572, %566, %494 : vector<4x32xi1>, vector<4x32xf32>
    %cst_167 = arith.constant 0.000000e+00 : f32
    %575 = vector.broadcast %cst_167 : f32 to vector<4x32xf32>
    %576 = arith.select %569, %538, %575 : vector<4x32xi1>, vector<4x32xf32>
    %c6_168 = arith.constant 6 : index
    %c0_169 = arith.constant 0 : index
    %c0_170 = arith.constant 0 : index
    %577 = vector.load %arg10[%c6_168, %c0_169, %c0_170] : memref<16x4x32xf32, #tpu.memory_space<vmem>>, vector<1x4x32xf32>
    %578 = vector.shape_cast %577 : vector<1x4x32xf32> to vector<4x32xf32>
    %579 = vector.shape_cast %576 : vector<4x32xf32> to vector<1x4x32xf32>
    tpu.vector_store %arg10[%c6_168, %c0_169, %c0_170], %579 {strides = array<i32>} : memref<16x4x32xf32, #tpu.memory_space<vmem>>, vector<1x4x32xf32>,
    %cst_171 = arith.constant 0.000000e+00 : f32
    %580 = vector.broadcast %cst_171 : f32 to vector<4x32xf32>
    %581 = arith.select %572, %566, %580 : vector<4x32xi1>, vector<4x32xf32>
    %c9_172 = arith.constant 9 : index
    %c0_173 = arith.constant 0 : index
    %c0_174 = arith.constant 0 : index
    %582 = vector.load %arg11[%c9_172, %c0_173, %c0_174] : memref<16x4x32xf32, #tpu.memory_space<vmem>>, vector<1x4x32xf32>
    %583 = vector.shape_cast %582 : vector<1x4x32xf32> to vector<4x32xf32>
    %584 = vector.shape_cast %581 : vector<4x32xf32> to vector<1x4x32xf32>
    tpu.vector_store %arg11[%c9_172, %c0_173, %c0_174], %584 {strides = array<i32>} : memref<16x4x32xf32, #tpu.memory_space<vmem>>, vector<1x4x32xf32>,
    %c0_175 = arith.constant 0 : index
    %c7 = arith.constant 7 : index
    %c0_176 = arith.constant 0 : index
    %c0_177 = arith.constant 0 : index
    %585 = vector.load %arg2[%c0_175, %c7, %c0_176, %c0_177] : memref<1x16x4x96xf32, #tpu.memory_space<vmem>>, vector<1x1x4x96xf32>
    %586 = vector.shape_cast %585 : vector<1x1x4x96xf32> to vector<4x96xf32>
    %587 = arith.addf %586, %7 : vector<4x96xf32>
    %c0_178 = arith.constant 0 : index
    %c8 = arith.constant 8 : index
    %c0_179 = arith.constant 0 : index
    %c0_180 = arith.constant 0 : index
    %588 = vector.load %arg3[%c0_178, %c8, %c0_179, %c0_180] : memref<1x16x4x96xf32, #tpu.memory_space<vmem>>, vector<1x1x4x96xf32>
    %589 = vector.shape_cast %588 : vector<1x1x4x96xf32> to vector<4x96xf32>
    %590 = arith.addf %589, %10 : vector<4x96xf32>
    %cst_181 = arith.constant dense<0.000000e+00> : vector<4x96xf32>
    %591 = tpu.matmul %573, %3, %cst_181 {dimension_numbers = #tpu.dot_dimension_numbers<[1], [0], [0], [1], [0, 0, 1, 1], [], []>} : vector<4x32xf32>, vector<32x96xf32>, vector<4x96xf32> -> vector<4x96xf32>
    %592 = vector.extract_strided_slice %587 {offsets = [0, 0], sizes = [4, 32], strides = [1, 1]} : vector<4x96xf32> to vector<4x32xf32>
    %593 = vector.extract_strided_slice %591 {offsets = [0, 0], sizes = [4, 32], strides = [1, 1]} : vector<4x96xf32> to vector<4x32xf32>
    %594 = arith.addf %592, %593 : vector<4x32xf32>
    %595 = arith.negf %594 : vector<4x32xf32>
    %596 = math.exp %595 : vector<4x32xf32>
    %cst_182 = arith.constant 1.000000e+00 : f32
    %597 = vector.broadcast %cst_182 : f32 to vector<4x32xf32>
    %598 = arith.addf %597, %596 : vector<4x32xf32>
    %599 = arith.divf %597, %598 : vector<4x32xf32>
    %600 = vector.extract_strided_slice %587 {offsets = [0, 32], sizes = [4, 32], strides = [1, 1]} : vector<4x96xf32> to vector<4x32xf32>
    %601 = vector.extract_strided_slice %591 {offsets = [0, 32], sizes = [4, 32], strides = [1, 1]} : vector<4x96xf32> to vector<4x32xf32>
    %602 = arith.addf %600, %601 : vector<4x32xf32>
    %603 = arith.negf %602 : vector<4x32xf32>
    %604 = math.exp %603 : vector<4x32xf32>
    %cst_183 = arith.constant 1.000000e+00 : f32
    %605 = vector.broadcast %cst_183 : f32 to vector<4x32xf32>
    %606 = arith.addf %605, %604 : vector<4x32xf32>
    %607 = arith.divf %605, %606 : vector<4x32xf32>
    %608 = vector.extract_strided_slice %587 {offsets = [0, 64], sizes = [4, 32], strides = [1, 1]} : vector<4x96xf32> to vector<4x32xf32>
    %609 = vector.extract_strided_slice %591 {offsets = [0, 64], sizes = [4, 32], strides = [1, 1]} : vector<4x96xf32> to vector<4x32xf32>
    %610 = arith.addf %609, %13 : vector<4x32xf32>
    %611 = arith.mulf %599, %610 : vector<4x32xf32>
    %612 = arith.addf %608, %611 : vector<4x32xf32>
    %613 = math.tanh %612 : vector<4x32xf32>
    %cst_184 = arith.constant 1.000000e+00 : f32
    %614 = vector.broadcast %cst_184 : f32 to vector<4x32xf32>
    %615 = arith.subf %614, %607 : vector<4x32xf32>
    %616 = arith.mulf %615, %613 : vector<4x32xf32>
    %617 = arith.mulf %607, %573 : vector<4x32xf32>
    %618 = arith.addf %616, %617 : vector<4x32xf32>
    %cst_185 = arith.constant dense<0.000000e+00> : vector<4x96xf32>
    %619 = tpu.matmul %574, %4, %cst_185 {dimension_numbers = #tpu.dot_dimension_numbers<[1], [0], [0], [1], [0, 0, 1, 1], [], []>} : vector<4x32xf32>, vector<32x96xf32>, vector<4x96xf32> -> vector<4x96xf32>
    %620 = vector.extract_strided_slice %590 {offsets = [0, 0], sizes = [4, 32], strides = [1, 1]} : vector<4x96xf32> to vector<4x32xf32>
    %621 = vector.extract_strided_slice %619 {offsets = [0, 0], sizes = [4, 32], strides = [1, 1]} : vector<4x96xf32> to vector<4x32xf32>
    %622 = arith.addf %620, %621 : vector<4x32xf32>
    %623 = arith.negf %622 : vector<4x32xf32>
    %624 = math.exp %623 : vector<4x32xf32>
    %cst_186 = arith.constant 1.000000e+00 : f32
    %625 = vector.broadcast %cst_186 : f32 to vector<4x32xf32>
    %626 = arith.addf %625, %624 : vector<4x32xf32>
    %627 = arith.divf %625, %626 : vector<4x32xf32>
    %628 = vector.extract_strided_slice %590 {offsets = [0, 32], sizes = [4, 32], strides = [1, 1]} : vector<4x96xf32> to vector<4x32xf32>
    %629 = vector.extract_strided_slice %619 {offsets = [0, 32], sizes = [4, 32], strides = [1, 1]} : vector<4x96xf32> to vector<4x32xf32>
    %630 = arith.addf %628, %629 : vector<4x32xf32>
    %631 = arith.negf %630 : vector<4x32xf32>
    %632 = math.exp %631 : vector<4x32xf32>
    %cst_187 = arith.constant 1.000000e+00 : f32
    %633 = vector.broadcast %cst_187 : f32 to vector<4x32xf32>
    %634 = arith.addf %633, %632 : vector<4x32xf32>
    %635 = arith.divf %633, %634 : vector<4x32xf32>
    %636 = vector.extract_strided_slice %590 {offsets = [0, 64], sizes = [4, 32], strides = [1, 1]} : vector<4x96xf32> to vector<4x32xf32>
    %637 = vector.extract_strided_slice %619 {offsets = [0, 64], sizes = [4, 32], strides = [1, 1]} : vector<4x96xf32> to vector<4x32xf32>
    %638 = arith.addf %637, %16 : vector<4x32xf32>
    %639 = arith.mulf %627, %638 : vector<4x32xf32>
    %640 = arith.addf %636, %639 : vector<4x32xf32>
    %641 = math.tanh %640 : vector<4x32xf32>
    %cst_188 = arith.constant 1.000000e+00 : f32
    %642 = vector.broadcast %cst_188 : f32 to vector<4x32xf32>
    %643 = arith.subf %642, %635 : vector<4x32xf32>
    %644 = arith.mulf %643, %641 : vector<4x32xf32>
    %645 = arith.mulf %635, %574 : vector<4x32xf32>
    %646 = arith.addf %644, %645 : vector<4x32xf32>
    %c7_i32 = arith.constant 7 : i32
    %647 = arith.addi %20, %c7_i32 : i32
    %648 = vector.broadcast %647 : i32 to vector<4x32xi32>
    %649 = arith.cmpi slt, %648, %19 : vector<4x32xi32>
    %c8_i32 = arith.constant 8 : i32
    %650 = arith.addi %22, %c8_i32 : i32
    %651 = vector.broadcast %650 : i32 to vector<4x32xi32>
    %652 = arith.cmpi slt, %651, %19 : vector<4x32xi32>
    %653 = arith.select %649, %618, %573 : vector<4x32xi1>, vector<4x32xf32>
    %654 = arith.select %652, %646, %574 : vector<4x32xi1>, vector<4x32xf32>
    %cst_189 = arith.constant 0.000000e+00 : f32
    %655 = vector.broadcast %cst_189 : f32 to vector<4x32xf32>
    %656 = arith.select %649, %618, %655 : vector<4x32xi1>, vector<4x32xf32>
    %c7_190 = arith.constant 7 : index
    %c0_191 = arith.constant 0 : index
    %c0_192 = arith.constant 0 : index
    %657 = vector.load %arg10[%c7_190, %c0_191, %c0_192] : memref<16x4x32xf32, #tpu.memory_space<vmem>>, vector<1x4x32xf32>
    %658 = vector.shape_cast %657 : vector<1x4x32xf32> to vector<4x32xf32>
    %659 = vector.shape_cast %656 : vector<4x32xf32> to vector<1x4x32xf32>
    tpu.vector_store %arg10[%c7_190, %c0_191, %c0_192], %659 {strides = array<i32>} : memref<16x4x32xf32, #tpu.memory_space<vmem>>, vector<1x4x32xf32>,
    %cst_193 = arith.constant 0.000000e+00 : f32
    %660 = vector.broadcast %cst_193 : f32 to vector<4x32xf32>
    %661 = arith.select %652, %646, %660 : vector<4x32xi1>, vector<4x32xf32>
    %c8_194 = arith.constant 8 : index
    %c0_195 = arith.constant 0 : index
    %c0_196 = arith.constant 0 : index
    %662 = vector.load %arg11[%c8_194, %c0_195, %c0_196] : memref<16x4x32xf32, #tpu.memory_space<vmem>>, vector<1x4x32xf32>
    %663 = vector.shape_cast %662 : vector<1x4x32xf32> to vector<4x32xf32>
    %664 = vector.shape_cast %661 : vector<4x32xf32> to vector<1x4x32xf32>
    tpu.vector_store %arg11[%c8_194, %c0_195, %c0_196], %664 {strides = array<i32>} : memref<16x4x32xf32, #tpu.memory_space<vmem>>, vector<1x4x32xf32>,
    %c0_197 = arith.constant 0 : index
    %c8_198 = arith.constant 8 : index
    %c0_199 = arith.constant 0 : index
    %c0_200 = arith.constant 0 : index
    %665 = vector.load %arg2[%c0_197, %c8_198, %c0_199, %c0_200] : memref<1x16x4x96xf32, #tpu.memory_space<vmem>>, vector<1x1x4x96xf32>
    %666 = vector.shape_cast %665 : vector<1x1x4x96xf32> to vector<4x96xf32>
    %667 = arith.addf %666, %7 : vector<4x96xf32>
    %c0_201 = arith.constant 0 : index
    %c7_202 = arith.constant 7 : index
    %c0_203 = arith.constant 0 : index
    %c0_204 = arith.constant 0 : index
    %668 = vector.load %arg3[%c0_201, %c7_202, %c0_203, %c0_204] : memref<1x16x4x96xf32, #tpu.memory_space<vmem>>, vector<1x1x4x96xf32>
    %669 = vector.shape_cast %668 : vector<1x1x4x96xf32> to vector<4x96xf32>
    %670 = arith.addf %669, %10 : vector<4x96xf32>
    %cst_205 = arith.constant dense<0.000000e+00> : vector<4x96xf32>
    %671 = tpu.matmul %653, %3, %cst_205 {dimension_numbers = #tpu.dot_dimension_numbers<[1], [0], [0], [1], [0, 0, 1, 1], [], []>} : vector<4x32xf32>, vector<32x96xf32>, vector<4x96xf32> -> vector<4x96xf32>
    %672 = vector.extract_strided_slice %667 {offsets = [0, 0], sizes = [4, 32], strides = [1, 1]} : vector<4x96xf32> to vector<4x32xf32>
    %673 = vector.extract_strided_slice %671 {offsets = [0, 0], sizes = [4, 32], strides = [1, 1]} : vector<4x96xf32> to vector<4x32xf32>
    %674 = arith.addf %672, %673 : vector<4x32xf32>
    %675 = arith.negf %674 : vector<4x32xf32>
    %676 = math.exp %675 : vector<4x32xf32>
    %cst_206 = arith.constant 1.000000e+00 : f32
    %677 = vector.broadcast %cst_206 : f32 to vector<4x32xf32>
    %678 = arith.addf %677, %676 : vector<4x32xf32>
    %679 = arith.divf %677, %678 : vector<4x32xf32>
    %680 = vector.extract_strided_slice %667 {offsets = [0, 32], sizes = [4, 32], strides = [1, 1]} : vector<4x96xf32> to vector<4x32xf32>
    %681 = vector.extract_strided_slice %671 {offsets = [0, 32], sizes = [4, 32], strides = [1, 1]} : vector<4x96xf32> to vector<4x32xf32>
    %682 = arith.addf %680, %681 : vector<4x32xf32>
    %683 = arith.negf %682 : vector<4x32xf32>
    %684 = math.exp %683 : vector<4x32xf32>
    %cst_207 = arith.constant 1.000000e+00 : f32
    %685 = vector.broadcast %cst_207 : f32 to vector<4x32xf32>
    %686 = arith.addf %685, %684 : vector<4x32xf32>
    %687 = arith.divf %685, %686 : vector<4x32xf32>
    %688 = vector.extract_strided_slice %667 {offsets = [0, 64], sizes = [4, 32], strides = [1, 1]} : vector<4x96xf32> to vector<4x32xf32>
    %689 = vector.extract_strided_slice %671 {offsets = [0, 64], sizes = [4, 32], strides = [1, 1]} : vector<4x96xf32> to vector<4x32xf32>
    %690 = arith.addf %689, %13 : vector<4x32xf32>
    %691 = arith.mulf %679, %690 : vector<4x32xf32>
    %692 = arith.addf %688, %691 : vector<4x32xf32>
    %693 = math.tanh %692 : vector<4x32xf32>
    %cst_208 = arith.constant 1.000000e+00 : f32
    %694 = vector.broadcast %cst_208 : f32 to vector<4x32xf32>
    %695 = arith.subf %694, %687 : vector<4x32xf32>
    %696 = arith.mulf %695, %693 : vector<4x32xf32>
    %697 = arith.mulf %687, %653 : vector<4x32xf32>
    %698 = arith.addf %696, %697 : vector<4x32xf32>
    %cst_209 = arith.constant dense<0.000000e+00> : vector<4x96xf32>
    %699 = tpu.matmul %654, %4, %cst_209 {dimension_numbers = #tpu.dot_dimension_numbers<[1], [0], [0], [1], [0, 0, 1, 1], [], []>} : vector<4x32xf32>, vector<32x96xf32>, vector<4x96xf32> -> vector<4x96xf32>
    %700 = vector.extract_strided_slice %670 {offsets = [0, 0], sizes = [4, 32], strides = [1, 1]} : vector<4x96xf32> to vector<4x32xf32>
    %701 = vector.extract_strided_slice %699 {offsets = [0, 0], sizes = [4, 32], strides = [1, 1]} : vector<4x96xf32> to vector<4x32xf32>
    %702 = arith.addf %700, %701 : vector<4x32xf32>
    %703 = arith.negf %702 : vector<4x32xf32>
    %704 = math.exp %703 : vector<4x32xf32>
    %cst_210 = arith.constant 1.000000e+00 : f32
    %705 = vector.broadcast %cst_210 : f32 to vector<4x32xf32>
    %706 = arith.addf %705, %704 : vector<4x32xf32>
    %707 = arith.divf %705, %706 : vector<4x32xf32>
    %708 = vector.extract_strided_slice %670 {offsets = [0, 32], sizes = [4, 32], strides = [1, 1]} : vector<4x96xf32> to vector<4x32xf32>
    %709 = vector.extract_strided_slice %699 {offsets = [0, 32], sizes = [4, 32], strides = [1, 1]} : vector<4x96xf32> to vector<4x32xf32>
    %710 = arith.addf %708, %709 : vector<4x32xf32>
    %711 = arith.negf %710 : vector<4x32xf32>
    %712 = math.exp %711 : vector<4x32xf32>
    %cst_211 = arith.constant 1.000000e+00 : f32
    %713 = vector.broadcast %cst_211 : f32 to vector<4x32xf32>
    %714 = arith.addf %713, %712 : vector<4x32xf32>
    %715 = arith.divf %713, %714 : vector<4x32xf32>
    %716 = vector.extract_strided_slice %670 {offsets = [0, 64], sizes = [4, 32], strides = [1, 1]} : vector<4x96xf32> to vector<4x32xf32>
    %717 = vector.extract_strided_slice %699 {offsets = [0, 64], sizes = [4, 32], strides = [1, 1]} : vector<4x96xf32> to vector<4x32xf32>
    %718 = arith.addf %717, %16 : vector<4x32xf32>
    %719 = arith.mulf %707, %718 : vector<4x32xf32>
    %720 = arith.addf %716, %719 : vector<4x32xf32>
    %721 = math.tanh %720 : vector<4x32xf32>
    %cst_212 = arith.constant 1.000000e+00 : f32
    %722 = vector.broadcast %cst_212 : f32 to vector<4x32xf32>
    %723 = arith.subf %722, %715 : vector<4x32xf32>
    %724 = arith.mulf %723, %721 : vector<4x32xf32>
    %725 = arith.mulf %715, %654 : vector<4x32xf32>
    %726 = arith.addf %724, %725 : vector<4x32xf32>
    %c8_i32_213 = arith.constant 8 : i32
    %727 = arith.addi %20, %c8_i32_213 : i32
    %728 = vector.broadcast %727 : i32 to vector<4x32xi32>
    %729 = arith.cmpi slt, %728, %19 : vector<4x32xi32>
    %c7_i32_214 = arith.constant 7 : i32
    %730 = arith.addi %22, %c7_i32_214 : i32
    %731 = vector.broadcast %730 : i32 to vector<4x32xi32>
    %732 = arith.cmpi slt, %731, %19 : vector<4x32xi32>
    %733 = arith.select %729, %698, %653 : vector<4x32xi1>, vector<4x32xf32>
    %734 = arith.select %732, %726, %654 : vector<4x32xi1>, vector<4x32xf32>
    %cst_215 = arith.constant 0.000000e+00 : f32
    %735 = vector.broadcast %cst_215 : f32 to vector<4x32xf32>
    %736 = arith.select %729, %698, %735 : vector<4x32xi1>, vector<4x32xf32>
    %c8_216 = arith.constant 8 : index
    %c0_217 = arith.constant 0 : index
    %c0_218 = arith.constant 0 : index
    %737 = vector.load %arg10[%c8_216, %c0_217, %c0_218] : memref<16x4x32xf32, #tpu.memory_space<vmem>>, vector<1x4x32xf32>
    %738 = vector.shape_cast %737 : vector<1x4x32xf32> to vector<4x32xf32>
    %739 = vector.shape_cast %736 : vector<4x32xf32> to vector<1x4x32xf32>
    tpu.vector_store %arg10[%c8_216, %c0_217, %c0_218], %739 {strides = array<i32>} : memref<16x4x32xf32, #tpu.memory_space<vmem>>, vector<1x4x32xf32>,
    %cst_219 = arith.constant 0.000000e+00 : f32
    %740 = vector.broadcast %cst_219 : f32 to vector<4x32xf32>
    %741 = arith.select %732, %726, %740 : vector<4x32xi1>, vector<4x32xf32>
    %c7_220 = arith.constant 7 : index
    %c0_221 = arith.constant 0 : index
    %c0_222 = arith.constant 0 : index
    %742 = vector.load %arg11[%c7_220, %c0_221, %c0_222] : memref<16x4x32xf32, #tpu.memory_space<vmem>>, vector<1x4x32xf32>
    %743 = vector.shape_cast %742 : vector<1x4x32xf32> to vector<4x32xf32>
    %744 = vector.shape_cast %741 : vector<4x32xf32> to vector<1x4x32xf32>
    tpu.vector_store %arg11[%c7_220, %c0_221, %c0_222], %744 {strides = array<i32>} : memref<16x4x32xf32, #tpu.memory_space<vmem>>, vector<1x4x32xf32>,
    %c0_223 = arith.constant 0 : index
    %c9_224 = arith.constant 9 : index
    %c0_225 = arith.constant 0 : index
    %c0_226 = arith.constant 0 : index
    %745 = vector.load %arg2[%c0_223, %c9_224, %c0_225, %c0_226] : memref<1x16x4x96xf32, #tpu.memory_space<vmem>>, vector<1x1x4x96xf32>
    %746 = vector.shape_cast %745 : vector<1x1x4x96xf32> to vector<4x96xf32>
    %747 = arith.addf %746, %7 : vector<4x96xf32>
    %c0_227 = arith.constant 0 : index
    %c6_228 = arith.constant 6 : index
    %c0_229 = arith.constant 0 : index
    %c0_230 = arith.constant 0 : index
    %748 = vector.load %arg3[%c0_227, %c6_228, %c0_229, %c0_230] : memref<1x16x4x96xf32, #tpu.memory_space<vmem>>, vector<1x1x4x96xf32>
    %749 = vector.shape_cast %748 : vector<1x1x4x96xf32> to vector<4x96xf32>
    %750 = arith.addf %749, %10 : vector<4x96xf32>
    %cst_231 = arith.constant dense<0.000000e+00> : vector<4x96xf32>
    %751 = tpu.matmul %733, %3, %cst_231 {dimension_numbers = #tpu.dot_dimension_numbers<[1], [0], [0], [1], [0, 0, 1, 1], [], []>} : vector<4x32xf32>, vector<32x96xf32>, vector<4x96xf32> -> vector<4x96xf32>
    %752 = vector.extract_strided_slice %747 {offsets = [0, 0], sizes = [4, 32], strides = [1, 1]} : vector<4x96xf32> to vector<4x32xf32>
    %753 = vector.extract_strided_slice %751 {offsets = [0, 0], sizes = [4, 32], strides = [1, 1]} : vector<4x96xf32> to vector<4x32xf32>
    %754 = arith.addf %752, %753 : vector<4x32xf32>
    %755 = arith.negf %754 : vector<4x32xf32>
    %756 = math.exp %755 : vector<4x32xf32>
    %cst_232 = arith.constant 1.000000e+00 : f32
    %757 = vector.broadcast %cst_232 : f32 to vector<4x32xf32>
    %758 = arith.addf %757, %756 : vector<4x32xf32>
    %759 = arith.divf %757, %758 : vector<4x32xf32>
    %760 = vector.extract_strided_slice %747 {offsets = [0, 32], sizes = [4, 32], strides = [1, 1]} : vector<4x96xf32> to vector<4x32xf32>
    %761 = vector.extract_strided_slice %751 {offsets = [0, 32], sizes = [4, 32], strides = [1, 1]} : vector<4x96xf32> to vector<4x32xf32>
    %762 = arith.addf %760, %761 : vector<4x32xf32>
    %763 = arith.negf %762 : vector<4x32xf32>
    %764 = math.exp %763 : vector<4x32xf32>
    %cst_233 = arith.constant 1.000000e+00 : f32
    %765 = vector.broadcast %cst_233 : f32 to vector<4x32xf32>
    %766 = arith.addf %765, %764 : vector<4x32xf32>
    %767 = arith.divf %765, %766 : vector<4x32xf32>
    %768 = vector.extract_strided_slice %747 {offsets = [0, 64], sizes = [4, 32], strides = [1, 1]} : vector<4x96xf32> to vector<4x32xf32>
    %769 = vector.extract_strided_slice %751 {offsets = [0, 64], sizes = [4, 32], strides = [1, 1]} : vector<4x96xf32> to vector<4x32xf32>
    %770 = arith.addf %769, %13 : vector<4x32xf32>
    %771 = arith.mulf %759, %770 : vector<4x32xf32>
    %772 = arith.addf %768, %771 : vector<4x32xf32>
    %773 = math.tanh %772 : vector<4x32xf32>
    %cst_234 = arith.constant 1.000000e+00 : f32
    %774 = vector.broadcast %cst_234 : f32 to vector<4x32xf32>
    %775 = arith.subf %774, %767 : vector<4x32xf32>
    %776 = arith.mulf %775, %773 : vector<4x32xf32>
    %777 = arith.mulf %767, %733 : vector<4x32xf32>
    %778 = arith.addf %776, %777 : vector<4x32xf32>
    %cst_235 = arith.constant dense<0.000000e+00> : vector<4x96xf32>
    %779 = tpu.matmul %734, %4, %cst_235 {dimension_numbers = #tpu.dot_dimension_numbers<[1], [0], [0], [1], [0, 0, 1, 1], [], []>} : vector<4x32xf32>, vector<32x96xf32>, vector<4x96xf32> -> vector<4x96xf32>
    %780 = vector.extract_strided_slice %750 {offsets = [0, 0], sizes = [4, 32], strides = [1, 1]} : vector<4x96xf32> to vector<4x32xf32>
    %781 = vector.extract_strided_slice %779 {offsets = [0, 0], sizes = [4, 32], strides = [1, 1]} : vector<4x96xf32> to vector<4x32xf32>
    %782 = arith.addf %780, %781 : vector<4x32xf32>
    %783 = arith.negf %782 : vector<4x32xf32>
    %784 = math.exp %783 : vector<4x32xf32>
    %cst_236 = arith.constant 1.000000e+00 : f32
    %785 = vector.broadcast %cst_236 : f32 to vector<4x32xf32>
    %786 = arith.addf %785, %784 : vector<4x32xf32>
    %787 = arith.divf %785, %786 : vector<4x32xf32>
    %788 = vector.extract_strided_slice %750 {offsets = [0, 32], sizes = [4, 32], strides = [1, 1]} : vector<4x96xf32> to vector<4x32xf32>
    %789 = vector.extract_strided_slice %779 {offsets = [0, 32], sizes = [4, 32], strides = [1, 1]} : vector<4x96xf32> to vector<4x32xf32>
    %790 = arith.addf %788, %789 : vector<4x32xf32>
    %791 = arith.negf %790 : vector<4x32xf32>
    %792 = math.exp %791 : vector<4x32xf32>
    %cst_237 = arith.constant 1.000000e+00 : f32
    %793 = vector.broadcast %cst_237 : f32 to vector<4x32xf32>
    %794 = arith.addf %793, %792 : vector<4x32xf32>
    %795 = arith.divf %793, %794 : vector<4x32xf32>
    %796 = vector.extract_strided_slice %750 {offsets = [0, 64], sizes = [4, 32], strides = [1, 1]} : vector<4x96xf32> to vector<4x32xf32>
    %797 = vector.extract_strided_slice %779 {offsets = [0, 64], sizes = [4, 32], strides = [1, 1]} : vector<4x96xf32> to vector<4x32xf32>
    %798 = arith.addf %797, %16 : vector<4x32xf32>
    %799 = arith.mulf %787, %798 : vector<4x32xf32>
    %800 = arith.addf %796, %799 : vector<4x32xf32>
    %801 = math.tanh %800 : vector<4x32xf32>
    %cst_238 = arith.constant 1.000000e+00 : f32
    %802 = vector.broadcast %cst_238 : f32 to vector<4x32xf32>
    %803 = arith.subf %802, %795 : vector<4x32xf32>
    %804 = arith.mulf %803, %801 : vector<4x32xf32>
    %805 = arith.mulf %795, %734 : vector<4x32xf32>
    %806 = arith.addf %804, %805 : vector<4x32xf32>
    %c9_i32_239 = arith.constant 9 : i32
    %807 = arith.addi %20, %c9_i32_239 : i32
    %808 = vector.broadcast %807 : i32 to vector<4x32xi32>
    %809 = arith.cmpi slt, %808, %19 : vector<4x32xi32>
    %c6_i32_240 = arith.constant 6 : i32
    %810 = arith.addi %22, %c6_i32_240 : i32
    %811 = vector.broadcast %810 : i32 to vector<4x32xi32>
    %812 = arith.cmpi slt, %811, %19 : vector<4x32xi32>
    %813 = arith.select %809, %778, %733 : vector<4x32xi1>, vector<4x32xf32>
    %814 = arith.select %812, %806, %734 : vector<4x32xi1>, vector<4x32xf32>
    %cst_241 = arith.constant 0.000000e+00 : f32
    %815 = vector.broadcast %cst_241 : f32 to vector<4x32xf32>
    %816 = arith.select %809, %778, %815 : vector<4x32xi1>, vector<4x32xf32>
    %c9_242 = arith.constant 9 : index
    %c0_243 = arith.constant 0 : index
    %c0_244 = arith.constant 0 : index
    %817 = vector.load %arg10[%c9_242, %c0_243, %c0_244] : memref<16x4x32xf32, #tpu.memory_space<vmem>>, vector<1x4x32xf32>
    %818 = vector.shape_cast %817 : vector<1x4x32xf32> to vector<4x32xf32>
    %819 = vector.shape_cast %816 : vector<4x32xf32> to vector<1x4x32xf32>
    tpu.vector_store %arg10[%c9_242, %c0_243, %c0_244], %819 {strides = array<i32>} : memref<16x4x32xf32, #tpu.memory_space<vmem>>, vector<1x4x32xf32>,
    %cst_245 = arith.constant 0.000000e+00 : f32
    %820 = vector.broadcast %cst_245 : f32 to vector<4x32xf32>
    %821 = arith.select %812, %806, %820 : vector<4x32xi1>, vector<4x32xf32>
    %c6_246 = arith.constant 6 : index
    %c0_247 = arith.constant 0 : index
    %c0_248 = arith.constant 0 : index
    %822 = vector.load %arg11[%c6_246, %c0_247, %c0_248] : memref<16x4x32xf32, #tpu.memory_space<vmem>>, vector<1x4x32xf32>
    %823 = vector.shape_cast %822 : vector<1x4x32xf32> to vector<4x32xf32>
    %824 = vector.shape_cast %821 : vector<4x32xf32> to vector<1x4x32xf32>
    tpu.vector_store %arg11[%c6_246, %c0_247, %c0_248], %824 {strides = array<i32>} : memref<16x4x32xf32, #tpu.memory_space<vmem>>, vector<1x4x32xf32>,
    %c0_249 = arith.constant 0 : index
    %c10_250 = arith.constant 10 : index
    %c0_251 = arith.constant 0 : index
    %c0_252 = arith.constant 0 : index
    %825 = vector.load %arg2[%c0_249, %c10_250, %c0_251, %c0_252] : memref<1x16x4x96xf32, #tpu.memory_space<vmem>>, vector<1x1x4x96xf32>
    %826 = vector.shape_cast %825 : vector<1x1x4x96xf32> to vector<4x96xf32>
    %827 = arith.addf %826, %7 : vector<4x96xf32>
    %c0_253 = arith.constant 0 : index
    %c5_254 = arith.constant 5 : index
    %c0_255 = arith.constant 0 : index
    %c0_256 = arith.constant 0 : index
    %828 = vector.load %arg3[%c0_253, %c5_254, %c0_255, %c0_256] : memref<1x16x4x96xf32, #tpu.memory_space<vmem>>, vector<1x1x4x96xf32>
    %829 = vector.shape_cast %828 : vector<1x1x4x96xf32> to vector<4x96xf32>
    %830 = arith.addf %829, %10 : vector<4x96xf32>
    %cst_257 = arith.constant dense<0.000000e+00> : vector<4x96xf32>
    %831 = tpu.matmul %813, %3, %cst_257 {dimension_numbers = #tpu.dot_dimension_numbers<[1], [0], [0], [1], [0, 0, 1, 1], [], []>} : vector<4x32xf32>, vector<32x96xf32>, vector<4x96xf32> -> vector<4x96xf32>
    %832 = vector.extract_strided_slice %827 {offsets = [0, 0], sizes = [4, 32], strides = [1, 1]} : vector<4x96xf32> to vector<4x32xf32>
    %833 = vector.extract_strided_slice %831 {offsets = [0, 0], sizes = [4, 32], strides = [1, 1]} : vector<4x96xf32> to vector<4x32xf32>
    %834 = arith.addf %832, %833 : vector<4x32xf32>
    %835 = arith.negf %834 : vector<4x32xf32>
    %836 = math.exp %835 : vector<4x32xf32>
    %cst_258 = arith.constant 1.000000e+00 : f32
    %837 = vector.broadcast %cst_258 : f32 to vector<4x32xf32>
    %838 = arith.addf %837, %836 : vector<4x32xf32>
    %839 = arith.divf %837, %838 : vector<4x32xf32>
    %840 = vector.extract_strided_slice %827 {offsets = [0, 32], sizes = [4, 32], strides = [1, 1]} : vector<4x96xf32> to vector<4x32xf32>
    %841 = vector.extract_strided_slice %831 {offsets = [0, 32], sizes = [4, 32], strides = [1, 1]} : vector<4x96xf32> to vector<4x32xf32>
    %842 = arith.addf %840, %841 : vector<4x32xf32>
    %843 = arith.negf %842 : vector<4x32xf32>
    %844 = math.exp %843 : vector<4x32xf32>
    %cst_259 = arith.constant 1.000000e+00 : f32
    %845 = vector.broadcast %cst_259 : f32 to vector<4x32xf32>
    %846 = arith.addf %845, %844 : vector<4x32xf32>
    %847 = arith.divf %845, %846 : vector<4x32xf32>
    %848 = vector.extract_strided_slice %827 {offsets = [0, 64], sizes = [4, 32], strides = [1, 1]} : vector<4x96xf32> to vector<4x32xf32>
    %849 = vector.extract_strided_slice %831 {offsets = [0, 64], sizes = [4, 32], strides = [1, 1]} : vector<4x96xf32> to vector<4x32xf32>
    %850 = arith.addf %849, %13 : vector<4x32xf32>
    %851 = arith.mulf %839, %850 : vector<4x32xf32>
    %852 = arith.addf %848, %851 : vector<4x32xf32>
    %853 = math.tanh %852 : vector<4x32xf32>
    %cst_260 = arith.constant 1.000000e+00 : f32
    %854 = vector.broadcast %cst_260 : f32 to vector<4x32xf32>
    %855 = arith.subf %854, %847 : vector<4x32xf32>
    %856 = arith.mulf %855, %853 : vector<4x32xf32>
    %857 = arith.mulf %847, %813 : vector<4x32xf32>
    %858 = arith.addf %856, %857 : vector<4x32xf32>
    %cst_261 = arith.constant dense<0.000000e+00> : vector<4x96xf32>
    %859 = tpu.matmul %814, %4, %cst_261 {dimension_numbers = #tpu.dot_dimension_numbers<[1], [0], [0], [1], [0, 0, 1, 1], [], []>} : vector<4x32xf32>, vector<32x96xf32>, vector<4x96xf32> -> vector<4x96xf32>
    %860 = vector.extract_strided_slice %830 {offsets = [0, 0], sizes = [4, 32], strides = [1, 1]} : vector<4x96xf32> to vector<4x32xf32>
    %861 = vector.extract_strided_slice %859 {offsets = [0, 0], sizes = [4, 32], strides = [1, 1]} : vector<4x96xf32> to vector<4x32xf32>
    %862 = arith.addf %860, %861 : vector<4x32xf32>
    %863 = arith.negf %862 : vector<4x32xf32>
    %864 = math.exp %863 : vector<4x32xf32>
    %cst_262 = arith.constant 1.000000e+00 : f32
    %865 = vector.broadcast %cst_262 : f32 to vector<4x32xf32>
    %866 = arith.addf %865, %864 : vector<4x32xf32>
    %867 = arith.divf %865, %866 : vector<4x32xf32>
    %868 = vector.extract_strided_slice %830 {offsets = [0, 32], sizes = [4, 32], strides = [1, 1]} : vector<4x96xf32> to vector<4x32xf32>
    %869 = vector.extract_strided_slice %859 {offsets = [0, 32], sizes = [4, 32], strides = [1, 1]} : vector<4x96xf32> to vector<4x32xf32>
    %870 = arith.addf %868, %869 : vector<4x32xf32>
    %871 = arith.negf %870 : vector<4x32xf32>
    %872 = math.exp %871 : vector<4x32xf32>
    %cst_263 = arith.constant 1.000000e+00 : f32
    %873 = vector.broadcast %cst_263 : f32 to vector<4x32xf32>
    %874 = arith.addf %873, %872 : vector<4x32xf32>
    %875 = arith.divf %873, %874 : vector<4x32xf32>
    %876 = vector.extract_strided_slice %830 {offsets = [0, 64], sizes = [4, 32], strides = [1, 1]} : vector<4x96xf32> to vector<4x32xf32>
    %877 = vector.extract_strided_slice %859 {offsets = [0, 64], sizes = [4, 32], strides = [1, 1]} : vector<4x96xf32> to vector<4x32xf32>
    %878 = arith.addf %877, %16 : vector<4x32xf32>
    %879 = arith.mulf %867, %878 : vector<4x32xf32>
    %880 = arith.addf %876, %879 : vector<4x32xf32>
    %881 = math.tanh %880 : vector<4x32xf32>
    %cst_264 = arith.constant 1.000000e+00 : f32
    %882 = vector.broadcast %cst_264 : f32 to vector<4x32xf32>
    %883 = arith.subf %882, %875 : vector<4x32xf32>
    %884 = arith.mulf %883, %881 : vector<4x32xf32>
    %885 = arith.mulf %875, %814 : vector<4x32xf32>
    %886 = arith.addf %884, %885 : vector<4x32xf32>
    %c10_i32_265 = arith.constant 10 : i32
    %887 = arith.addi %20, %c10_i32_265 : i32
    %888 = vector.broadcast %887 : i32 to vector<4x32xi32>
    %889 = arith.cmpi slt, %888, %19 : vector<4x32xi32>
    %c5_i32_266 = arith.constant 5 : i32
    %890 = arith.addi %22, %c5_i32_266 : i32
    %891 = vector.broadcast %890 : i32 to vector<4x32xi32>
    %892 = arith.cmpi slt, %891, %19 : vector<4x32xi32>
    %893 = arith.select %889, %858, %813 : vector<4x32xi1>, vector<4x32xf32>
    %894 = arith.select %892, %886, %814 : vector<4x32xi1>, vector<4x32xf32>
    %cst_267 = arith.constant 0.000000e+00 : f32
    %895 = vector.broadcast %cst_267 : f32 to vector<4x32xf32>
    %896 = arith.select %889, %858, %895 : vector<4x32xi1>, vector<4x32xf32>
    %c10_268 = arith.constant 10 : index
    %c0_269 = arith.constant 0 : index
    %c0_270 = arith.constant 0 : index
    %897 = vector.load %arg10[%c10_268, %c0_269, %c0_270] : memref<16x4x32xf32, #tpu.memory_space<vmem>>, vector<1x4x32xf32>
    %898 = vector.shape_cast %897 : vector<1x4x32xf32> to vector<4x32xf32>
    %899 = vector.shape_cast %896 : vector<4x32xf32> to vector<1x4x32xf32>
    tpu.vector_store %arg10[%c10_268, %c0_269, %c0_270], %899 {strides = array<i32>} : memref<16x4x32xf32, #tpu.memory_space<vmem>>, vector<1x4x32xf32>,
    %cst_271 = arith.constant 0.000000e+00 : f32
    %900 = vector.broadcast %cst_271 : f32 to vector<4x32xf32>
    %901 = arith.select %892, %886, %900 : vector<4x32xi1>, vector<4x32xf32>
    %c5_272 = arith.constant 5 : index
    %c0_273 = arith.constant 0 : index
    %c0_274 = arith.constant 0 : index
    %902 = vector.load %arg11[%c5_272, %c0_273, %c0_274] : memref<16x4x32xf32, #tpu.memory_space<vmem>>, vector<1x4x32xf32>
    %903 = vector.shape_cast %902 : vector<1x4x32xf32> to vector<4x32xf32>
    %904 = vector.shape_cast %901 : vector<4x32xf32> to vector<1x4x32xf32>
    tpu.vector_store %arg11[%c5_272, %c0_273, %c0_274], %904 {strides = array<i32>} : memref<16x4x32xf32, #tpu.memory_space<vmem>>, vector<1x4x32xf32>,
    %c0_275 = arith.constant 0 : index
    %c11_276 = arith.constant 11 : index
    %c0_277 = arith.constant 0 : index
    %c0_278 = arith.constant 0 : index
    %905 = vector.load %arg2[%c0_275, %c11_276, %c0_277, %c0_278] : memref<1x16x4x96xf32, #tpu.memory_space<vmem>>, vector<1x1x4x96xf32>
    %906 = vector.shape_cast %905 : vector<1x1x4x96xf32> to vector<4x96xf32>
    %907 = arith.addf %906, %7 : vector<4x96xf32>
    %c0_279 = arith.constant 0 : index
    %c4_280 = arith.constant 4 : index
    %c0_281 = arith.constant 0 : index
    %c0_282 = arith.constant 0 : index
    %908 = vector.load %arg3[%c0_279, %c4_280, %c0_281, %c0_282] : memref<1x16x4x96xf32, #tpu.memory_space<vmem>>, vector<1x1x4x96xf32>
    %909 = vector.shape_cast %908 : vector<1x1x4x96xf32> to vector<4x96xf32>
    %910 = arith.addf %909, %10 : vector<4x96xf32>
    %cst_283 = arith.constant dense<0.000000e+00> : vector<4x96xf32>
    %911 = tpu.matmul %893, %3, %cst_283 {dimension_numbers = #tpu.dot_dimension_numbers<[1], [0], [0], [1], [0, 0, 1, 1], [], []>} : vector<4x32xf32>, vector<32x96xf32>, vector<4x96xf32> -> vector<4x96xf32>
    %912 = vector.extract_strided_slice %907 {offsets = [0, 0], sizes = [4, 32], strides = [1, 1]} : vector<4x96xf32> to vector<4x32xf32>
    %913 = vector.extract_strided_slice %911 {offsets = [0, 0], sizes = [4, 32], strides = [1, 1]} : vector<4x96xf32> to vector<4x32xf32>
    %914 = arith.addf %912, %913 : vector<4x32xf32>
    %915 = arith.negf %914 : vector<4x32xf32>
    %916 = math.exp %915 : vector<4x32xf32>
    %cst_284 = arith.constant 1.000000e+00 : f32
    %917 = vector.broadcast %cst_284 : f32 to vector<4x32xf32>
    %918 = arith.addf %917, %916 : vector<4x32xf32>
    %919 = arith.divf %917, %918 : vector<4x32xf32>
    %920 = vector.extract_strided_slice %907 {offsets = [0, 32], sizes = [4, 32], strides = [1, 1]} : vector<4x96xf32> to vector<4x32xf32>
    %921 = vector.extract_strided_slice %911 {offsets = [0, 32], sizes = [4, 32], strides = [1, 1]} : vector<4x96xf32> to vector<4x32xf32>
    %922 = arith.addf %920, %921 : vector<4x32xf32>
    %923 = arith.negf %922 : vector<4x32xf32>
    %924 = math.exp %923 : vector<4x32xf32>
    %cst_285 = arith.constant 1.000000e+00 : f32
    %925 = vector.broadcast %cst_285 : f32 to vector<4x32xf32>
    %926 = arith.addf %925, %924 : vector<4x32xf32>
    %927 = arith.divf %925, %926 : vector<4x32xf32>
    %928 = vector.extract_strided_slice %907 {offsets = [0, 64], sizes = [4, 32], strides = [1, 1]} : vector<4x96xf32> to vector<4x32xf32>
    %929 = vector.extract_strided_slice %911 {offsets = [0, 64], sizes = [4, 32], strides = [1, 1]} : vector<4x96xf32> to vector<4x32xf32>
    %930 = arith.addf %929, %13 : vector<4x32xf32>
    %931 = arith.mulf %919, %930 : vector<4x32xf32>
    %932 = arith.addf %928, %931 : vector<4x32xf32>
    %933 = math.tanh %932 : vector<4x32xf32>
    %cst_286 = arith.constant 1.000000e+00 : f32
    %934 = vector.broadcast %cst_286 : f32 to vector<4x32xf32>
    %935 = arith.subf %934, %927 : vector<4x32xf32>
    %936 = arith.mulf %935, %933 : vector<4x32xf32>
    %937 = arith.mulf %927, %893 : vector<4x32xf32>
    %938 = arith.addf %936, %937 : vector<4x32xf32>
    %cst_287 = arith.constant dense<0.000000e+00> : vector<4x96xf32>
    %939 = tpu.matmul %894, %4, %cst_287 {dimension_numbers = #tpu.dot_dimension_numbers<[1], [0], [0], [1], [0, 0, 1, 1], [], []>} : vector<4x32xf32>, vector<32x96xf32>, vector<4x96xf32> -> vector<4x96xf32>
    %940 = vector.extract_strided_slice %910 {offsets = [0, 0], sizes = [4, 32], strides = [1, 1]} : vector<4x96xf32> to vector<4x32xf32>
    %941 = vector.extract_strided_slice %939 {offsets = [0, 0], sizes = [4, 32], strides = [1, 1]} : vector<4x96xf32> to vector<4x32xf32>
    %942 = arith.addf %940, %941 : vector<4x32xf32>
    %943 = arith.negf %942 : vector<4x32xf32>
    %944 = math.exp %943 : vector<4x32xf32>
    %cst_288 = arith.constant 1.000000e+00 : f32
    %945 = vector.broadcast %cst_288 : f32 to vector<4x32xf32>
    %946 = arith.addf %945, %944 : vector<4x32xf32>
    %947 = arith.divf %945, %946 : vector<4x32xf32>
    %948 = vector.extract_strided_slice %910 {offsets = [0, 32], sizes = [4, 32], strides = [1, 1]} : vector<4x96xf32> to vector<4x32xf32>
    %949 = vector.extract_strided_slice %939 {offsets = [0, 32], sizes = [4, 32], strides = [1, 1]} : vector<4x96xf32> to vector<4x32xf32>
    %950 = arith.addf %948, %949 : vector<4x32xf32>
    %951 = arith.negf %950 : vector<4x32xf32>
    %952 = math.exp %951 : vector<4x32xf32>
    %cst_289 = arith.constant 1.000000e+00 : f32
    %953 = vector.broadcast %cst_289 : f32 to vector<4x32xf32>
    %954 = arith.addf %953, %952 : vector<4x32xf32>
    %955 = arith.divf %953, %954 : vector<4x32xf32>
    %956 = vector.extract_strided_slice %910 {offsets = [0, 64], sizes = [4, 32], strides = [1, 1]} : vector<4x96xf32> to vector<4x32xf32>
    %957 = vector.extract_strided_slice %939 {offsets = [0, 64], sizes = [4, 32], strides = [1, 1]} : vector<4x96xf32> to vector<4x32xf32>
    %958 = arith.addf %957, %16 : vector<4x32xf32>
    %959 = arith.mulf %947, %958 : vector<4x32xf32>
    %960 = arith.addf %956, %959 : vector<4x32xf32>
    %961 = math.tanh %960 : vector<4x32xf32>
    %cst_290 = arith.constant 1.000000e+00 : f32
    %962 = vector.broadcast %cst_290 : f32 to vector<4x32xf32>
    %963 = arith.subf %962, %955 : vector<4x32xf32>
    %964 = arith.mulf %963, %961 : vector<4x32xf32>
    %965 = arith.mulf %955, %894 : vector<4x32xf32>
    %966 = arith.addf %964, %965 : vector<4x32xf32>
    %c11_i32_291 = arith.constant 11 : i32
    %967 = arith.addi %20, %c11_i32_291 : i32
    %968 = vector.broadcast %967 : i32 to vector<4x32xi32>
    %969 = arith.cmpi slt, %968, %19 : vector<4x32xi32>
    %c4_i32_292 = arith.constant 4 : i32
    %970 = arith.addi %22, %c4_i32_292 : i32
    %971 = vector.broadcast %970 : i32 to vector<4x32xi32>
    %972 = arith.cmpi slt, %971, %19 : vector<4x32xi32>
    %973 = arith.select %969, %938, %893 : vector<4x32xi1>, vector<4x32xf32>
    %974 = arith.select %972, %966, %894 : vector<4x32xi1>, vector<4x32xf32>
    %cst_293 = arith.constant 0.000000e+00 : f32
    %975 = vector.broadcast %cst_293 : f32 to vector<4x32xf32>
    %976 = arith.select %969, %938, %975 : vector<4x32xi1>, vector<4x32xf32>
    %c11_294 = arith.constant 11 : index
    %c0_295 = arith.constant 0 : index
    %c0_296 = arith.constant 0 : index
    %977 = vector.load %arg10[%c11_294, %c0_295, %c0_296] : memref<16x4x32xf32, #tpu.memory_space<vmem>>, vector<1x4x32xf32>
    %978 = vector.shape_cast %977 : vector<1x4x32xf32> to vector<4x32xf32>
    %979 = vector.shape_cast %976 : vector<4x32xf32> to vector<1x4x32xf32>
    tpu.vector_store %arg10[%c11_294, %c0_295, %c0_296], %979 {strides = array<i32>} : memref<16x4x32xf32, #tpu.memory_space<vmem>>, vector<1x4x32xf32>,
    %cst_297 = arith.constant 0.000000e+00 : f32
    %980 = vector.broadcast %cst_297 : f32 to vector<4x32xf32>
    %981 = arith.select %972, %966, %980 : vector<4x32xi1>, vector<4x32xf32>
    %c4_298 = arith.constant 4 : index
    %c0_299 = arith.constant 0 : index
    %c0_300 = arith.constant 0 : index
    %982 = vector.load %arg11[%c4_298, %c0_299, %c0_300] : memref<16x4x32xf32, #tpu.memory_space<vmem>>, vector<1x4x32xf32>
    %983 = vector.shape_cast %982 : vector<1x4x32xf32> to vector<4x32xf32>
    %984 = vector.shape_cast %981 : vector<4x32xf32> to vector<1x4x32xf32>
    tpu.vector_store %arg11[%c4_298, %c0_299, %c0_300], %984 {strides = array<i32>} : memref<16x4x32xf32, #tpu.memory_space<vmem>>, vector<1x4x32xf32>,
    %c0_301 = arith.constant 0 : index
    %c12_302 = arith.constant 12 : index
    %c0_303 = arith.constant 0 : index
    %c0_304 = arith.constant 0 : index
    %985 = vector.load %arg2[%c0_301, %c12_302, %c0_303, %c0_304] : memref<1x16x4x96xf32, #tpu.memory_space<vmem>>, vector<1x1x4x96xf32>
    %986 = vector.shape_cast %985 : vector<1x1x4x96xf32> to vector<4x96xf32>
    %987 = arith.addf %986, %7 : vector<4x96xf32>
    %c0_305 = arith.constant 0 : index
    %c3_306 = arith.constant 3 : index
    %c0_307 = arith.constant 0 : index
    %c0_308 = arith.constant 0 : index
    %988 = vector.load %arg3[%c0_305, %c3_306, %c0_307, %c0_308] : memref<1x16x4x96xf32, #tpu.memory_space<vmem>>, vector<1x1x4x96xf32>
    %989 = vector.shape_cast %988 : vector<1x1x4x96xf32> to vector<4x96xf32>
    %990 = arith.addf %989, %10 : vector<4x96xf32>
    %cst_309 = arith.constant dense<0.000000e+00> : vector<4x96xf32>
    %991 = tpu.matmul %973, %3, %cst_309 {dimension_numbers = #tpu.dot_dimension_numbers<[1], [0], [0], [1], [0, 0, 1, 1], [], []>} : vector<4x32xf32>, vector<32x96xf32>, vector<4x96xf32> -> vector<4x96xf32>
    %992 = vector.extract_strided_slice %987 {offsets = [0, 0], sizes = [4, 32], strides = [1, 1]} : vector<4x96xf32> to vector<4x32xf32>
    %993 = vector.extract_strided_slice %991 {offsets = [0, 0], sizes = [4, 32], strides = [1, 1]} : vector<4x96xf32> to vector<4x32xf32>
    %994 = arith.addf %992, %993 : vector<4x32xf32>
    %995 = arith.negf %994 : vector<4x32xf32>
    %996 = math.exp %995 : vector<4x32xf32>
    %cst_310 = arith.constant 1.000000e+00 : f32
    %997 = vector.broadcast %cst_310 : f32 to vector<4x32xf32>
    %998 = arith.addf %997, %996 : vector<4x32xf32>
    %999 = arith.divf %997, %998 : vector<4x32xf32>
    %1000 = vector.extract_strided_slice %987 {offsets = [0, 32], sizes = [4, 32], strides = [1, 1]} : vector<4x96xf32> to vector<4x32xf32>
    %1001 = vector.extract_strided_slice %991 {offsets = [0, 32], sizes = [4, 32], strides = [1, 1]} : vector<4x96xf32> to vector<4x32xf32>
    %1002 = arith.addf %1000, %1001 : vector<4x32xf32>
    %1003 = arith.negf %1002 : vector<4x32xf32>
    %1004 = math.exp %1003 : vector<4x32xf32>
    %cst_311 = arith.constant 1.000000e+00 : f32
    %1005 = vector.broadcast %cst_311 : f32 to vector<4x32xf32>
    %1006 = arith.addf %1005, %1004 : vector<4x32xf32>
    %1007 = arith.divf %1005, %1006 : vector<4x32xf32>
    %1008 = vector.extract_strided_slice %987 {offsets = [0, 64], sizes = [4, 32], strides = [1, 1]} : vector<4x96xf32> to vector<4x32xf32>
    %1009 = vector.extract_strided_slice %991 {offsets = [0, 64], sizes = [4, 32], strides = [1, 1]} : vector<4x96xf32> to vector<4x32xf32>
    %1010 = arith.addf %1009, %13 : vector<4x32xf32>
    %1011 = arith.mulf %999, %1010 : vector<4x32xf32>
    %1012 = arith.addf %1008, %1011 : vector<4x32xf32>
    %1013 = math.tanh %1012 : vector<4x32xf32>
    %cst_312 = arith.constant 1.000000e+00 : f32
    %1014 = vector.broadcast %cst_312 : f32 to vector<4x32xf32>
    %1015 = arith.subf %1014, %1007 : vector<4x32xf32>
    %1016 = arith.mulf %1015, %1013 : vector<4x32xf32>
    %1017 = arith.mulf %1007, %973 : vector<4x32xf32>
    %1018 = arith.addf %1016, %1017 : vector<4x32xf32>
    %cst_313 = arith.constant dense<0.000000e+00> : vector<4x96xf32>
    %1019 = tpu.matmul %974, %4, %cst_313 {dimension_numbers = #tpu.dot_dimension_numbers<[1], [0], [0], [1], [0, 0, 1, 1], [], []>} : vector<4x32xf32>, vector<32x96xf32>, vector<4x96xf32> -> vector<4x96xf32>
    %1020 = vector.extract_strided_slice %990 {offsets = [0, 0], sizes = [4, 32], strides = [1, 1]} : vector<4x96xf32> to vector<4x32xf32>
    %1021 = vector.extract_strided_slice %1019 {offsets = [0, 0], sizes = [4, 32], strides = [1, 1]} : vector<4x96xf32> to vector<4x32xf32>
    %1022 = arith.addf %1020, %1021 : vector<4x32xf32>
    %1023 = arith.negf %1022 : vector<4x32xf32>
    %1024 = math.exp %1023 : vector<4x32xf32>
    %cst_314 = arith.constant 1.000000e+00 : f32
    %1025 = vector.broadcast %cst_314 : f32 to vector<4x32xf32>
    %1026 = arith.addf %1025, %1024 : vector<4x32xf32>
    %1027 = arith.divf %1025, %1026 : vector<4x32xf32>
    %1028 = vector.extract_strided_slice %990 {offsets = [0, 32], sizes = [4, 32], strides = [1, 1]} : vector<4x96xf32> to vector<4x32xf32>
    %1029 = vector.extract_strided_slice %1019 {offsets = [0, 32], sizes = [4, 32], strides = [1, 1]} : vector<4x96xf32> to vector<4x32xf32>
    %1030 = arith.addf %1028, %1029 : vector<4x32xf32>
    %1031 = arith.negf %1030 : vector<4x32xf32>
    %1032 = math.exp %1031 : vector<4x32xf32>
    %cst_315 = arith.constant 1.000000e+00 : f32
    %1033 = vector.broadcast %cst_315 : f32 to vector<4x32xf32>
    %1034 = arith.addf %1033, %1032 : vector<4x32xf32>
    %1035 = arith.divf %1033, %1034 : vector<4x32xf32>
    %1036 = vector.extract_strided_slice %990 {offsets = [0, 64], sizes = [4, 32], strides = [1, 1]} : vector<4x96xf32> to vector<4x32xf32>
    %1037 = vector.extract_strided_slice %1019 {offsets = [0, 64], sizes = [4, 32], strides = [1, 1]} : vector<4x96xf32> to vector<4x32xf32>
    %1038 = arith.addf %1037, %16 : vector<4x32xf32>
    %1039 = arith.mulf %1027, %1038 : vector<4x32xf32>
    %1040 = arith.addf %1036, %1039 : vector<4x32xf32>
    %1041 = math.tanh %1040 : vector<4x32xf32>
    %cst_316 = arith.constant 1.000000e+00 : f32
    %1042 = vector.broadcast %cst_316 : f32 to vector<4x32xf32>
    %1043 = arith.subf %1042, %1035 : vector<4x32xf32>
    %1044 = arith.mulf %1043, %1041 : vector<4x32xf32>
    %1045 = arith.mulf %1035, %974 : vector<4x32xf32>
    %1046 = arith.addf %1044, %1045 : vector<4x32xf32>
    %c12_i32_317 = arith.constant 12 : i32
    %1047 = arith.addi %20, %c12_i32_317 : i32
    %1048 = vector.broadcast %1047 : i32 to vector<4x32xi32>
    %1049 = arith.cmpi slt, %1048, %19 : vector<4x32xi32>
    %c3_i32_318 = arith.constant 3 : i32
    %1050 = arith.addi %22, %c3_i32_318 : i32
    %1051 = vector.broadcast %1050 : i32 to vector<4x32xi32>
    %1052 = arith.cmpi slt, %1051, %19 : vector<4x32xi32>
    %1053 = arith.select %1049, %1018, %973 : vector<4x32xi1>, vector<4x32xf32>
    %1054 = arith.select %1052, %1046, %974 : vector<4x32xi1>, vector<4x32xf32>
    %cst_319 = arith.constant 0.000000e+00 : f32
    %1055 = vector.broadcast %cst_319 : f32 to vector<4x32xf32>
    %1056 = arith.select %1049, %1018, %1055 : vector<4x32xi1>, vector<4x32xf32>
    %c12_320 = arith.constant 12 : index
    %c0_321 = arith.constant 0 : index
    %c0_322 = arith.constant 0 : index
    %1057 = vector.load %arg10[%c12_320, %c0_321, %c0_322] : memref<16x4x32xf32, #tpu.memory_space<vmem>>, vector<1x4x32xf32>
    %1058 = vector.shape_cast %1057 : vector<1x4x32xf32> to vector<4x32xf32>
    %1059 = vector.shape_cast %1056 : vector<4x32xf32> to vector<1x4x32xf32>
    tpu.vector_store %arg10[%c12_320, %c0_321, %c0_322], %1059 {strides = array<i32>} : memref<16x4x32xf32, #tpu.memory_space<vmem>>, vector<1x4x32xf32>,
    %cst_323 = arith.constant 0.000000e+00 : f32
    %1060 = vector.broadcast %cst_323 : f32 to vector<4x32xf32>
    %1061 = arith.select %1052, %1046, %1060 : vector<4x32xi1>, vector<4x32xf32>
    %c3_324 = arith.constant 3 : index
    %c0_325 = arith.constant 0 : index
    %c0_326 = arith.constant 0 : index
    %1062 = vector.load %arg11[%c3_324, %c0_325, %c0_326] : memref<16x4x32xf32, #tpu.memory_space<vmem>>, vector<1x4x32xf32>
    %1063 = vector.shape_cast %1062 : vector<1x4x32xf32> to vector<4x32xf32>
    %1064 = vector.shape_cast %1061 : vector<4x32xf32> to vector<1x4x32xf32>
    tpu.vector_store %arg11[%c3_324, %c0_325, %c0_326], %1064 {strides = array<i32>} : memref<16x4x32xf32, #tpu.memory_space<vmem>>, vector<1x4x32xf32>,
    %c0_327 = arith.constant 0 : index
    %c13_328 = arith.constant 13 : index
    %c0_329 = arith.constant 0 : index
    %c0_330 = arith.constant 0 : index
    %1065 = vector.load %arg2[%c0_327, %c13_328, %c0_329, %c0_330] : memref<1x16x4x96xf32, #tpu.memory_space<vmem>>, vector<1x1x4x96xf32>
    %1066 = vector.shape_cast %1065 : vector<1x1x4x96xf32> to vector<4x96xf32>
    %1067 = arith.addf %1066, %7 : vector<4x96xf32>
    %c0_331 = arith.constant 0 : index
    %c2_332 = arith.constant 2 : index
    %c0_333 = arith.constant 0 : index
    %c0_334 = arith.constant 0 : index
    %1068 = vector.load %arg3[%c0_331, %c2_332, %c0_333, %c0_334] : memref<1x16x4x96xf32, #tpu.memory_space<vmem>>, vector<1x1x4x96xf32>
    %1069 = vector.shape_cast %1068 : vector<1x1x4x96xf32> to vector<4x96xf32>
    %1070 = arith.addf %1069, %10 : vector<4x96xf32>
    %cst_335 = arith.constant dense<0.000000e+00> : vector<4x96xf32>
    %1071 = tpu.matmul %1053, %3, %cst_335 {dimension_numbers = #tpu.dot_dimension_numbers<[1], [0], [0], [1], [0, 0, 1, 1], [], []>} : vector<4x32xf32>, vector<32x96xf32>, vector<4x96xf32> -> vector<4x96xf32>
    %1072 = vector.extract_strided_slice %1067 {offsets = [0, 0], sizes = [4, 32], strides = [1, 1]} : vector<4x96xf32> to vector<4x32xf32>
    %1073 = vector.extract_strided_slice %1071 {offsets = [0, 0], sizes = [4, 32], strides = [1, 1]} : vector<4x96xf32> to vector<4x32xf32>
    %1074 = arith.addf %1072, %1073 : vector<4x32xf32>
    %1075 = arith.negf %1074 : vector<4x32xf32>
    %1076 = math.exp %1075 : vector<4x32xf32>
    %cst_336 = arith.constant 1.000000e+00 : f32
    %1077 = vector.broadcast %cst_336 : f32 to vector<4x32xf32>
    %1078 = arith.addf %1077, %1076 : vector<4x32xf32>
    %1079 = arith.divf %1077, %1078 : vector<4x32xf32>
    %1080 = vector.extract_strided_slice %1067 {offsets = [0, 32], sizes = [4, 32], strides = [1, 1]} : vector<4x96xf32> to vector<4x32xf32>
    %1081 = vector.extract_strided_slice %1071 {offsets = [0, 32], sizes = [4, 32], strides = [1, 1]} : vector<4x96xf32> to vector<4x32xf32>
    %1082 = arith.addf %1080, %1081 : vector<4x32xf32>
    %1083 = arith.negf %1082 : vector<4x32xf32>
    %1084 = math.exp %1083 : vector<4x32xf32>
    %cst_337 = arith.constant 1.000000e+00 : f32
    %1085 = vector.broadcast %cst_337 : f32 to vector<4x32xf32>
    %1086 = arith.addf %1085, %1084 : vector<4x32xf32>
    %1087 = arith.divf %1085, %1086 : vector<4x32xf32>
    %1088 = vector.extract_strided_slice %1067 {offsets = [0, 64], sizes = [4, 32], strides = [1, 1]} : vector<4x96xf32> to vector<4x32xf32>
    %1089 = vector.extract_strided_slice %1071 {offsets = [0, 64], sizes = [4, 32], strides = [1, 1]} : vector<4x96xf32> to vector<4x32xf32>
    %1090 = arith.addf %1089, %13 : vector<4x32xf32>
    %1091 = arith.mulf %1079, %1090 : vector<4x32xf32>
    %1092 = arith.addf %1088, %1091 : vector<4x32xf32>
    %1093 = math.tanh %1092 : vector<4x32xf32>
    %cst_338 = arith.constant 1.000000e+00 : f32
    %1094 = vector.broadcast %cst_338 : f32 to vector<4x32xf32>
    %1095 = arith.subf %1094, %1087 : vector<4x32xf32>
    %1096 = arith.mulf %1095, %1093 : vector<4x32xf32>
    %1097 = arith.mulf %1087, %1053 : vector<4x32xf32>
    %1098 = arith.addf %1096, %1097 : vector<4x32xf32>
    %cst_339 = arith.constant dense<0.000000e+00> : vector<4x96xf32>
    %1099 = tpu.matmul %1054, %4, %cst_339 {dimension_numbers = #tpu.dot_dimension_numbers<[1], [0], [0], [1], [0, 0, 1, 1], [], []>} : vector<4x32xf32>, vector<32x96xf32>, vector<4x96xf32> -> vector<4x96xf32>
    %1100 = vector.extract_strided_slice %1070 {offsets = [0, 0], sizes = [4, 32], strides = [1, 1]} : vector<4x96xf32> to vector<4x32xf32>
    %1101 = vector.extract_strided_slice %1099 {offsets = [0, 0], sizes = [4, 32], strides = [1, 1]} : vector<4x96xf32> to vector<4x32xf32>
    %1102 = arith.addf %1100, %1101 : vector<4x32xf32>
    %1103 = arith.negf %1102 : vector<4x32xf32>
    %1104 = math.exp %1103 : vector<4x32xf32>
    %cst_340 = arith.constant 1.000000e+00 : f32
    %1105 = vector.broadcast %cst_340 : f32 to vector<4x32xf32>
    %1106 = arith.addf %1105, %1104 : vector<4x32xf32>
    %1107 = arith.divf %1105, %1106 : vector<4x32xf32>
    %1108 = vector.extract_strided_slice %1070 {offsets = [0, 32], sizes = [4, 32], strides = [1, 1]} : vector<4x96xf32> to vector<4x32xf32>
    %1109 = vector.extract_strided_slice %1099 {offsets = [0, 32], sizes = [4, 32], strides = [1, 1]} : vector<4x96xf32> to vector<4x32xf32>
    %1110 = arith.addf %1108, %1109 : vector<4x32xf32>
    %1111 = arith.negf %1110 : vector<4x32xf32>
    %1112 = math.exp %1111 : vector<4x32xf32>
    %cst_341 = arith.constant 1.000000e+00 : f32
    %1113 = vector.broadcast %cst_341 : f32 to vector<4x32xf32>
    %1114 = arith.addf %1113, %1112 : vector<4x32xf32>
    %1115 = arith.divf %1113, %1114 : vector<4x32xf32>
    %1116 = vector.extract_strided_slice %1070 {offsets = [0, 64], sizes = [4, 32], strides = [1, 1]} : vector<4x96xf32> to vector<4x32xf32>
    %1117 = vector.extract_strided_slice %1099 {offsets = [0, 64], sizes = [4, 32], strides = [1, 1]} : vector<4x96xf32> to vector<4x32xf32>
    %1118 = arith.addf %1117, %16 : vector<4x32xf32>
    %1119 = arith.mulf %1107, %1118 : vector<4x32xf32>
    %1120 = arith.addf %1116, %1119 : vector<4x32xf32>
    %1121 = math.tanh %1120 : vector<4x32xf32>
    %cst_342 = arith.constant 1.000000e+00 : f32
    %1122 = vector.broadcast %cst_342 : f32 to vector<4x32xf32>
    %1123 = arith.subf %1122, %1115 : vector<4x32xf32>
    %1124 = arith.mulf %1123, %1121 : vector<4x32xf32>
    %1125 = arith.mulf %1115, %1054 : vector<4x32xf32>
    %1126 = arith.addf %1124, %1125 : vector<4x32xf32>
    %c13_i32_343 = arith.constant 13 : i32
    %1127 = arith.addi %20, %c13_i32_343 : i32
    %1128 = vector.broadcast %1127 : i32 to vector<4x32xi32>
    %1129 = arith.cmpi slt, %1128, %19 : vector<4x32xi32>
    %c2_i32_344 = arith.constant 2 : i32
    %1130 = arith.addi %22, %c2_i32_344 : i32
    %1131 = vector.broadcast %1130 : i32 to vector<4x32xi32>
    %1132 = arith.cmpi slt, %1131, %19 : vector<4x32xi32>
    %1133 = arith.select %1129, %1098, %1053 : vector<4x32xi1>, vector<4x32xf32>
    %1134 = arith.select %1132, %1126, %1054 : vector<4x32xi1>, vector<4x32xf32>
    %cst_345 = arith.constant 0.000000e+00 : f32
    %1135 = vector.broadcast %cst_345 : f32 to vector<4x32xf32>
    %1136 = arith.select %1129, %1098, %1135 : vector<4x32xi1>, vector<4x32xf32>
    %c13_346 = arith.constant 13 : index
    %c0_347 = arith.constant 0 : index
    %c0_348 = arith.constant 0 : index
    %1137 = vector.load %arg10[%c13_346, %c0_347, %c0_348] : memref<16x4x32xf32, #tpu.memory_space<vmem>>, vector<1x4x32xf32>
    %1138 = vector.shape_cast %1137 : vector<1x4x32xf32> to vector<4x32xf32>
    %1139 = vector.shape_cast %1136 : vector<4x32xf32> to vector<1x4x32xf32>
    tpu.vector_store %arg10[%c13_346, %c0_347, %c0_348], %1139 {strides = array<i32>} : memref<16x4x32xf32, #tpu.memory_space<vmem>>, vector<1x4x32xf32>,
    %cst_349 = arith.constant 0.000000e+00 : f32
    %1140 = vector.broadcast %cst_349 : f32 to vector<4x32xf32>
    %1141 = arith.select %1132, %1126, %1140 : vector<4x32xi1>, vector<4x32xf32>
    %c2_350 = arith.constant 2 : index
    %c0_351 = arith.constant 0 : index
    %c0_352 = arith.constant 0 : index
    %1142 = vector.load %arg11[%c2_350, %c0_351, %c0_352] : memref<16x4x32xf32, #tpu.memory_space<vmem>>, vector<1x4x32xf32>
    %1143 = vector.shape_cast %1142 : vector<1x4x32xf32> to vector<4x32xf32>
    %1144 = vector.shape_cast %1141 : vector<4x32xf32> to vector<1x4x32xf32>
    tpu.vector_store %arg11[%c2_350, %c0_351, %c0_352], %1144 {strides = array<i32>} : memref<16x4x32xf32, #tpu.memory_space<vmem>>, vector<1x4x32xf32>,
    %c0_353 = arith.constant 0 : index
    %c14_354 = arith.constant 14 : index
    %c0_355 = arith.constant 0 : index
    %c0_356 = arith.constant 0 : index
    %1145 = vector.load %arg2[%c0_353, %c14_354, %c0_355, %c0_356] : memref<1x16x4x96xf32, #tpu.memory_space<vmem>>, vector<1x1x4x96xf32>
    %1146 = vector.shape_cast %1145 : vector<1x1x4x96xf32> to vector<4x96xf32>
    %1147 = arith.addf %1146, %7 : vector<4x96xf32>
    %c0_357 = arith.constant 0 : index
    %c1_358 = arith.constant 1 : index
    %c0_359 = arith.constant 0 : index
    %c0_360 = arith.constant 0 : index
    %1148 = vector.load %arg3[%c0_357, %c1_358, %c0_359, %c0_360] : memref<1x16x4x96xf32, #tpu.memory_space<vmem>>, vector<1x1x4x96xf32>
    %1149 = vector.shape_cast %1148 : vector<1x1x4x96xf32> to vector<4x96xf32>
    %1150 = arith.addf %1149, %10 : vector<4x96xf32>
    %cst_361 = arith.constant dense<0.000000e+00> : vector<4x96xf32>
    %1151 = tpu.matmul %1133, %3, %cst_361 {dimension_numbers = #tpu.dot_dimension_numbers<[1], [0], [0], [1], [0, 0, 1, 1], [], []>} : vector<4x32xf32>, vector<32x96xf32>, vector<4x96xf32> -> vector<4x96xf32>
    %1152 = vector.extract_strided_slice %1147 {offsets = [0, 0], sizes = [4, 32], strides = [1, 1]} : vector<4x96xf32> to vector<4x32xf32>
    %1153 = vector.extract_strided_slice %1151 {offsets = [0, 0], sizes = [4, 32], strides = [1, 1]} : vector<4x96xf32> to vector<4x32xf32>
    %1154 = arith.addf %1152, %1153 : vector<4x32xf32>
    %1155 = arith.negf %1154 : vector<4x32xf32>
    %1156 = math.exp %1155 : vector<4x32xf32>
    %cst_362 = arith.constant 1.000000e+00 : f32
    %1157 = vector.broadcast %cst_362 : f32 to vector<4x32xf32>
    %1158 = arith.addf %1157, %1156 : vector<4x32xf32>
    %1159 = arith.divf %1157, %1158 : vector<4x32xf32>
    %1160 = vector.extract_strided_slice %1147 {offsets = [0, 32], sizes = [4, 32], strides = [1, 1]} : vector<4x96xf32> to vector<4x32xf32>
    %1161 = vector.extract_strided_slice %1151 {offsets = [0, 32], sizes = [4, 32], strides = [1, 1]} : vector<4x96xf32> to vector<4x32xf32>
    %1162 = arith.addf %1160, %1161 : vector<4x32xf32>
    %1163 = arith.negf %1162 : vector<4x32xf32>
    %1164 = math.exp %1163 : vector<4x32xf32>
    %cst_363 = arith.constant 1.000000e+00 : f32
    %1165 = vector.broadcast %cst_363 : f32 to vector<4x32xf32>
    %1166 = arith.addf %1165, %1164 : vector<4x32xf32>
    %1167 = arith.divf %1165, %1166 : vector<4x32xf32>
    %1168 = vector.extract_strided_slice %1147 {offsets = [0, 64], sizes = [4, 32], strides = [1, 1]} : vector<4x96xf32> to vector<4x32xf32>
    %1169 = vector.extract_strided_slice %1151 {offsets = [0, 64], sizes = [4, 32], strides = [1, 1]} : vector<4x96xf32> to vector<4x32xf32>
    %1170 = arith.addf %1169, %13 : vector<4x32xf32>
    %1171 = arith.mulf %1159, %1170 : vector<4x32xf32>
    %1172 = arith.addf %1168, %1171 : vector<4x32xf32>
    %1173 = math.tanh %1172 : vector<4x32xf32>
    %cst_364 = arith.constant 1.000000e+00 : f32
    %1174 = vector.broadcast %cst_364 : f32 to vector<4x32xf32>
    %1175 = arith.subf %1174, %1167 : vector<4x32xf32>
    %1176 = arith.mulf %1175, %1173 : vector<4x32xf32>
    %1177 = arith.mulf %1167, %1133 : vector<4x32xf32>
    %1178 = arith.addf %1176, %1177 : vector<4x32xf32>
    %cst_365 = arith.constant dense<0.000000e+00> : vector<4x96xf32>
    %1179 = tpu.matmul %1134, %4, %cst_365 {dimension_numbers = #tpu.dot_dimension_numbers<[1], [0], [0], [1], [0, 0, 1, 1], [], []>} : vector<4x32xf32>, vector<32x96xf32>, vector<4x96xf32> -> vector<4x96xf32>
    %1180 = vector.extract_strided_slice %1150 {offsets = [0, 0], sizes = [4, 32], strides = [1, 1]} : vector<4x96xf32> to vector<4x32xf32>
    %1181 = vector.extract_strided_slice %1179 {offsets = [0, 0], sizes = [4, 32], strides = [1, 1]} : vector<4x96xf32> to vector<4x32xf32>
    %1182 = arith.addf %1180, %1181 : vector<4x32xf32>
    %1183 = arith.negf %1182 : vector<4x32xf32>
    %1184 = math.exp %1183 : vector<4x32xf32>
    %cst_366 = arith.constant 1.000000e+00 : f32
    %1185 = vector.broadcast %cst_366 : f32 to vector<4x32xf32>
    %1186 = arith.addf %1185, %1184 : vector<4x32xf32>
    %1187 = arith.divf %1185, %1186 : vector<4x32xf32>
    %1188 = vector.extract_strided_slice %1150 {offsets = [0, 32], sizes = [4, 32], strides = [1, 1]} : vector<4x96xf32> to vector<4x32xf32>
    %1189 = vector.extract_strided_slice %1179 {offsets = [0, 32], sizes = [4, 32], strides = [1, 1]} : vector<4x96xf32> to vector<4x32xf32>
    %1190 = arith.addf %1188, %1189 : vector<4x32xf32>
    %1191 = arith.negf %1190 : vector<4x32xf32>
    %1192 = math.exp %1191 : vector<4x32xf32>
    %cst_367 = arith.constant 1.000000e+00 : f32
    %1193 = vector.broadcast %cst_367 : f32 to vector<4x32xf32>
    %1194 = arith.addf %1193, %1192 : vector<4x32xf32>
    %1195 = arith.divf %1193, %1194 : vector<4x32xf32>
    %1196 = vector.extract_strided_slice %1150 {offsets = [0, 64], sizes = [4, 32], strides = [1, 1]} : vector<4x96xf32> to vector<4x32xf32>
    %1197 = vector.extract_strided_slice %1179 {offsets = [0, 64], sizes = [4, 32], strides = [1, 1]} : vector<4x96xf32> to vector<4x32xf32>
    %1198 = arith.addf %1197, %16 : vector<4x32xf32>
    %1199 = arith.mulf %1187, %1198 : vector<4x32xf32>
    %1200 = arith.addf %1196, %1199 : vector<4x32xf32>
    %1201 = math.tanh %1200 : vector<4x32xf32>
    %cst_368 = arith.constant 1.000000e+00 : f32
    %1202 = vector.broadcast %cst_368 : f32 to vector<4x32xf32>
    %1203 = arith.subf %1202, %1195 : vector<4x32xf32>
    %1204 = arith.mulf %1203, %1201 : vector<4x32xf32>
    %1205 = arith.mulf %1195, %1134 : vector<4x32xf32>
    %1206 = arith.addf %1204, %1205 : vector<4x32xf32>
    %c14_i32_369 = arith.constant 14 : i32
    %1207 = arith.addi %20, %c14_i32_369 : i32
    %1208 = vector.broadcast %1207 : i32 to vector<4x32xi32>
    %1209 = arith.cmpi slt, %1208, %19 : vector<4x32xi32>
    %c1_i32_370 = arith.constant 1 : i32
    %1210 = arith.addi %22, %c1_i32_370 : i32
    %1211 = vector.broadcast %1210 : i32 to vector<4x32xi32>
    %1212 = arith.cmpi slt, %1211, %19 : vector<4x32xi32>
    %1213 = arith.select %1209, %1178, %1133 : vector<4x32xi1>, vector<4x32xf32>
    %1214 = arith.select %1212, %1206, %1134 : vector<4x32xi1>, vector<4x32xf32>
    %cst_371 = arith.constant 0.000000e+00 : f32
    %1215 = vector.broadcast %cst_371 : f32 to vector<4x32xf32>
    %1216 = arith.select %1209, %1178, %1215 : vector<4x32xi1>, vector<4x32xf32>
    %c14_372 = arith.constant 14 : index
    %c0_373 = arith.constant 0 : index
    %c0_374 = arith.constant 0 : index
    %1217 = vector.load %arg10[%c14_372, %c0_373, %c0_374] : memref<16x4x32xf32, #tpu.memory_space<vmem>>, vector<1x4x32xf32>
    %1218 = vector.shape_cast %1217 : vector<1x4x32xf32> to vector<4x32xf32>
    %1219 = vector.shape_cast %1216 : vector<4x32xf32> to vector<1x4x32xf32>
    tpu.vector_store %arg10[%c14_372, %c0_373, %c0_374], %1219 {strides = array<i32>} : memref<16x4x32xf32, #tpu.memory_space<vmem>>, vector<1x4x32xf32>,
    %cst_375 = arith.constant 0.000000e+00 : f32
    %1220 = vector.broadcast %cst_375 : f32 to vector<4x32xf32>
    %1221 = arith.select %1212, %1206, %1220 : vector<4x32xi1>, vector<4x32xf32>
    %c1_376 = arith.constant 1 : index
    %c0_377 = arith.constant 0 : index
    %c0_378 = arith.constant 0 : index
    %1222 = vector.load %arg11[%c1_376, %c0_377, %c0_378] : memref<16x4x32xf32, #tpu.memory_space<vmem>>, vector<1x4x32xf32>
    %1223 = vector.shape_cast %1222 : vector<1x4x32xf32> to vector<4x32xf32>
    %1224 = vector.shape_cast %1221 : vector<4x32xf32> to vector<1x4x32xf32>
    tpu.vector_store %arg11[%c1_376, %c0_377, %c0_378], %1224 {strides = array<i32>} : memref<16x4x32xf32, #tpu.memory_space<vmem>>, vector<1x4x32xf32>,
    %c0_379 = arith.constant 0 : index
    %c15_380 = arith.constant 15 : index
    %c0_381 = arith.constant 0 : index
    %c0_382 = arith.constant 0 : index
    %1225 = vector.load %arg2[%c0_379, %c15_380, %c0_381, %c0_382] : memref<1x16x4x96xf32, #tpu.memory_space<vmem>>, vector<1x1x4x96xf32>
    %1226 = vector.shape_cast %1225 : vector<1x1x4x96xf32> to vector<4x96xf32>
    %1227 = arith.addf %1226, %7 : vector<4x96xf32>
    %c0_383 = arith.constant 0 : index
    %c0_384 = arith.constant 0 : index
    %c0_385 = arith.constant 0 : index
    %c0_386 = arith.constant 0 : index
    %1228 = vector.load %arg3[%c0_383, %c0_384, %c0_385, %c0_386] : memref<1x16x4x96xf32, #tpu.memory_space<vmem>>, vector<1x1x4x96xf32>
    %1229 = vector.shape_cast %1228 : vector<1x1x4x96xf32> to vector<4x96xf32>
    %1230 = arith.addf %1229, %10 : vector<4x96xf32>
    %cst_387 = arith.constant dense<0.000000e+00> : vector<4x96xf32>
    %1231 = tpu.matmul %1213, %3, %cst_387 {dimension_numbers = #tpu.dot_dimension_numbers<[1], [0], [0], [1], [0, 0, 1, 1], [], []>} : vector<4x32xf32>, vector<32x96xf32>, vector<4x96xf32> -> vector<4x96xf32>
    %1232 = vector.extract_strided_slice %1227 {offsets = [0, 0], sizes = [4, 32], strides = [1, 1]} : vector<4x96xf32> to vector<4x32xf32>
    %1233 = vector.extract_strided_slice %1231 {offsets = [0, 0], sizes = [4, 32], strides = [1, 1]} : vector<4x96xf32> to vector<4x32xf32>
    %1234 = arith.addf %1232, %1233 : vector<4x32xf32>
    %1235 = arith.negf %1234 : vector<4x32xf32>
    %1236 = math.exp %1235 : vector<4x32xf32>
    %cst_388 = arith.constant 1.000000e+00 : f32
    %1237 = vector.broadcast %cst_388 : f32 to vector<4x32xf32>
    %1238 = arith.addf %1237, %1236 : vector<4x32xf32>
    %1239 = arith.divf %1237, %1238 : vector<4x32xf32>
    %1240 = vector.extract_strided_slice %1227 {offsets = [0, 32], sizes = [4, 32], strides = [1, 1]} : vector<4x96xf32> to vector<4x32xf32>
    %1241 = vector.extract_strided_slice %1231 {offsets = [0, 32], sizes = [4, 32], strides = [1, 1]} : vector<4x96xf32> to vector<4x32xf32>
    %1242 = arith.addf %1240, %1241 : vector<4x32xf32>
    %1243 = arith.negf %1242 : vector<4x32xf32>
    %1244 = math.exp %1243 : vector<4x32xf32>
    %cst_389 = arith.constant 1.000000e+00 : f32
    %1245 = vector.broadcast %cst_389 : f32 to vector<4x32xf32>
    %1246 = arith.addf %1245, %1244 : vector<4x32xf32>
    %1247 = arith.divf %1245, %1246 : vector<4x32xf32>
    %1248 = vector.extract_strided_slice %1227 {offsets = [0, 64], sizes = [4, 32], strides = [1, 1]} : vector<4x96xf32> to vector<4x32xf32>
    %1249 = vector.extract_strided_slice %1231 {offsets = [0, 64], sizes = [4, 32], strides = [1, 1]} : vector<4x96xf32> to vector<4x32xf32>
    %1250 = arith.addf %1249, %13 : vector<4x32xf32>
    %1251 = arith.mulf %1239, %1250 : vector<4x32xf32>
    %1252 = arith.addf %1248, %1251 : vector<4x32xf32>
    %1253 = math.tanh %1252 : vector<4x32xf32>
    %cst_390 = arith.constant 1.000000e+00 : f32
    %1254 = vector.broadcast %cst_390 : f32 to vector<4x32xf32>
    %1255 = arith.subf %1254, %1247 : vector<4x32xf32>
    %1256 = arith.mulf %1255, %1253 : vector<4x32xf32>
    %1257 = arith.mulf %1247, %1213 : vector<4x32xf32>
    %1258 = arith.addf %1256, %1257 : vector<4x32xf32>
    %cst_391 = arith.constant dense<0.000000e+00> : vector<4x96xf32>
    %1259 = tpu.matmul %1214, %4, %cst_391 {dimension_numbers = #tpu.dot_dimension_numbers<[1], [0], [0], [1], [0, 0, 1, 1], [], []>} : vector<4x32xf32>, vector<32x96xf32>, vector<4x96xf32> -> vector<4x96xf32>
    %1260 = vector.extract_strided_slice %1230 {offsets = [0, 0], sizes = [4, 32], strides = [1, 1]} : vector<4x96xf32> to vector<4x32xf32>
    %1261 = vector.extract_strided_slice %1259 {offsets = [0, 0], sizes = [4, 32], strides = [1, 1]} : vector<4x96xf32> to vector<4x32xf32>
    %1262 = arith.addf %1260, %1261 : vector<4x32xf32>
    %1263 = arith.negf %1262 : vector<4x32xf32>
    %1264 = math.exp %1263 : vector<4x32xf32>
    %cst_392 = arith.constant 1.000000e+00 : f32
    %1265 = vector.broadcast %cst_392 : f32 to vector<4x32xf32>
    %1266 = arith.addf %1265, %1264 : vector<4x32xf32>
    %1267 = arith.divf %1265, %1266 : vector<4x32xf32>
    %1268 = vector.extract_strided_slice %1230 {offsets = [0, 32], sizes = [4, 32], strides = [1, 1]} : vector<4x96xf32> to vector<4x32xf32>
    %1269 = vector.extract_strided_slice %1259 {offsets = [0, 32], sizes = [4, 32], strides = [1, 1]} : vector<4x96xf32> to vector<4x32xf32>
    %1270 = arith.addf %1268, %1269 : vector<4x32xf32>
    %1271 = arith.negf %1270 : vector<4x32xf32>
    %1272 = math.exp %1271 : vector<4x32xf32>
    %cst_393 = arith.constant 1.000000e+00 : f32
    %1273 = vector.broadcast %cst_393 : f32 to vector<4x32xf32>
    %1274 = arith.addf %1273, %1272 : vector<4x32xf32>
    %1275 = arith.divf %1273, %1274 : vector<4x32xf32>
    %1276 = vector.extract_strided_slice %1230 {offsets = [0, 64], sizes = [4, 32], strides = [1, 1]} : vector<4x96xf32> to vector<4x32xf32>
    %1277 = vector.extract_strided_slice %1259 {offsets = [0, 64], sizes = [4, 32], strides = [1, 1]} : vector<4x96xf32> to vector<4x32xf32>
    %1278 = arith.addf %1277, %16 : vector<4x32xf32>
    %1279 = arith.mulf %1267, %1278 : vector<4x32xf32>
    %1280 = arith.addf %1276, %1279 : vector<4x32xf32>
    %1281 = math.tanh %1280 : vector<4x32xf32>
    %cst_394 = arith.constant 1.000000e+00 : f32
    %1282 = vector.broadcast %cst_394 : f32 to vector<4x32xf32>
    %1283 = arith.subf %1282, %1275 : vector<4x32xf32>
    %1284 = arith.mulf %1283, %1281 : vector<4x32xf32>
    %1285 = arith.mulf %1275, %1214 : vector<4x32xf32>
    %1286 = arith.addf %1284, %1285 : vector<4x32xf32>
    %c15_i32_395 = arith.constant 15 : i32
    %1287 = arith.addi %20, %c15_i32_395 : i32
    %1288 = vector.broadcast %1287 : i32 to vector<4x32xi32>
    %1289 = arith.cmpi slt, %1288, %19 : vector<4x32xi32>
    %c0_i32_396 = arith.constant 0 : i32
    %1290 = arith.addi %22, %c0_i32_396 : i32
    %1291 = vector.broadcast %1290 : i32 to vector<4x32xi32>
    %1292 = arith.cmpi slt, %1291, %19 : vector<4x32xi32>
    %1293 = arith.select %1289, %1258, %1213 : vector<4x32xi1>, vector<4x32xf32>
    %1294 = arith.select %1292, %1286, %1214 : vector<4x32xi1>, vector<4x32xf32>
    %cst_397 = arith.constant 0.000000e+00 : f32
    %1295 = vector.broadcast %cst_397 : f32 to vector<4x32xf32>
    %1296 = arith.select %1289, %1258, %1295 : vector<4x32xi1>, vector<4x32xf32>
    %c15_398 = arith.constant 15 : index
    %c0_399 = arith.constant 0 : index
    %c0_400 = arith.constant 0 : index
    %1297 = vector.load %arg10[%c15_398, %c0_399, %c0_400] : memref<16x4x32xf32, #tpu.memory_space<vmem>>, vector<1x4x32xf32>
    %1298 = vector.shape_cast %1297 : vector<1x4x32xf32> to vector<4x32xf32>
    %1299 = vector.shape_cast %1296 : vector<4x32xf32> to vector<1x4x32xf32>
    tpu.vector_store %arg10[%c15_398, %c0_399, %c0_400], %1299 {strides = array<i32>} : memref<16x4x32xf32, #tpu.memory_space<vmem>>, vector<1x4x32xf32>,
    %cst_401 = arith.constant 0.000000e+00 : f32
    %1300 = vector.broadcast %cst_401 : f32 to vector<4x32xf32>
    %1301 = arith.select %1292, %1286, %1300 : vector<4x32xi1>, vector<4x32xf32>
    %c0_402 = arith.constant 0 : index
    %c0_403 = arith.constant 0 : index
    %c0_404 = arith.constant 0 : index
    %1302 = vector.load %arg11[%c0_402, %c0_403, %c0_404] : memref<16x4x32xf32, #tpu.memory_space<vmem>>, vector<1x4x32xf32>
    %1303 = vector.shape_cast %1302 : vector<1x4x32xf32> to vector<4x32xf32>
    %1304 = vector.shape_cast %1301 : vector<4x32xf32> to vector<1x4x32xf32>
    tpu.vector_store %arg11[%c0_402, %c0_403, %c0_404], %1304 {strides = array<i32>} : memref<16x4x32xf32, #tpu.memory_space<vmem>>, vector<1x4x32xf32>,
    %c0_405 = arith.constant 0 : index
    %c0_406 = arith.constant 0 : index
    %1305 = vector.load %arg14[%c0_405, %c0_406] : memref<4x32xf32, #tpu.memory_space<vmem>>, vector<4x32xf32>
    tpu.vector_store %arg14[%c0_405, %c0_406], %1293 {strides = array<i32>} : memref<4x32xf32, #tpu.memory_space<vmem>>, vector<4x32xf32>,
    %c0_407 = arith.constant 0 : index
    %c0_408 = arith.constant 0 : index
    %1306 = vector.load %arg15[%c0_407, %c0_408] : memref<4x32xf32, #tpu.memory_space<vmem>>, vector<4x32xf32>
    tpu.vector_store %arg15[%c0_407, %c0_408], %1294 {strides = array<i32>} : memref<4x32xf32, #tpu.memory_space<vmem>>, vector<4x32xf32>,
    %c2_i32_409 = arith.constant 2 : i32
    %1307 = arith.cmpi eq, %arg0, %c2_i32_409 : i32
    %1308 = arith.extui %1307 : i1 to i32
    %c0_i32_410 = arith.constant 0 : i32
    %1309 = arith.cmpi ne, %1308, %c0_i32_410 : i32
    scf.if %1309 {
      %c0_411 = arith.constant 0 : index
      %c0_412 = arith.constant 0 : index
      %1310 = vector.load %arg14[%c0_411, %c0_412] : memref<4x32xf32, #tpu.memory_space<vmem>>, vector<4x32xf32>
      %c0_413 = arith.constant 0 : index
      %c0_414 = arith.constant 0 : index
      %1311 = vector.load %arg12[%c0_413, %c0_414] : memref<4x32xf32, #tpu.memory_space<vmem>>, vector<4x32xf32>
      tpu.vector_store %arg12[%c0_413, %c0_414], %1310 {strides = array<i32>} : memref<4x32xf32, #tpu.memory_space<vmem>>, vector<4x32xf32>,
      %c0_415 = arith.constant 0 : index
      %c0_416 = arith.constant 0 : index
      %1312 = vector.load %arg15[%c0_415, %c0_416] : memref<4x32xf32, #tpu.memory_space<vmem>>, vector<4x32xf32>
      %c0_417 = arith.constant 0 : index
      %c0_418 = arith.constant 0 : index
      %1313 = vector.load %arg13[%c0_417, %c0_418] : memref<4x32xf32, #tpu.memory_space<vmem>>, vector<4x32xf32>
      tpu.vector_store %arg13[%c0_417, %c0_418], %1312 {strides = array<i32>} : memref<4x32xf32, #tpu.memory_space<vmem>>, vector<4x32xf32>,
    } else {
    }
    return
  }
  func.func @transform_0(%arg0: i32) -> (i32, i32) {
    %c0_i32 = arith.constant 0 : i32
    %c0_i32_0 = arith.constant 0 : i32
    %c0_i32_1 = arith.constant 0 : i32
    return %c0_i32, %c0_i32_0 : i32, i32
  }
  func.func @transform_1(%arg0: i32) -> (i32, i32, i32, i32) {
    %c0_i32 = arith.constant 0 : i32
    %c0_i32_0 = arith.constant 0 : i32
    %c0_i32_1 = arith.constant 0 : i32
    %c0_i32_2 = arith.constant 0 : i32
    return %c0_i32, %arg0, %c0_i32_0, %c0_i32_1 : i32, i32, i32, i32
  }
  func.func @transform_2(%arg0: i32) -> (i32, i32, i32, i32) {
    %c2_i32 = arith.constant 2 : i32
    %0 = arith.subi %c2_i32, %arg0 : i32
    %c1_i32 = arith.constant 1 : i32
    %c0_i32 = arith.constant 0 : i32
    %c0_i32_0 = arith.constant 0 : i32
    %c0_i32_1 = arith.constant 0 : i32
    return %c1_i32, %0, %c0_i32, %c0_i32_0 : i32, i32, i32, i32
  }
  func.func @transform_3(%arg0: i32) -> (i32, i32) {
    %c0_i32 = arith.constant 0 : i32
    %c0_i32_0 = arith.constant 0 : i32
    %c0_i32_1 = arith.constant 0 : i32
    return %c0_i32, %c0_i32_0 : i32, i32
  }
  func.func @transform_4(%arg0: i32) -> (i32, i32) {
    %c0_i32 = arith.constant 0 : i32
    %c0_i32_0 = arith.constant 0 : i32
    %c0_i32_1 = arith.constant 0 : i32
    return %c0_i32, %c0_i32_0 : i32, i32
  }
  func.func @transform_5(%arg0: i32) -> (i32, i32) {
    %c0_i32 = arith.constant 0 : i32
    %c0_i32_0 = arith.constant 0 : i32
    %c0_i32_1 = arith.constant 0 : i32
    return %c0_i32, %c0_i32_0 : i32, i32
  }
  func.func @transform_6(%arg0: i32) -> (i32, i32) {
    %c0_i32 = arith.constant 0 : i32
    %c0_i32_0 = arith.constant 0 : i32
    %c0_i32_1 = arith.constant 0 : i32
    return %c0_i32, %c0_i32_0 : i32, i32
  }
  func.func @transform_7(%arg0: i32) -> (i32, i32) {
    %c0_i32 = arith.constant 0 : i32
    %c0_i32_0 = arith.constant 0 : i32
    %c0_i32_1 = arith.constant 0 : i32
    return %c0_i32, %c0_i32_0 : i32, i32
  }
  func.func @transform_8(%arg0: i32) -> (i32, i32) {
    %c0_i32 = arith.constant 0 : i32
    %c0_i32_0 = arith.constant 0 : i32
    %c0_i32_1 = arith.constant 0 : i32
    return %c0_i32, %c0_i32_0 : i32, i32
  }
  func.func @transform_9(%arg0: i32) -> (i32, i32, i32) {
    %c0_i32 = arith.constant 0 : i32
    %c0_i32_0 = arith.constant 0 : i32
    %c0_i32_1 = arith.constant 0 : i32
    return %arg0, %c0_i32, %c0_i32_0 : i32, i32, i32
  }
  func.func @transform_10(%arg0: i32) -> (i32, i32, i32) {
    %c2_i32 = arith.constant 2 : i32
    %0 = arith.subi %c2_i32, %arg0 : i32
    %c0_i32 = arith.constant 0 : i32
    %c0_i32_0 = arith.constant 0 : i32
    %c0_i32_1 = arith.constant 0 : i32
    return %0, %c0_i32, %c0_i32_0 : i32, i32, i32
  }
  func.func @transform_11(%arg0: i32) -> (i32, i32) {
    %c0_i32 = arith.constant 0 : i32
    %c0_i32_0 = arith.constant 0 : i32
    %c0_i32_1 = arith.constant 0 : i32
    return %c0_i32, %c0_i32_0 : i32, i32
  }
  func.func @transform_12(%arg0: i32) -> (i32, i32) {
    %c0_i32 = arith.constant 0 : i32
    %c0_i32_0 = arith.constant 0 : i32
    %c0_i32_1 = arith.constant 0 : i32
    return %c0_i32, %c0_i32_0 : i32, i32
  }
}

</mosaic_0001>

<llo_original>
// kernel: gru_encoder_forward.2
$region0: #{gru_encoder_forward.2}
  #allocation0 [shape = 'u32[]', space=smem, size = 0x4, offset = 0x4, fixed_abs, tag = 'smem constant byte address 0x4 - core index']
  #allocation1 [shape = 'u32[144,128]{1,0:T(1,128)}', space=vmem, size = 0x12000, scoped, tag = 'internal scratch']
  #allocation2 [shape = 'f32[4,32]{1,0:T(4,128)}', space=vmem, size = 0x800, scoped, tag = 'scratch operand']
  #allocation3 [shape = 'f32[4,32]{1,0:T(4,128)}', space=vmem, size = 0x800, scoped, tag = 'scratch operand']
  %s0 = inlined_call_operand.vmem [shape: s32[4,1], index: 0, kind: input, shape index: {}]
  %s1 = inlined_call_operand.vmem [shape: f32[2,48,4,96], index: 1, kind: input, shape index: {}, may-alias: {1,2}]
  %s2 = inlined_call_operand.vmem [shape: f32[2,48,4,96], index: 2, kind: input, shape index: {}, may-alias: {1,2}]
  %s3 = inlined_call_operand.vmem [shape: f32[32,96], index: 3, kind: input, shape index: {}]
  %s4 = inlined_call_operand.vmem [shape: f32[32,96], index: 4, kind: input, shape index: {}]
  %s5 = inlined_call_operand.vmem [shape: f32[1,96], index: 5, kind: input, shape index: {}]
  %s6 = inlined_call_operand.vmem [shape: f32[1,96], index: 6, kind: input, shape index: {}]
  %s7 = inlined_call_operand.vmem [shape: f32[1,32], index: 7, kind: input, shape index: {}]
  %s8 = inlined_call_operand.vmem [shape: f32[1,32], index: 8, kind: input, shape index: {}]
  %s9 = inlined_call_operand.vmem [shape: f32[48,4,32], index: 9, kind: output, shape index: {0}]
  %s10 = inlined_call_operand.vmem [shape: f32[48,4,32], index: 10, kind: output, shape index: {1}]
  %s11 = inlined_call_operand.vmem [shape: f32[4,32], index: 11, kind: output, shape index: {2}]
  %s12 = inlined_call_operand.vmem [shape: f32[4,32], index: 12, kind: output, shape index: {3}]
  %13 = xla_tuple %s9, %s10, %s11, %s12
  %s14 = sld [smem:[#allocation0]]
  $region101: #{gru_encoder_forward.2} parent=0
    _
  %s16 = ssub.s32 1, %s14
  %s17 = scalar_select 0, %s16, %s14
  loop: start=0, step=1, limit=5
  $region2: #{gru_encoder_forward.2} parent=0 // loop_pre_header
    _
  $region3: #{gru_encoder_forward.2} parent=0 // loop_header
    %s19 = sphi 0, %s23
    %p20 = scmp.ge.s32.totalorder %s19, 5
    %s27 = sphi 0, %s27
    %s29 = sphi 0, %s27
    %s30 = sphi 0, %s29
    %s44 = sphi 0, %s30
    %s50 = sphi 0, %s52
    %s53 = sphi 0, %s50
    %s54 = sphi 0, %s53
    %s70 = sphi 0, %s54
    %s78 = sphi 0, %s80
    %s81 = sphi 0, %s78
    %s82 = sphi 0, %s81
    %s98 = sphi 0, %s82
    %s102 = sphi 0, %s102
    %s104 = sphi 0, %s102
    %s105 = sphi 0, %s104
    %s119 = sphi 0, %s105
    %s123 = sphi 0, %s123
    %s125 = sphi 0, %s123
    %s126 = sphi 0, %s125
    %s140 = sphi 0, %s126
    %s144 = sphi 0, %s144
    %s146 = sphi 0, %s144
    %s147 = sphi 0, %s146
    %s161 = sphi 0, %s147
    %s165 = sphi 0, %s165
    %s167 = sphi 0, %s165
    %s168 = sphi 0, %s167
    %s182 = sphi 0, %s168
    %s186 = sphi 0, %s186
    %s188 = sphi 0, %s186
    %s189 = sphi 0, %s188
    %s203 = sphi 0, %s189
    %s207 = sphi 0, %s207
    %s209 = sphi 0, %s207
    %s210 = sphi 0, %s209
    %s224 = sphi 0, %s210
    %s230 = sphi 0, %s232
    %s233 = sphi 0, %s230
    %s234 = sphi 0, %s233
    %s250 = sphi 0, %s234
    %s258 = sphi 0, %s260
    %s261 = sphi 0, %s258
    %s262 = sphi 0, %s261
    %s278 = sphi 0, %s262
    %s282 = sphi 0, %s282
    %s284 = sphi 0, %s282
    %s285 = sphi 0, %s284
    %s299 = sphi 0, %s285
    %s303 = sphi 0, %s303
    %s305 = sphi 0, %s303
    %s306 = sphi 0, %s305
    %s320 = sphi 0, %s306
  $region4: #{gru_encoder_forward.2} parent=0 // loop_header_branch
    %22 = sbr.rel (%p20) target = $region8
  $region5: #{gru_encoder_forward.2} parent=0 // loop_body
    %s24 = ssub.s32 %s19, 1
    %s25 = ssub.s32 %s19, 2
    %s26 = sadd.s32 %s19, 1
    %s28 = sadd.s32 %s27, 1
    %p31 = scmp.eq.s32.totalorder %s19, 2
    %p32 = scmp.ne.s32.totalorder %s27, %s29
    %p33 = scmp.eq.s32.totalorder %s19, 0
    %p34 = por %p32, %p33
    %p35 = scmp.ne.s32.totalorder %s27, %s29
    %p36 = scmp.eq.s32.totalorder %s24, 2
    %p37 = por %p35, %p36
    %p38 = scmp.ne.s32.totalorder %s29, %s30
    %p39 = scmp.eq.s32.totalorder %s24, 0
    %p40 = por %p38, %p39
    %p41 = scmp.ne.s32.totalorder %s29, %s30
    %p42 = scmp.eq.s32.totalorder %s25, 2
    %p43 = por %p41, %p42
    %p45 = scmp.ne.s32.totalorder %s30, %s44
    %p46 = scmp.eq.s32.totalorder %s25, 0
    %p47 = por %p45, %p46
    %s48 = ssub.s32 %s19, %s26
    %p49 = scmp.eq.s32.totalorder %s48, 0
    %s51 = sadd.s32 %s50, 1
    %s52 = scalar_select %p49, %s50, %s51
    %p55 = pneg %p49
    %p56 = scmp.eq.s32.totalorder %s19, 2
    %p57 = por %p55, %p56
    %p58 = scmp.ne.s32.totalorder %s50, %s53
    %p59 = scmp.eq.s32.totalorder %s19, 0
    %p60 = por %p58, %p59
    %p61 = scmp.ne.s32.totalorder %s50, %s53
    %p62 = scmp.eq.s32.totalorder %s24, 2
    %p63 = por %p61, %p62
    %p64 = scmp.ne.s32.totalorder %s53, %s54
    %p65 = scmp.eq.s32.totalorder %s24, 0
    %p66 = por %p64, %p65
    %p67 = scmp.ne.s32.totalorder %s53, %s54
    %p68 = scmp.eq.s32.totalorder %s25, 2
    %p69 = por %p67, %p68
    %p71 = scmp.ne.s32.totalorder %s54, %s70
    %p72 = scmp.eq.s32.totalorder %s25, 0
    %p73 = por %p71, %p72
    %s74 = ssub.s32 2, %s19
    %s75 = ssub.s32 2, %s26
    %s76 = ssub.s32 %s74, %s75
    %p77 = scmp.eq.s32.totalorder %s76, 0
    %s79 = sadd.s32 %s78, 1
    %s80 = scalar_select %p77, %s78, %s79
    %p83 = pneg %p77
    %p84 = scmp.eq.s32.totalorder %s19, 2
    %p85 = por %p83, %p84
    %p86 = scmp.ne.s32.totalorder %s78, %s81
    %p87 = scmp.eq.s32.totalorder %s19, 0
    %p88 = por %p86, %p87
    %p89 = scmp.ne.s32.totalorder %s78, %s81
    %p90 = scmp.eq.s32.totalorder %s24, 2
    %p91 = por %p89, %p90
    %p92 = scmp.ne.s32.totalorder %s81, %s82
    %p93 = scmp.eq.s32.totalorder %s24, 0
    %p94 = por %p92, %p93
    %p95 = scmp.ne.s32.totalorder %s81, %s82
    %p96 = scmp.eq.s32.totalorder %s25, 2
    %p97 = por %p95, %p96
    %p99 = scmp.ne.s32.totalorder %s82, %s98
    %p100 = scmp.eq.s32.totalorder %s25, 0
    %p101 = por %p99, %p100
    %s103 = sadd.s32 %s102, 1
    %p106 = scmp.eq.s32.totalorder %s19, 2
    %p107 = scmp.ne.s32.totalorder %s102, %s104
    %p108 = scmp.eq.s32.totalorder %s19, 0
    %p109 = por %p107, %p108
    %p110 = scmp.ne.s32.totalorder %s102, %s104
    %p111 = scmp.eq.s32.totalorder %s24, 2
    %p112 = por %p110, %p111
    %p113 = scmp.ne.s32.totalorder %s104, %s105
    %p114 = scmp.eq.s32.totalorder %s24, 0
    %p115 = por %p113, %p114
    %p116 = scmp.ne.s32.totalorder %s104, %s105
    %p117 = scmp.eq.s32.totalorder %s25, 2
    %p118 = por %p116, %p117
    %p120 = scmp.ne.s32.totalorder %s105, %s119
    %p121 = scmp.eq.s32.totalorder %s25, 0
    %p122 = por %p120, %p121
    %s124 = sadd.s32 %s123, 1
    %p127 = scmp.eq.s32.totalorder %s19, 2
    %p128 = scmp.ne.s32.totalorder %s123, %s125
    %p129 = scmp.eq.s32.totalorder %s19, 0
    %p130 = por %p128, %p129
    %p131 = scmp.ne.s32.totalorder %s123, %s125
    %p132 = scmp.eq.s32.totalorder %s24, 2
    %p133 = por %p131, %p132
    %p134 = scmp.ne.s32.totalorder %s125, %s126
    %p135 = scmp.eq.s32.totalorder %s24, 0
    %p136 = por %p134, %p135
    %p137 = scmp.ne.s32.totalorder %s125, %s126
    %p138 = scmp.eq.s32.totalorder %s25, 2
    %p139 = por %p137, %p138
    %p141 = scmp.ne.s32.totalorder %s126, %s140
    %p142 = scmp.eq.s32.totalorder %s25, 0
    %p143 = por %p141, %p142
    %s145 = sadd.s32 %s144, 1
    %p148 = scmp.eq.s32.totalorder %s19, 2
    %p149 = scmp.ne.s32.totalorder %s144, %s146
    %p150 = scmp.eq.s32.totalorder %s19, 0
    %p151 = por %p149, %p150
    %p152 = scmp.ne.s32.totalorder %s144, %s146
    %p153 = scmp.eq.s32.totalorder %s24, 2
    %p154 = por %p152, %p153
    %p155 = scmp.ne.s32.totalorder %s146, %s147
    %p156 = scmp.eq.s32.totalorder %s24, 0
    %p157 = por %p155, %p156
    %p158 = scmp.ne.s32.totalorder %s146, %s147
    %p159 = scmp.eq.s32.totalorder %s25, 2
    %p160 = por %p158, %p159
    %p162 = scmp.ne.s32.totalorder %s147, %s161
    %p163 = scmp.eq.s32.totalorder %s25, 0
    %p164 = por %p162, %p163
    %s166 = sadd.s32 %s165, 1
    %p169 = scmp.eq.s32.totalorder %s19, 2
    %p170 = scmp.ne.s32.totalorder %s165, %s167
    %p171 = scmp.eq.s32.totalorder %s19, 0
    %p172 = por %p170, %p171
    %p173 = scmp.ne.s32.totalorder %s165, %s167
    %p174 = scmp.eq.s32.totalorder %s24, 2
    %p175 = por %p173, %p174
    %p176 = scmp.ne.s32.totalorder %s167, %s168
    %p177 = scmp.eq.s32.totalorder %s24, 0
    %p178 = por %p176, %p177
    %p179 = scmp.ne.s32.totalorder %s167, %s168
    %p180 = scmp.eq.s32.totalorder %s25, 2
    %p181 = por %p179, %p180
    %p183 = scmp.ne.s32.totalorder %s168, %s182
    %p184 = scmp.eq.s32.totalorder %s25, 0
    %p185 = por %p183, %p184
    %s187 = sadd.s32 %s186, 1
    %p190 = scmp.eq.s32.totalorder %s19, 2
    %p191 = scmp.ne.s32.totalorder %s186, %s188
    %p192 = scmp.eq.s32.totalorder %s19, 0
    %p193 = por %p191, %p192
    %p194 = scmp.ne.s32.totalorder %s186, %s188
    %p195 = scmp.eq.s32.totalorder %s24, 2
    %p196 = por %p194, %p195
    %p197 = scmp.ne.s32.totalorder %s188, %s189
    %p198 = scmp.eq.s32.totalorder %s24, 0
    %p199 = por %p197, %p198
    %p200 = scmp.ne.s32.totalorder %s188, %s189
    %p201 = scmp.eq.s32.totalorder %s25, 2
    %p202 = por %p200, %p201
    %p204 = scmp.ne.s32.totalorder %s189, %s203
    %p205 = scmp.eq.s32.totalorder %s25, 0
    %p206 = por %p204, %p205
    %s208 = sadd.s32 %s207, 1
    %p211 = scmp.eq.s32.totalorder %s19, 2
    %p212 = scmp.ne.s32.totalorder %s207, %s209
    %p213 = scmp.eq.s32.totalorder %s19, 0
    %p214 = por %p212, %p213
    %p215 = scmp.ne.s32.totalorder %s207, %s209
    %p216 = scmp.eq.s32.totalorder %s24, 2
    %p217 = por %p215, %p216
    %p218 = scmp.ne.s32.totalorder %s209, %s210
    %p219 = scmp.eq.s32.totalorder %s24, 0
    %p220 = por %p218, %p219
    %p221 = scmp.ne.s32.totalorder %s209, %s210
    %p222 = scmp.eq.s32.totalorder %s25, 2
    %p223 = por %p221, %p222
    %p225 = scmp.ne.s32.totalorder %s210, %s224
    %p226 = scmp.eq.s32.totalorder %s25, 0
    %p227 = por %p225, %p226
    %s228 = ssub.s32 %s19, %s26
    %p229 = scmp.eq.s32.totalorder %s228, 0
    %s231 = sadd.s32 %s230, 1
    %s232 = scalar_select %p229, %s230, %s231
    %p235 = pneg %p229
    %p236 = scmp.eq.s32.totalorder %s19, 2
    %p237 = por %p235, %p236
    %p238 = scmp.ne.s32.totalorder %s230, %s233
    %p239 = scmp.eq.s32.totalorder %s19, 0
    %p240 = por %p238, %p239
    %p241 = scmp.ne.s32.totalorder %s230, %s233
    %p242 = scmp.eq.s32.totalorder %s24, 2
    %p243 = por %p241, %p242
    %p244 = scmp.ne.s32.totalorder %s233, %s234
    %p245 = scmp.eq.s32.totalorder %s24, 0
    %p246 = por %p244, %p245
    %p247 = scmp.ne.s32.totalorder %s233, %s234
    %p248 = scmp.eq.s32.totalorder %s25, 2
    %p249 = por %p247, %p248
    %p251 = scmp.ne.s32.totalorder %s234, %s250
    %p252 = scmp.eq.s32.totalorder %s25, 0
    %p253 = por %p251, %p252
    %s254 = ssub.s32 2, %s19
    %s255 = ssub.s32 2, %s26
    %s256 = ssub.s32 %s254, %s255
    %p257 = scmp.eq.s32.totalorder %s256, 0
    %s259 = sadd.s32 %s258, 1
    %s260 = scalar_select %p257, %s258, %s259
    %p263 = pneg %p257
    %p264 = scmp.eq.s32.totalorder %s19, 2
    %p265 = por %p263, %p264
    %p266 = scmp.ne.s32.totalorder %s258, %s261
    %p267 = scmp.eq.s32.totalorder %s19, 0
    %p268 = por %p266, %p267
    %p269 = scmp.ne.s32.totalorder %s258, %s261
    %p270 = scmp.eq.s32.totalorder %s24, 2
    %p271 = por %p269, %p270
    %p272 = scmp.ne.s32.totalorder %s261, %s262
    %p273 = scmp.eq.s32.totalorder %s24, 0
    %p274 = por %p272, %p273
    %p275 = scmp.ne.s32.totalorder %s261, %s262
    %p276 = scmp.eq.s32.totalorder %s25, 2
    %p277 = por %p275, %p276
    %p279 = scmp.ne.s32.totalorder %s262, %s278
    %p280 = scmp.eq.s32.totalorder %s25, 0
    %p281 = por %p279, %p280
    %s283 = sadd.s32 %s282, 1
    %p286 = scmp.eq.s32.totalorder %s19, 2
    %p287 = scmp.ne.s32.totalorder %s282, %s284
    %p288 = scmp.eq.s32.totalorder %s19, 0
    %p289 = por %p287, %p288
    %p290 = scmp.ne.s32.totalorder %s282, %s284
    %p291 = scmp.eq.s32.totalorder %s24, 2
    %p292 = por %p290, %p291
    %p293 = scmp.ne.s32.totalorder %s284, %s285
    %p294 = scmp.eq.s32.totalorder %s24, 0
    %p295 = por %p293, %p294
    %p296 = scmp.ne.s32.totalorder %s284, %s285
    %p297 = scmp.eq.s32.totalorder %s25, 2
    %p298 = por %p296, %p297
    %p300 = scmp.ne.s32.totalorder %s285, %s299
    %p301 = scmp.eq.s32.totalorder %s25, 0
    %p302 = por %p300, %p301
    %s304 = sadd.s32 %s303, 1
    %p307 = scmp.eq.s32.totalorder %s19, 2
    %p308 = scmp.ne.s32.totalorder %s303, %s305
    %p309 = scmp.eq.s32.totalorder %s19, 0
    %p310 = por %p308, %p309
    %p311 = scmp.ne.s32.totalorder %s303, %s305
    %p312 = scmp.eq.s32.totalorder %s24, 2
    %p313 = por %p311, %p312
    %p314 = scmp.ne.s32.totalorder %s305, %s306
    %p315 = scmp.eq.s32.totalorder %s24, 0
    %p316 = por %p314, %p315
    %p317 = scmp.ne.s32.totalorder %s305, %s306
    %p318 = scmp.eq.s32.totalorder %s25, 2
    %p319 = por %p317, %p318
    %p321 = scmp.ne.s32.totalorder %s306, %s320
    %p322 = scmp.eq.s32.totalorder %s25, 0
    %p323 = por %p321, %p322
    %p324 = scmp.le.s32.totalorder 1, %s19
    %p325 = scmp.lt.s32.totalorder %s19, 4
    %p326 = pnand %p324, %p325
    %p327 = pneg %p326
    // Predicated region
    $region9: #{gru_encoder_forward.2} parent=5 // pred_check
      _
    $region10: #{gru_encoder_forward.2} parent=5 // pred_check_branch
      %329 = sbr.rel (%p326) target = $region12
    $region11: #{gru_encoder_forward.2} parent=5 // pred_region
      %s330 = ssub.s32 %s19, 1
      // Predicated region
      $region13: #{gru_encoder_forward.2} parent=11 // pred_check
        %p331 = pneg %p40
      $region14: #{gru_encoder_forward.2} parent=11 // pred_check_branch
        %333 = sbr.rel (%p331) target = $region16
      $region15: #{gru_encoder_forward.2} parent=11 // pred_region
        _
      $region16: #{gru_encoder_forward.2} parent=11 // pred_fallthru
        _
      // Predicated region
      $region17: #{gru_encoder_forward.2} parent=11 // pred_check
        %p334 = pneg %p115
      $region18: #{gru_encoder_forward.2} parent=11 // pred_check_branch
        %336 = sbr.rel (%p334) target = $region20
      $region19: #{gru_encoder_forward.2} parent=11 // pred_region
        _
      $region20: #{gru_encoder_forward.2} parent=11 // pred_fallthru
        _
      // Predicated region
      $region21: #{gru_encoder_forward.2} parent=11 // pred_check
        %p337 = pneg %p136
      $region22: #{gru_encoder_forward.2} parent=11 // pred_check_branch
        %339 = sbr.rel (%p337) target = $region24
      $region23: #{gru_encoder_forward.2} parent=11 // pred_region
        _
      $region24: #{gru_encoder_forward.2} parent=11 // pred_fallthru
        _
      // Predicated region
      $region25: #{gru_encoder_forward.2} parent=11 // pred_check
        %p340 = pneg %p157
      $region26: #{gru_encoder_forward.2} parent=11 // pred_check_branch
        %342 = sbr.rel (%p340) target = $region28
      $region27: #{gru_encoder_forward.2} parent=11 // pred_region
        _
      $region28: #{gru_encoder_forward.2} parent=11 // pred_fallthru
        _
      // Predicated region
      $region29: #{gru_encoder_forward.2} parent=11 // pred_check
        %p343 = pneg %p178
      $region30: #{gru_encoder_forward.2} parent=11 // pred_check_branch
        %345 = sbr.rel (%p343) target = $region32
      $region31: #{gru_encoder_forward.2} parent=11 // pred_region
        _
      $region32: #{gru_encoder_forward.2} parent=11 // pred_fallthru
        _
      // Predicated region
      $region33: #{gru_encoder_forward.2} parent=11 // pred_check
        %p346 = pneg %p199
      $region34: #{gru_encoder_forward.2} parent=11 // pred_check_branch
        %348 = sbr.rel (%p346) target = $region36
      $region35: #{gru_encoder_forward.2} parent=11 // pred_region
        _
      $region36: #{gru_encoder_forward.2} parent=11 // pred_fallthru
        _
      // Predicated region
      $region37: #{gru_encoder_forward.2} parent=11 // pred_check
        %p349 = pneg %p220
      $region38: #{gru_encoder_forward.2} parent=11 // pred_check_branch
        %351 = sbr.rel (%p349) target = $region40
      $region39: #{gru_encoder_forward.2} parent=11 // pred_region
        _
      $region40: #{gru_encoder_forward.2} parent=11 // pred_fallthru
        _
    $region12: #{gru_encoder_forward.2} parent=5 // pred_fallthru
      _
    %p352 = scmp.lt.s32.totalorder %s19, 3
    // Predicated region
    $region41: #{gru_encoder_forward.2} parent=5 // pred_check
      %p353 = pneg %p352
    $region42: #{gru_encoder_forward.2} parent=5 // pred_check_branch
      %355 = sbr.rel (%p353) target = $region44
    $region43: #{gru_encoder_forward.2} parent=5 // pred_region
      // Predicated region
      $region45: #{gru_encoder_forward.2} parent=43 // pred_check
        %p356 = pneg %p60
      $region46: #{gru_encoder_forward.2} parent=43 // pred_check_branch
        %358 = sbr.rel (%p356) target = $region48
      $region47: #{gru_encoder_forward.2} parent=43 // pred_region
        %s359 = smul.u32 16, %s19
        %p360 = scmp.lt.s32.totalorder %s359, 47
        %s361 = scalar_select %p360, %s359, 47
        %s362 = smul.addr %s361, 4
        %s363 = scalar_lea.vmem %s1, %s362
        %s364 = smul.u32 16, %s19
      $region48: #{gru_encoder_forward.2} parent=43 // pred_fallthru
        _
      // Predicated region
      $region49: #{gru_encoder_forward.2} parent=43 // pred_check
        %p365 = pneg %p88
      $region50: #{gru_encoder_forward.2} parent=43 // pred_check_branch
        %367 = sbr.rel (%p365) target = $region52
      $region51: #{gru_encoder_forward.2} parent=43 // pred_region
        %s368 = ssub.s32 2, %s19
        %s369 = smul.u32 16, %s368
        %p370 = scmp.lt.s32.totalorder %s369, 47
        %s371 = scalar_select %p370, %s369, 47
        %s372 = sadd.s32 %s371, 48
        %s373 = smul.addr %s372, 4
        %s374 = scalar_lea.vmem %s2, %s373
        %s375 = ssub.s32 2, %s19
        %s376 = smul.u32 16, %s375
      $region52: #{gru_encoder_forward.2} parent=43 // pred_fallthru
        _
    $region44: #{gru_encoder_forward.2} parent=5 // pred_fallthru
      _
    %p377 = scmp.le.s32.totalorder 1, %s19
    %p378 = scmp.lt.s32.totalorder %s19, 4
    %p379 = pnand %p377, %p378
    %p380 = pneg %p379
    // Predicated region
    $region53: #{gru_encoder_forward.2} parent=5 // pred_check
      _
    $region54: #{gru_encoder_forward.2} parent=5 // pred_check_branch
      %382 = sbr.rel (%p379) target = $region56
    $region55: #{gru_encoder_forward.2} parent=5 // pred_region
      %s383 = ssub.s32 %s19, 1
      %p384 = pneg %p40
      %p385 = pneg %p37
      %s386 = smul.u32 16, %s24
      %p387 = scmp.lt.s32.totalorder %s386, 47
      %s388 = scalar_select %p387, %s386, 47
      %s389 = smul.addr %s388, 4
      %s390 = scalar_lea.vmem %s1, %s389
      %p391 = pneg %p66
      %p392 = pneg %p63
      %s393 = ssub.s32 2, %s24
      %s394 = smul.u32 16, %s393
      %p395 = scmp.lt.s32.totalorder %s394, 47
      %s396 = scalar_select %p395, %s394, 47
      %s397 = sadd.s32 %s396, 48
      %s398 = smul.addr %s397, 4
      %s399 = scalar_lea.vmem %s2, %s398
      %p400 = pneg %p94
      %p401 = pneg %p91
      %p402 = pneg %p115
      %p403 = pneg %p112
      %p404 = pneg %p136
      %p405 = pneg %p133
      %p406 = pneg %p157
      %p407 = pneg %p154
      %p408 = pneg %p178
      %p409 = pneg %p175
      %p410 = pneg %p199
      %p411 = pneg %p196
      %p412 = pneg %p220
      %p413 = pneg %p217
      %p414 = pneg %p246
      %p415 = pneg %p243
      %s416 = smul.u32 16, %s24
      %p417 = scmp.lt.s32.totalorder %s416, 47
      %s418 = scalar_select %p417, %s416, 47
      %s419 = smul.addr %s418, 4
      %s420 = scalar_lea.vmem %s9, %s419
      %p421 = pneg %p274
      %p422 = pneg %p271
      %s423 = ssub.s32 2, %s24
      %s424 = smul.u32 16, %s423
      %p425 = scmp.lt.s32.totalorder %s424, 47
      %s426 = scalar_select %p425, %s424, 47
      %s427 = smul.addr %s426, 4
      %s428 = scalar_lea.vmem %s10, %s427
      %p429 = pneg %p295
      %p430 = pneg %p292
      %p431 = pneg %p316
      %p432 = pneg %p313
      %s433 = smul.u32 16, %s24
      %p434 = scmp.lt.s32.totalorder %s433, 47
      %s435 = scalar_select %p434, %s433, 47
      %s436 = smul.addr %s435, 4
      %s437 = scalar_lea.vmem %s1, %s436
      %s438 = smul.u32 16, %s24
      %s439 = ssub.s32 2, %s24
      %s440 = smul.u32 16, %s439
      %p441 = scmp.lt.s32.totalorder %s440, 47
      %s442 = scalar_select %p441, %s440, 47
      %s443 = sadd.s32 %s442, 48
      %s444 = smul.addr %s443, 4
      %s445 = scalar_lea.vmem %s2, %s444
      %s446 = ssub.s32 2, %s24
      %s447 = smul.u32 16, %s446
      %s448 = smul.u32 16, %s24
      %p449 = scmp.lt.s32.totalorder %s448, 47
      %s450 = scalar_select %p449, %s448, 47
      %s451 = smul.addr %s450, 4
      %s452 = scalar_lea.vmem %s9, %s451
      %s453 = smul.u32 16, %s24
      %s454 = ssub.s32 2, %s24
      %s455 = smul.u32 16, %s454
      %p456 = scmp.lt.s32.totalorder %s455, 47
      %s457 = scalar_select %p456, %s455, 47
      %s458 = smul.addr %s457, 4
      %s459 = scalar_lea.vmem %s10, %s458
      %s460 = ssub.s32 2, %s24
      %s461 = smul.u32 16, %s460
      %p462 = scmp.eq.s32.totalorder %s24, 0
      // Predicated region
      $region57: #{gru_encoder_forward.2} parent=55 // pred_check
        %p463 = pneg %p462
      $region58: #{gru_encoder_forward.2} parent=55 // pred_check_branch
        %465 = sbr.rel (%p463) target = $region60
      $region59: #{gru_encoder_forward.2} parent=55 // pred_region
        %vm466 = vcmask 257024
        %467 = vst.msk [vmem:[#allocation2] sm:$0xf] %vm466, 0.0
        %468 = vst.msk [vmem:[#allocation3] sm:$0xf] %vm466, 0.0
      $region60: #{gru_encoder_forward.2} parent=55 // pred_fallthru
        _
      %v469 = vld [vmem:[%s3] sm:$0xff]
      %v470 = vld [vmem:[%s3 + $0x8] sm:$0xff]
      %v471 = vld [vmem:[%s3 + $0x10] sm:$0xff]
      %v472 = vld [vmem:[%s3 + $0x18] sm:$0xff]
      %v473 = vld [vmem:[%s4] sm:$0xff]
      %v474 = vld [vmem:[%s4 + $0x8] sm:$0xff]
      %v475 = vld [vmem:[%s4 + $0x10] sm:$0xff]
      %v476 = vld [vmem:[%s4 + $0x18] sm:$0xff]
      %v477 = vld [vmem:[%s5] sm:$0x1]
      %v479 = vlaneseq
      %v480 = vshrl.u32 %v479, 7
      %v481 = vsub.s32 0, %v480
      %v482 = vrot.slane %v477, %v481
      %v484 = vld [vmem:[%s6] sm:$0x1]
      %v486 = vlaneseq
      %v487 = vshrl.u32 %v486, 7
      %v488 = vsub.s32 0, %v487
      %v489 = vrot.slane %v484, %v488
      %v491 = vld [vmem:[%s7] sm:$0x1]
      %v493 = vlaneseq
      %v494 = vshrl.u32 %v493, 7
      %v495 = vsub.s32 0, %v494
      %v496 = vrot.slane %v491, %v495
      %v497 = vld [vmem:[%s8] sm:$0x1]
      %v499 = vlaneseq
      %v500 = vshrl.u32 %v499, 7
      %v501 = vsub.s32 0, %v500
      %v502 = vrot.slane %v497, %v501
      %v503 = vld [vmem:[%s0] sm:$0xf]
      %504 = vset.pattern.permute.xlu0 0
      %505 = vperm.xlu0 %504, %v503
      %v506 = vpop.permute.xlu0 %505
      %s507 = smul.u32 %s24, 16
      %s508 = ssub.s32 2, %s24
      %s509 = smul.u32 %s508, 16
      %v510 = vld [vmem:[#allocation2] sm:$0xf]
      %v511 = vld [vmem:[#allocation3] sm:$0xf]
      %v512 = vld [vmem:[%s437] sm:$0xf]
      %v513 = vadd.f32 %v512, %v482
      %s514 = scalar_lea.vmem %s445, 60
      %v515 = vld [vmem:[%s514] sm:$0xf]
      %v516 = vadd.f32 %v515, %v489
      %vm517 = vcmask 261120
      %v519 = vsel %vm517, %v510, 0
      %521 = vmatprep.subr.mxu0 0.0
      %522 = vmatpush1.msra.mxu0 %v469
      %523 = vmatprep.subr.mxu0 0.0
      %524 = vmatpush1.msra.mxu0 %v470
      %525 = vmatprep.subr.mxu0 0.0
      %526 = vmatpush1.msra.mxu0 %v471
      %527 = vmatprep.subr.mxu0 0.0
      %528 = vmatpush1.msra.mxu0 %v472
      %529 = vmatprep.subr.mxu0 0.0
      %530 = vmatpush1.msra.mxu0 0.0
      %531 = vmatprep.subr.mxu0 0.0
      %532 = vmatpush1.msra.mxu0 0.0
      %533 = vmatprep.subr.mxu0 0.0
      %534 = vmatpush1.msra.mxu0 0.0
      %535 = vmatprep.subr.mxu0 0.0
      %536 = vmatpush1.msra.mxu0 0.0
      %537 = vmatprep.subr.mxu0 0.0
      %538 = vmatpush1.msra.mxu0 0.0
      %539 = vmatprep.subr.mxu0 0.0
      %540 = vmatpush1.msra.mxu0 0.0
      %541 = vmatprep.subr.mxu0 0.0
      %542 = vmatpush1.msra.mxu0 0.0
      %543 = vmatprep.subr.mxu0 0.0
      %544 = vmatpush1.msra.mxu0 0.0
      %545 = vmatprep.subr.mxu0 0.0
      %546 = vmatpush1.msra.mxu0 0.0
      %547 = vmatprep.subr.mxu0 0.0
      %548 = vmatpush1.msra.mxu0 0.0
      %549 = vmatprep.subr.mxu0 0.0
      %550 = vmatpush1.msra.mxu0 0.0
      %551 = vmatprep.subr.mxu0 0.0
      %552 = vmatpush1.msra.mxu0 0.0
      %553 = vmatprep.subr.mxu0 0.0
      %554 = vmatpush1.msra.mxu0 0.0
      %555 = vmatprep.subr.mxu0 0.0
      %556 = vmatpush1.msra.mxu0 0.0
      %557 = vmatprep.subr.mxu0 0.0
      %558 = vmatpush1.msra.mxu0 0.0
      %559 = vmatprep.subr.mxu0 0.0
      %560 = vmatpush1.msra.mxu0 0.0
      %561 = vmatprep.subr.mxu0 0.0
      %562 = vmatpush1.msra.mxu0 0.0
      %563 = vmatprep.subr.mxu0 0.0
      %564 = vmatpush1.msra.mxu0 0.0
      %565 = vmatprep.subr.mxu0 0.0
      %566 = vmatpush1.msra.mxu0 0.0
      %567 = vmatprep.subr.mxu0 0.0
      %568 = vmatpush1.msra.mxu0 0.0
      %569 = vmatprep.subr.mxu0 0.0
      %570 = vmatpush1.msra.mxu0 0.0
      %571 = vmatprep.subr.mxu0 0.0
      %572 = vmatpush1.msra.mxu0 0.0
      %573 = vmatprep.subr.mxu0 0.0
      %574 = vmatpush1.msra.mxu0 0.0
      %575 = vmatprep.subr.mxu0 0.0
      %576 = vmatpush1.msra.mxu0 0.0
      %577 = vmatprep.subr.mxu0 0.0
      %578 = vmatpush1.msra.mxu0 0.0
      %579 = vmatprep.subr.mxu0 0.0
      %580 = vmatpush1.msra.mxu0 0.0
      %581 = vmatprep.subr.mxu0 0.0
      %582 = vmatpush1.msra.mxu0 0.0
      %583 = vmatprep.subr.mxu0 0.0
      %584 = vmatpush1.msra.mxu0 0.0
      %585 = vmatprep.mubr.f32.mxu0 0.0
      %586 = vmatmul.mubr.f32.gmra.mrb[0].mxu0 %v519
      %v587 = vpop.f32.mrb[0].mxu0
      %v588 = vadd.f32 0.0, %v587
      %v589 = vpop.f32.mrb[0].mxu0
      %590 = vdwg.mxu0
      %v591 = vadd.f32 %v513, %v588
      %v592 = vxor.u32 %v591, 2147483648
      %v593 = vmul.f32 %v592, 1.442695
      %v594 = vpow.pop %v593
      %v595 = vadd.f32 %v594, 1.0
      %v596 = vrcp.pop %v595
      %v597 = vmul.f32 1.0, %v596
      %598 = vrot.lane.b32.xlu0 %v496, 64
      %v599 = vpop.permute.xlu0 %598
      %v601 = vadd.f32 %v588, %v599
      %603 = vrot.lane.b32.xlu0 %v601, 64
      %v604 = vpop.permute.xlu0 %603
      %v606 = vmul.f32 %v597, %v604
      %608 = vrot.lane.b32.xlu0 %v606, 64
      %v609 = vpop.permute.xlu0 %608
      %v611 = vadd.f32 %v513, %v609
      %v612 = vtanh.pop %v611
      %v613 = vsub.f32 1.0, %v597
      %615 = vrot.lane.b32.xlu0 %v612, 96
      %v616 = vpop.permute.xlu0 %615
      %v618 = vmul.f32 %v613, %v616
      %619 = vrot.lane.b32.xlu0 %v510, 32
      %v620 = vpop.permute.xlu0 %619
      %v622 = vmul.f32 %v597, %v620
      %v623 = vadd.f32 %v618, %v622
      %v625 = vsel %vm517, %v511, 0
      %627 = vmatprep.subr.mxu0 0.0
      %628 = vmatpush1.msra.mxu0 %v473
      %629 = vmatprep.subr.mxu0 0.0
      %630 = vmatpush1.msra.mxu0 %v474
      %631 = vmatprep.subr.mxu0 0.0
      %632 = vmatpush1.msra.mxu0 %v475
      %633 = vmatprep.subr.mxu0 0.0
      %634 = vmatpush1.msra.mxu0 %v476
      %635 = vmatprep.subr.mxu0 0.0
      %636 = vmatpush1.msra.mxu0 0.0
      %637 = vmatprep.subr.mxu0 0.0
      %638 = vmatpush1.msra.mxu0 0.0
      %639 = vmatprep.subr.mxu0 0.0
      %640 = vmatpush1.msra.mxu0 0.0
      %641 = vmatprep.subr.mxu0 0.0
      %642 = vmatpush1.msra.mxu0 0.0
      %643 = vmatprep.subr.mxu0 0.0
      %644 = vmatpush1.msra.mxu0 0.0
      %645 = vmatprep.subr.mxu0 0.0
      %646 = vmatpush1.msra.mxu0 0.0
      %647 = vmatprep.subr.mxu0 0.0
      %648 = vmatpush1.msra.mxu0 0.0
      %649 = vmatprep.subr.mxu0 0.0
      %650 = vmatpush1.msra.mxu0 0.0
      %651 = vmatprep.subr.mxu0 0.0
      %652 = vmatpush1.msra.mxu0 0.0
      %653 = vmatprep.subr.mxu0 0.0
      %654 = vmatpush1.msra.mxu0 0.0
      %655 = vmatprep.subr.mxu0 0.0
      %656 = vmatpush1.msra.mxu0 0.0
      %657 = vmatprep.subr.mxu0 0.0
      %658 = vmatpush1.msra.mxu0 0.0
      %659 = vmatprep.subr.mxu0 0.0
      %660 = vmatpush1.msra.mxu0 0.0
      %661 = vmatprep.subr.mxu0 0.0
      %662 = vmatpush1.msra.mxu0 0.0
      %663 = vmatprep.subr.mxu0 0.0
      %664 = vmatpush1.msra.mxu0 0.0
      %665 = vmatprep.subr.mxu0 0.0
      %666 = vmatpush1.msra.mxu0 0.0
      %667 = vmatprep.subr.mxu0 0.0
      %668 = vmatpush1.msra.mxu0 0.0
      %669 = vmatprep.subr.mxu0 0.0
      %670 = vmatpush1.msra.mxu0 0.0
      %671 = vmatprep.subr.mxu0 0.0
      %672 = vmatpush1.msra.mxu0 0.0
      %673 = vmatprep.subr.mxu0 0.0
      %674 = vmatpush1.msra.mxu0 0.0
      %675 = vmatprep.subr.mxu0 0.0
      %676 = vmatpush1.msra.mxu0 0.0
      %677 = vmatprep.subr.mxu0 0.0
      %678 = vmatpush1.msra.mxu0 0.0
      %679 = vmatprep.subr.mxu0 0.0
      %680 = vmatpush1.msra.mxu0 0.0
      %681 = vmatprep.subr.mxu0 0.0
      %682 = vmatpush1.msra.mxu0 0.0
      %683 = vmatprep.subr.mxu0 0.0
      %684 = vmatpush1.msra.mxu0 0.0
      %685 = vmatprep.subr.mxu0 0.0
      %686 = vmatpush1.msra.mxu0 0.0
      %687 = vmatprep.subr.mxu0 0.0
      %688 = vmatpush1.msra.mxu0 0.0
      %689 = vmatprep.subr.mxu0 0.0
      %690 = vmatpush1.msra.mxu0 0.0
      %691 = vmatprep.mubr.f32.mxu0 0.0
      %692 = vmatmul.mubr.f32.gmra.mrb[0].mxu0 %v625
      %v693 = vpop.f32.mrb[0].mxu0
      %v694 = vadd.f32 0.0, %v693
      %v695 = vpop.f32.mrb[0].mxu0
      %696 = vdwg.mxu0
      %v697 = vadd.f32 %v516, %v694
      %v698 = vxor.u32 %v697, 2147483648
      %v699 = vmul.f32 %v698, 1.442695
      %v700 = vpow.pop %v699
      %v701 = vadd.f32 %v700, 1.0
      %v702 = vrcp.pop %v701
      %v703 = vmul.f32 1.0, %v702
      %704 = vrot.lane.b32.xlu0 %v502, 64
      %v705 = vpop.permute.xlu0 %704
      %v707 = vadd.f32 %v694, %v705
      %709 = vrot.lane.b32.xlu0 %v707, 64
      %v710 = vpop.permute.xlu0 %709
      %v712 = vmul.f32 %v703, %v710
      %714 = vrot.lane.b32.xlu0 %v712, 64
      %v715 = vpop.permute.xlu0 %714
      %v717 = vadd.f32 %v516, %v715
      %v718 = vtanh.pop %v717
      %v719 = vsub.f32 1.0, %v703
      %721 = vrot.lane.b32.xlu0 %v718, 96
      %v722 = vpop.permute.xlu0 %721
      %v724 = vmul.f32 %v719, %v722
      %725 = vrot.lane.b32.xlu0 %v511, 32
      %v726 = vpop.permute.xlu0 %725
      %v728 = vmul.f32 %v703, %v726
      %v729 = vadd.f32 %v724, %v728
      %v730 = vstv %s507
      %vm731 = vcmp.lt.s32.totalorder %v730, %v506
      %s732 = sadd.s32 %s509, 15
      %v733 = vstv %s732
      %vm734 = vcmp.lt.s32.totalorder %v733, %v506
      %v735 = vsel %vm731, %v623, %v620
      %v736 = vsel %vm734, %v729, %v726
      %v737 = vsel %vm731, %v623, 0.0
      %739 = vrot.lane.b32.xlu0 %v737, 96
      %v740 = vpop.permute.xlu0 %739
      %vm742 = vcmask 257024
      %743 = vst.msk [vmem:[%s452] sm:$0xf] %vm742, %v740
      %v744 = vsel %vm734, %v729, 0.0
      %746 = vrot.lane.b32.xlu0 %v744, 96
      %v747 = vpop.permute.xlu0 %746
      %s749 = scalar_lea.vmem %s459, 60
      %750 = vst.msk [vmem:[%s749] sm:$0xf] %vm742, %v747
      %s751 = scalar_lea.vmem %s437, 4
      %v752 = vld [vmem:[%s751] sm:$0xf]
      %v753 = vadd.f32 %v752, %v482
      %s754 = scalar_lea.vmem %s445, 56
      %v755 = vld [vmem:[%s754] sm:$0xf]
      %v756 = vadd.f32 %v755, %v489
      %758 = vrot.lane.b32.xlu0 %v735, 96
      %v759 = vpop.permute.xlu0 %758
      %v760 = vsel %vm517, %v759, 0
      %762 = vmatprep.subr.mxu0 0.0
      %763 = vmatpush1.msra.mxu0 %v469
      %764 = vmatprep.subr.mxu0 0.0
      %765 = vmatpush1.msra.mxu0 %v470
      %766 = vmatprep.subr.mxu0 0.0
      %767 = vmatpush1.msra.mxu0 %v471
      %768 = vmatprep.subr.mxu0 0.0
      %769 = vmatpush1.msra.mxu0 %v472
      %770 = vmatprep.subr.mxu0 0.0
      %771 = vmatpush1.msra.mxu0 0.0
      %772 = vmatprep.subr.mxu0 0.0
      %773 = vmatpush1.msra.mxu0 0.0
      %774 = vmatprep.subr.mxu0 0.0
      %775 = vmatpush1.msra.mxu0 0.0
      %776 = vmatprep.subr.mxu0 0.0
      %777 = vmatpush1.msra.mxu0 0.0
      %778 = vmatprep.subr.mxu0 0.0
      %779 = vmatpush1.msra.mxu0 0.0
      %780 = vmatprep.subr.mxu0 0.0
      %781 = vmatpush1.msra.mxu0 0.0
      %782 = vmatprep.subr.mxu0 0.0
      %783 = vmatpush1.msra.mxu0 0.0
      %784 = vmatprep.subr.mxu0 0.0
      %785 = vmatpush1.msra.mxu0 0.0
      %786 = vmatprep.subr.mxu0 0.0
      %787 = vmatpush1.msra.mxu0 0.0
      %788 = vmatprep.subr.mxu0 0.0
      %789 = vmatpush1.msra.mxu0 0.0
      %790 = vmatprep.subr.mxu0 0.0
      %791 = vmatpush1.msra.mxu0 0.0
      %792 = vmatprep.subr.mxu0 0.0
      %793 = vmatpush1.msra.mxu0 0.0
      %794 = vmatprep.subr.mxu0 0.0
      %795 = vmatpush1.msra.mxu0 0.0
      %796 = vmatprep.subr.mxu0 0.0
      %797 = vmatpush1.msra.mxu0 0.0
      %798 = vmatprep.subr.mxu0 0.0
      %799 = vmatpush1.msra.mxu0 0.0
      %800 = vmatprep.subr.mxu0 0.0
      %801 = vmatpush1.msra.mxu0 0.0
      %802 = vmatprep.subr.mxu0 0.0
      %803 = vmatpush1.msra.mxu0 0.0
      %804 = vmatprep.subr.mxu0 0.0
      %805 = vmatpush1.msra.mxu0 0.0
      %806 = vmatprep.subr.mxu0 0.0
      %807 = vmatpush1.msra.mxu0 0.0
      %808 = vmatprep.subr.mxu0 0.0
      %809 = vmatpush1.msra.mxu0 0.0
      %810 = vmatprep.subr.mxu0 0.0
      %811 = vmatpush1.msra.mxu0 0.0
      %812 = vmatprep.subr.mxu0 0.0
      %813 = vmatpush1.msra.mxu0 0.0
      %814 = vmatprep.subr.mxu0 0.0
      %815 = vmatpush1.msra.mxu0 0.0
      %816 = vmatprep.subr.mxu0 0.0
      %817 = vmatpush1.msra.mxu0 0.0
      %818 = vmatprep.subr.mxu0 0.0
      %819 = vmatpush1.msra.mxu0 0.0
      %820 = vmatprep.subr.mxu0 0.0
      %821 = vmatpush1.msra.mxu0 0.0
      %822 = vmatprep.subr.mxu0 0.0
      %823 = vmatpush1.msra.mxu0 0.0
      %824 = vmatprep.subr.mxu0 0.0
      %825 = vmatpush1.msra.mxu0 0.0
      %826 = vmatprep.mubr.f32.mxu0 0.0
      %827 = vmatmul.mubr.f32.gmra.mrb[0].mxu0 %v760
      %v828 = vpop.f32.mrb[0].mxu0
      %v829 = vadd.f32 0.0, %v828
      %v830 = vpop.f32.mrb[0].mxu0
      %831 = vdwg.mxu0
      %v832 = vadd.f32 %v753, %v829
      %v833 = vxor.u32 %v832, 2147483648
      %v834 = vmul.f32 %v833, 1.442695
      %v835 = vpow.pop %v834
      %v836 = vadd.f32 %v835, 1.0
      %v837 = vrcp.pop %v836
      %v838 = vmul.f32 1.0, %v837
      %v839 = vadd.f32 %v829, %v599
      %841 = vrot.lane.b32.xlu0 %v839, 64
      %v842 = vpop.permute.xlu0 %841
      %v844 = vmul.f32 %v838, %v842
      %846 = vrot.lane.b32.xlu0 %v844, 64
      %v847 = vpop.permute.xlu0 %846
      %v849 = vadd.f32 %v753, %v847
      %v850 = vtanh.pop %v849
      %v851 = vsub.f32 1.0, %v838
      %853 = vrot.lane.b32.xlu0 %v850, 96
      %v854 = vpop.permute.xlu0 %853
      %v856 = vmul.f32 %v851, %v854
      %v857 = vmul.f32 %v838, %v735
      %v858 = vadd.f32 %v856, %v857
      %860 = vrot.lane.b32.xlu0 %v736, 96
      %v861 = vpop.permute.xlu0 %860
      %v862 = vsel %vm517, %v861, 0
      %864 = vmatprep.subr.mxu0 0.0
      %865 = vmatpush1.msra.mxu0 %v473
      %866 = vmatprep.subr.mxu0 0.0
      %867 = vmatpush1.msra.mxu0 %v474
      %868 = vmatprep.subr.mxu0 0.0
      %869 = vmatpush1.msra.mxu0 %v475
      %870 = vmatprep.subr.mxu0 0.0
      %871 = vmatpush1.msra.mxu0 %v476
      %872 = vmatprep.subr.mxu0 0.0
      %873 = vmatpush1.msra.mxu0 0.0
      %874 = vmatprep.subr.mxu0 0.0
      %875 = vmatpush1.msra.mxu0 0.0
      %876 = vmatprep.subr.mxu0 0.0
      %877 = vmatpush1.msra.mxu0 0.0
      %878 = vmatprep.subr.mxu0 0.0
      %879 = vmatpush1.msra.mxu0 0.0
      %880 = vmatprep.subr.mxu0 0.0
      %881 = vmatpush1.msra.mxu0 0.0
      %882 = vmatprep.subr.mxu0 0.0
      %883 = vmatpush1.msra.mxu0 0.0
      %884 = vmatprep.subr.mxu0 0.0
      %885 = vmatpush1.msra.mxu0 0.0
      %886 = vmatprep.subr.mxu0 0.0
      %887 = vmatpush1.msra.mxu0 0.0
      %888 = vmatprep.subr.mxu0 0.0
      %889 = vmatpush1.msra.mxu0 0.0
      %890 = vmatprep.subr.mxu0 0.0
      %891 = vmatpush1.msra.mxu0 0.0
      %892 = vmatprep.subr.mxu0 0.0
      %893 = vmatpush1.msra.mxu0 0.0
      %894 = vmatprep.subr.mxu0 0.0
      %895 = vmatpush1.msra.mxu0 0.0
      %896 = vmatprep.subr.mxu0 0.0
      %897 = vmatpush1.msra.mxu0 0.0
      %898 = vmatprep.subr.mxu0 0.0
      %899 = vmatpush1.msra.mxu0 0.0
      %900 = vmatprep.subr.mxu0 0.0
      %901 = vmatpush1.msra.mxu0 0.0
      %902 = vmatprep.subr.mxu0 0.0
      %903 = vmatpush1.msra.mxu0 0.0
      %904 = vmatprep.subr.mxu0 0.0
      %905 = vmatpush1.msra.mxu0 0.0
      %906 = vmatprep.subr.mxu0 0.0
      %907 = vmatpush1.msra.mxu0 0.0
      %908 = vmatprep.subr.mxu0 0.0
      %909 = vmatpush1.msra.mxu0 0.0
      %910 = vmatprep.subr.mxu0 0.0
      %911 = vmatpush1.msra.mxu0 0.0
      %912 = vmatprep.subr.mxu0 0.0
      %913 = vmatpush1.msra.mxu0 0.0
      %914 = vmatprep.subr.mxu0 0.0
      %915 = vmatpush1.msra.mxu0 0.0
      %916 = vmatprep.subr.mxu0 0.0
      %917 = vmatpush1.msra.mxu0 0.0
      %918 = vmatprep.subr.mxu0 0.0
      %919 = vmatpush1.msra.mxu0 0.0
      %920 = vmatprep.subr.mxu0 0.0
      %921 = vmatpush1.msra.mxu0 0.0
      %922 = vmatprep.subr.mxu0 0.0
      %923 = vmatpush1.msra.mxu0 0.0
      %924 = vmatprep.subr.mxu0 0.0
      %925 = vmatpush1.msra.mxu0 0.0
      %926 = vmatprep.subr.mxu0 0.0
      %927 = vmatpush1.msra.mxu0 0.0
      %928 = vmatprep.mubr.f32.mxu0 0.0
      %929 = vmatmul.mubr.f32.gmra.mrb[0].mxu0 %v862
      %v930 = vpop.f32.mrb[0].mxu0
      %v931 = vadd.f32 0.0, %v930
      %v932 = vpop.f32.mrb[0].mxu0
      %933 = vdwg.mxu0
      %v934 = vadd.f32 %v756, %v931
      %v935 = vxor.u32 %v934, 2147483648
      %v936 = vmul.f32 %v935, 1.442695
      %v937 = vpow.pop %v936
      %v938 = vadd.f32 %v937, 1.0
      %v939 = vrcp.pop %v938
      %v940 = vmul.f32 1.0, %v939
      %v941 = vadd.f32 %v931, %v705
      %943 = vrot.lane.b32.xlu0 %v941, 64
      %v944 = vpop.permute.xlu0 %943
      %v946 = vmul.f32 %v940, %v944
      %948 = vrot.lane.b32.xlu0 %v946, 64
      %v949 = vpop.permute.xlu0 %948
      %v951 = vadd.f32 %v756, %v949
      %v952 = vtanh.pop %v951
      %v953 = vsub.f32 1.0, %v940
      %955 = vrot.lane.b32.xlu0 %v952, 96
      %v956 = vpop.permute.xlu0 %955
      %v958 = vmul.f32 %v953, %v956
      %v959 = vmul.f32 %v940, %v736
      %v960 = vadd.f32 %v958, %v959
      %s961 = sadd.s32 %s507, 1
      %v962 = vstv %s961
      %vm963 = vcmp.lt.s32.totalorder %v962, %v506
      %s964 = sadd.s32 %s509, 14
      %v965 = vstv %s964
      %vm966 = vcmp.lt.s32.totalorder %v965, %v506
      %v967 = vsel %vm963, %v858, %v735
      %v968 = vsel %vm966, %v960, %v736
      %v969 = vsel %vm963, %v858, 0.0
      %971 = vrot.lane.b32.xlu0 %v969, 96
      %v972 = vpop.permute.xlu0 %971
      %s974 = scalar_lea.vmem %s452, 4
      %975 = vst.msk [vmem:[%s974] sm:$0xf] %vm742, %v972
      %v976 = vsel %vm966, %v960, 0.0
      %978 = vrot.lane.b32.xlu0 %v976, 96
      %v979 = vpop.permute.xlu0 %978
      %s981 = scalar_lea.vmem %s459, 56
      %982 = vst.msk [vmem:[%s981] sm:$0xf] %vm742, %v979
      %s983 = scalar_lea.vmem %s437, 8
      %v984 = vld [vmem:[%s983] sm:$0xf]
      %v985 = vadd.f32 %v984, %v482
      %s986 = scalar_lea.vmem %s445, 52
      %v987 = vld [vmem:[%s986] sm:$0xf]
      %v988 = vadd.f32 %v987, %v489
      %990 = vrot.lane.b32.xlu0 %v967, 96
      %v991 = vpop.permute.xlu0 %990
      %v992 = vsel %vm517, %v991, 0
      %994 = vmatprep.subr.mxu0 0.0
      %995 = vmatpush1.msra.mxu0 %v469
      %996 = vmatprep.subr.mxu0 0.0
      %997 = vmatpush1.msra.mxu0 %v470
      %998 = vmatprep.subr.mxu0 0.0
      %999 = vmatpush1.msra.mxu0 %v471
      %1000 = vmatprep.subr.mxu0 0.0
      %1001 = vmatpush1.msra.mxu0 %v472
      %1002 = vmatprep.subr.mxu0 0.0
      %1003 = vmatpush1.msra.mxu0 0.0
      %1004 = vmatprep.subr.mxu0 0.0
      %1005 = vmatpush1.msra.mxu0 0.0
      %1006 = vmatprep.subr.mxu0 0.0
      %1007 = vmatpush1.msra.mxu0 0.0
      %1008 = vmatprep.subr.mxu0 0.0
      %1009 = vmatpush1.msra.mxu0 0.0
      %1010 = vmatprep.subr.mxu0 0.0
      %1011 = vmatpush1.msra.mxu0 0.0
      %1012 = vmatprep.subr.mxu0 0.0
      %1013 = vmatpush1.msra.mxu0 0.0
      %1014 = vmatprep.subr.mxu0 0.0
      %1015 = vmatpush1.msra.mxu0 0.0
      %1016 = vmatprep.subr.mxu0 0.0
      %1017 = vmatpush1.msra.mxu0 0.0
      %1018 = vmatprep.subr.mxu0 0.0
      %1019 = vmatpush1.msra.mxu0 0.0
      %1020 = vmatprep.subr.mxu0 0.0
      %1021 = vmatpush1.msra.mxu0 0.0
      %1022 = vmatprep.subr.mxu0 0.0
      %1023 = vmatpush1.msra.mxu0 0.0
      %1024 = vmatprep.subr.mxu0 0.0
      %1025 = vmatpush1.msra.mxu0 0.0
      %1026 = vmatprep.subr.mxu0 0.0
      %1027 = vmatpush1.msra.mxu0 0.0
      %1028 = vmatprep.subr.mxu0 0.0
      %1029 = vmatpush1.msra.mxu0 0.0
      %1030 = vmatprep.subr.mxu0 0.0
      %1031 = vmatpush1.msra.mxu0 0.0
      %1032 = vmatprep.subr.mxu0 0.0
      %1033 = vmatpush1.msra.mxu0 0.0
      %1034 = vmatprep.subr.mxu0 0.0
      %1035 = vmatpush1.msra.mxu0 0.0
      %1036 = vmatprep.subr.mxu0 0.0
      %1037 = vmatpush1.msra.mxu0 0.0
      %1038 = vmatprep.subr.mxu0 0.0
      %1039 = vmatpush1.msra.mxu0 0.0
      %1040 = vmatprep.subr.mxu0 0.0
      %1041 = vmatpush1.msra.mxu0 0.0
      %1042 = vmatprep.subr.mxu0 0.0
      %1043 = vmatpush1.msra.mxu0 0.0
      %1044 = vmatprep.subr.mxu0 0.0
      %1045 = vmatpush1.msra.mxu0 0.0
      %1046 = vmatprep.subr.mxu0 0.0
      %1047 = vmatpush1.msra.mxu0 0.0
      %1048 = vmatprep.subr.mxu0 0.0
      %1049 = vmatpush1.msra.mxu0 0.0
      %1050 = vmatprep.subr.mxu0 0.0
      %1051 = vmatpush1.msra.mxu0 0.0
      %1052 = vmatprep.subr.mxu0 0.0
      %1053 = vmatpush1.msra.mxu0 0.0
      %1054 = vmatprep.subr.mxu0 0.0
      %1055 = vmatpush1.msra.mxu0 0.0
      %1056 = vmatprep.subr.mxu0 0.0
      %1057 = vmatpush1.msra.mxu0 0.0
      %1058 = vmatprep.mubr.f32.mxu0 0.0
      %1059 = vmatmul.mubr.f32.gmra.mrb[0].mxu0 %v992
      %v1060 = vpop.f32.mrb[0].mxu0
      %v1061 = vadd.f32 0.0, %v1060
      %v1062 = vpop.f32.mrb[0].mxu0
      %1063 = vdwg.mxu0
      %v1064 = vadd.f32 %v985, %v1061
      %v1065 = vxor.u32 %v1064, 2147483648
      %v1066 = vmul.f32 %v1065, 1.442695
      %v1067 = vpow.pop %v1066
      %v1068 = vadd.f32 %v1067, 1.0
      %v1069 = vrcp.pop %v1068
      %v1070 = vmul.f32 1.0, %v1069
      %v1071 = vadd.f32 %v1061, %v599
      %1073 = vrot.lane.b32.xlu0 %v1071, 64
      %v1074 = vpop.permute.xlu0 %1073
      %v1076 = vmul.f32 %v1070, %v1074
      %1078 = vrot.lane.b32.xlu0 %v1076, 64
      %v1079 = vpop.permute.xlu0 %1078
      %v1081 = vadd.f32 %v985, %v1079
      %v1082 = vtanh.pop %v1081
      %v1083 = vsub.f32 1.0, %v1070
      %1085 = vrot.lane.b32.xlu0 %v1082, 96
      %v1086 = vpop.permute.xlu0 %1085
      %v1088 = vmul.f32 %v1083, %v1086
      %v1089 = vmul.f32 %v1070, %v967
      %v1090 = vadd.f32 %v1088, %v1089
      %1092 = vrot.lane.b32.xlu0 %v968, 96
      %v1093 = vpop.permute.xlu0 %1092
      %v1094 = vsel %vm517, %v1093, 0
      %1096 = vmatprep.subr.mxu0 0.0
      %1097 = vmatpush1.msra.mxu0 %v473
      %1098 = vmatprep.subr.mxu0 0.0
      %1099 = vmatpush1.msra.mxu0 %v474
      %1100 = vmatprep.subr.mxu0 0.0
      %1101 = vmatpush1.msra.mxu0 %v475
      %1102 = vmatprep.subr.mxu0 0.0
      %1103 = vmatpush1.msra.mxu0 %v476
      %1104 = vmatprep.subr.mxu0 0.0
      %1105 = vmatpush1.msra.mxu0 0.0
      %1106 = vmatprep.subr.mxu0 0.0
      %1107 = vmatpush1.msra.mxu0 0.0
      %1108 = vmatprep.subr.mxu0 0.0
      %1109 = vmatpush1.msra.mxu0 0.0
      %1110 = vmatprep.subr.mxu0 0.0
      %1111 = vmatpush1.msra.mxu0 0.0
      %1112 = vmatprep.subr.mxu0 0.0
      %1113 = vmatpush1.msra.mxu0 0.0
      %1114 = vmatprep.subr.mxu0 0.0
      %1115 = vmatpush1.msra.mxu0 0.0
      %1116 = vmatprep.subr.mxu0 0.0
      %1117 = vmatpush1.msra.mxu0 0.0
      %1118 = vmatprep.subr.mxu0 0.0
      %1119 = vmatpush1.msra.mxu0 0.0
      %1120 = vmatprep.subr.mxu0 0.0
      %1121 = vmatpush1.msra.mxu0 0.0
      %1122 = vmatprep.subr.mxu0 0.0
      %1123 = vmatpush1.msra.mxu0 0.0
      %1124 = vmatprep.subr.mxu0 0.0
      %1125 = vmatpush1.msra.mxu0 0.0
      %1126 = vmatprep.subr.mxu0 0.0
      %1127 = vmatpush1.msra.mxu0 0.0
      %1128 = vmatprep.subr.mxu0 0.0
      %1129 = vmatpush1.msra.mxu0 0.0
      %1130 = vmatprep.subr.mxu0 0.0
      %1131 = vmatpush1.msra.mxu0 0.0
      %1132 = vmatprep.subr.mxu0 0.0
      %1133 = vmatpush1.msra.mxu0 0.0
      %1134 = vmatprep.subr.mxu0 0.0
      %1135 = vmatpush1.msra.mxu0 0.0
      %1136 = vmatprep.subr.mxu0 0.0
      %1137 = vmatpush1.msra.mxu0 0.0
      %1138 = vmatprep.subr.mxu0 0.0
      %1139 = vmatpush1.msra.mxu0 0.0
      %1140 = vmatprep.subr.mxu0 0.0
      %1141 = vmatpush1.msra.mxu0 0.0
      %1142 = vmatprep.subr.mxu0 0.0
      %1143 = vmatpush1.msra.mxu0 0.0
      %1144 = vmatprep.subr.mxu0 0.0
      %1145 = vmatpush1.msra.mxu0 0.0
      %1146 = vmatprep.subr.mxu0 0.0
      %1147 = vmatpush1.msra.mxu0 0.0
      %1148 = vmatprep.subr.mxu0 0.0
      %1149 = vmatpush1.msra.mxu0 0.0
      %1150 = vmatprep.subr.mxu0 0.0
      %1151 = vmatpush1.msra.mxu0 0.0
      %1152 = vmatprep.subr.mxu0 0.0
      %1153 = vmatpush1.msra.mxu0 0.0
      %1154 = vmatprep.subr.mxu0 0.0
      %1155 = vmatpush1.msra.mxu0 0.0
      %1156 = vmatprep.subr.mxu0 0.0
      %1157 = vmatpush1.msra.mxu0 0.0
      %1158 = vmatprep.subr.mxu0 0.0
      %1159 = vmatpush1.msra.mxu0 0.0
      %1160 = vmatprep.mubr.f32.mxu0 0.0
      %1161 = vmatmul.mubr.f32.gmra.mrb[0].mxu0 %v1094
      %v1162 = vpop.f32.mrb[0].mxu0
      %v1163 = vadd.f32 0.0, %v1162
      %v1164 = vpop.f32.mrb[0].mxu0
      %1165 = vdwg.mxu0
      %v1166 = vadd.f32 %v988, %v1163
      %v1167 = vxor.u32 %v1166, 2147483648
      %v1168 = vmul.f32 %v1167, 1.442695
      %v1169 = vpow.pop %v1168
      %v1170 = vadd.f32 %v1169, 1.0
      %v1171 = vrcp.pop %v1170
      %v1172 = vmul.f32 1.0, %v1171
      %v1173 = vadd.f32 %v1163, %v705
      %1175 = vrot.lane.b32.xlu0 %v1173, 64
      %v1176 = vpop.permute.xlu0 %1175
      %v1178 = vmul.f32 %v1172, %v1176
      %1180 = vrot.lane.b32.xlu0 %v1178, 64
      %v1181 = vpop.permute.xlu0 %1180
      %v1183 = vadd.f32 %v988, %v1181
      %v1184 = vtanh.pop %v1183
      %v1185 = vsub.f32 1.0, %v1172
      %1187 = vrot.lane.b32.xlu0 %v1184, 96
      %v1188 = vpop.permute.xlu0 %1187
      %v1190 = vmul.f32 %v1185, %v1188
      %v1191 = vmul.f32 %v1172, %v968
      %v1192 = vadd.f32 %v1190, %v1191
      %s1193 = sadd.s32 %s507, 2
      %v1194 = vstv %s1193
      %vm1195 = vcmp.lt.s32.totalorder %v1194, %v506
      %s1196 = sadd.s32 %s509, 13
      %v1197 = vstv %s1196
      %vm1198 = vcmp.lt.s32.totalorder %v1197, %v506
      %v1199 = vsel %vm1195, %v1090, %v967
      %v1200 = vsel %vm1198, %v1192, %v968
      %v1201 = vsel %vm1195, %v1090, 0.0
      %1203 = vrot.lane.b32.xlu0 %v1201, 96
      %v1204 = vpop.permute.xlu0 %1203
      %s1206 = scalar_lea.vmem %s452, 8
      %1207 = vst.msk [vmem:[%s1206] sm:$0xf] %vm742, %v1204
      %v1208 = vsel %vm1198, %v1192, 0.0
      %1210 = vrot.lane.b32.xlu0 %v1208, 96
      %v1211 = vpop.permute.xlu0 %1210
      %s1213 = scalar_lea.vmem %s459, 52
      %1214 = vst.msk [vmem:[%s1213] sm:$0xf] %vm742, %v1211
      %s1215 = scalar_lea.vmem %s437, 12
      %v1216 = vld [vmem:[%s1215] sm:$0xf]
      %v1217 = vadd.f32 %v1216, %v482
      %s1218 = scalar_lea.vmem %s445, 48
      %v1219 = vld [vmem:[%s1218] sm:$0xf]
      %v1220 = vadd.f32 %v1219, %v489
      %1222 = vrot.lane.b32.xlu0 %v1199, 96
      %v1223 = vpop.permute.xlu0 %1222
      %v1224 = vsel %vm517, %v1223, 0
      %1226 = vmatprep.subr.mxu0 0.0
      %1227 = vmatpush1.msra.mxu0 %v469
      %1228 = vmatprep.subr.mxu0 0.0
      %1229 = vmatpush1.msra.mxu0 %v470
      %1230 = vmatprep.subr.mxu0 0.0
      %1231 = vmatpush1.msra.mxu0 %v471
      %1232 = vmatprep.subr.mxu0 0.0
      %1233 = vmatpush1.msra.mxu0 %v472
      %1234 = vmatprep.subr.mxu0 0.0
      %1235 = vmatpush1.msra.mxu0 0.0
      %1236 = vmatprep.subr.mxu0 0.0
      %1237 = vmatpush1.msra.mxu0 0.0
      %1238 = vmatprep.subr.mxu0 0.0
      %1239 = vmatpush1.msra.mxu0 0.0
      %1240 = vmatprep.subr.mxu0 0.0
      %1241 = vmatpush1.msra.mxu0 0.0
      %1242 = vmatprep.subr.mxu0 0.0
      %1243 = vmatpush1.msra.mxu0 0.0
      %1244 = vmatprep.subr.mxu0 0.0
      %1245 = vmatpush1.msra.mxu0 0.0
      %1246 = vmatprep.subr.mxu0 0.0
      %1247 = vmatpush1.msra.mxu0 0.0
      %1248 = vmatprep.subr.mxu0 0.0
      %1249 = vmatpush1.msra.mxu0 0.0
      %1250 = vmatprep.subr.mxu0 0.0
      %1251 = vmatpush1.msra.mxu0 0.0
      %1252 = vmatprep.subr.mxu0 0.0
      %1253 = vmatpush1.msra.mxu0 0.0
      %1254 = vmatprep.subr.mxu0 0.0
      %1255 = vmatpush1.msra.mxu0 0.0
      %1256 = vmatprep.subr.mxu0 0.0
      %1257 = vmatpush1.msra.mxu0 0.0
      %1258 = vmatprep.subr.mxu0 0.0
      %1259 = vmatpush1.msra.mxu0 0.0
      %1260 = vmatprep.subr.mxu0 0.0
      %1261 = vmatpush1.msra.mxu0 0.0
      %1262 = vmatprep.subr.mxu0 0.0
      %1263 = vmatpush1.msra.mxu0 0.0
      %1264 = vmatprep.subr.mxu0 0.0
      %1265 = vmatpush1.msra.mxu0 0.0
      %1266 = vmatprep.subr.mxu0 0.0
      %1267 = vmatpush1.msra.mxu0 0.0
      %1268 = vmatprep.subr.mxu0 0.0
      %1269 = vmatpush1.msra.mxu0 0.0
      %1270 = vmatprep.subr.mxu0 0.0
      %1271 = vmatpush1.msra.mxu0 0.0
      %1272 = vmatprep.subr.mxu0 0.0
      %1273 = vmatpush1.msra.mxu0 0.0
      %1274 = vmatprep.subr.mxu0 0.0
      %1275 = vmatpush1.msra.mxu0 0.0
      %1276 = vmatprep.subr.mxu0 0.0
      %1277 = vmatpush1.msra.mxu0 0.0
      %1278 = vmatprep.subr.mxu0 0.0
      %1279 = vmatpush1.msra.mxu0 0.0
      %1280 = vmatprep.subr.mxu0 0.0
      %1281 = vmatpush1.msra.mxu0 0.0
      %1282 = vmatprep.subr.mxu0 0.0
      %1283 = vmatpush1.msra.mxu0 0.0
      %1284 = vmatprep.subr.mxu0 0.0
      %1285 = vmatpush1.msra.mxu0 0.0
      %1286 = vmatprep.subr.mxu0 0.0
      %1287 = vmatpush1.msra.mxu0 0.0
      %1288 = vmatprep.subr.mxu0 0.0
      %1289 = vmatpush1.msra.mxu0 0.0
      %1290 = vmatprep.mubr.f32.mxu0 0.0
      %1291 = vmatmul.mubr.f32.gmra.mrb[0].mxu0 %v1224
      %v1292 = vpop.f32.mrb[0].mxu0
      %v1293 = vadd.f32 0.0, %v1292
      %v1294 = vpop.f32.mrb[0].mxu0
      %1295 = vdwg.mxu0
      %v1296 = vadd.f32 %v1217, %v1293
      %v1297 = vxor.u32 %v1296, 2147483648
      %v1298 = vmul.f32 %v1297, 1.442695
      %v1299 = vpow.pop %v1298
      %v1300 = vadd.f32 %v1299, 1.0
      %v1301 = vrcp.pop %v1300
      %v1302 = vmul.f32 1.0, %v1301
      %v1303 = vadd.f32 %v1293, %v599
      %1305 = vrot.lane.b32.xlu0 %v1303, 64
      %v1306 = vpop.permute.xlu0 %1305
      %v1308 = vmul.f32 %v1302, %v1306
      %1310 = vrot.lane.b32.xlu0 %v1308, 64
      %v1311 = vpop.permute.xlu0 %1310
      %v1313 = vadd.f32 %v1217, %v1311
      %v1314 = vtanh.pop %v1313
      %v1315 = vsub.f32 1.0, %v1302
      %1317 = vrot.lane.b32.xlu0 %v1314, 96
      %v1318 = vpop.permute.xlu0 %1317
      %v1320 = vmul.f32 %v1315, %v1318
      %v1321 = vmul.f32 %v1302, %v1199
      %v1322 = vadd.f32 %v1320, %v1321
      %1324 = vrot.lane.b32.xlu0 %v1200, 96
      %v1325 = vpop.permute.xlu0 %1324
      %v1326 = vsel %vm517, %v1325, 0
      %1328 = vmatprep.subr.mxu0 0.0
      %1329 = vmatpush1.msra.mxu0 %v473
      %1330 = vmatprep.subr.mxu0 0.0
      %1331 = vmatpush1.msra.mxu0 %v474
      %1332 = vmatprep.subr.mxu0 0.0
      %1333 = vmatpush1.msra.mxu0 %v475
      %1334 = vmatprep.subr.mxu0 0.0
      %1335 = vmatpush1.msra.mxu0 %v476
      %1336 = vmatprep.subr.mxu0 0.0
      %1337 = vmatpush1.msra.mxu0 0.0
      %1338 = vmatprep.subr.mxu0 0.0
      %1339 = vmatpush1.msra.mxu0 0.0
      %1340 = vmatprep.subr.mxu0 0.0
      %1341 = vmatpush1.msra.mxu0 0.0
      %1342 = vmatprep.subr.mxu0 0.0
      %1343 = vmatpush1.msra.mxu0 0.0
      %1344 = vmatprep.subr.mxu0 0.0
      %1345 = vmatpush1.msra.mxu0 0.0
      %1346 = vmatprep.subr.mxu0 0.0
      %1347 = vmatpush1.msra.mxu0 0.0
      %1348 = vmatprep.subr.mxu0 0.0
      %1349 = vmatpush1.msra.mxu0 0.0
      %1350 = vmatprep.subr.mxu0 0.0
      %1351 = vmatpush1.msra.mxu0 0.0
      %1352 = vmatprep.subr.mxu0 0.0
      %1353 = vmatpush1.msra.mxu0 0.0
      %1354 = vmatprep.subr.mxu0 0.0
      %1355 = vmatpush1.msra.mxu0 0.0
      %1356 = vmatprep.subr.mxu0 0.0
      %1357 = vmatpush1.msra.mxu0 0.0
      %1358 = vmatprep.subr.mxu0 0.0
      %1359 = vmatpush1.msra.mxu0 0.0
      %1360 = vmatprep.subr.mxu0 0.0
      %1361 = vmatpush1.msra.mxu0 0.0
      %1362 = vmatprep.subr.mxu0 0.0
      %1363 = vmatpush1.msra.mxu0 0.0
      %1364 = vmatprep.subr.mxu0 0.0
      %1365 = vmatpush1.msra.mxu0 0.0
      %1366 = vmatprep.subr.mxu0 0.0
      %1367 = vmatpush1.msra.mxu0 0.0
      %1368 = vmatprep.subr.mxu0 0.0
      %1369 = vmatpush1.msra.mxu0 0.0
      %1370 = vmatprep.subr.mxu0 0.0
      %1371 = vmatpush1.msra.mxu0 0.0
      %1372 = vmatprep.subr.mxu0 0.0
      %1373 = vmatpush1.msra.mxu0 0.0
      %1374 = vmatprep.subr.mxu0 0.0
      %1375 = vmatpush1.msra.mxu0 0.0
      %1376 = vmatprep.subr.mxu0 0.0
      %1377 = vmatpush1.msra.mxu0 0.0
      %1378 = vmatprep.subr.mxu0 0.0
      %1379 = vmatpush1.msra.mxu0 0.0
      %1380 = vmatprep.subr.mxu0 0.0
      %1381 = vmatpush1.msra.mxu0 0.0
      %1382 = vmatprep.subr.mxu0 0.0
      %1383 = vmatpush1.msra.mxu0 0.0
      %1384 = vmatprep.subr.mxu0 0.0
      %1385 = vmatpush1.msra.mxu0 0.0
      %1386 = vmatprep.subr.mxu0 0.0
      %1387 = vmatpush1.msra.mxu0 0.0
      %1388 = vmatprep.subr.mxu0 0.0
      %1389 = vmatpush1.msra.mxu0 0.0
      %1390 = vmatprep.subr.mxu0 0.0
      %1391 = vmatpush1.msra.mxu0 0.0
      %1392 = vmatprep.mubr.f32.mxu0 0.0
      %1393 = vmatmul.mubr.f32.gmra.mrb[0].mxu0 %v1326
      %v1394 = vpop.f32.mrb[0].mxu0
      %v1395 = vadd.f32 0.0, %v1394
      %v1396 = vpop.f32.mrb[0].mxu0
      %1397 = vdwg.mxu0
      %v1398 = vadd.f32 %v1220, %v1395
      %v1399 = vxor.u32 %v1398, 2147483648
      %v1400 = vmul.f32 %v1399, 1.442695
      %v1401 = vpow.pop %v1400
      %v1402 = vadd.f32 %v1401, 1.0
      %v1403 = vrcp.pop %v1402
      %v1404 = vmul.f32 1.0, %v1403
      %v1405 = vadd.f32 %v1395, %v705
      %1407 = vrot.lane.b32.xlu0 %v1405, 64
      %v1408 = vpop.permute.xlu0 %1407
      %v1410 = vmul.f32 %v1404, %v1408
      %1412 = vrot.lane.b32.xlu0 %v1410, 64
      %v1413 = vpop.permute.xlu0 %1412
      %v1415 = vadd.f32 %v1220, %v1413
      %v1416 = vtanh.pop %v1415
      %v1417 = vsub.f32 1.0, %v1404
      %1419 = vrot.lane.b32.xlu0 %v1416, 96
      %v1420 = vpop.permute.xlu0 %1419
      %v1422 = vmul.f32 %v1417, %v1420
      %v1423 = vmul.f32 %v1404, %v1200
      %v1424 = vadd.f32 %v1422, %v1423
      %s1425 = sadd.s32 %s507, 3
      %v1426 = vstv %s1425
      %vm1427 = vcmp.lt.s32.totalorder %v1426, %v506
      %s1428 = sadd.s32 %s509, 12
      %v1429 = vstv %s1428
      %vm1430 = vcmp.lt.s32.totalorder %v1429, %v506
      %v1431 = vsel %vm1427, %v1322, %v1199
      %v1432 = vsel %vm1430, %v1424, %v1200
      %v1433 = vsel %vm1427, %v1322, 0.0
      %1435 = vrot.lane.b32.xlu0 %v1433, 96
      %v1436 = vpop.permute.xlu0 %1435
      %s1438 = scalar_lea.vmem %s452, 12
      %1439 = vst.msk [vmem:[%s1438] sm:$0xf] %vm742, %v1436
      %v1440 = vsel %vm1430, %v1424, 0.0
      %1442 = vrot.lane.b32.xlu0 %v1440, 96
      %v1443 = vpop.permute.xlu0 %1442
      %s1445 = scalar_lea.vmem %s459, 48
      %1446 = vst.msk [vmem:[%s1445] sm:$0xf] %vm742, %v1443
      %s1447 = scalar_lea.vmem %s437, 16
      %v1448 = vld [vmem:[%s1447] sm:$0xf]
      %v1449 = vadd.f32 %v1448, %v482
      %s1450 = scalar_lea.vmem %s445, 44
      %v1451 = vld [vmem:[%s1450] sm:$0xf]
      %v1452 = vadd.f32 %v1451, %v489
      %1454 = vrot.lane.b32.xlu0 %v1431, 96
      %v1455 = vpop.permute.xlu0 %1454
      %v1456 = vsel %vm517, %v1455, 0
      %1458 = vmatprep.subr.mxu0 0.0
      %1459 = vmatpush1.msra.mxu0 %v469
      %1460 = vmatprep.subr.mxu0 0.0
      %1461 = vmatpush1.msra.mxu0 %v470
      %1462 = vmatprep.subr.mxu0 0.0
      %1463 = vmatpush1.msra.mxu0 %v471
      %1464 = vmatprep.subr.mxu0 0.0
      %1465 = vmatpush1.msra.mxu0 %v472
      %1466 = vmatprep.subr.mxu0 0.0
      %1467 = vmatpush1.msra.mxu0 0.0
      %1468 = vmatprep.subr.mxu0 0.0
      %1469 = vmatpush1.msra.mxu0 0.0
      %1470 = vmatprep.subr.mxu0 0.0
      %1471 = vmatpush1.msra.mxu0 0.0
      %1472 = vmatprep.subr.mxu0 0.0
      %1473 = vmatpush1.msra.mxu0 0.0
      %1474 = vmatprep.subr.mxu0 0.0
      %1475 = vmatpush1.msra.mxu0 0.0
      %1476 = vmatprep.subr.mxu0 0.0
      %1477 = vmatpush1.msra.mxu0 0.0
      %1478 = vmatprep.subr.mxu0 0.0
      %1479 = vmatpush1.msra.mxu0 0.0
      %1480 = vmatprep.subr.mxu0 0.0
      %1481 = vmatpush1.msra.mxu0 0.0
      %1482 = vmatprep.subr.mxu0 0.0
      %1483 = vmatpush1.msra.mxu0 0.0
      %1484 = vmatprep.subr.mxu0 0.0
      %1485 = vmatpush1.msra.mxu0 0.0
      %1486 = vmatprep.subr.mxu0 0.0
      %1487 = vmatpush1.msra.mxu0 0.0
      %1488 = vmatprep.subr.mxu0 0.0
      %1489 = vmatpush1.msra.mxu0 0.0
      %1490 = vmatprep.subr.mxu0 0.0
      %1491 = vmatpush1.msra.mxu0 0.0
      %1492 = vmatprep.subr.mxu0 0.0
      %1493 = vmatpush1.msra.mxu0 0.0
      %1494 = vmatprep.subr.mxu0 0.0
      %1495 = vmatpush1.msra.mxu0 0.0
      %1496 = vmatprep.subr.mxu0 0.0
      %1497 = vmatpush1.msra.mxu0 0.0
      %1498 = vmatprep.subr.mxu0 0.0
      %1499 = vmatpush1.msra.mxu0 0.0
      %1500 = vmatprep.subr.mxu0 0.0
      %1501 = vmatpush1.msra.mxu0 0.0
      %1502 = vmatprep.subr.mxu0 0.0
      %1503 = vmatpush1.msra.mxu0 0.0
      %1504 = vmatprep.subr.mxu0 0.0
      %1505 = vmatpush1.msra.mxu0 0.0
      %1506 = vmatprep.subr.mxu0 0.0
      %1507 = vmatpush1.msra.mxu0 0.0
      %1508 = vmatprep.subr.mxu0 0.0
      %1509 = vmatpush1.msra.mxu0 0.0
      %1510 = vmatprep.subr.mxu0 0.0
      %1511 = vmatpush1.msra.mxu0 0.0
      %1512 = vmatprep.subr.mxu0 0.0
      %1513 = vmatpush1.msra.mxu0 0.0
      %1514 = vmatprep.subr.mxu0 0.0
      %1515 = vmatpush1.msra.mxu0 0.0
      %1516 = vmatprep.subr.mxu0 0.0
      %1517 = vmatpush1.msra.mxu0 0.0
      %1518 = vmatprep.subr.mxu0 0.0
      %1519 = vmatpush1.msra.mxu0 0.0
      %1520 = vmatprep.subr.mxu0 0.0
      %1521 = vmatpush1.msra.mxu0 0.0
      %1522 = vmatprep.mubr.f32.mxu0 0.0
      %1523 = vmatmul.mubr.f32.gmra.mrb[0].mxu0 %v1456
      %v1524 = vpop.f32.mrb[0].mxu0
      %v1525 = vadd.f32 0.0, %v1524
      %v1526 = vpop.f32.mrb[0].mxu0
      %1527 = vdwg.mxu0
      %v1528 = vadd.f32 %v1449, %v1525
      %v1529 = vxor.u32 %v1528, 2147483648
      %v1530 = vmul.f32 %v1529, 1.442695
      %v1531 = vpow.pop %v1530
      %v1532 = vadd.f32 %v1531, 1.0
      %v1533 = vrcp.pop %v1532
      %v1534 = vmul.f32 1.0, %v1533
      %v1535 = vadd.f32 %v1525, %v599
      %1537 = vrot.lane.b32.xlu0 %v1535, 64
      %v1538 = vpop.permute.xlu0 %1537
      %v1540 = vmul.f32 %v1534, %v1538
      %1542 = vrot.lane.b32.xlu0 %v1540, 64
      %v1543 = vpop.permute.xlu0 %1542
      %v1545 = vadd.f32 %v1449, %v1543
      %v1546 = vtanh.pop %v1545
      %v1547 = vsub.f32 1.0, %v1534
      %1549 = vrot.lane.b32.xlu0 %v1546, 96
      %v1550 = vpop.permute.xlu0 %1549
      %v1552 = vmul.f32 %v1547, %v1550
      %v1553 = vmul.f32 %v1534, %v1431
      %v1554 = vadd.f32 %v1552, %v1553
      %1556 = vrot.lane.b32.xlu0 %v1432, 96
      %v1557 = vpop.permute.xlu0 %1556
      %v1558 = vsel %vm517, %v1557, 0
      %1560 = vmatprep.subr.mxu0 0.0
      %1561 = vmatpush1.msra.mxu0 %v473
      %1562 = vmatprep.subr.mxu0 0.0
      %1563 = vmatpush1.msra.mxu0 %v474
      %1564 = vmatprep.subr.mxu0 0.0
      %1565 = vmatpush1.msra.mxu0 %v475
      %1566 = vmatprep.subr.mxu0 0.0
      %1567 = vmatpush1.msra.mxu0 %v476
      %1568 = vmatprep.subr.mxu0 0.0
      %1569 = vmatpush1.msra.mxu0 0.0
      %1570 = vmatprep.subr.mxu0 0.0
      %1571 = vmatpush1.msra.mxu0 0.0
      %1572 = vmatprep.subr.mxu0 0.0
      %1573 = vmatpush1.msra.mxu0 0.0
      %1574 = vmatprep.subr.mxu0 0.0
      %1575 = vmatpush1.msra.mxu0 0.0
      %1576 = vmatprep.subr.mxu0 0.0
      %1577 = vmatpush1.msra.mxu0 0.0
      %1578 = vmatprep.subr.mxu0 0.0
      %1579 = vmatpush1.msra.mxu0 0.0
      %1580 = vmatprep.subr.mxu0 0.0
      %1581 = vmatpush1.msra.mxu0 0.0
      %1582 = vmatprep.subr.mxu0 0.0
      %1583 = vmatpush1.msra.mxu0 0.0
      %1584 = vmatprep.subr.mxu0 0.0
      %1585 = vmatpush1.msra.mxu0 0.0
      %1586 = vmatprep.subr.mxu0 0.0
      %1587 = vmatpush1.msra.mxu0 0.0
      %1588 = vmatprep.subr.mxu0 0.0
      %1589 = vmatpush1.msra.mxu0 0.0
      %1590 = vmatprep.subr.mxu0 0.0
      %1591 = vmatpush1.msra.mxu0 0.0
      %1592 = vmatprep.subr.mxu0 0.0
      %1593 = vmatpush1.msra.mxu0 0.0
      %1594 = vmatprep.subr.mxu0 0.0
      %1595 = vmatpush1.msra.mxu0 0.0
      %1596 = vmatprep.subr.mxu0 0.0
      %1597 = vmatpush1.msra.mxu0 0.0
      %1598 = vmatprep.subr.mxu0 0.0
      %1599 = vmatpush1.msra.mxu0 0.0
      %1600 = vmatprep.subr.mxu0 0.0
      %1601 = vmatpush1.msra.mxu0 0.0
      %1602 = vmatprep.subr.mxu0 0.0
      %1603 = vmatpush1.msra.mxu0 0.0
      %1604 = vmatprep.subr.mxu0 0.0
      %1605 = vmatpush1.msra.mxu0 0.0
      %1606 = vmatprep.subr.mxu0 0.0
      %1607 = vmatpush1.msra.mxu0 0.0
      %1608 = vmatprep.subr.mxu0 0.0
      %1609 = vmatpush1.msra.mxu0 0.0
      %1610 = vmatprep.subr.mxu0 0.0
      %1611 = vmatpush1.msra.mxu0 0.0
      %1612 = vmatprep.subr.mxu0 0.0
      %1613 = vmatpush1.msra.mxu0 0.0
      %1614 = vmatprep.subr.mxu0 0.0
      %1615 = vmatpush1.msra.mxu0 0.0
      %1616 = vmatprep.subr.mxu0 0.0
      %1617 = vmatpush1.msra.mxu0 0.0
      %1618 = vmatprep.subr.mxu0 0.0
      %1619 = vmatpush1.msra.mxu0 0.0
      %1620 = vmatprep.subr.mxu0 0.0
      %1621 = vmatpush1.msra.mxu0 0.0
      %1622 = vmatprep.subr.mxu0 0.0
      %1623 = vmatpush1.msra.mxu0 0.0
      %1624 = vmatprep.mubr.f32.mxu0 0.0
      %1625 = vmatmul.mubr.f32.gmra.mrb[0].mxu0 %v1558
      %v1626 = vpop.f32.mrb[0].mxu0
      %v1627 = vadd.f32 0.0, %v1626
      %v1628 = vpop.f32.mrb[0].mxu0
      %1629 = vdwg.mxu0
      %v1630 = vadd.f32 %v1452, %v1627
      %v1631 = vxor.u32 %v1630, 2147483648
      %v1632 = vmul.f32 %v1631, 1.442695
      %v1633 = vpow.pop %v1632
      %v1634 = vadd.f32 %v1633, 1.0
      %v1635 = vrcp.pop %v1634
      %v1636 = vmul.f32 1.0, %v1635
      %v1637 = vadd.f32 %v1627, %v705
      %1639 = vrot.lane.b32.xlu0 %v1637, 64
      %v1640 = vpop.permute.xlu0 %1639
      %v1642 = vmul.f32 %v1636, %v1640
      %1644 = vrot.lane.b32.xlu0 %v1642, 64
      %v1645 = vpop.permute.xlu0 %1644
      %v1647 = vadd.f32 %v1452, %v1645
      %v1648 = vtanh.pop %v1647
      %v1649 = vsub.f32 1.0, %v1636
      %1651 = vrot.lane.b32.xlu0 %v1648, 96
      %v1652 = vpop.permute.xlu0 %1651
      %v1654 = vmul.f32 %v1649, %v1652
      %v1655 = vmul.f32 %v1636, %v1432
      %v1656 = vadd.f32 %v1654, %v1655
      %s1657 = sadd.s32 %s507, 4
      %v1658 = vstv %s1657
      %vm1659 = vcmp.lt.s32.totalorder %v1658, %v506
      %s1660 = sadd.s32 %s509, 11
      %v1661 = vstv %s1660
      %vm1662 = vcmp.lt.s32.totalorder %v1661, %v506
      %v1663 = vsel %vm1659, %v1554, %v1431
      %v1664 = vsel %vm1662, %v1656, %v1432
      %v1665 = vsel %vm1659, %v1554, 0.0
      %1667 = vrot.lane.b32.xlu0 %v1665, 96
      %v1668 = vpop.permute.xlu0 %1667
      %s1670 = scalar_lea.vmem %s452, 16
      %1671 = vst.msk [vmem:[%s1670] sm:$0xf] %vm742, %v1668
      %v1672 = vsel %vm1662, %v1656, 0.0
      %1674 = vrot.lane.b32.xlu0 %v1672, 96
      %v1675 = vpop.permute.xlu0 %1674
      %s1677 = scalar_lea.vmem %s459, 44
      %1678 = vst.msk [vmem:[%s1677] sm:$0xf] %vm742, %v1675
      %s1679 = scalar_lea.vmem %s437, 20
      %v1680 = vld [vmem:[%s1679] sm:$0xf]
      %v1681 = vadd.f32 %v1680, %v482
      %s1682 = scalar_lea.vmem %s445, 40
      %v1683 = vld [vmem:[%s1682] sm:$0xf]
      %v1684 = vadd.f32 %v1683, %v489
      %1686 = vrot.lane.b32.xlu0 %v1663, 96
      %v1687 = vpop.permute.xlu0 %1686
      %v1688 = vsel %vm517, %v1687, 0
      %1690 = vmatprep.subr.mxu0 0.0
      %1691 = vmatpush1.msra.mxu0 %v469
      %1692 = vmatprep.subr.mxu0 0.0
      %1693 = vmatpush1.msra.mxu0 %v470
      %1694 = vmatprep.subr.mxu0 0.0
      %1695 = vmatpush1.msra.mxu0 %v471
      %1696 = vmatprep.subr.mxu0 0.0
      %1697 = vmatpush1.msra.mxu0 %v472
      %1698 = vmatprep.subr.mxu0 0.0
      %1699 = vmatpush1.msra.mxu0 0.0
      %1700 = vmatprep.subr.mxu0 0.0
      %1701 = vmatpush1.msra.mxu0 0.0
      %1702 = vmatprep.subr.mxu0 0.0
      %1703 = vmatpush1.msra.mxu0 0.0
      %1704 = vmatprep.subr.mxu0 0.0
      %1705 = vmatpush1.msra.mxu0 0.0
      %1706 = vmatprep.subr.mxu0 0.0
      %1707 = vmatpush1.msra.mxu0 0.0
      %1708 = vmatprep.subr.mxu0 0.0
      %1709 = vmatpush1.msra.mxu0 0.0
      %1710 = vmatprep.subr.mxu0 0.0
      %1711 = vmatpush1.msra.mxu0 0.0
      %1712 = vmatprep.subr.mxu0 0.0
      %1713 = vmatpush1.msra.mxu0 0.0
      %1714 = vmatprep.subr.mxu0 0.0
      %1715 = vmatpush1.msra.mxu0 0.0
      %1716 = vmatprep.subr.mxu0 0.0
      %1717 = vmatpush1.msra.mxu0 0.0
      %1718 = vmatprep.subr.mxu0 0.0
      %1719 = vmatpush1.msra.mxu0 0.0
      %1720 = vmatprep.subr.mxu0 0.0
      %1721 = vmatpush1.msra.mxu0 0.0
      %1722 = vmatprep.subr.mxu0 0.0
      %1723 = vmatpush1.msra.mxu0 0.0
      %1724 = vmatprep.subr.mxu0 0.0
      %1725 = vmatpush1.msra.mxu0 0.0
      %1726 = vmatprep.subr.mxu0 0.0
      %1727 = vmatpush1.msra.mxu0 0.0
      %1728 = vmatprep.subr.mxu0 0.0
      %1729 = vmatpush1.msra.mxu0 0.0
      %1730 = vmatprep.subr.mxu0 0.0
      %1731 = vmatpush1.msra.mxu0 0.0
      %1732 = vmatprep.subr.mxu0 0.0
      %1733 = vmatpush1.msra.mxu0 0.0
      %1734 = vmatprep.subr.mxu0 0.0
      %1735 = vmatpush1.msra.mxu0 0.0
      %1736 = vmatprep.subr.mxu0 0.0
      %1737 = vmatpush1.msra.mxu0 0.0
      %1738 = vmatprep.subr.mxu0 0.0
      %1739 = vmatpush1.msra.mxu0 0.0
      %1740 = vmatprep.subr.mxu0 0.0
      %1741 = vmatpush1.msra.mxu0 0.0
      %1742 = vmatprep.subr.mxu0 0.0
      %1743 = vmatpush1.msra.mxu0 0.0
      %1744 = vmatprep.subr.mxu0 0.0
      %1745 = vmatpush1.msra.mxu0 0.0
      %1746 = vmatprep.subr.mxu0 0.0
      %1747 = vmatpush1.msra.mxu0 0.0
      %1748 = vmatprep.subr.mxu0 0.0
      %1749 = vmatpush1.msra.mxu0 0.0
      %1750 = vmatprep.subr.mxu0 0.0
      %1751 = vmatpush1.msra.mxu0 0.0
      %1752 = vmatprep.subr.mxu0 0.0
      %1753 = vmatpush1.msra.mxu0 0.0
      %1754 = vmatprep.mubr.f32.mxu0 0.0
      %1755 = vmatmul.mubr.f32.gmra.mrb[0].mxu0 %v1688
      %v1756 = vpop.f32.mrb[0].mxu0
      %v1757 = vadd.f32 0.0, %v1756
      %v1758 = vpop.f32.mrb[0].mxu0
      %1759 = vdwg.mxu0
      %v1760 = vadd.f32 %v1681, %v1757
      %v1761 = vxor.u32 %v1760, 2147483648
      %v1762 = vmul.f32 %v1761, 1.442695
      %v1763 = vpow.pop %v1762
      %v1764 = vadd.f32 %v1763, 1.0
      %v1765 = vrcp.pop %v1764
      %v1766 = vmul.f32 1.0, %v1765
      %v1767 = vadd.f32 %v1757, %v599
      %1769 = vrot.lane.b32.xlu0 %v1767, 64
      %v1770 = vpop.permute.xlu0 %1769
      %v1772 = vmul.f32 %v1766, %v1770
      %1774 = vrot.lane.b32.xlu0 %v1772, 64
      %v1775 = vpop.permute.xlu0 %1774
      %v1777 = vadd.f32 %v1681, %v1775
      %v1778 = vtanh.pop %v1777
      %v1779 = vsub.f32 1.0, %v1766
      %1781 = vrot.lane.b32.xlu0 %v1778, 96
      %v1782 = vpop.permute.xlu0 %1781
      %v1784 = vmul.f32 %v1779, %v1782
      %v1785 = vmul.f32 %v1766, %v1663
      %v1786 = vadd.f32 %v1784, %v1785
      %1788 = vrot.lane.b32.xlu0 %v1664, 96
      %v1789 = vpop.permute.xlu0 %1788
      %v1790 = vsel %vm517, %v1789, 0
      %1792 = vmatprep.subr.mxu0 0.0
      %1793 = vmatpush1.msra.mxu0 %v473
      %1794 = vmatprep.subr.mxu0 0.0
      %1795 = vmatpush1.msra.mxu0 %v474
      %1796 = vmatprep.subr.mxu0 0.0
      %1797 = vmatpush1.msra.mxu0 %v475
      %1798 = vmatprep.subr.mxu0 0.0
      %1799 = vmatpush1.msra.mxu0 %v476
      %1800 = vmatprep.subr.mxu0 0.0
      %1801 = vmatpush1.msra.mxu0 0.0
      %1802 = vmatprep.subr.mxu0 0.0
      %1803 = vmatpush1.msra.mxu0 0.0
      %1804 = vmatprep.subr.mxu0 0.0
      %1805 = vmatpush1.msra.mxu0 0.0
      %1806 = vmatprep.subr.mxu0 0.0
      %1807 = vmatpush1.msra.mxu0 0.0
      %1808 = vmatprep.subr.mxu0 0.0
      %1809 = vmatpush1.msra.mxu0 0.0
      %1810 = vmatprep.subr.mxu0 0.0
      %1811 = vmatpush1.msra.mxu0 0.0
      %1812 = vmatprep.subr.mxu0 0.0
      %1813 = vmatpush1.msra.mxu0 0.0
      %1814 = vmatprep.subr.mxu0 0.0
      %1815 = vmatpush1.msra.mxu0 0.0
      %1816 = vmatprep.subr.mxu0 0.0
      %1817 = vmatpush1.msra.mxu0 0.0
      %1818 = vmatprep.subr.mxu0 0.0
      %1819 = vmatpush1.msra.mxu0 0.0
      %1820 = vmatprep.subr.mxu0 0.0
      %1821 = vmatpush1.msra.mxu0 0.0
      %1822 = vmatprep.subr.mxu0 0.0
      %1823 = vmatpush1.msra.mxu0 0.0
      %1824 = vmatprep.subr.mxu0 0.0
      %1825 = vmatpush1.msra.mxu0 0.0
      %1826 = vmatprep.subr.mxu0 0.0
      %1827 = vmatpush1.msra.mxu0 0.0
      %1828 = vmatprep.subr.mxu0 0.0
      %1829 = vmatpush1.msra.mxu0 0.0
      %1830 = vmatprep.subr.mxu0 0.0
      %1831 = vmatpush1.msra.mxu0 0.0
      %1832 = vmatprep.subr.mxu0 0.0
      %1833 = vmatpush1.msra.mxu0 0.0
      %1834 = vmatprep.subr.mxu0 0.0
      %1835 = vmatpush1.msra.mxu0 0.0
      %1836 = vmatprep.subr.mxu0 0.0
      %1837 = vmatpush1.msra.mxu0 0.0
      %1838 = vmatprep.subr.mxu0 0.0
      %1839 = vmatpush1.msra.mxu0 0.0
      %1840 = vmatprep.subr.mxu0 0.0
      %1841 = vmatpush1.msra.mxu0 0.0
      %1842 = vmatprep.subr.mxu0 0.0
      %1843 = vmatpush1.msra.mxu0 0.0
      %1844 = vmatprep.subr.mxu0 0.0
      %1845 = vmatpush1.msra.mxu0 0.0
      %1846 = vmatprep.subr.mxu0 0.0
      %1847 = vmatpush1.msra.mxu0 0.0
      %1848 = vmatprep.subr.mxu0 0.0
      %1849 = vmatpush1.msra.mxu0 0.0
      %1850 = vmatprep.subr.mxu0 0.0
      %1851 = vmatpush1.msra.mxu0 0.0
      %1852 = vmatprep.subr.mxu0 0.0
      %1853 = vmatpush1.msra.mxu0 0.0
      %1854 = vmatprep.subr.mxu0 0.0
      %1855 = vmatpush1.msra.mxu0 0.0
      %1856 = vmatprep.mubr.f32.mxu0 0.0
      %1857 = vmatmul.mubr.f32.gmra.mrb[0].mxu0 %v1790
      %v1858 = vpop.f32.mrb[0].mxu0
      %v1859 = vadd.f32 0.0, %v1858
      %v1860 = vpop.f32.mrb[0].mxu0
      %1861 = vdwg.mxu0
      %v1862 = vadd.f32 %v1684, %v1859
      %v1863 = vxor.u32 %v1862, 2147483648
      %v1864 = vmul.f32 %v1863, 1.442695
      %v1865 = vpow.pop %v1864
      %v1866 = vadd.f32 %v1865, 1.0
      %v1867 = vrcp.pop %v1866
      %v1868 = vmul.f32 1.0, %v1867
      %v1869 = vadd.f32 %v1859, %v705
      %1871 = vrot.lane.b32.xlu0 %v1869, 64
      %v1872 = vpop.permute.xlu0 %1871
      %v1874 = vmul.f32 %v1868, %v1872
      %1876 = vrot.lane.b32.xlu0 %v1874, 64
      %v1877 = vpop.permute.xlu0 %1876
      %v1879 = vadd.f32 %v1684, %v1877
      %v1880 = vtanh.pop %v1879
      %v1881 = vsub.f32 1.0, %v1868
      %1883 = vrot.lane.b32.xlu0 %v1880, 96
      %v1884 = vpop.permute.xlu0 %1883
      %v1886 = vmul.f32 %v1881, %v1884
      %v1887 = vmul.f32 %v1868, %v1664
      %v1888 = vadd.f32 %v1886, %v1887
      %s1889 = sadd.s32 %s507, 5
      %v1890 = vstv %s1889
      %vm1891 = vcmp.lt.s32.totalorder %v1890, %v506
      %s1892 = sadd.s32 %s509, 10
      %v1893 = vstv %s1892
      %vm1894 = vcmp.lt.s32.totalorder %v1893, %v506
      %v1895 = vsel %vm1891, %v1786, %v1663
      %v1896 = vsel %vm1894, %v1888, %v1664
      %v1897 = vsel %vm1891, %v1786, 0.0
      %1899 = vrot.lane.b32.xlu0 %v1897, 96
      %v1900 = vpop.permute.xlu0 %1899
      %s1902 = scalar_lea.vmem %s452, 20
      %1903 = vst.msk [vmem:[%s1902] sm:$0xf] %vm742, %v1900
      %v1904 = vsel %vm1894, %v1888, 0.0
      %1906 = vrot.lane.b32.xlu0 %v1904, 96
      %v1907 = vpop.permute.xlu0 %1906
      %s1909 = scalar_lea.vmem %s459, 40
      %1910 = vst.msk [vmem:[%s1909] sm:$0xf] %vm742, %v1907
      %s1911 = scalar_lea.vmem %s437, 24
      %v1912 = vld [vmem:[%s1911] sm:$0xf]
      %v1913 = vadd.f32 %v1912, %v482
      %s1914 = scalar_lea.vmem %s445, 36
      %v1915 = vld [vmem:[%s1914] sm:$0xf]
      %v1916 = vadd.f32 %v1915, %v489
      %1918 = vrot.lane.b32.xlu0 %v1895, 96
      %v1919 = vpop.permute.xlu0 %1918
      %v1920 = vsel %vm517, %v1919, 0
      %1922 = vmatprep.subr.mxu0 0.0
      %1923 = vmatpush1.msra.mxu0 %v469
      %1924 = vmatprep.subr.mxu0 0.0
      %1925 = vmatpush1.msra.mxu0 %v470
      %1926 = vmatprep.subr.mxu0 0.0
      %1927 = vmatpush1.msra.mxu0 %v471
      %1928 = vmatprep.subr.mxu0 0.0
      %1929 = vmatpush1.msra.mxu0 %v472
      %1930 = vmatprep.subr.mxu0 0.0
      %1931 = vmatpush1.msra.mxu0 0.0
      %1932 = vmatprep.subr.mxu0 0.0
      %1933 = vmatpush1.msra.mxu0 0.0
      %1934 = vmatprep.subr.mxu0 0.0
      %1935 = vmatpush1.msra.mxu0 0.0
      %1936 = vmatprep.subr.mxu0 0.0
      %1937 = vmatpush1.msra.mxu0 0.0
      %1938 = vmatprep.subr.mxu0 0.0
      %1939 = vmatpush1.msra.mxu0 0.0
      %1940 = vmatprep.subr.mxu0 0.0
      %1941 = vmatpush1.msra.mxu0 0.0
      %1942 = vmatprep.subr.mxu0 0.0
      %1943 = vmatpush1.msra.mxu0 0.0
      %1944 = vmatprep.subr.mxu0 0.0
      %1945 = vmatpush1.msra.mxu0 0.0
      %1946 = vmatprep.subr.mxu0 0.0
      %1947 = vmatpush1.msra.mxu0 0.0
      %1948 = vmatprep.subr.mxu0 0.0
      %1949 = vmatpush1.msra.mxu0 0.0
      %1950 = vmatprep.subr.mxu0 0.0
      %1951 = vmatpush1.msra.mxu0 0.0
      %1952 = vmatprep.subr.mxu0 0.0
      %1953 = vmatpush1.msra.mxu0 0.0
      %1954 = vmatprep.subr.mxu0 0.0
      %1955 = vmatpush1.msra.mxu0 0.0
      %1956 = vmatprep.subr.mxu0 0.0
      %1957 = vmatpush1.msra.mxu0 0.0
      %1958 = vmatprep.subr.mxu0 0.0
      %1959 = vmatpush1.msra.mxu0 0.0
      %1960 = vmatprep.subr.mxu0 0.0
      %1961 = vmatpush1.msra.mxu0 0.0
      %1962 = vmatprep.subr.mxu0 0.0
      %1963 = vmatpush1.msra.mxu0 0.0
      %1964 = vmatprep.subr.mxu0 0.0
      %1965 = vmatpush1.msra.mxu0 0.0
      %1966 = vmatprep.subr.mxu0 0.0
      %1967 = vmatpush1.msra.mxu0 0.0
      %1968 = vmatprep.subr.mxu0 0.0
      %1969 = vmatpush1.msra.mxu0 0.0
      %1970 = vmatprep.subr.mxu0 0.0
      %1971 = vmatpush1.msra.mxu0 0.0
      %1972 = vmatprep.subr.mxu0 0.0
      %1973 = vmatpush1.msra.mxu0 0.0
      %1974 = vmatprep.subr.mxu0 0.0
      %1975 = vmatpush1.msra.mxu0 0.0
      %1976 = vmatprep.subr.mxu0 0.0
      %1977 = vmatpush1.msra.mxu0 0.0
      %1978 = vmatprep.subr.mxu0 0.0
      %1979 = vmatpush1.msra.mxu0 0.0
      %1980 = vmatprep.subr.mxu0 0.0
      %1981 = vmatpush1.msra.mxu0 0.0
      %1982 = vmatprep.subr.mxu0 0.0
      %1983 = vmatpush1.msra.mxu0 0.0
      %1984 = vmatprep.subr.mxu0 0.0
      %1985 = vmatpush1.msra.mxu0 0.0
      %1986 = vmatprep.mubr.f32.mxu0 0.0
      %1987 = vmatmul.mubr.f32.gmra.mrb[0].mxu0 %v1920
      %v1988 = vpop.f32.mrb[0].mxu0
      %v1989 = vadd.f32 0.0, %v1988
      %v1990 = vpop.f32.mrb[0].mxu0
      %1991 = vdwg.mxu0
      %v1992 = vadd.f32 %v1913, %v1989
      %v1993 = vxor.u32 %v1992, 2147483648
      %v1994 = vmul.f32 %v1993, 1.442695
      %v1995 = vpow.pop %v1994
      %v1996 = vadd.f32 %v1995, 1.0
      %v1997 = vrcp.pop %v1996
      %v1998 = vmul.f32 1.0, %v1997
      %v1999 = vadd.f32 %v1989, %v599
      %2001 = vrot.lane.b32.xlu0 %v1999, 64
      %v2002 = vpop.permute.xlu0 %2001
      %v2004 = vmul.f32 %v1998, %v2002
      %2006 = vrot.lane.b32.xlu0 %v2004, 64
      %v2007 = vpop.permute.xlu0 %2006
      %v2009 = vadd.f32 %v1913, %v2007
      %v2010 = vtanh.pop %v2009
      %v2011 = vsub.f32 1.0, %v1998
      %2013 = vrot.lane.b32.xlu0 %v2010, 96
      %v2014 = vpop.permute.xlu0 %2013
      %v2016 = vmul.f32 %v2011, %v2014
      %v2017 = vmul.f32 %v1998, %v1895
      %v2018 = vadd.f32 %v2016, %v2017
      %2020 = vrot.lane.b32.xlu0 %v1896, 96
      %v2021 = vpop.permute.xlu0 %2020
      %v2022 = vsel %vm517, %v2021, 0
      %2024 = vmatprep.subr.mxu0 0.0
      %2025 = vmatpush1.msra.mxu0 %v473
      %2026 = vmatprep.subr.mxu0 0.0
      %2027 = vmatpush1.msra.mxu0 %v474
      %2028 = vmatprep.subr.mxu0 0.0
      %2029 = vmatpush1.msra.mxu0 %v475
      %2030 = vmatprep.subr.mxu0 0.0
      %2031 = vmatpush1.msra.mxu0 %v476
      %2032 = vmatprep.subr.mxu0 0.0
      %2033 = vmatpush1.msra.mxu0 0.0
      %2034 = vmatprep.subr.mxu0 0.0
      %2035 = vmatpush1.msra.mxu0 0.0
      %2036 = vmatprep.subr.mxu0 0.0
      %2037 = vmatpush1.msra.mxu0 0.0
      %2038 = vmatprep.subr.mxu0 0.0
      %2039 = vmatpush1.msra.mxu0 0.0
      %2040 = vmatprep.subr.mxu0 0.0
      %2041 = vmatpush1.msra.mxu0 0.0
      %2042 = vmatprep.subr.mxu0 0.0
      %2043 = vmatpush1.msra.mxu0 0.0
      %2044 = vmatprep.subr.mxu0 0.0
      %2045 = vmatpush1.msra.mxu0 0.0
      %2046 = vmatprep.subr.mxu0 0.0
      %2047 = vmatpush1.msra.mxu0 0.0
      %2048 = vmatprep.subr.mxu0 0.0
      %2049 = vmatpush1.msra.mxu0 0.0
      %2050 = vmatprep.subr.mxu0 0.0
      %2051 = vmatpush1.msra.mxu0 0.0
      %2052 = vmatprep.subr.mxu0 0.0
      %2053 = vmatpush1.msra.mxu0 0.0
      %2054 = vmatprep.subr.mxu0 0.0
      %2055 = vmatpush1.msra.mxu0 0.0
      %2056 = vmatprep.subr.mxu0 0.0
      %2057 = vmatpush1.msra.mxu0 0.0
      %2058 = vmatprep.subr.mxu0 0.0
      %2059 = vmatpush1.msra.mxu0 0.0
      %2060 = vmatprep.subr.mxu0 0.0
      %2061 = vmatpush1.msra.mxu0 0.0
      %2062 = vmatprep.subr.mxu0 0.0
      %2063 = vmatpush1.msra.mxu0 0.0
      %2064 = vmatprep.subr.mxu0 0.0
      %2065 = vmatpush1.msra.mxu0 0.0
      %2066 = vmatprep.subr.mxu0 0.0
      %2067 = vmatpush1.msra.mxu0 0.0
      %2068 = vmatprep.subr.mxu0 0.0
      %2069 = vmatpush1.msra.mxu0 0.0
      %2070 = vmatprep.subr.mxu0 0.0
      %2071 = vmatpush1.msra.mxu0 0.0
      %2072 = vmatprep.subr.mxu0 0.0
      %2073 = vmatpush1.msra.mxu0 0.0
      %2074 = vmatprep.subr.mxu0 0.0
      %2075 = vmatpush1.msra.mxu0 0.0
      %2076 = vmatprep.subr.mxu0 0.0
      %2077 = vmatpush1.msra.mxu0 0.0
      %2078 = vmatprep.subr.mxu0 0.0
      %2079 = vmatpush1.msra.mxu0 0.0
      %2080 = vmatprep.subr.mxu0 0.0
      %2081 = vmatpush1.msra.mxu0 0.0
      %2082 = vmatprep.subr.mxu0 0.0
      %2083 = vmatpush1.msra.mxu0 0.0
      %2084 = vmatprep.subr.mxu0 0.0
      %2085 = vmatpush1.msra.mxu0 0.0
      %2086 = vmatprep.subr.mxu0 0.0
      %2087 = vmatpush1.msra.mxu0 0.0
      %2088 = vmatprep.mubr.f32.mxu0 0.0
      %2089 = vmatmul.mubr.f32.gmra.mrb[0].mxu0 %v2022
      %v2090 = vpop.f32.mrb[0].mxu0
      %v2091 = vadd.f32 0.0, %v2090
      %v2092 = vpop.f32.mrb[0].mxu0
      %2093 = vdwg.mxu0
      %v2094 = vadd.f32 %v1916, %v2091
      %v2095 = vxor.u32 %v2094, 2147483648
      %v2096 = vmul.f32 %v2095, 1.442695
      %v2097 = vpow.pop %v2096
      %v2098 = vadd.f32 %v2097, 1.0
      %v2099 = vrcp.pop %v2098
      %v2100 = vmul.f32 1.0, %v2099
      %v2101 = vadd.f32 %v2091, %v705
      %2103 = vrot.lane.b32.xlu0 %v2101, 64
      %v2104 = vpop.permute.xlu0 %2103
      %v2106 = vmul.f32 %v2100, %v2104
      %2108 = vrot.lane.b32.xlu0 %v2106, 64
      %v2109 = vpop.permute.xlu0 %2108
      %v2111 = vadd.f32 %v1916, %v2109
      %v2112 = vtanh.pop %v2111
      %v2113 = vsub.f32 1.0, %v2100
      %2115 = vrot.lane.b32.xlu0 %v2112, 96
      %v2116 = vpop.permute.xlu0 %2115
      %v2118 = vmul.f32 %v2113, %v2116
      %v2119 = vmul.f32 %v2100, %v1896
      %v2120 = vadd.f32 %v2118, %v2119
      %s2121 = sadd.s32 %s507, 6
      %v2122 = vstv %s2121
      %vm2123 = vcmp.lt.s32.totalorder %v2122, %v506
      %s2124 = sadd.s32 %s509, 9
      %v2125 = vstv %s2124
      %vm2126 = vcmp.lt.s32.totalorder %v2125, %v506
      %v2127 = vsel %vm2123, %v2018, %v1895
      %v2128 = vsel %vm2126, %v2120, %v1896
      %v2129 = vsel %vm2123, %v2018, 0.0
      %2131 = vrot.lane.b32.xlu0 %v2129, 96
      %v2132 = vpop.permute.xlu0 %2131
      %s2134 = scalar_lea.vmem %s452, 24
      %2135 = vst.msk [vmem:[%s2134] sm:$0xf] %vm742, %v2132
      %v2136 = vsel %vm2126, %v2120, 0.0
      %2138 = vrot.lane.b32.xlu0 %v2136, 96
      %v2139 = vpop.permute.xlu0 %2138
      %s2141 = scalar_lea.vmem %s459, 36
      %2142 = vst.msk [vmem:[%s2141] sm:$0xf] %vm742, %v2139
      %s2143 = scalar_lea.vmem %s437, 28
      %v2144 = vld [vmem:[%s2143] sm:$0xf]
      %v2145 = vadd.f32 %v2144, %v482
      %s2146 = scalar_lea.vmem %s445, 32
      %v2147 = vld [vmem:[%s2146] sm:$0xf]
      %v2148 = vadd.f32 %v2147, %v489
      %2150 = vrot.lane.b32.xlu0 %v2127, 96
      %v2151 = vpop.permute.xlu0 %2150
      %v2152 = vsel %vm517, %v2151, 0
      %2154 = vmatprep.subr.mxu0 0.0
      %2155 = vmatpush1.msra.mxu0 %v469
      %2156 = vmatprep.subr.mxu0 0.0
      %2157 = vmatpush1.msra.mxu0 %v470
      %2158 = vmatprep.subr.mxu0 0.0
      %2159 = vmatpush1.msra.mxu0 %v471
      %2160 = vmatprep.subr.mxu0 0.0
      %2161 = vmatpush1.msra.mxu0 %v472
      %2162 = vmatprep.subr.mxu0 0.0
      %2163 = vmatpush1.msra.mxu0 0.0
      %2164 = vmatprep.subr.mxu0 0.0
      %2165 = vmatpush1.msra.mxu0 0.0
      %2166 = vmatprep.subr.mxu0 0.0
      %2167 = vmatpush1.msra.mxu0 0.0
      %2168 = vmatprep.subr.mxu0 0.0
      %2169 = vmatpush1.msra.mxu0 0.0
      %2170 = vmatprep.subr.mxu0 0.0
      %2171 = vmatpush1.msra.mxu0 0.0
      %2172 = vmatprep.subr.mxu0 0.0
      %2173 = vmatpush1.msra.mxu0 0.0
      %2174 = vmatprep.subr.mxu0 0.0
      %2175 = vmatpush1.msra.mxu0 0.0
      %2176 = vmatprep.subr.mxu0 0.0
      %2177 = vmatpush1.msra.mxu0 0.0
      %2178 = vmatprep.subr.mxu0 0.0
      %2179 = vmatpush1.msra.mxu0 0.0
      %2180 = vmatprep.subr.mxu0 0.0
      %2181 = vmatpush1.msra.mxu0 0.0
      %2182 = vmatprep.subr.mxu0 0.0
      %2183 = vmatpush1.msra.mxu0 0.0
      %2184 = vmatprep.subr.mxu0 0.0
      %2185 = vmatpush1.msra.mxu0 0.0
      %2186 = vmatprep.subr.mxu0 0.0
      %2187 = vmatpush1.msra.mxu0 0.0
      %2188 = vmatprep.subr.mxu0 0.0
      %2189 = vmatpush1.msra.mxu0 0.0
      %2190 = vmatprep.subr.mxu0 0.0
      %2191 = vmatpush1.msra.mxu0 0.0
      %2192 = vmatprep.subr.mxu0 0.0
      %2193 = vmatpush1.msra.mxu0 0.0
      %2194 = vmatprep.subr.mxu0 0.0
      %2195 = vmatpush1.msra.mxu0 0.0
      %2196 = vmatprep.subr.mxu0 0.0
      %2197 = vmatpush1.msra.mxu0 0.0
      %2198 = vmatprep.subr.mxu0 0.0
      %2199 = vmatpush1.msra.mxu0 0.0
      %2200 = vmatprep.subr.mxu0 0.0
      %2201 = vmatpush1.msra.mxu0 0.0
      %2202 = vmatprep.subr.mxu0 0.0
      %2203 = vmatpush1.msra.mxu0 0.0
      %2204 = vmatprep.subr.mxu0 0.0
      %2205 = vmatpush1.msra.mxu0 0.0
      %2206 = vmatprep.subr.mxu0 0.0
      %2207 = vmatpush1.msra.mxu0 0.0
      %2208 = vmatprep.subr.mxu0 0.0
      %2209 = vmatpush1.msra.mxu0 0.0
      %2210 = vmatprep.subr.mxu0 0.0
      %2211 = vmatpush1.msra.mxu0 0.0
      %2212 = vmatprep.subr.mxu0 0.0
      %2213 = vmatpush1.msra.mxu0 0.0
      %2214 = vmatprep.subr.mxu0 0.0
      %2215 = vmatpush1.msra.mxu0 0.0
      %2216 = vmatprep.subr.mxu0 0.0
      %2217 = vmatpush1.msra.mxu0 0.0
      %2218 = vmatprep.mubr.f32.mxu0 0.0
      %2219 = vmatmul.mubr.f32.gmra.mrb[0].mxu0 %v2152
      %v2220 = vpop.f32.mrb[0].mxu0
      %v2221 = vadd.f32 0.0, %v2220
      %v2222 = vpop.f32.mrb[0].mxu0
      %2223 = vdwg.mxu0
      %v2224 = vadd.f32 %v2145, %v2221
      %v2225 = vxor.u32 %v2224, 2147483648
      %v2226 = vmul.f32 %v2225, 1.442695
      %v2227 = vpow.pop %v2226
      %v2228 = vadd.f32 %v2227, 1.0
      %v2229 = vrcp.pop %v2228
      %v2230 = vmul.f32 1.0, %v2229
      %v2231 = vadd.f32 %v2221, %v599
      %2233 = vrot.lane.b32.xlu0 %v2231, 64
      %v2234 = vpop.permute.xlu0 %2233
      %v2236 = vmul.f32 %v2230, %v2234
      %2238 = vrot.lane.b32.xlu0 %v2236, 64
      %v2239 = vpop.permute.xlu0 %2238
      %v2241 = vadd.f32 %v2145, %v2239
      %v2242 = vtanh.pop %v2241
      %v2243 = vsub.f32 1.0, %v2230
      %2245 = vrot.lane.b32.xlu0 %v2242, 96
      %v2246 = vpop.permute.xlu0 %2245
      %v2248 = vmul.f32 %v2243, %v2246
      %v2249 = vmul.f32 %v2230, %v2127
      %v2250 = vadd.f32 %v2248, %v2249
      %2252 = vrot.lane.b32.xlu0 %v2128, 96
      %v2253 = vpop.permute.xlu0 %2252
      %v2254 = vsel %vm517, %v2253, 0
      %2256 = vmatprep.subr.mxu0 0.0
      %2257 = vmatpush1.msra.mxu0 %v473
      %2258 = vmatprep.subr.mxu0 0.0
      %2259 = vmatpush1.msra.mxu0 %v474
      %2260 = vmatprep.subr.mxu0 0.0
      %2261 = vmatpush1.msra.mxu0 %v475
      %2262 = vmatprep.subr.mxu0 0.0
      %2263 = vmatpush1.msra.mxu0 %v476
      %2264 = vmatprep.subr.mxu0 0.0
      %2265 = vmatpush1.msra.mxu0 0.0
      %2266 = vmatprep.subr.mxu0 0.0
      %2267 = vmatpush1.msra.mxu0 0.0
      %2268 = vmatprep.subr.mxu0 0.0
      %2269 = vmatpush1.msra.mxu0 0.0
      %2270 = vmatprep.subr.mxu0 0.0
      %2271 = vmatpush1.msra.mxu0 0.0
      %2272 = vmatprep.subr.mxu0 0.0
      %2273 = vmatpush1.msra.mxu0 0.0
      %2274 = vmatprep.subr.mxu0 0.0
      %2275 = vmatpush1.msra.mxu0 0.0
      %2276 = vmatprep.subr.mxu0 0.0
      %2277 = vmatpush1.msra.mxu0 0.0
      %2278 = vmatprep.subr.mxu0 0.0
      %2279 = vmatpush1.msra.mxu0 0.0
      %2280 = vmatprep.subr.mxu0 0.0
      %2281 = vmatpush1.msra.mxu0 0.0
      %2282 = vmatprep.subr.mxu0 0.0
      %2283 = vmatpush1.msra.mxu0 0.0
      %2284 = vmatprep.subr.mxu0 0.0
      %2285 = vmatpush1.msra.mxu0 0.0
      %2286 = vmatprep.subr.mxu0 0.0
      %2287 = vmatpush1.msra.mxu0 0.0
      %2288 = vmatprep.subr.mxu0 0.0
      %2289 = vmatpush1.msra.mxu0 0.0
      %2290 = vmatprep.subr.mxu0 0.0
      %2291 = vmatpush1.msra.mxu0 0.0
      %2292 = vmatprep.subr.mxu0 0.0
      %2293 = vmatpush1.msra.mxu0 0.0
      %2294 = vmatprep.subr.mxu0 0.0
      %2295 = vmatpush1.msra.mxu0 0.0
      %2296 = vmatprep.subr.mxu0 0.0
      %2297 = vmatpush1.msra.mxu0 0.0
      %2298 = vmatprep.subr.mxu0 0.0
      %2299 = vmatpush1.msra.mxu0 0.0
      %2300 = vmatprep.subr.mxu0 0.0
      %2301 = vmatpush1.msra.mxu0 0.0
      %2302 = vmatprep.subr.mxu0 0.0
      %2303 = vmatpush1.msra.mxu0 0.0
      %2304 = vmatprep.subr.mxu0 0.0
      %2305 = vmatpush1.msra.mxu0 0.0
      %2306 = vmatprep.subr.mxu0 0.0
      %2307 = vmatpush1.msra.mxu0 0.0
      %2308 = vmatprep.subr.mxu0 0.0
      %2309 = vmatpush1.msra.mxu0 0.0
      %2310 = vmatprep.subr.mxu0 0.0
      %2311 = vmatpush1.msra.mxu0 0.0
      %2312 = vmatprep.subr.mxu0 0.0
      %2313 = vmatpush1.msra.mxu0 0.0
      %2314 = vmatprep.subr.mxu0 0.0
      %2315 = vmatpush1.msra.mxu0 0.0
      %2316 = vmatprep.subr.mxu0 0.0
      %2317 = vmatpush1.msra.mxu0 0.0
      %2318 = vmatprep.subr.mxu0 0.0
      %2319 = vmatpush1.msra.mxu0 0.0
      %2320 = vmatprep.mubr.f32.mxu0 0.0
      %2321 = vmatmul.mubr.f32.gmra.mrb[0].mxu0 %v2254
      %v2322 = vpop.f32.mrb[0].mxu0
      %v2323 = vadd.f32 0.0, %v2322
      %v2324 = vpop.f32.mrb[0].mxu0
      %2325 = vdwg.mxu0
      %v2326 = vadd.f32 %v2148, %v2323
      %v2327 = vxor.u32 %v2326, 2147483648
      %v2328 = vmul.f32 %v2327, 1.442695
      %v2329 = vpow.pop %v2328
      %v2330 = vadd.f32 %v2329, 1.0
      %v2331 = vrcp.pop %v2330
      %v2332 = vmul.f32 1.0, %v2331
      %v2333 = vadd.f32 %v2323, %v705
      %2335 = vrot.lane.b32.xlu0 %v2333, 64
      %v2336 = vpop.permute.xlu0 %2335
      %v2338 = vmul.f32 %v2332, %v2336
      %2340 = vrot.lane.b32.xlu0 %v2338, 64
      %v2341 = vpop.permute.xlu0 %2340
      %v2343 = vadd.f32 %v2148, %v2341
      %v2344 = vtanh.pop %v2343
      %v2345 = vsub.f32 1.0, %v2332
      %2347 = vrot.lane.b32.xlu0 %v2344, 96
      %v2348 = vpop.permute.xlu0 %2347
      %v2350 = vmul.f32 %v2345, %v2348
      %v2351 = vmul.f32 %v2332, %v2128
      %v2352 = vadd.f32 %v2350, %v2351
      %s2353 = sadd.s32 %s507, 7
      %v2354 = vstv %s2353
      %vm2355 = vcmp.lt.s32.totalorder %v2354, %v506
      %s2356 = sadd.s32 %s509, 8
      %v2357 = vstv %s2356
      %vm2358 = vcmp.lt.s32.totalorder %v2357, %v506
      %v2359 = vsel %vm2355, %v2250, %v2127
      %v2360 = vsel %vm2358, %v2352, %v2128
      %v2361 = vsel %vm2355, %v2250, 0.0
      %2363 = vrot.lane.b32.xlu0 %v2361, 96
      %v2364 = vpop.permute.xlu0 %2363
      %s2366 = scalar_lea.vmem %s452, 28
      %2367 = vst.msk [vmem:[%s2366] sm:$0xf] %vm742, %v2364
      %v2368 = vsel %vm2358, %v2352, 0.0
      %2370 = vrot.lane.b32.xlu0 %v2368, 96
      %v2371 = vpop.permute.xlu0 %2370
      %s2373 = scalar_lea.vmem %s459, 32
      %2374 = vst.msk [vmem:[%s2373] sm:$0xf] %vm742, %v2371
      %s2375 = scalar_lea.vmem %s437, 32
      %v2376 = vld [vmem:[%s2375] sm:$0xf]
      %v2377 = vadd.f32 %v2376, %v482
      %s2378 = scalar_lea.vmem %s445, 28
      %v2379 = vld [vmem:[%s2378] sm:$0xf]
      %v2380 = vadd.f32 %v2379, %v489
      %2382 = vrot.lane.b32.xlu0 %v2359, 96
      %v2383 = vpop.permute.xlu0 %2382
      %v2384 = vsel %vm517, %v2383, 0
      %2386 = vmatprep.subr.mxu0 0.0
      %2387 = vmatpush1.msra.mxu0 %v469
      %2388 = vmatprep.subr.mxu0 0.0
      %2389 = vmatpush1.msra.mxu0 %v470
      %2390 = vmatprep.subr.mxu0 0.0
      %2391 = vmatpush1.msra.mxu0 %v471
      %2392 = vmatprep.subr.mxu0 0.0
      %2393 = vmatpush1.msra.mxu0 %v472
      %2394 = vmatprep.subr.mxu0 0.0
      %2395 = vmatpush1.msra.mxu0 0.0
      %2396 = vmatprep.subr.mxu0 0.0
      %2397 = vmatpush1.msra.mxu0 0.0
      %2398 = vmatprep.subr.mxu0 0.0
      %2399 = vmatpush1.msra.mxu0 0.0
      %2400 = vmatprep.subr.mxu0 0.0
      %2401 = vmatpush1.msra.mxu0 0.0
      %2402 = vmatprep.subr.mxu0 0.0
      %2403 = vmatpush1.msra.mxu0 0.0
      %2404 = vmatprep.subr.mxu0 0.0
      %2405 = vmatpush1.msra.mxu0 0.0
      %2406 = vmatprep.subr.mxu0 0.0
      %2407 = vmatpush1.msra.mxu0 0.0
      %2408 = vmatprep.subr.mxu0 0.0
      %2409 = vmatpush1.msra.mxu0 0.0
      %2410 = vmatprep.subr.mxu0 0.0
      %2411 = vmatpush1.msra.mxu0 0.0
      %2412 = vmatprep.subr.mxu0 0.0
      %2413 = vmatpush1.msra.mxu0 0.0
      %2414 = vmatprep.subr.mxu0 0.0
      %2415 = vmatpush1.msra.mxu0 0.0
      %2416 = vmatprep.subr.mxu0 0.0
      %2417 = vmatpush1.msra.mxu0 0.0
      %2418 = vmatprep.subr.mxu0 0.0
      %2419 = vmatpush1.msra.mxu0 0.0
      %2420 = vmatprep.subr.mxu0 0.0
      %2421 = vmatpush1.msra.mxu0 0.0
      %2422 = vmatprep.subr.mxu0 0.0
      %2423 = vmatpush1.msra.mxu0 0.0
      %2424 = vmatprep.subr.mxu0 0.0
      %2425 = vmatpush1.msra.mxu0 0.0
      %2426 = vmatprep.subr.mxu0 0.0
      %2427 = vmatpush1.msra.mxu0 0.0
      %2428 = vmatprep.subr.mxu0 0.0
      %2429 = vmatpush1.msra.mxu0 0.0
      %2430 = vmatprep.subr.mxu0 0.0
      %2431 = vmatpush1.msra.mxu0 0.0
      %2432 = vmatprep.subr.mxu0 0.0
      %2433 = vmatpush1.msra.mxu0 0.0
      %2434 = vmatprep.subr.mxu0 0.0
      %2435 = vmatpush1.msra.mxu0 0.0
      %2436 = vmatprep.subr.mxu0 0.0
      %2437 = vmatpush1.msra.mxu0 0.0
      %2438 = vmatprep.subr.mxu0 0.0
      %2439 = vmatpush1.msra.mxu0 0.0
      %2440 = vmatprep.subr.mxu0 0.0
      %2441 = vmatpush1.msra.mxu0 0.0
      %2442 = vmatprep.subr.mxu0 0.0
      %2443 = vmatpush1.msra.mxu0 0.0
      %2444 = vmatprep.subr.mxu0 0.0
      %2445 = vmatpush1.msra.mxu0 0.0
      %2446 = vmatprep.subr.mxu0 0.0
      %2447 = vmatpush1.msra.mxu0 0.0
      %2448 = vmatprep.subr.mxu0 0.0
      %2449 = vmatpush1.msra.mxu0 0.0
      %2450 = vmatprep.mubr.f32.mxu0 0.0
      %2451 = vmatmul.mubr.f32.gmra.mrb[0].mxu0 %v2384
      %v2452 = vpop.f32.mrb[0].mxu0
      %v2453 = vadd.f32 0.0, %v2452
      %v2454 = vpop.f32.mrb[0].mxu0
      %2455 = vdwg.mxu0
      %v2456 = vadd.f32 %v2377, %v2453
      %v2457 = vxor.u32 %v2456, 2147483648
      %v2458 = vmul.f32 %v2457, 1.442695
      %v2459 = vpow.pop %v2458
      %v2460 = vadd.f32 %v2459, 1.0
      %v2461 = vrcp.pop %v2460
      %v2462 = vmul.f32 1.0, %v2461
      %v2463 = vadd.f32 %v2453, %v599
      %2465 = vrot.lane.b32.xlu0 %v2463, 64
      %v2466 = vpop.permute.xlu0 %2465
      %v2468 = vmul.f32 %v2462, %v2466
      %2470 = vrot.lane.b32.xlu0 %v2468, 64
      %v2471 = vpop.permute.xlu0 %2470
      %v2473 = vadd.f32 %v2377, %v2471
      %v2474 = vtanh.pop %v2473
      %v2475 = vsub.f32 1.0, %v2462
      %2477 = vrot.lane.b32.xlu0 %v2474, 96
      %v2478 = vpop.permute.xlu0 %2477
      %v2480 = vmul.f32 %v2475, %v2478
      %v2481 = vmul.f32 %v2462, %v2359
      %v2482 = vadd.f32 %v2480, %v2481
      %2484 = vrot.lane.b32.xlu0 %v2360, 96
      %v2485 = vpop.permute.xlu0 %2484
      %v2486 = vsel %vm517, %v2485, 0
      %2488 = vmatprep.subr.mxu0 0.0
      %2489 = vmatpush1.msra.mxu0 %v473
      %2490 = vmatprep.subr.mxu0 0.0
      %2491 = vmatpush1.msra.mxu0 %v474
      %2492 = vmatprep.subr.mxu0 0.0
      %2493 = vmatpush1.msra.mxu0 %v475
      %2494 = vmatprep.subr.mxu0 0.0
      %2495 = vmatpush1.msra.mxu0 %v476
      %2496 = vmatprep.subr.mxu0 0.0
      %2497 = vmatpush1.msra.mxu0 0.0
      %2498 = vmatprep.subr.mxu0 0.0
      %2499 = vmatpush1.msra.mxu0 0.0
      %2500 = vmatprep.subr.mxu0 0.0
      %2501 = vmatpush1.msra.mxu0 0.0
      %2502 = vmatprep.subr.mxu0 0.0
      %2503 = vmatpush1.msra.mxu0 0.0
      %2504 = vmatprep.subr.mxu0 0.0
      %2505 = vmatpush1.msra.mxu0 0.0
      %2506 = vmatprep.subr.mxu0 0.0
      %2507 = vmatpush1.msra.mxu0 0.0
      %2508 = vmatprep.subr.mxu0 0.0
      %2509 = vmatpush1.msra.mxu0 0.0
      %2510 = vmatprep.subr.mxu0 0.0
      %2511 = vmatpush1.msra.mxu0 0.0
      %2512 = vmatprep.subr.mxu0 0.0
      %2513 = vmatpush1.msra.mxu0 0.0
      %2514 = vmatprep.subr.mxu0 0.0
      %2515 = vmatpush1.msra.mxu0 0.0
      %2516 = vmatprep.subr.mxu0 0.0
      %2517 = vmatpush1.msra.mxu0 0.0
      %2518 = vmatprep.subr.mxu0 0.0
      %2519 = vmatpush1.msra.mxu0 0.0
      %2520 = vmatprep.subr.mxu0 0.0
      %2521 = vmatpush1.msra.mxu0 0.0
      %2522 = vmatprep.subr.mxu0 0.0
      %2523 = vmatpush1.msra.mxu0 0.0
      %2524 = vmatprep.subr.mxu0 0.0
      %2525 = vmatpush1.msra.mxu0 0.0
      %2526 = vmatprep.subr.mxu0 0.0
      %2527 = vmatpush1.msra.mxu0 0.0
      %2528 = vmatprep.subr.mxu0 0.0
      %2529 = vmatpush1.msra.mxu0 0.0
      %2530 = vmatprep.subr.mxu0 0.0
      %2531 = vmatpush1.msra.mxu0 0.0
      %2532 = vmatprep.subr.mxu0 0.0
      %2533 = vmatpush1.msra.mxu0 0.0
      %2534 = vmatprep.subr.mxu0 0.0
      %2535 = vmatpush1.msra.mxu0 0.0
      %2536 = vmatprep.subr.mxu0 0.0
      %2537 = vmatpush1.msra.mxu0 0.0
      %2538 = vmatprep.subr.mxu0 0.0
      %2539 = vmatpush1.msra.mxu0 0.0
      %2540 = vmatprep.subr.mxu0 0.0
      %2541 = vmatpush1.msra.mxu0 0.0
      %2542 = vmatprep.subr.mxu0 0.0
      %2543 = vmatpush1.msra.mxu0 0.0
      %2544 = vmatprep.subr.mxu0 0.0
      %2545 = vmatpush1.msra.mxu0 0.0
      %2546 = vmatprep.subr.mxu0 0.0
      %2547 = vmatpush1.msra.mxu0 0.0
      %2548 = vmatprep.subr.mxu0 0.0
      %2549 = vmatpush1.msra.mxu0 0.0
      %2550 = vmatprep.subr.mxu0 0.0
      %2551 = vmatpush1.msra.mxu0 0.0
      %2552 = vmatprep.mubr.f32.mxu0 0.0
      %2553 = vmatmul.mubr.f32.gmra.mrb[0].mxu0 %v2486
      %v2554 = vpop.f32.mrb[0].mxu0
      %v2555 = vadd.f32 0.0, %v2554
      %v2556 = vpop.f32.mrb[0].mxu0
      %2557 = vdwg.mxu0
      %v2558 = vadd.f32 %v2380, %v2555
      %v2559 = vxor.u32 %v2558, 2147483648
      %v2560 = vmul.f32 %v2559, 1.442695
      %v2561 = vpow.pop %v2560
      %v2562 = vadd.f32 %v2561, 1.0
      %v2563 = vrcp.pop %v2562
      %v2564 = vmul.f32 1.0, %v2563
      %v2565 = vadd.f32 %v2555, %v705
      %2567 = vrot.lane.b32.xlu0 %v2565, 64
      %v2568 = vpop.permute.xlu0 %2567
      %v2570 = vmul.f32 %v2564, %v2568
      %2572 = vrot.lane.b32.xlu0 %v2570, 64
      %v2573 = vpop.permute.xlu0 %2572
      %v2575 = vadd.f32 %v2380, %v2573
      %v2576 = vtanh.pop %v2575
      %v2577 = vsub.f32 1.0, %v2564
      %2579 = vrot.lane.b32.xlu0 %v2576, 96
      %v2580 = vpop.permute.xlu0 %2579
      %v2582 = vmul.f32 %v2577, %v2580
      %v2583 = vmul.f32 %v2564, %v2360
      %v2584 = vadd.f32 %v2582, %v2583
      %s2585 = sadd.s32 %s507, 8
      %v2586 = vstv %s2585
      %vm2587 = vcmp.lt.s32.totalorder %v2586, %v506
      %s2588 = sadd.s32 %s509, 7
      %v2589 = vstv %s2588
      %vm2590 = vcmp.lt.s32.totalorder %v2589, %v506
      %v2591 = vsel %vm2587, %v2482, %v2359
      %v2592 = vsel %vm2590, %v2584, %v2360
      %v2593 = vsel %vm2587, %v2482, 0.0
      %2595 = vrot.lane.b32.xlu0 %v2593, 96
      %v2596 = vpop.permute.xlu0 %2595
      %s2598 = scalar_lea.vmem %s452, 32
      %2599 = vst.msk [vmem:[%s2598] sm:$0xf] %vm742, %v2596
      %v2600 = vsel %vm2590, %v2584, 0.0
      %2602 = vrot.lane.b32.xlu0 %v2600, 96
      %v2603 = vpop.permute.xlu0 %2602
      %s2605 = scalar_lea.vmem %s459, 28
      %2606 = vst.msk [vmem:[%s2605] sm:$0xf] %vm742, %v2603
      %s2607 = scalar_lea.vmem %s437, 36
      %v2608 = vld [vmem:[%s2607] sm:$0xf]
      %v2609 = vadd.f32 %v2608, %v482
      %s2610 = scalar_lea.vmem %s445, 24
      %v2611 = vld [vmem:[%s2610] sm:$0xf]
      %v2612 = vadd.f32 %v2611, %v489
      %2614 = vrot.lane.b32.xlu0 %v2591, 96
      %v2615 = vpop.permute.xlu0 %2614
      %v2616 = vsel %vm517, %v2615, 0
      %2618 = vmatprep.subr.mxu0 0.0
      %2619 = vmatpush1.msra.mxu0 %v469
      %2620 = vmatprep.subr.mxu0 0.0
      %2621 = vmatpush1.msra.mxu0 %v470
      %2622 = vmatprep.subr.mxu0 0.0
      %2623 = vmatpush1.msra.mxu0 %v471
      %2624 = vmatprep.subr.mxu0 0.0
      %2625 = vmatpush1.msra.mxu0 %v472
      %2626 = vmatprep.subr.mxu0 0.0
      %2627 = vmatpush1.msra.mxu0 0.0
      %2628 = vmatprep.subr.mxu0 0.0
      %2629 = vmatpush1.msra.mxu0 0.0
      %2630 = vmatprep.subr.mxu0 0.0
      %2631 = vmatpush1.msra.mxu0 0.0
      %2632 = vmatprep.subr.mxu0 0.0
      %2633 = vmatpush1.msra.mxu0 0.0
      %2634 = vmatprep.subr.mxu0 0.0
      %2635 = vmatpush1.msra.mxu0 0.0
      %2636 = vmatprep.subr.mxu0 0.0
      %2637 = vmatpush1.msra.mxu0 0.0
      %2638 = vmatprep.subr.mxu0 0.0
      %2639 = vmatpush1.msra.mxu0 0.0
      %2640 = vmatprep.subr.mxu0 0.0
      %2641 = vmatpush1.msra.mxu0 0.0
      %2642 = vmatprep.subr.mxu0 0.0
      %2643 = vmatpush1.msra.mxu0 0.0
      %2644 = vmatprep.subr.mxu0 0.0
      %2645 = vmatpush1.msra.mxu0 0.0
      %2646 = vmatprep.subr.mxu0 0.0
      %2647 = vmatpush1.msra.mxu0 0.0
      %2648 = vmatprep.subr.mxu0 0.0
      %2649 = vmatpush1.msra.mxu0 0.0
      %2650 = vmatprep.subr.mxu0 0.0
      %2651 = vmatpush1.msra.mxu0 0.0
      %2652 = vmatprep.subr.mxu0 0.0
      %2653 = vmatpush1.msra.mxu0 0.0
      %2654 = vmatprep.subr.mxu0 0.0
      %2655 = vmatpush1.msra.mxu0 0.0
      %2656 = vmatprep.subr.mxu0 0.0
      %2657 = vmatpush1.msra.mxu0 0.0
      %2658 = vmatprep.subr.mxu0 0.0
      %2659 = vmatpush1.msra.mxu0 0.0
      %2660 = vmatprep.subr.mxu0 0.0
      %2661 = vmatpush1.msra.mxu0 0.0
      %2662 = vmatprep.subr.mxu0 0.0
      %2663 = vmatpush1.msra.mxu0 0.0
      %2664 = vmatprep.subr.mxu0 0.0
      %2665 = vmatpush1.msra.mxu0 0.0
      %2666 = vmatprep.subr.mxu0 0.0
      %2667 = vmatpush1.msra.mxu0 0.0
      %2668 = vmatprep.subr.mxu0 0.0
      %2669 = vmatpush1.msra.mxu0 0.0
      %2670 = vmatprep.subr.mxu0 0.0
      %2671 = vmatpush1.msra.mxu0 0.0
      %2672 = vmatprep.subr.mxu0 0.0
      %2673 = vmatpush1.msra.mxu0 0.0
      %2674 = vmatprep.subr.mxu0 0.0
      %2675 = vmatpush1.msra.mxu0 0.0
      %2676 = vmatprep.subr.mxu0 0.0
      %2677 = vmatpush1.msra.mxu0 0.0
      %2678 = vmatprep.subr.mxu0 0.0
      %2679 = vmatpush1.msra.mxu0 0.0
      %2680 = vmatprep.subr.mxu0 0.0
      %2681 = vmatpush1.msra.mxu0 0.0
      %2682 = vmatprep.mubr.f32.mxu0 0.0
      %2683 = vmatmul.mubr.f32.gmra.mrb[0].mxu0 %v2616
      %v2684 = vpop.f32.mrb[0].mxu0
      %v2685 = vadd.f32 0.0, %v2684
      %v2686 = vpop.f32.mrb[0].mxu0
      %2687 = vdwg.mxu0
      %v2688 = vadd.f32 %v2609, %v2685
      %v2689 = vxor.u32 %v2688, 2147483648
      %v2690 = vmul.f32 %v2689, 1.442695
      %v2691 = vpow.pop %v2690
      %v2692 = vadd.f32 %v2691, 1.0
      %v2693 = vrcp.pop %v2692
      %v2694 = vmul.f32 1.0, %v2693
      %v2695 = vadd.f32 %v2685, %v599
      %2697 = vrot.lane.b32.xlu0 %v2695, 64
      %v2698 = vpop.permute.xlu0 %2697
      %v2700 = vmul.f32 %v2694, %v2698
      %2702 = vrot.lane.b32.xlu0 %v2700, 64
      %v2703 = vpop.permute.xlu0 %2702
      %v2705 = vadd.f32 %v2609, %v2703
      %v2706 = vtanh.pop %v2705
      %v2707 = vsub.f32 1.0, %v2694
      %2709 = vrot.lane.b32.xlu0 %v2706, 96
      %v2710 = vpop.permute.xlu0 %2709
      %v2712 = vmul.f32 %v2707, %v2710
      %v2713 = vmul.f32 %v2694, %v2591
      %v2714 = vadd.f32 %v2712, %v2713
      %2716 = vrot.lane.b32.xlu0 %v2592, 96
      %v2717 = vpop.permute.xlu0 %2716
      %v2718 = vsel %vm517, %v2717, 0
      %2720 = vmatprep.subr.mxu0 0.0
      %2721 = vmatpush1.msra.mxu0 %v473
      %2722 = vmatprep.subr.mxu0 0.0
      %2723 = vmatpush1.msra.mxu0 %v474
      %2724 = vmatprep.subr.mxu0 0.0
      %2725 = vmatpush1.msra.mxu0 %v475
      %2726 = vmatprep.subr.mxu0 0.0
      %2727 = vmatpush1.msra.mxu0 %v476
      %2728 = vmatprep.subr.mxu0 0.0
      %2729 = vmatpush1.msra.mxu0 0.0
      %2730 = vmatprep.subr.mxu0 0.0
      %2731 = vmatpush1.msra.mxu0 0.0
      %2732 = vmatprep.subr.mxu0 0.0
      %2733 = vmatpush1.msra.mxu0 0.0
      %2734 = vmatprep.subr.mxu0 0.0
      %2735 = vmatpush1.msra.mxu0 0.0
      %2736 = vmatprep.subr.mxu0 0.0
      %2737 = vmatpush1.msra.mxu0 0.0
      %2738 = vmatprep.subr.mxu0 0.0
      %2739 = vmatpush1.msra.mxu0 0.0
      %2740 = vmatprep.subr.mxu0 0.0
      %2741 = vmatpush1.msra.mxu0 0.0
      %2742 = vmatprep.subr.mxu0 0.0
      %2743 = vmatpush1.msra.mxu0 0.0
      %2744 = vmatprep.subr.mxu0 0.0
      %2745 = vmatpush1.msra.mxu0 0.0
      %2746 = vmatprep.subr.mxu0 0.0
      %2747 = vmatpush1.msra.mxu0 0.0
      %2748 = vmatprep.subr.mxu0 0.0
      %2749 = vmatpush1.msra.mxu0 0.0
      %2750 = vmatprep.subr.mxu0 0.0
      %2751 = vmatpush1.msra.mxu0 0.0
      %2752 = vmatprep.subr.mxu0 0.0
      %2753 = vmatpush1.msra.mxu0 0.0
      %2754 = vmatprep.subr.mxu0 0.0
      %2755 = vmatpush1.msra.mxu0 0.0
      %2756 = vmatprep.subr.mxu0 0.0
      %2757 = vmatpush1.msra.mxu0 0.0
      %2758 = vmatprep.subr.mxu0 0.0
      %2759 = vmatpush1.msra.mxu0 0.0
      %2760 = vmatprep.subr.mxu0 0.0
      %2761 = vmatpush1.msra.mxu0 0.0
      %2762 = vmatprep.subr.mxu0 0.0
      %2763 = vmatpush1.msra.mxu0 0.0
      %2764 = vmatprep.subr.mxu0 0.0
      %2765 = vmatpush1.msra.mxu0 0.0
      %2766 = vmatprep.subr.mxu0 0.0
      %2767 = vmatpush1.msra.mxu0 0.0
      %2768 = vmatprep.subr.mxu0 0.0
      %2769 = vmatpush1.msra.mxu0 0.0
      %2770 = vmatprep.subr.mxu0 0.0
      %2771 = vmatpush1.msra.mxu0 0.0
      %2772 = vmatprep.subr.mxu0 0.0
      %2773 = vmatpush1.msra.mxu0 0.0
      %2774 = vmatprep.subr.mxu0 0.0
      %2775 = vmatpush1.msra.mxu0 0.0
      %2776 = vmatprep.subr.mxu0 0.0
      %2777 = vmatpush1.msra.mxu0 0.0
      %2778 = vmatprep.subr.mxu0 0.0
      %2779 = vmatpush1.msra.mxu0 0.0
      %2780 = vmatprep.subr.mxu0 0.0
      %2781 = vmatpush1.msra.mxu0 0.0
      %2782 = vmatprep.subr.mxu0 0.0
      %2783 = vmatpush1.msra.mxu0 0.0
      %2784 = vmatprep.mubr.f32.mxu0 0.0
      %2785 = vmatmul.mubr.f32.gmra.mrb[0].mxu0 %v2718
      %v2786 = vpop.f32.mrb[0].mxu0
      %v2787 = vadd.f32 0.0, %v2786
      %v2788 = vpop.f32.mrb[0].mxu0
      %2789 = vdwg.mxu0
      %v2790 = vadd.f32 %v2612, %v2787
      %v2791 = vxor.u32 %v2790, 2147483648
      %v2792 = vmul.f32 %v2791, 1.442695
      %v2793 = vpow.pop %v2792
      %v2794 = vadd.f32 %v2793, 1.0
      %v2795 = vrcp.pop %v2794
      %v2796 = vmul.f32 1.0, %v2795
      %v2797 = vadd.f32 %v2787, %v705
      %2799 = vrot.lane.b32.xlu0 %v2797, 64
      %v2800 = vpop.permute.xlu0 %2799
      %v2802 = vmul.f32 %v2796, %v2800
      %2804 = vrot.lane.b32.xlu0 %v2802, 64
      %v2805 = vpop.permute.xlu0 %2804
      %v2807 = vadd.f32 %v2612, %v2805
      %v2808 = vtanh.pop %v2807
      %v2809 = vsub.f32 1.0, %v2796
      %2811 = vrot.lane.b32.xlu0 %v2808, 96
      %v2812 = vpop.permute.xlu0 %2811
      %v2814 = vmul.f32 %v2809, %v2812
      %v2815 = vmul.f32 %v2796, %v2592
      %v2816 = vadd.f32 %v2814, %v2815
      %s2817 = sadd.s32 %s507, 9
      %v2818 = vstv %s2817
      %vm2819 = vcmp.lt.s32.totalorder %v2818, %v506
      %s2820 = sadd.s32 %s509, 6
      %v2821 = vstv %s2820
      %vm2822 = vcmp.lt.s32.totalorder %v2821, %v506
      %v2823 = vsel %vm2819, %v2714, %v2591
      %v2824 = vsel %vm2822, %v2816, %v2592
      %v2825 = vsel %vm2819, %v2714, 0.0
      %2827 = vrot.lane.b32.xlu0 %v2825, 96
      %v2828 = vpop.permute.xlu0 %2827
      %s2830 = scalar_lea.vmem %s452, 36
      %2831 = vst.msk [vmem:[%s2830] sm:$0xf] %vm742, %v2828
      %v2832 = vsel %vm2822, %v2816, 0.0
      %2834 = vrot.lane.b32.xlu0 %v2832, 96
      %v2835 = vpop.permute.xlu0 %2834
      %s2837 = scalar_lea.vmem %s459, 24
      %2838 = vst.msk [vmem:[%s2837] sm:$0xf] %vm742, %v2835
      %s2839 = scalar_lea.vmem %s437, 40
      %v2840 = vld [vmem:[%s2839] sm:$0xf]
      %v2841 = vadd.f32 %v2840, %v482
      %s2842 = scalar_lea.vmem %s445, 20
      %v2843 = vld [vmem:[%s2842] sm:$0xf]
      %v2844 = vadd.f32 %v2843, %v489
      %2846 = vrot.lane.b32.xlu0 %v2823, 96
      %v2847 = vpop.permute.xlu0 %2846
      %v2848 = vsel %vm517, %v2847, 0
      %2850 = vmatprep.subr.mxu0 0.0
      %2851 = vmatpush1.msra.mxu0 %v469
      %2852 = vmatprep.subr.mxu0 0.0
      %2853 = vmatpush1.msra.mxu0 %v470
      %2854 = vmatprep.subr.mxu0 0.0
      %2855 = vmatpush1.msra.mxu0 %v471
      %2856 = vmatprep.subr.mxu0 0.0
      %2857 = vmatpush1.msra.mxu0 %v472
      %2858 = vmatprep.subr.mxu0 0.0
      %2859 = vmatpush1.msra.mxu0 0.0
      %2860 = vmatprep.subr.mxu0 0.0
      %2861 = vmatpush1.msra.mxu0 0.0
      %2862 = vmatprep.subr.mxu0 0.0
      %2863 = vmatpush1.msra.mxu0 0.0
      %2864 = vmatprep.subr.mxu0 0.0
      %2865 = vmatpush1.msra.mxu0 0.0
      %2866 = vmatprep.subr.mxu0 0.0
      %2867 = vmatpush1.msra.mxu0 0.0
      %2868 = vmatprep.subr.mxu0 0.0
      %2869 = vmatpush1.msra.mxu0 0.0
      %2870 = vmatprep.subr.mxu0 0.0
      %2871 = vmatpush1.msra.mxu0 0.0
      %2872 = vmatprep.subr.mxu0 0.0
      %2873 = vmatpush1.msra.mxu0 0.0
      %2874 = vmatprep.subr.mxu0 0.0
      %2875 = vmatpush1.msra.mxu0 0.0
      %2876 = vmatprep.subr.mxu0 0.0
      %2877 = vmatpush1.msra.mxu0 0.0
      %2878 = vmatprep.subr.mxu0 0.0
      %2879 = vmatpush1.msra.mxu0 0.0
      %2880 = vmatprep.subr.mxu0 0.0
      %2881 = vmatpush1.msra.mxu0 0.0
      %2882 = vmatprep.subr.mxu0 0.0
      %2883 = vmatpush1.msra.mxu0 0.0
      %2884 = vmatprep.subr.mxu0 0.0
      %2885 = vmatpush1.msra.mxu0 0.0
      %2886 = vmatprep.subr.mxu0 0.0
      %2887 = vmatpush1.msra.mxu0 0.0
      %2888 = vmatprep.subr.mxu0 0.0
      %2889 = vmatpush1.msra.mxu0 0.0
      %2890 = vmatprep.subr.mxu0 0.0
      %2891 = vmatpush1.msra.mxu0 0.0
      %2892 = vmatprep.subr.mxu0 0.0
      %2893 = vmatpush1.msra.mxu0 0.0
      %2894 = vmatprep.subr.mxu0 0.0
      %2895 = vmatpush1.msra.mxu0 0.0
      %2896 = vmatprep.subr.mxu0 0.0
      %2897 = vmatpush1.msra.mxu0 0.0
      %2898 = vmatprep.subr.mxu0 0.0
      %2899 = vmatpush1.msra.mxu0 0.0
      %2900 = vmatprep.subr.mxu0 0.0
      %2901 = vmatpush1.msra.mxu0 0.0
      %2902 = vmatprep.subr.mxu0 0.0
      %2903 = vmatpush1.msra.mxu0 0.0
      %2904 = vmatprep.subr.mxu0 0.0
      %2905 = vmatpush1.msra.mxu0 0.0
      %2906 = vmatprep.subr.mxu0 0.0
      %2907 = vmatpush1.msra.mxu0 0.0
      %2908 = vmatprep.subr.mxu0 0.0
      %2909 = vmatpush1.msra.mxu0 0.0
      %2910 = vmatprep.subr.mxu0 0.0
      %2911 = vmatpush1.msra.mxu0 0.0
      %2912 = vmatprep.subr.mxu0 0.0
      %2913 = vmatpush1.msra.mxu0 0.0
      %2914 = vmatprep.mubr.f32.mxu0 0.0
      %2915 = vmatmul.mubr.f32.gmra.mrb[0].mxu0 %v2848
      %v2916 = vpop.f32.mrb[0].mxu0
      %v2917 = vadd.f32 0.0, %v2916
      %v2918 = vpop.f32.mrb[0].mxu0
      %2919 = vdwg.mxu0
      %v2920 = vadd.f32 %v2841, %v2917
      %v2921 = vxor.u32 %v2920, 2147483648
      %v2922 = vmul.f32 %v2921, 1.442695
      %v2923 = vpow.pop %v2922
      %v2924 = vadd.f32 %v2923, 1.0
      %v2925 = vrcp.pop %v2924
      %v2926 = vmul.f32 1.0, %v2925
      %v2927 = vadd.f32 %v2917, %v599
      %2929 = vrot.lane.b32.xlu0 %v2927, 64
      %v2930 = vpop.permute.xlu0 %2929
      %v2932 = vmul.f32 %v2926, %v2930
      %2934 = vrot.lane.b32.xlu0 %v2932, 64
      %v2935 = vpop.permute.xlu0 %2934
      %v2937 = vadd.f32 %v2841, %v2935
      %v2938 = vtanh.pop %v2937
      %v2939 = vsub.f32 1.0, %v2926
      %2941 = vrot.lane.b32.xlu0 %v2938, 96
      %v2942 = vpop.permute.xlu0 %2941
      %v2944 = vmul.f32 %v2939, %v2942
      %v2945 = vmul.f32 %v2926, %v2823
      %v2946 = vadd.f32 %v2944, %v2945
      %2948 = vrot.lane.b32.xlu0 %v2824, 96
      %v2949 = vpop.permute.xlu0 %2948
      %v2950 = vsel %vm517, %v2949, 0
      %2952 = vmatprep.subr.mxu0 0.0
      %2953 = vmatpush1.msra.mxu0 %v473
      %2954 = vmatprep.subr.mxu0 0.0
      %2955 = vmatpush1.msra.mxu0 %v474
      %2956 = vmatprep.subr.mxu0 0.0
      %2957 = vmatpush1.msra.mxu0 %v475
      %2958 = vmatprep.subr.mxu0 0.0
      %2959 = vmatpush1.msra.mxu0 %v476
      %2960 = vmatprep.subr.mxu0 0.0
      %2961 = vmatpush1.msra.mxu0 0.0
      %2962 = vmatprep.subr.mxu0 0.0
      %2963 = vmatpush1.msra.mxu0 0.0
      %2964 = vmatprep.subr.mxu0 0.0
      %2965 = vmatpush1.msra.mxu0 0.0
      %2966 = vmatprep.subr.mxu0 0.0
      %2967 = vmatpush1.msra.mxu0 0.0
      %2968 = vmatprep.subr.mxu0 0.0
      %2969 = vmatpush1.msra.mxu0 0.0
      %2970 = vmatprep.subr.mxu0 0.0
      %2971 = vmatpush1.msra.mxu0 0.0
      %2972 = vmatprep.subr.mxu0 0.0
      %2973 = vmatpush1.msra.mxu0 0.0
      %2974 = vmatprep.subr.mxu0 0.0
      %2975 = vmatpush1.msra.mxu0 0.0
      %2976 = vmatprep.subr.mxu0 0.0
      %2977 = vmatpush1.msra.mxu0 0.0
      %2978 = vmatprep.subr.mxu0 0.0
      %2979 = vmatpush1.msra.mxu0 0.0
      %2980 = vmatprep.subr.mxu0 0.0
      %2981 = vmatpush1.msra.mxu0 0.0
      %2982 = vmatprep.subr.mxu0 0.0
      %2983 = vmatpush1.msra.mxu0 0.0
      %2984 = vmatprep.subr.mxu0 0.0
      %2985 = vmatpush1.msra.mxu0 0.0
      %2986 = vmatprep.subr.mxu0 0.0
      %2987 = vmatpush1.msra.mxu0 0.0
      %2988 = vmatprep.subr.mxu0 0.0
      %2989 = vmatpush1.msra.mxu0 0.0
      %2990 = vmatprep.subr.mxu0 0.0
      %2991 = vmatpush1.msra.mxu0 0.0
      %2992 = vmatprep.subr.mxu0 0.0
      %2993 = vmatpush1.msra.mxu0 0.0
      %2994 = vmatprep.subr.mxu0 0.0
      %2995 = vmatpush1.msra.mxu0 0.0
      %2996 = vmatprep.subr.mxu0 0.0
      %2997 = vmatpush1.msra.mxu0 0.0
      %2998 = vmatprep.subr.mxu0 0.0
      %2999 = vmatpush1.msra.mxu0 0.0
      %3000 = vmatprep.subr.mxu0 0.0
      %3001 = vmatpush1.msra.mxu0 0.0
      %3002 = vmatprep.subr.mxu0 0.0
      %3003 = vmatpush1.msra.mxu0 0.0
      %3004 = vmatprep.subr.mxu0 0.0
      %3005 = vmatpush1.msra.mxu0 0.0
      %3006 = vmatprep.subr.mxu0 0.0
      %3007 = vmatpush1.msra.mxu0 0.0
      %3008 = vmatprep.subr.mxu0 0.0
      %3009 = vmatpush1.msra.mxu0 0.0
      %3010 = vmatprep.subr.mxu0 0.0
      %3011 = vmatpush1.msra.mxu0 0.0
      %3012 = vmatprep.subr.mxu0 0.0
      %3013 = vmatpush1.msra.mxu0 0.0
      %3014 = vmatprep.subr.mxu0 0.0
      %3015 = vmatpush1.msra.mxu0 0.0
      %3016 = vmatprep.mubr.f32.mxu0 0.0
      %3017 = vmatmul.mubr.f32.gmra.mrb[0].mxu0 %v2950
      %v3018 = vpop.f32.mrb[0].mxu0
      %v3019 = vadd.f32 0.0, %v3018
      %v3020 = vpop.f32.mrb[0].mxu0
      %3021 = vdwg.mxu0
      %v3022 = vadd.f32 %v2844, %v3019
      %v3023 = vxor.u32 %v3022, 2147483648
      %v3024 = vmul.f32 %v3023, 1.442695
      %v3025 = vpow.pop %v3024
      %v3026 = vadd.f32 %v3025, 1.0
      %v3027 = vrcp.pop %v3026
      %v3028 = vmul.f32 1.0, %v3027
      %v3029 = vadd.f32 %v3019, %v705
      %3031 = vrot.lane.b32.xlu0 %v3029, 64
      %v3032 = vpop.permute.xlu0 %3031
      %v3034 = vmul.f32 %v3028, %v3032
      %3036 = vrot.lane.b32.xlu0 %v3034, 64
      %v3037 = vpop.permute.xlu0 %3036
      %v3039 = vadd.f32 %v2844, %v3037
      %v3040 = vtanh.pop %v3039
      %v3041 = vsub.f32 1.0, %v3028
      %3043 = vrot.lane.b32.xlu0 %v3040, 96
      %v3044 = vpop.permute.xlu0 %3043
      %v3046 = vmul.f32 %v3041, %v3044
      %v3047 = vmul.f32 %v3028, %v2824
      %v3048 = vadd.f32 %v3046, %v3047
      %s3049 = sadd.s32 %s507, 10
      %v3050 = vstv %s3049
      %vm3051 = vcmp.lt.s32.totalorder %v3050, %v506
      %s3052 = sadd.s32 %s509, 5
      %v3053 = vstv %s3052
      %vm3054 = vcmp.lt.s32.totalorder %v3053, %v506
      %v3055 = vsel %vm3051, %v2946, %v2823
      %v3056 = vsel %vm3054, %v3048, %v2824
      %v3057 = vsel %vm3051, %v2946, 0.0
      %3059 = vrot.lane.b32.xlu0 %v3057, 96
      %v3060 = vpop.permute.xlu0 %3059
      %s3062 = scalar_lea.vmem %s452, 40
      %3063 = vst.msk [vmem:[%s3062] sm:$0xf] %vm742, %v3060
      %v3064 = vsel %vm3054, %v3048, 0.0
      %3066 = vrot.lane.b32.xlu0 %v3064, 96
      %v3067 = vpop.permute.xlu0 %3066
      %s3069 = scalar_lea.vmem %s459, 20
      %3070 = vst.msk [vmem:[%s3069] sm:$0xf] %vm742, %v3067
      %s3071 = scalar_lea.vmem %s437, 44
      %v3072 = vld [vmem:[%s3071] sm:$0xf]
      %v3073 = vadd.f32 %v3072, %v482
      %s3074 = scalar_lea.vmem %s445, 16
      %v3075 = vld [vmem:[%s3074] sm:$0xf]
      %v3076 = vadd.f32 %v3075, %v489
      %3078 = vrot.lane.b32.xlu0 %v3055, 96
      %v3079 = vpop.permute.xlu0 %3078
      %v3080 = vsel %vm517, %v3079, 0
      %3082 = vmatprep.subr.mxu0 0.0
      %3083 = vmatpush1.msra.mxu0 %v469
      %3084 = vmatprep.subr.mxu0 0.0
      %3085 = vmatpush1.msra.mxu0 %v470
      %3086 = vmatprep.subr.mxu0 0.0
      %3087 = vmatpush1.msra.mxu0 %v471
      %3088 = vmatprep.subr.mxu0 0.0
      %3089 = vmatpush1.msra.mxu0 %v472
      %3090 = vmatprep.subr.mxu0 0.0
      %3091 = vmatpush1.msra.mxu0 0.0
      %3092 = vmatprep.subr.mxu0 0.0
      %3093 = vmatpush1.msra.mxu0 0.0
      %3094 = vmatprep.subr.mxu0 0.0
      %3095 = vmatpush1.msra.mxu0 0.0
      %3096 = vmatprep.subr.mxu0 0.0
      %3097 = vmatpush1.msra.mxu0 0.0
      %3098 = vmatprep.subr.mxu0 0.0
      %3099 = vmatpush1.msra.mxu0 0.0
      %3100 = vmatprep.subr.mxu0 0.0
      %3101 = vmatpush1.msra.mxu0 0.0
      %3102 = vmatprep.subr.mxu0 0.0
      %3103 = vmatpush1.msra.mxu0 0.0
      %3104 = vmatprep.subr.mxu0 0.0
      %3105 = vmatpush1.msra.mxu0 0.0
      %3106 = vmatprep.subr.mxu0 0.0
      %3107 = vmatpush1.msra.mxu0 0.0
      %3108 = vmatprep.subr.mxu0 0.0
      %3109 = vmatpush1.msra.mxu0 0.0
      %3110 = vmatprep.subr.mxu0 0.0
      %3111 = vmatpush1.msra.mxu0 0.0
      %3112 = vmatprep.subr.mxu0 0.0
      %3113 = vmatpush1.msra.mxu0 0.0
      %3114 = vmatprep.subr.mxu0 0.0
      %3115 = vmatpush1.msra.mxu0 0.0
      %3116 = vmatprep.subr.mxu0 0.0
      %3117 = vmatpush1.msra.mxu0 0.0
      %3118 = vmatprep.subr.mxu0 0.0
      %3119 = vmatpush1.msra.mxu0 0.0
      %3120 = vmatprep.subr.mxu0 0.0
      %3121 = vmatpush1.msra.mxu0 0.0
      %3122 = vmatprep.subr.mxu0 0.0
      %3123 = vmatpush1.msra.mxu0 0.0
      %3124 = vmatprep.subr.mxu0 0.0
      %3125 = vmatpush1.msra.mxu0 0.0
      %3126 = vmatprep.subr.mxu0 0.0
      %3127 = vmatpush1.msra.mxu0 0.0
      %3128 = vmatprep.subr.mxu0 0.0
      %3129 = vmatpush1.msra.mxu0 0.0
      %3130 = vmatprep.subr.mxu0 0.0
      %3131 = vmatpush1.msra.mxu0 0.0
      %3132 = vmatprep.subr.mxu0 0.0
      %3133 = vmatpush1.msra.mxu0 0.0
      %3134 = vmatprep.subr.mxu0 0.0
      %3135 = vmatpush1.msra.mxu0 0.0
      %3136 = vmatprep.subr.mxu0 0.0
      %3137 = vmatpush1.msra.mxu0 0.0
      %3138 = vmatprep.subr.mxu0 0.0
      %3139 = vmatpush1.msra.mxu0 0.0
      %3140 = vmatprep.subr.mxu0 0.0
      %3141 = vmatpush1.msra.mxu0 0.0
      %3142 = vmatprep.subr.mxu0 0.0
      %3143 = vmatpush1.msra.mxu0 0.0
      %3144 = vmatprep.subr.mxu0 0.0
      %3145 = vmatpush1.msra.mxu0 0.0
      %3146 = vmatprep.mubr.f32.mxu0 0.0
      %3147 = vmatmul.mubr.f32.gmra.mrb[0].mxu0 %v3080
      %v3148 = vpop.f32.mrb[0].mxu0
      %v3149 = vadd.f32 0.0, %v3148
      %v3150 = vpop.f32.mrb[0].mxu0
      %3151 = vdwg.mxu0
      %v3152 = vadd.f32 %v3073, %v3149
      %v3153 = vxor.u32 %v3152, 2147483648
      %v3154 = vmul.f32 %v3153, 1.442695
      %v3155 = vpow.pop %v3154
      %v3156 = vadd.f32 %v3155, 1.0
      %v3157 = vrcp.pop %v3156
      %v3158 = vmul.f32 1.0, %v3157
      %v3159 = vadd.f32 %v3149, %v599
      %3161 = vrot.lane.b32.xlu0 %v3159, 64
      %v3162 = vpop.permute.xlu0 %3161
      %v3164 = vmul.f32 %v3158, %v3162
      %3166 = vrot.lane.b32.xlu0 %v3164, 64
      %v3167 = vpop.permute.xlu0 %3166
      %v3169 = vadd.f32 %v3073, %v3167
      %v3170 = vtanh.pop %v3169
      %v3171 = vsub.f32 1.0, %v3158
      %3173 = vrot.lane.b32.xlu0 %v3170, 96
      %v3174 = vpop.permute.xlu0 %3173
      %v3176 = vmul.f32 %v3171, %v3174
      %v3177 = vmul.f32 %v3158, %v3055
      %v3178 = vadd.f32 %v3176, %v3177
      %3180 = vrot.lane.b32.xlu0 %v3056, 96
      %v3181 = vpop.permute.xlu0 %3180
      %v3182 = vsel %vm517, %v3181, 0
      %3184 = vmatprep.subr.mxu0 0.0
      %3185 = vmatpush1.msra.mxu0 %v473
      %3186 = vmatprep.subr.mxu0 0.0
      %3187 = vmatpush1.msra.mxu0 %v474
      %3188 = vmatprep.subr.mxu0 0.0
      %3189 = vmatpush1.msra.mxu0 %v475
      %3190 = vmatprep.subr.mxu0 0.0
      %3191 = vmatpush1.msra.mxu0 %v476
      %3192 = vmatprep.subr.mxu0 0.0
      %3193 = vmatpush1.msra.mxu0 0.0
      %3194 = vmatprep.subr.mxu0 0.0
      %3195 = vmatpush1.msra.mxu0 0.0
      %3196 = vmatprep.subr.mxu0 0.0
      %3197 = vmatpush1.msra.mxu0 0.0
      %3198 = vmatprep.subr.mxu0 0.0
      %3199 = vmatpush1.msra.mxu0 0.0
      %3200 = vmatprep.subr.mxu0 0.0
      %3201 = vmatpush1.msra.mxu0 0.0
      %3202 = vmatprep.subr.mxu0 0.0
      %3203 = vmatpush1.msra.mxu0 0.0
      %3204 = vmatprep.subr.mxu0 0.0
      %3205 = vmatpush1.msra.mxu0 0.0
      %3206 = vmatprep.subr.mxu0 0.0
      %3207 = vmatpush1.msra.mxu0 0.0
      %3208 = vmatprep.subr.mxu0 0.0
      %3209 = vmatpush1.msra.mxu0 0.0
      %3210 = vmatprep.subr.mxu0 0.0
      %3211 = vmatpush1.msra.mxu0 0.0
      %3212 = vmatprep.subr.mxu0 0.0
      %3213 = vmatpush1.msra.mxu0 0.0
      %3214 = vmatprep.subr.mxu0 0.0
      %3215 = vmatpush1.msra.mxu0 0.0
      %3216 = vmatprep.subr.mxu0 0.0
      %3217 = vmatpush1.msra.mxu0 0.0
      %3218 = vmatprep.subr.mxu0 0.0
      %3219 = vmatpush1.msra.mxu0 0.0
      %3220 = vmatprep.subr.mxu0 0.0
      %3221 = vmatpush1.msra.mxu0 0.0
      %3222 = vmatprep.subr.mxu0 0.0
      %3223 = vmatpush1.msra.mxu0 0.0
      %3224 = vmatprep.subr.mxu0 0.0
      %3225 = vmatpush1.msra.mxu0 0.0
      %3226 = vmatprep.subr.mxu0 0.0
      %3227 = vmatpush1.msra.mxu0 0.0
      %3228 = vmatprep.subr.mxu0 0.0
      %3229 = vmatpush1.msra.mxu0 0.0
      %3230 = vmatprep.subr.mxu0 0.0
      %3231 = vmatpush1.msra.mxu0 0.0
      %3232 = vmatprep.subr.mxu0 0.0
      %3233 = vmatpush1.msra.mxu0 0.0
      %3234 = vmatprep.subr.mxu0 0.0
      %3235 = vmatpush1.msra.mxu0 0.0
      %3236 = vmatprep.subr.mxu0 0.0
      %3237 = vmatpush1.msra.mxu0 0.0
      %3238 = vmatprep.subr.mxu0 0.0
      %3239 = vmatpush1.msra.mxu0 0.0
      %3240 = vmatprep.subr.mxu0 0.0
      %3241 = vmatpush1.msra.mxu0 0.0
      %3242 = vmatprep.subr.mxu0 0.0
      %3243 = vmatpush1.msra.mxu0 0.0
      %3244 = vmatprep.subr.mxu0 0.0
      %3245 = vmatpush1.msra.mxu0 0.0
      %3246 = vmatprep.subr.mxu0 0.0
      %3247 = vmatpush1.msra.mxu0 0.0
      %3248 = vmatprep.mubr.f32.mxu0 0.0
      %3249 = vmatmul.mubr.f32.gmra.mrb[0].mxu0 %v3182
      %v3250 = vpop.f32.mrb[0].mxu0
      %v3251 = vadd.f32 0.0, %v3250
      %v3252 = vpop.f32.mrb[0].mxu0
      %3253 = vdwg.mxu0
      %v3254 = vadd.f32 %v3076, %v3251
      %v3255 = vxor.u32 %v3254, 2147483648
      %v3256 = vmul.f32 %v3255, 1.442695
      %v3257 = vpow.pop %v3256
      %v3258 = vadd.f32 %v3257, 1.0
      %v3259 = vrcp.pop %v3258
      %v3260 = vmul.f32 1.0, %v3259
      %v3261 = vadd.f32 %v3251, %v705
      %3263 = vrot.lane.b32.xlu0 %v3261, 64
      %v3264 = vpop.permute.xlu0 %3263
      %v3266 = vmul.f32 %v3260, %v3264
      %3268 = vrot.lane.b32.xlu0 %v3266, 64
      %v3269 = vpop.permute.xlu0 %3268
      %v3271 = vadd.f32 %v3076, %v3269
      %v3272 = vtanh.pop %v3271
      %v3273 = vsub.f32 1.0, %v3260
      %3275 = vrot.lane.b32.xlu0 %v3272, 96
      %v3276 = vpop.permute.xlu0 %3275
      %v3278 = vmul.f32 %v3273, %v3276
      %v3279 = vmul.f32 %v3260, %v3056
      %v3280 = vadd.f32 %v3278, %v3279
      %s3281 = sadd.s32 %s507, 11
      %v3282 = vstv %s3281
      %vm3283 = vcmp.lt.s32.totalorder %v3282, %v506
      %s3284 = sadd.s32 %s509, 4
      %v3285 = vstv %s3284
      %vm3286 = vcmp.lt.s32.totalorder %v3285, %v506
      %v3287 = vsel %vm3283, %v3178, %v3055
      %v3288 = vsel %vm3286, %v3280, %v3056
      %v3289 = vsel %vm3283, %v3178, 0.0
      %3291 = vrot.lane.b32.xlu0 %v3289, 96
      %v3292 = vpop.permute.xlu0 %3291
      %s3294 = scalar_lea.vmem %s452, 44
      %3295 = vst.msk [vmem:[%s3294] sm:$0xf] %vm742, %v3292
      %v3296 = vsel %vm3286, %v3280, 0.0
      %3298 = vrot.lane.b32.xlu0 %v3296, 96
      %v3299 = vpop.permute.xlu0 %3298
      %s3301 = scalar_lea.vmem %s459, 16
      %3302 = vst.msk [vmem:[%s3301] sm:$0xf] %vm742, %v3299
      %s3303 = scalar_lea.vmem %s437, 48
      %v3304 = vld [vmem:[%s3303] sm:$0xf]
      %v3305 = vadd.f32 %v3304, %v482
      %s3306 = scalar_lea.vmem %s445, 12
      %v3307 = vld [vmem:[%s3306] sm:$0xf]
      %v3308 = vadd.f32 %v3307, %v489
      %3310 = vrot.lane.b32.xlu0 %v3287, 96
      %v3311 = vpop.permute.xlu0 %3310
      %v3312 = vsel %vm517, %v3311, 0
      %3314 = vmatprep.subr.mxu0 0.0
      %3315 = vmatpush1.msra.mxu0 %v469
      %3316 = vmatprep.subr.mxu0 0.0
      %3317 = vmatpush1.msra.mxu0 %v470
      %3318 = vmatprep.subr.mxu0 0.0
      %3319 = vmatpush1.msra.mxu0 %v471
      %3320 = vmatprep.subr.mxu0 0.0
      %3321 = vmatpush1.msra.mxu0 %v472
      %3322 = vmatprep.subr.mxu0 0.0
      %3323 = vmatpush1.msra.mxu0 0.0
      %3324 = vmatprep.subr.mxu0 0.0
      %3325 = vmatpush1.msra.mxu0 0.0
      %3326 = vmatprep.subr.mxu0 0.0
      %3327 = vmatpush1.msra.mxu0 0.0
      %3328 = vmatprep.subr.mxu0 0.0
      %3329 = vmatpush1.msra.mxu0 0.0
      %3330 = vmatprep.subr.mxu0 0.0
      %3331 = vmatpush1.msra.mxu0 0.0
      %3332 = vmatprep.subr.mxu0 0.0
      %3333 = vmatpush1.msra.mxu0 0.0
      %3334 = vmatprep.subr.mxu0 0.0
      %3335 = vmatpush1.msra.mxu0 0.0
      %3336 = vmatprep.subr.mxu0 0.0
      %3337 = vmatpush1.msra.mxu0 0.0
      %3338 = vmatprep.subr.mxu0 0.0
      %3339 = vmatpush1.msra.mxu0 0.0
      %3340 = vmatprep.subr.mxu0 0.0
      %3341 = vmatpush1.msra.mxu0 0.0
      %3342 = vmatprep.subr.mxu0 0.0
      %3343 = vmatpush1.msra.mxu0 0.0
      %3344 = vmatprep.subr.mxu0 0.0
      %3345 = vmatpush1.msra.mxu0 0.0
      %3346 = vmatprep.subr.mxu0 0.0
      %3347 = vmatpush1.msra.mxu0 0.0
      %3348 = vmatprep.subr.mxu0 0.0
      %3349 = vmatpush1.msra.mxu0 0.0
      %3350 = vmatprep.subr.mxu0 0.0
      %3351 = vmatpush1.msra.mxu0 0.0
      %3352 = vmatprep.subr.mxu0 0.0
      %3353 = vmatpush1.msra.mxu0 0.0
      %3354 = vmatprep.subr.mxu0 0.0
      %3355 = vmatpush1.msra.mxu0 0.0
      %3356 = vmatprep.subr.mxu0 0.0
      %3357 = vmatpush1.msra.mxu0 0.0
      %3358 = vmatprep.subr.mxu0 0.0
      %3359 = vmatpush1.msra.mxu0 0.0
      %3360 = vmatprep.subr.mxu0 0.0
      %3361 = vmatpush1.msra.mxu0 0.0
      %3362 = vmatprep.subr.mxu0 0.0
      %3363 = vmatpush1.msra.mxu0 0.0
      %3364 = vmatprep.subr.mxu0 0.0
      %3365 = vmatpush1.msra.mxu0 0.0
      %3366 = vmatprep.subr.mxu0 0.0
      %3367 = vmatpush1.msra.mxu0 0.0
      %3368 = vmatprep.subr.mxu0 0.0
      %3369 = vmatpush1.msra.mxu0 0.0
      %3370 = vmatprep.subr.mxu0 0.0
      %3371 = vmatpush1.msra.mxu0 0.0
      %3372 = vmatprep.subr.mxu0 0.0
      %3373 = vmatpush1.msra.mxu0 0.0
      %3374 = vmatprep.subr.mxu0 0.0
      %3375 = vmatpush1.msra.mxu0 0.0
      %3376 = vmatprep.subr.mxu0 0.0
      %3377 = vmatpush1.msra.mxu0 0.0
      %3378 = vmatprep.mubr.f32.mxu0 0.0
      %3379 = vmatmul.mubr.f32.gmra.mrb[0].mxu0 %v3312
      %v3380 = vpop.f32.mrb[0].mxu0
      %v3381 = vadd.f32 0.0, %v3380
      %v3382 = vpop.f32.mrb[0].mxu0
      %3383 = vdwg.mxu0
      %v3384 = vadd.f32 %v3305, %v3381
      %v3385 = vxor.u32 %v3384, 2147483648
      %v3386 = vmul.f32 %v3385, 1.442695
      %v3387 = vpow.pop %v3386
      %v3388 = vadd.f32 %v3387, 1.0
      %v3389 = vrcp.pop %v3388
      %v3390 = vmul.f32 1.0, %v3389
      %v3391 = vadd.f32 %v3381, %v599
      %3393 = vrot.lane.b32.xlu0 %v3391, 64
      %v3394 = vpop.permute.xlu0 %3393
      %v3396 = vmul.f32 %v3390, %v3394
      %3398 = vrot.lane.b32.xlu0 %v3396, 64
      %v3399 = vpop.permute.xlu0 %3398
      %v3401 = vadd.f32 %v3305, %v3399
      %v3402 = vtanh.pop %v3401
      %v3403 = vsub.f32 1.0, %v3390
      %3405 = vrot.lane.b32.xlu0 %v3402, 96
      %v3406 = vpop.permute.xlu0 %3405
      %v3408 = vmul.f32 %v3403, %v3406
      %v3409 = vmul.f32 %v3390, %v3287
      %v3410 = vadd.f32 %v3408, %v3409
      %3412 = vrot.lane.b32.xlu0 %v3288, 96
      %v3413 = vpop.permute.xlu0 %3412
      %v3414 = vsel %vm517, %v3413, 0
      %3416 = vmatprep.subr.mxu0 0.0
      %3417 = vmatpush1.msra.mxu0 %v473
      %3418 = vmatprep.subr.mxu0 0.0
      %3419 = vmatpush1.msra.mxu0 %v474
      %3420 = vmatprep.subr.mxu0 0.0
      %3421 = vmatpush1.msra.mxu0 %v475
      %3422 = vmatprep.subr.mxu0 0.0
      %3423 = vmatpush1.msra.mxu0 %v476
      %3424 = vmatprep.subr.mxu0 0.0
      %3425 = vmatpush1.msra.mxu0 0.0
      %3426 = vmatprep.subr.mxu0 0.0
      %3427 = vmatpush1.msra.mxu0 0.0
      %3428 = vmatprep.subr.mxu0 0.0
      %3429 = vmatpush1.msra.mxu0 0.0
      %3430 = vmatprep.subr.mxu0 0.0
      %3431 = vmatpush1.msra.mxu0 0.0
      %3432 = vmatprep.subr.mxu0 0.0
      %3433 = vmatpush1.msra.mxu0 0.0
      %3434 = vmatprep.subr.mxu0 0.0
      %3435 = vmatpush1.msra.mxu0 0.0
      %3436 = vmatprep.subr.mxu0 0.0
      %3437 = vmatpush1.msra.mxu0 0.0
      %3438 = vmatprep.subr.mxu0 0.0
      %3439 = vmatpush1.msra.mxu0 0.0
      %3440 = vmatprep.subr.mxu0 0.0
      %3441 = vmatpush1.msra.mxu0 0.0
      %3442 = vmatprep.subr.mxu0 0.0
      %3443 = vmatpush1.msra.mxu0 0.0
      %3444 = vmatprep.subr.mxu0 0.0
      %3445 = vmatpush1.msra.mxu0 0.0
      %3446 = vmatprep.subr.mxu0 0.0
      %3447 = vmatpush1.msra.mxu0 0.0
      %3448 = vmatprep.subr.mxu0 0.0
      %3449 = vmatpush1.msra.mxu0 0.0
      %3450 = vmatprep.subr.mxu0 0.0
      %3451 = vmatpush1.msra.mxu0 0.0
      %3452 = vmatprep.subr.mxu0 0.0
      %3453 = vmatpush1.msra.mxu0 0.0
      %3454 = vmatprep.subr.mxu0 0.0
      %3455 = vmatpush1.msra.mxu0 0.0
      %3456 = vmatprep.subr.mxu0 0.0
      %3457 = vmatpush1.msra.mxu0 0.0
      %3458 = vmatprep.subr.mxu0 0.0
      %3459 = vmatpush1.msra.mxu0 0.0
      %3460 = vmatprep.subr.mxu0 0.0
      %3461 = vmatpush1.msra.mxu0 0.0
      %3462 = vmatprep.subr.mxu0 0.0
      %3463 = vmatpush1.msra.mxu0 0.0
      %3464 = vmatprep.subr.mxu0 0.0
      %3465 = vmatpush1.msra.mxu0 0.0
      %3466 = vmatprep.subr.mxu0 0.0
      %3467 = vmatpush1.msra.mxu0 0.0
      %3468 = vmatprep.subr.mxu0 0.0
      %3469 = vmatpush1.msra.mxu0 0.0
      %3470 = vmatprep.subr.mxu0 0.0
      %3471 = vmatpush1.msra.mxu0 0.0
      %3472 = vmatprep.subr.mxu0 0.0
      %3473 = vmatpush1.msra.mxu0 0.0
      %3474 = vmatprep.subr.mxu0 0.0
      %3475 = vmatpush1.msra.mxu0 0.0
      %3476 = vmatprep.subr.mxu0 0.0
      %3477 = vmatpush1.msra.mxu0 0.0
      %3478 = vmatprep.subr.mxu0 0.0
      %3479 = vmatpush1.msra.mxu0 0.0
      %3480 = vmatprep.mubr.f32.mxu0 0.0
      %3481 = vmatmul.mubr.f32.gmra.mrb[0].mxu0 %v3414
      %v3482 = vpop.f32.mrb[0].mxu0
      %v3483 = vadd.f32 0.0, %v3482
      %v3484 = vpop.f32.mrb[0].mxu0
      %3485 = vdwg.mxu0
      %v3486 = vadd.f32 %v3308, %v3483
      %v3487 = vxor.u32 %v3486, 2147483648
      %v3488 = vmul.f32 %v3487, 1.442695
      %v3489 = vpow.pop %v3488
      %v3490 = vadd.f32 %v3489, 1.0
      %v3491 = vrcp.pop %v3490
      %v3492 = vmul.f32 1.0, %v3491
      %v3493 = vadd.f32 %v3483, %v705
      %3495 = vrot.lane.b32.xlu0 %v3493, 64
      %v3496 = vpop.permute.xlu0 %3495
      %v3498 = vmul.f32 %v3492, %v3496
      %3500 = vrot.lane.b32.xlu0 %v3498, 64
      %v3501 = vpop.permute.xlu0 %3500
      %v3503 = vadd.f32 %v3308, %v3501
      %v3504 = vtanh.pop %v3503
      %v3505 = vsub.f32 1.0, %v3492
      %3507 = vrot.lane.b32.xlu0 %v3504, 96
      %v3508 = vpop.permute.xlu0 %3507
      %v3510 = vmul.f32 %v3505, %v3508
      %v3511 = vmul.f32 %v3492, %v3288
      %v3512 = vadd.f32 %v3510, %v3511
      %s3513 = sadd.s32 %s507, 12
      %v3514 = vstv %s3513
      %vm3515 = vcmp.lt.s32.totalorder %v3514, %v506
      %s3516 = sadd.s32 %s509, 3
      %v3517 = vstv %s3516
      %vm3518 = vcmp.lt.s32.totalorder %v3517, %v506
      %v3519 = vsel %vm3515, %v3410, %v3287
      %v3520 = vsel %vm3518, %v3512, %v3288
      %v3521 = vsel %vm3515, %v3410, 0.0
      %3523 = vrot.lane.b32.xlu0 %v3521, 96
      %v3524 = vpop.permute.xlu0 %3523
      %s3526 = scalar_lea.vmem %s452, 48
      %3527 = vst.msk [vmem:[%s3526] sm:$0xf] %vm742, %v3524
      %v3528 = vsel %vm3518, %v3512, 0.0
      %3530 = vrot.lane.b32.xlu0 %v3528, 96
      %v3531 = vpop.permute.xlu0 %3530
      %s3533 = scalar_lea.vmem %s459, 12
      %3534 = vst.msk [vmem:[%s3533] sm:$0xf] %vm742, %v3531
      %s3535 = scalar_lea.vmem %s437, 52
      %v3536 = vld [vmem:[%s3535] sm:$0xf]
      %v3537 = vadd.f32 %v3536, %v482
      %s3538 = scalar_lea.vmem %s445, 8
      %v3539 = vld [vmem:[%s3538] sm:$0xf]
      %v3540 = vadd.f32 %v3539, %v489
      %3542 = vrot.lane.b32.xlu0 %v3519, 96
      %v3543 = vpop.permute.xlu0 %3542
      %v3544 = vsel %vm517, %v3543, 0
      %3546 = vmatprep.subr.mxu0 0.0
      %3547 = vmatpush1.msra.mxu0 %v469
      %3548 = vmatprep.subr.mxu0 0.0
      %3549 = vmatpush1.msra.mxu0 %v470
      %3550 = vmatprep.subr.mxu0 0.0
      %3551 = vmatpush1.msra.mxu0 %v471
      %3552 = vmatprep.subr.mxu0 0.0
      %3553 = vmatpush1.msra.mxu0 %v472
      %3554 = vmatprep.subr.mxu0 0.0
      %3555 = vmatpush1.msra.mxu0 0.0
      %3556 = vmatprep.subr.mxu0 0.0
      %3557 = vmatpush1.msra.mxu0 0.0
      %3558 = vmatprep.subr.mxu0 0.0
      %3559 = vmatpush1.msra.mxu0 0.0
      %3560 = vmatprep.subr.mxu0 0.0
      %3561 = vmatpush1.msra.mxu0 0.0
      %3562 = vmatprep.subr.mxu0 0.0
      %3563 = vmatpush1.msra.mxu0 0.0
      %3564 = vmatprep.subr.mxu0 0.0
      %3565 = vmatpush1.msra.mxu0 0.0
      %3566 = vmatprep.subr.mxu0 0.0
      %3567 = vmatpush1.msra.mxu0 0.0
      %3568 = vmatprep.subr.mxu0 0.0
      %3569 = vmatpush1.msra.mxu0 0.0
      %3570 = vmatprep.subr.mxu0 0.0
      %3571 = vmatpush1.msra.mxu0 0.0
      %3572 = vmatprep.subr.mxu0 0.0
      %3573 = vmatpush1.msra.mxu0 0.0
      %3574 = vmatprep.subr.mxu0 0.0
      %3575 = vmatpush1.msra.mxu0 0.0
      %3576 = vmatprep.subr.mxu0 0.0
      %3577 = vmatpush1.msra.mxu0 0.0
      %3578 = vmatprep.subr.mxu0 0.0
      %3579 = vmatpush1.msra.mxu0 0.0
      %3580 = vmatprep.subr.mxu0 0.0
      %3581 = vmatpush1.msra.mxu0 0.0
      %3582 = vmatprep.subr.mxu0 0.0
      %3583 = vmatpush1.msra.mxu0 0.0
      %3584 = vmatprep.subr.mxu0 0.0
      %3585 = vmatpush1.msra.mxu0 0.0
      %3586 = vmatprep.subr.mxu0 0.0
      %3587 = vmatpush1.msra.mxu0 0.0
      %3588 = vmatprep.subr.mxu0 0.0
      %3589 = vmatpush1.msra.mxu0 0.0
      %3590 = vmatprep.subr.mxu0 0.0
      %3591 = vmatpush1.msra.mxu0 0.0
      %3592 = vmatprep.subr.mxu0 0.0
      %3593 = vmatpush1.msra.mxu0 0.0
      %3594 = vmatprep.subr.mxu0 0.0
      %3595 = vmatpush1.msra.mxu0 0.0
      %3596 = vmatprep.subr.mxu0 0.0
      %3597 = vmatpush1.msra.mxu0 0.0
      %3598 = vmatprep.subr.mxu0 0.0
      %3599 = vmatpush1.msra.mxu0 0.0
      %3600 = vmatprep.subr.mxu0 0.0
      %3601 = vmatpush1.msra.mxu0 0.0
      %3602 = vmatprep.subr.mxu0 0.0
      %3603 = vmatpush1.msra.mxu0 0.0
      %3604 = vmatprep.subr.mxu0 0.0
      %3605 = vmatpush1.msra.mxu0 0.0
      %3606 = vmatprep.subr.mxu0 0.0
      %3607 = vmatpush1.msra.mxu0 0.0
      %3608 = vmatprep.subr.mxu0 0.0
      %3609 = vmatpush1.msra.mxu0 0.0
      %3610 = vmatprep.mubr.f32.mxu0 0.0
      %3611 = vmatmul.mubr.f32.gmra.mrb[0].mxu0 %v3544
      %v3612 = vpop.f32.mrb[0].mxu0
      %v3613 = vadd.f32 0.0, %v3612
      %v3614 = vpop.f32.mrb[0].mxu0
      %3615 = vdwg.mxu0
      %v3616 = vadd.f32 %v3537, %v3613
      %v3617 = vxor.u32 %v3616, 2147483648
      %v3618 = vmul.f32 %v3617, 1.442695
      %v3619 = vpow.pop %v3618
      %v3620 = vadd.f32 %v3619, 1.0
      %v3621 = vrcp.pop %v3620
      %v3622 = vmul.f32 1.0, %v3621
      %v3623 = vadd.f32 %v3613, %v599
      %3625 = vrot.lane.b32.xlu0 %v3623, 64
      %v3626 = vpop.permute.xlu0 %3625
      %v3628 = vmul.f32 %v3622, %v3626
      %3630 = vrot.lane.b32.xlu0 %v3628, 64
      %v3631 = vpop.permute.xlu0 %3630
      %v3633 = vadd.f32 %v3537, %v3631
      %v3634 = vtanh.pop %v3633
      %v3635 = vsub.f32 1.0, %v3622
      %3637 = vrot.lane.b32.xlu0 %v3634, 96
      %v3638 = vpop.permute.xlu0 %3637
      %v3640 = vmul.f32 %v3635, %v3638
      %v3641 = vmul.f32 %v3622, %v3519
      %v3642 = vadd.f32 %v3640, %v3641
      %3644 = vrot.lane.b32.xlu0 %v3520, 96
      %v3645 = vpop.permute.xlu0 %3644
      %v3646 = vsel %vm517, %v3645, 0
      %3648 = vmatprep.subr.mxu0 0.0
      %3649 = vmatpush1.msra.mxu0 %v473
      %3650 = vmatprep.subr.mxu0 0.0
      %3651 = vmatpush1.msra.mxu0 %v474
      %3652 = vmatprep.subr.mxu0 0.0
      %3653 = vmatpush1.msra.mxu0 %v475
      %3654 = vmatprep.subr.mxu0 0.0
      %3655 = vmatpush1.msra.mxu0 %v476
      %3656 = vmatprep.subr.mxu0 0.0
      %3657 = vmatpush1.msra.mxu0 0.0
      %3658 = vmatprep.subr.mxu0 0.0
      %3659 = vmatpush1.msra.mxu0 0.0
      %3660 = vmatprep.subr.mxu0 0.0
      %3661 = vmatpush1.msra.mxu0 0.0
      %3662 = vmatprep.subr.mxu0 0.0
      %3663 = vmatpush1.msra.mxu0 0.0
      %3664 = vmatprep.subr.mxu0 0.0
      %3665 = vmatpush1.msra.mxu0 0.0
      %3666 = vmatprep.subr.mxu0 0.0
      %3667 = vmatpush1.msra.mxu0 0.0
      %3668 = vmatprep.subr.mxu0 0.0
      %3669 = vmatpush1.msra.mxu0 0.0
      %3670 = vmatprep.subr.mxu0 0.0
      %3671 = vmatpush1.msra.mxu0 0.0
      %3672 = vmatprep.subr.mxu0 0.0
      %3673 = vmatpush1.msra.mxu0 0.0
      %3674 = vmatprep.subr.mxu0 0.0
      %3675 = vmatpush1.msra.mxu0 0.0
      %3676 = vmatprep.subr.mxu0 0.0
      %3677 = vmatpush1.msra.mxu0 0.0
      %3678 = vmatprep.subr.mxu0 0.0
      %3679 = vmatpush1.msra.mxu0 0.0
      %3680 = vmatprep.subr.mxu0 0.0
      %3681 = vmatpush1.msra.mxu0 0.0
      %3682 = vmatprep.subr.mxu0 0.0
      %3683 = vmatpush1.msra.mxu0 0.0
      %3684 = vmatprep.subr.mxu0 0.0
      %3685 = vmatpush1.msra.mxu0 0.0
      %3686 = vmatprep.subr.mxu0 0.0
      %3687 = vmatpush1.msra.mxu0 0.0
      %3688 = vmatprep.subr.mxu0 0.0
      %3689 = vmatpush1.msra.mxu0 0.0
      %3690 = vmatprep.subr.mxu0 0.0
      %3691 = vmatpush1.msra.mxu0 0.0
      %3692 = vmatprep.subr.mxu0 0.0
      %3693 = vmatpush1.msra.mxu0 0.0
      %3694 = vmatprep.subr.mxu0 0.0
      %3695 = vmatpush1.msra.mxu0 0.0
      %3696 = vmatprep.subr.mxu0 0.0
      %3697 = vmatpush1.msra.mxu0 0.0
      %3698 = vmatprep.subr.mxu0 0.0
      %3699 = vmatpush1.msra.mxu0 0.0
      %3700 = vmatprep.subr.mxu0 0.0
      %3701 = vmatpush1.msra.mxu0 0.0
      %3702 = vmatprep.subr.mxu0 0.0
      %3703 = vmatpush1.msra.mxu0 0.0
      %3704 = vmatprep.subr.mxu0 0.0
      %3705 = vmatpush1.msra.mxu0 0.0
      %3706 = vmatprep.subr.mxu0 0.0
      %3707 = vmatpush1.msra.mxu0 0.0
      %3708 = vmatprep.subr.mxu0 0.0
      %3709 = vmatpush1.msra.mxu0 0.0
      %3710 = vmatprep.subr.mxu0 0.0
      %3711 = vmatpush1.msra.mxu0 0.0
      %3712 = vmatprep.mubr.f32.mxu0 0.0
      %3713 = vmatmul.mubr.f32.gmra.mrb[0].mxu0 %v3646
      %v3714 = vpop.f32.mrb[0].mxu0
      %v3715 = vadd.f32 0.0, %v3714
      %v3716 = vpop.f32.mrb[0].mxu0
      %3717 = vdwg.mxu0
      %v3718 = vadd.f32 %v3540, %v3715
      %v3719 = vxor.u32 %v3718, 2147483648
      %v3720 = vmul.f32 %v3719, 1.442695
      %v3721 = vpow.pop %v3720
      %v3722 = vadd.f32 %v3721, 1.0
      %v3723 = vrcp.pop %v3722
      %v3724 = vmul.f32 1.0, %v3723
      %v3725 = vadd.f32 %v3715, %v705
      %3727 = vrot.lane.b32.xlu0 %v3725, 64
      %v3728 = vpop.permute.xlu0 %3727
      %v3730 = vmul.f32 %v3724, %v3728
      %3732 = vrot.lane.b32.xlu0 %v3730, 64
      %v3733 = vpop.permute.xlu0 %3732
      %v3735 = vadd.f32 %v3540, %v3733
      %v3736 = vtanh.pop %v3735
      %v3737 = vsub.f32 1.0, %v3724
      %3739 = vrot.lane.b32.xlu0 %v3736, 96
      %v3740 = vpop.permute.xlu0 %3739
      %v3742 = vmul.f32 %v3737, %v3740
      %v3743 = vmul.f32 %v3724, %v3520
      %v3744 = vadd.f32 %v3742, %v3743
      %s3745 = sadd.s32 %s507, 13
      %v3746 = vstv %s3745
      %vm3747 = vcmp.lt.s32.totalorder %v3746, %v506
      %s3748 = sadd.s32 %s509, 2
      %v3749 = vstv %s3748
      %vm3750 = vcmp.lt.s32.totalorder %v3749, %v506
      %v3751 = vsel %vm3747, %v3642, %v3519
      %v3752 = vsel %vm3750, %v3744, %v3520
      %v3753 = vsel %vm3747, %v3642, 0.0
      %3755 = vrot.lane.b32.xlu0 %v3753, 96
      %v3756 = vpop.permute.xlu0 %3755
      %s3758 = scalar_lea.vmem %s452, 52
      %3759 = vst.msk [vmem:[%s3758] sm:$0xf] %vm742, %v3756
      %v3760 = vsel %vm3750, %v3744, 0.0
      %3762 = vrot.lane.b32.xlu0 %v3760, 96
      %v3763 = vpop.permute.xlu0 %3762
      %s3765 = scalar_lea.vmem %s459, 8
      %3766 = vst.msk [vmem:[%s3765] sm:$0xf] %vm742, %v3763
      %s3767 = scalar_lea.vmem %s437, 56
      %v3768 = vld [vmem:[%s3767] sm:$0xf]
      %v3769 = vadd.f32 %v3768, %v482
      %s3770 = scalar_lea.vmem %s445, 4
      %v3771 = vld [vmem:[%s3770] sm:$0xf]
      %v3772 = vadd.f32 %v3771, %v489
      %3774 = vrot.lane.b32.xlu0 %v3751, 96
      %v3775 = vpop.permute.xlu0 %3774
      %v3776 = vsel %vm517, %v3775, 0
      %3778 = vmatprep.subr.mxu0 0.0
      %3779 = vmatpush1.msra.mxu0 %v469
      %3780 = vmatprep.subr.mxu0 0.0
      %3781 = vmatpush1.msra.mxu0 %v470
      %3782 = vmatprep.subr.mxu0 0.0
      %3783 = vmatpush1.msra.mxu0 %v471
      %3784 = vmatprep.subr.mxu0 0.0
      %3785 = vmatpush1.msra.mxu0 %v472
      %3786 = vmatprep.subr.mxu0 0.0
      %3787 = vmatpush1.msra.mxu0 0.0
      %3788 = vmatprep.subr.mxu0 0.0
      %3789 = vmatpush1.msra.mxu0 0.0
      %3790 = vmatprep.subr.mxu0 0.0
      %3791 = vmatpush1.msra.mxu0 0.0
      %3792 = vmatprep.subr.mxu0 0.0
      %3793 = vmatpush1.msra.mxu0 0.0
      %3794 = vmatprep.subr.mxu0 0.0
      %3795 = vmatpush1.msra.mxu0 0.0
      %3796 = vmatprep.subr.mxu0 0.0
      %3797 = vmatpush1.msra.mxu0 0.0
      %3798 = vmatprep.subr.mxu0 0.0
      %3799 = vmatpush1.msra.mxu0 0.0
      %3800 = vmatprep.subr.mxu0 0.0
      %3801 = vmatpush1.msra.mxu0 0.0
      %3802 = vmatprep.subr.mxu0 0.0
      %3803 = vmatpush1.msra.mxu0 0.0
      %3804 = vmatprep.subr.mxu0 0.0
      %3805 = vmatpush1.msra.mxu0 0.0
      %3806 = vmatprep.subr.mxu0 0.0
      %3807 = vmatpush1.msra.mxu0 0.0
      %3808 = vmatprep.subr.mxu0 0.0
      %3809 = vmatpush1.msra.mxu0 0.0
      %3810 = vmatprep.subr.mxu0 0.0
      %3811 = vmatpush1.msra.mxu0 0.0
      %3812 = vmatprep.subr.mxu0 0.0
      %3813 = vmatpush1.msra.mxu0 0.0
      %3814 = vmatprep.subr.mxu0 0.0
      %3815 = vmatpush1.msra.mxu0 0.0
      %3816 = vmatprep.subr.mxu0 0.0
      %3817 = vmatpush1.msra.mxu0 0.0
      %3818 = vmatprep.subr.mxu0 0.0
      %3819 = vmatpush1.msra.mxu0 0.0
      %3820 = vmatprep.subr.mxu0 0.0
      %3821 = vmatpush1.msra.mxu0 0.0
      %3822 = vmatprep.subr.mxu0 0.0
      %3823 = vmatpush1.msra.mxu0 0.0
      %3824 = vmatprep.subr.mxu0 0.0
      %3825 = vmatpush1.msra.mxu0 0.0
      %3826 = vmatprep.subr.mxu0 0.0
      %3827 = vmatpush1.msra.mxu0 0.0
      %3828 = vmatprep.subr.mxu0 0.0
      %3829 = vmatpush1.msra.mxu0 0.0
      %3830 = vmatprep.subr.mxu0 0.0
      %3831 = vmatpush1.msra.mxu0 0.0
      %3832 = vmatprep.subr.mxu0 0.0
      %3833 = vmatpush1.msra.mxu0 0.0
      %3834 = vmatprep.subr.mxu0 0.0
      %3835 = vmatpush1.msra.mxu0 0.0
      %3836 = vmatprep.subr.mxu0 0.0
      %3837 = vmatpush1.msra.mxu0 0.0
      %3838 = vmatprep.subr.mxu0 0.0
      %3839 = vmatpush1.msra.mxu0 0.0
      %3840 = vmatprep.subr.mxu0 0.0
      %3841 = vmatpush1.msra.mxu0 0.0
      %3842 = vmatprep.mubr.f32.mxu0 0.0
      %3843 = vmatmul.mubr.f32.gmra.mrb[0].mxu0 %v3776
      %v3844 = vpop.f32.mrb[0].mxu0
      %v3845 = vadd.f32 0.0, %v3844
      %v3846 = vpop.f32.mrb[0].mxu0
      %3847 = vdwg.mxu0
      %v3848 = vadd.f32 %v3769, %v3845
      %v3849 = vxor.u32 %v3848, 2147483648
      %v3850 = vmul.f32 %v3849, 1.442695
      %v3851 = vpow.pop %v3850
      %v3852 = vadd.f32 %v3851, 1.0
      %v3853 = vrcp.pop %v3852
      %v3854 = vmul.f32 1.0, %v3853
      %v3855 = vadd.f32 %v3845, %v599
      %3857 = vrot.lane.b32.xlu0 %v3855, 64
      %v3858 = vpop.permute.xlu0 %3857
      %v3860 = vmul.f32 %v3854, %v3858
      %3862 = vrot.lane.b32.xlu0 %v3860, 64
      %v3863 = vpop.permute.xlu0 %3862
      %v3865 = vadd.f32 %v3769, %v3863
      %v3866 = vtanh.pop %v3865
      %v3867 = vsub.f32 1.0, %v3854
      %3869 = vrot.lane.b32.xlu0 %v3866, 96
      %v3870 = vpop.permute.xlu0 %3869
      %v3872 = vmul.f32 %v3867, %v3870
      %v3873 = vmul.f32 %v3854, %v3751
      %v3874 = vadd.f32 %v3872, %v3873
      %3876 = vrot.lane.b32.xlu0 %v3752, 96
      %v3877 = vpop.permute.xlu0 %3876
      %v3878 = vsel %vm517, %v3877, 0
      %3880 = vmatprep.subr.mxu0 0.0
      %3881 = vmatpush1.msra.mxu0 %v473
      %3882 = vmatprep.subr.mxu0 0.0
      %3883 = vmatpush1.msra.mxu0 %v474
      %3884 = vmatprep.subr.mxu0 0.0
      %3885 = vmatpush1.msra.mxu0 %v475
      %3886 = vmatprep.subr.mxu0 0.0
      %3887 = vmatpush1.msra.mxu0 %v476
      %3888 = vmatprep.subr.mxu0 0.0
      %3889 = vmatpush1.msra.mxu0 0.0
      %3890 = vmatprep.subr.mxu0 0.0
      %3891 = vmatpush1.msra.mxu0 0.0
      %3892 = vmatprep.subr.mxu0 0.0
      %3893 = vmatpush1.msra.mxu0 0.0
      %3894 = vmatprep.subr.mxu0 0.0
      %3895 = vmatpush1.msra.mxu0 0.0
      %3896 = vmatprep.subr.mxu0 0.0
      %3897 = vmatpush1.msra.mxu0 0.0
      %3898 = vmatprep.subr.mxu0 0.0
      %3899 = vmatpush1.msra.mxu0 0.0
      %3900 = vmatprep.subr.mxu0 0.0
      %3901 = vmatpush1.msra.mxu0 0.0
      %3902 = vmatprep.subr.mxu0 0.0
      %3903 = vmatpush1.msra.mxu0 0.0
      %3904 = vmatprep.subr.mxu0 0.0
      %3905 = vmatpush1.msra.mxu0 0.0
      %3906 = vmatprep.subr.mxu0 0.0
      %3907 = vmatpush1.msra.mxu0 0.0
      %3908 = vmatprep.subr.mxu0 0.0
      %3909 = vmatpush1.msra.mxu0 0.0
      %3910 = vmatprep.subr.mxu0 0.0
      %3911 = vmatpush1.msra.mxu0 0.0
      %3912 = vmatprep.subr.mxu0 0.0
      %3913 = vmatpush1.msra.mxu0 0.0
      %3914 = vmatprep.subr.mxu0 0.0
      %3915 = vmatpush1.msra.mxu0 0.0
      %3916 = vmatprep.subr.mxu0 0.0
      %3917 = vmatpush1.msra.mxu0 0.0
      %3918 = vmatprep.subr.mxu0 0.0
      %3919 = vmatpush1.msra.mxu0 0.0
      %3920 = vmatprep.subr.mxu0 0.0
      %3921 = vmatpush1.msra.mxu0 0.0
      %3922 = vmatprep.subr.mxu0 0.0
      %3923 = vmatpush1.msra.mxu0 0.0
      %3924 = vmatprep.subr.mxu0 0.0
      %3925 = vmatpush1.msra.mxu0 0.0
      %3926 = vmatprep.subr.mxu0 0.0
      %3927 = vmatpush1.msra.mxu0 0.0
      %3928 = vmatprep.subr.mxu0 0.0
      %3929 = vmatpush1.msra.mxu0 0.0
      %3930 = vmatprep.subr.mxu0 0.0
      %3931 = vmatpush1.msra.mxu0 0.0
      %3932 = vmatprep.subr.mxu0 0.0
      %3933 = vmatpush1.msra.mxu0 0.0
      %3934 = vmatprep.subr.mxu0 0.0
      %3935 = vmatpush1.msra.mxu0 0.0
      %3936 = vmatprep.subr.mxu0 0.0
      %3937 = vmatpush1.msra.mxu0 0.0
      %3938 = vmatprep.subr.mxu0 0.0
      %3939 = vmatpush1.msra.mxu0 0.0
      %3940 = vmatprep.subr.mxu0 0.0
      %3941 = vmatpush1.msra.mxu0 0.0
      %3942 = vmatprep.subr.mxu0 0.0
      %3943 = vmatpush1.msra.mxu0 0.0
      %3944 = vmatprep.mubr.f32.mxu0 0.0
      %3945 = vmatmul.mubr.f32.gmra.mrb[0].mxu0 %v3878
      %v3946 = vpop.f32.mrb[0].mxu0
      %v3947 = vadd.f32 0.0, %v3946
      %v3948 = vpop.f32.mrb[0].mxu0
      %3949 = vdwg.mxu0
      %v3950 = vadd.f32 %v3772, %v3947
      %v3951 = vxor.u32 %v3950, 2147483648
      %v3952 = vmul.f32 %v3951, 1.442695
      %v3953 = vpow.pop %v3952
      %v3954 = vadd.f32 %v3953, 1.0
      %v3955 = vrcp.pop %v3954
      %v3956 = vmul.f32 1.0, %v3955
      %v3957 = vadd.f32 %v3947, %v705
      %3959 = vrot.lane.b32.xlu0 %v3957, 64
      %v3960 = vpop.permute.xlu0 %3959
      %v3962 = vmul.f32 %v3956, %v3960
      %3964 = vrot.lane.b32.xlu0 %v3962, 64
      %v3965 = vpop.permute.xlu0 %3964
      %v3967 = vadd.f32 %v3772, %v3965
      %v3968 = vtanh.pop %v3967
      %v3969 = vsub.f32 1.0, %v3956
      %3971 = vrot.lane.b32.xlu0 %v3968, 96
      %v3972 = vpop.permute.xlu0 %3971
      %v3974 = vmul.f32 %v3969, %v3972
      %v3975 = vmul.f32 %v3956, %v3752
      %v3976 = vadd.f32 %v3974, %v3975
      %s3977 = sadd.s32 %s507, 14
      %v3978 = vstv %s3977
      %vm3979 = vcmp.lt.s32.totalorder %v3978, %v506
      %s3980 = sadd.s32 %s509, 1
      %v3981 = vstv %s3980
      %vm3982 = vcmp.lt.s32.totalorder %v3981, %v506
      %v3983 = vsel %vm3979, %v3874, %v3751
      %v3984 = vsel %vm3982, %v3976, %v3752
      %v3985 = vsel %vm3979, %v3874, 0.0
      %3987 = vrot.lane.b32.xlu0 %v3985, 96
      %v3988 = vpop.permute.xlu0 %3987
      %s3990 = scalar_lea.vmem %s452, 56
      %3991 = vst.msk [vmem:[%s3990] sm:$0xf] %vm742, %v3988
      %v3992 = vsel %vm3982, %v3976, 0.0
      %3994 = vrot.lane.b32.xlu0 %v3992, 96
      %v3995 = vpop.permute.xlu0 %3994
      %s3997 = scalar_lea.vmem %s459, 4
      %3998 = vst.msk [vmem:[%s3997] sm:$0xf] %vm742, %v3995
      %s3999 = scalar_lea.vmem %s437, 60
      %v4000 = vld [vmem:[%s3999] sm:$0xf]
      %v4001 = vadd.f32 %v4000, %v482
      %v4002 = vld [vmem:[%s445] sm:$0xf]
      %v4003 = vadd.f32 %v4002, %v489
      %4005 = vrot.lane.b32.xlu0 %v3983, 96
      %v4006 = vpop.permute.xlu0 %4005
      %v4007 = vsel %vm517, %v4006, 0
      %4009 = vmatprep.subr.mxu0 0.0
      %4010 = vmatpush1.msra.mxu0 %v469
      %4011 = vmatprep.subr.mxu0 0.0
      %4012 = vmatpush1.msra.mxu0 %v470
      %4013 = vmatprep.subr.mxu0 0.0
      %4014 = vmatpush1.msra.mxu0 %v471
      %4015 = vmatprep.subr.mxu0 0.0
      %4016 = vmatpush1.msra.mxu0 %v472
      %4017 = vmatprep.subr.mxu0 0.0
      %4018 = vmatpush1.msra.mxu0 0.0
      %4019 = vmatprep.subr.mxu0 0.0
      %4020 = vmatpush1.msra.mxu0 0.0
      %4021 = vmatprep.subr.mxu0 0.0
      %4022 = vmatpush1.msra.mxu0 0.0
      %4023 = vmatprep.subr.mxu0 0.0
      %4024 = vmatpush1.msra.mxu0 0.0
      %4025 = vmatprep.subr.mxu0 0.0
      %4026 = vmatpush1.msra.mxu0 0.0
      %4027 = vmatprep.subr.mxu0 0.0
      %4028 = vmatpush1.msra.mxu0 0.0
      %4029 = vmatprep.subr.mxu0 0.0
      %4030 = vmatpush1.msra.mxu0 0.0
      %4031 = vmatprep.subr.mxu0 0.0
      %4032 = vmatpush1.msra.mxu0 0.0
      %4033 = vmatprep.subr.mxu0 0.0
      %4034 = vmatpush1.msra.mxu0 0.0
      %4035 = vmatprep.subr.mxu0 0.0
      %4036 = vmatpush1.msra.mxu0 0.0
      %4037 = vmatprep.subr.mxu0 0.0
      %4038 = vmatpush1.msra.mxu0 0.0
      %4039 = vmatprep.subr.mxu0 0.0
      %4040 = vmatpush1.msra.mxu0 0.0
      %4041 = vmatprep.subr.mxu0 0.0
      %4042 = vmatpush1.msra.mxu0 0.0
      %4043 = vmatprep.subr.mxu0 0.0
      %4044 = vmatpush1.msra.mxu0 0.0
      %4045 = vmatprep.subr.mxu0 0.0
      %4046 = vmatpush1.msra.mxu0 0.0
      %4047 = vmatprep.subr.mxu0 0.0
      %4048 = vmatpush1.msra.mxu0 0.0
      %4049 = vmatprep.subr.mxu0 0.0
      %4050 = vmatpush1.msra.mxu0 0.0
      %4051 = vmatprep.subr.mxu0 0.0
      %4052 = vmatpush1.msra.mxu0 0.0
      %4053 = vmatprep.subr.mxu0 0.0
      %4054 = vmatpush1.msra.mxu0 0.0
      %4055 = vmatprep.subr.mxu0 0.0
      %4056 = vmatpush1.msra.mxu0 0.0
      %4057 = vmatprep.subr.mxu0 0.0
      %4058 = vmatpush1.msra.mxu0 0.0
      %4059 = vmatprep.subr.mxu0 0.0
      %4060 = vmatpush1.msra.mxu0 0.0
      %4061 = vmatprep.subr.mxu0 0.0
      %4062 = vmatpush1.msra.mxu0 0.0
      %4063 = vmatprep.subr.mxu0 0.0
      %4064 = vmatpush1.msra.mxu0 0.0
      %4065 = vmatprep.subr.mxu0 0.0
      %4066 = vmatpush1.msra.mxu0 0.0
      %4067 = vmatprep.subr.mxu0 0.0
      %4068 = vmatpush1.msra.mxu0 0.0
      %4069 = vmatprep.subr.mxu0 0.0
      %4070 = vmatpush1.msra.mxu0 0.0
      %4071 = vmatprep.subr.mxu0 0.0
      %4072 = vmatpush1.msra.mxu0 0.0
      %4073 = vmatprep.mubr.f32.mxu0 0.0
      %4074 = vmatmul.mubr.f32.gmra.mrb[0].mxu0 %v4007
      %v4075 = vpop.f32.mrb[0].mxu0
      %v4076 = vadd.f32 0.0, %v4075
      %v4077 = vpop.f32.mrb[0].mxu0
      %4078 = vdwg.mxu0
      %v4079 = vadd.f32 %v4001, %v4076
      %v4080 = vxor.u32 %v4079, 2147483648
      %v4081 = vmul.f32 %v4080, 1.442695
      %v4082 = vpow.pop %v4081
      %v4083 = vadd.f32 %v4082, 1.0
      %v4084 = vrcp.pop %v4083
      %v4085 = vmul.f32 1.0, %v4084
      %v4086 = vadd.f32 %v4076, %v599
      %4088 = vrot.lane.b32.xlu0 %v4086, 64
      %v4089 = vpop.permute.xlu0 %4088
      %v4091 = vmul.f32 %v4085, %v4089
      %4093 = vrot.lane.b32.xlu0 %v4091, 64
      %v4094 = vpop.permute.xlu0 %4093
      %v4096 = vadd.f32 %v4001, %v4094
      %v4097 = vtanh.pop %v4096
      %v4098 = vsub.f32 1.0, %v4085
      %4100 = vrot.lane.b32.xlu0 %v4097, 96
      %v4101 = vpop.permute.xlu0 %4100
      %v4103 = vmul.f32 %v4098, %v4101
      %v4104 = vmul.f32 %v4085, %v3983
      %v4105 = vadd.f32 %v4103, %v4104
      %4107 = vrot.lane.b32.xlu0 %v3984, 96
      %v4108 = vpop.permute.xlu0 %4107
      %v4109 = vsel %vm517, %v4108, 0
      %4111 = vmatprep.subr.mxu0 0.0
      %4112 = vmatpush1.msra.mxu0 %v473
      %4113 = vmatprep.subr.mxu0 0.0
      %4114 = vmatpush1.msra.mxu0 %v474
      %4115 = vmatprep.subr.mxu0 0.0
      %4116 = vmatpush1.msra.mxu0 %v475
      %4117 = vmatprep.subr.mxu0 0.0
      %4118 = vmatpush1.msra.mxu0 %v476
      %4119 = vmatprep.subr.mxu0 0.0
      %4120 = vmatpush1.msra.mxu0 0.0
      %4121 = vmatprep.subr.mxu0 0.0
      %4122 = vmatpush1.msra.mxu0 0.0
      %4123 = vmatprep.subr.mxu0 0.0
      %4124 = vmatpush1.msra.mxu0 0.0
      %4125 = vmatprep.subr.mxu0 0.0
      %4126 = vmatpush1.msra.mxu0 0.0
      %4127 = vmatprep.subr.mxu0 0.0
      %4128 = vmatpush1.msra.mxu0 0.0
      %4129 = vmatprep.subr.mxu0 0.0
      %4130 = vmatpush1.msra.mxu0 0.0
      %4131 = vmatprep.subr.mxu0 0.0
      %4132 = vmatpush1.msra.mxu0 0.0
      %4133 = vmatprep.subr.mxu0 0.0
      %4134 = vmatpush1.msra.mxu0 0.0
      %4135 = vmatprep.subr.mxu0 0.0
      %4136 = vmatpush1.msra.mxu0 0.0
      %4137 = vmatprep.subr.mxu0 0.0
      %4138 = vmatpush1.msra.mxu0 0.0
      %4139 = vmatprep.subr.mxu0 0.0
      %4140 = vmatpush1.msra.mxu0 0.0
      %4141 = vmatprep.subr.mxu0 0.0
      %4142 = vmatpush1.msra.mxu0 0.0
      %4143 = vmatprep.subr.mxu0 0.0
      %4144 = vmatpush1.msra.mxu0 0.0
      %4145 = vmatprep.subr.mxu0 0.0
      %4146 = vmatpush1.msra.mxu0 0.0
      %4147 = vmatprep.subr.mxu0 0.0
      %4148 = vmatpush1.msra.mxu0 0.0
      %4149 = vmatprep.subr.mxu0 0.0
      %4150 = vmatpush1.msra.mxu0 0.0
      %4151 = vmatprep.subr.mxu0 0.0
      %4152 = vmatpush1.msra.mxu0 0.0
      %4153 = vmatprep.subr.mxu0 0.0
      %4154 = vmatpush1.msra.mxu0 0.0
      %4155 = vmatprep.subr.mxu0 0.0
      %4156 = vmatpush1.msra.mxu0 0.0
      %4157 = vmatprep.subr.mxu0 0.0
      %4158 = vmatpush1.msra.mxu0 0.0
      %4159 = vmatprep.subr.mxu0 0.0
      %4160 = vmatpush1.msra.mxu0 0.0
      %4161 = vmatprep.subr.mxu0 0.0
      %4162 = vmatpush1.msra.mxu0 0.0
      %4163 = vmatprep.subr.mxu0 0.0
      %4164 = vmatpush1.msra.mxu0 0.0
      %4165 = vmatprep.subr.mxu0 0.0
      %4166 = vmatpush1.msra.mxu0 0.0
      %4167 = vmatprep.subr.mxu0 0.0
      %4168 = vmatpush1.msra.mxu0 0.0
      %4169 = vmatprep.subr.mxu0 0.0
      %4170 = vmatpush1.msra.mxu0 0.0
      %4171 = vmatprep.subr.mxu0 0.0
      %4172 = vmatpush1.msra.mxu0 0.0
      %4173 = vmatprep.subr.mxu0 0.0
      %4174 = vmatpush1.msra.mxu0 0.0
      %4175 = vmatprep.mubr.f32.mxu0 0.0
      %4176 = vmatmul.mubr.f32.gmra.mrb[0].mxu0 %v4109
      %v4177 = vpop.f32.mrb[0].mxu0
      %v4178 = vadd.f32 0.0, %v4177
      %v4179 = vpop.f32.mrb[0].mxu0
      %4180 = vdwg.mxu0
      %v4181 = vadd.f32 %v4003, %v4178
      %v4182 = vxor.u32 %v4181, 2147483648
      %v4183 = vmul.f32 %v4182, 1.442695
      %v4184 = vpow.pop %v4183
      %v4185 = vadd.f32 %v4184, 1.0
      %v4186 = vrcp.pop %v4185
      %v4187 = vmul.f32 1.0, %v4186
      %v4188 = vadd.f32 %v4178, %v705
      %4190 = vrot.lane.b32.xlu0 %v4188, 64
      %v4191 = vpop.permute.xlu0 %4190
      %v4193 = vmul.f32 %v4187, %v4191
      %4195 = vrot.lane.b32.xlu0 %v4193, 64
      %v4196 = vpop.permute.xlu0 %4195
      %v4198 = vadd.f32 %v4003, %v4196
      %v4199 = vtanh.pop %v4198
      %v4200 = vsub.f32 1.0, %v4187
      %4202 = vrot.lane.b32.xlu0 %v4199, 96
      %v4203 = vpop.permute.xlu0 %4202
      %v4205 = vmul.f32 %v4200, %v4203
      %v4206 = vmul.f32 %v4187, %v3984
      %v4207 = vadd.f32 %v4205, %v4206
      %s4208 = sadd.s32 %s507, 15
      %v4209 = vstv %s4208
      %vm4210 = vcmp.lt.s32.totalorder %v4209, %v506
      %v4211 = vstv %s509
      %vm4212 = vcmp.lt.s32.totalorder %v4211, %v506
      %v4213 = vsel %vm4210, %v4105, %v3983
      %v4214 = vsel %vm4212, %v4207, %v3984
      %v4215 = vsel %vm4210, %v4105, 0.0
      %4217 = vrot.lane.b32.xlu0 %v4215, 96
      %v4218 = vpop.permute.xlu0 %4217
      %s4220 = scalar_lea.vmem %s452, 60
      %4221 = vst.msk [vmem:[%s4220] sm:$0xf] %vm742, %v4218
      %v4222 = vsel %vm4212, %v4207, 0.0
      %4224 = vrot.lane.b32.xlu0 %v4222, 96
      %v4225 = vpop.permute.xlu0 %4224
      %4227 = vst.msk [vmem:[%s459] sm:$0xf] %vm742, %v4225
      %4229 = vrot.lane.b32.xlu0 %v4213, 96
      %v4230 = vpop.permute.xlu0 %4229
      %4232 = vst.msk [vmem:[#allocation2] sm:$0xf] %vm742, %v4230
      %4234 = vrot.lane.b32.xlu0 %v4214, 96
      %v4235 = vpop.permute.xlu0 %4234
      %4237 = vst.msk [vmem:[#allocation3] sm:$0xf] %vm742, %v4235
      %p4238 = scmp.eq.s32.totalorder %s24, 2
      // Predicated region
      $region61: #{gru_encoder_forward.2} parent=55 // pred_check
        %p4239 = pneg %p4238
      $region62: #{gru_encoder_forward.2} parent=55 // pred_check_branch
        %4241 = sbr.rel (%p4239) target = $region64
      $region63: #{gru_encoder_forward.2} parent=55 // pred_region
        %v4242 = vld [vmem:[#allocation2] sm:$0xf]
        %4243 = vst.msk [vmem:[%s11] sm:$0xf] %vm742, %v4242
        %v4244 = vld [vmem:[#allocation3] sm:$0xf]
        %4245 = vst.msk [vmem:[%s12] sm:$0xf] %vm742, %v4244
      $region64: #{gru_encoder_forward.2} parent=55 // pred_fallthru
        _
      %s4246 = smul.u32 16, %s24
      %p4247 = scmp.lt.s32.totalorder %s4246, 47
      %s4248 = scalar_select %p4247, %s4246, 47
      %s4249 = smul.addr %s4248, 4
      %s4250 = scalar_lea.vmem %s9, %s4249
      %s4251 = ssub.s32 2, %s24
      %s4252 = smul.u32 16, %s4251
      %p4253 = scmp.lt.s32.totalorder %s4252, 47
      %s4254 = scalar_select %p4253, %s4252, 47
      %s4255 = smul.addr %s4254, 4
      %s4256 = scalar_lea.vmem %s10, %s4255
      // Predicated region
      $region65: #{gru_encoder_forward.2} parent=55 // pred_check
        %p4257 = pneg %p243
      $region66: #{gru_encoder_forward.2} parent=55 // pred_check_branch
        %4259 = sbr.rel (%p4257) target = $region68
      $region67: #{gru_encoder_forward.2} parent=55 // pred_region
        %s4260 = smul.u32 16, %s24
      $region68: #{gru_encoder_forward.2} parent=55 // pred_fallthru
        _
      // Predicated region
      $region69: #{gru_encoder_forward.2} parent=55 // pred_check
        %p4261 = pneg %p271
      $region70: #{gru_encoder_forward.2} parent=55 // pred_check_branch
        %4263 = sbr.rel (%p4261) target = $region72
      $region71: #{gru_encoder_forward.2} parent=55 // pred_region
        %s4264 = ssub.s32 2, %s24
        %s4265 = smul.u32 16, %s4264
      $region72: #{gru_encoder_forward.2} parent=55 // pred_fallthru
        _
      // Predicated region
      $region73: #{gru_encoder_forward.2} parent=55 // pred_check
        %p4266 = pneg %p292
      $region74: #{gru_encoder_forward.2} parent=55 // pred_check_branch
        %4268 = sbr.rel (%p4266) target = $region76
      $region75: #{gru_encoder_forward.2} parent=55 // pred_region
        _
      $region76: #{gru_encoder_forward.2} parent=55 // pred_fallthru
        _
      // Predicated region
      $region77: #{gru_encoder_forward.2} parent=55 // pred_check
        %p4269 = pneg %p313
      $region78: #{gru_encoder_forward.2} parent=55 // pred_check_branch
        %4271 = sbr.rel (%p4269) target = $region80
      $region79: #{gru_encoder_forward.2} parent=55 // pred_region
        _
      $region80: #{gru_encoder_forward.2} parent=55 // pred_fallthru
        _
      // Predicated region
      $region81: #{gru_encoder_forward.2} parent=55 // pred_check
        %p4272 = pneg %p292
      $region82: #{gru_encoder_forward.2} parent=55 // pred_check_branch
        %4274 = sbr.rel (%p4272) target = $region84
      $region83: #{gru_encoder_forward.2} parent=55 // pred_region
        _
      $region84: #{gru_encoder_forward.2} parent=55 // pred_fallthru
        _
      // Predicated region
      $region85: #{gru_encoder_forward.2} parent=55 // pred_check
        %p4275 = pneg %p313
      $region86: #{gru_encoder_forward.2} parent=55 // pred_check_branch
        %4277 = sbr.rel (%p4275) target = $region88
      $region87: #{gru_encoder_forward.2} parent=55 // pred_region
        _
      $region88: #{gru_encoder_forward.2} parent=55 // pred_fallthru
        _
    $region56: #{gru_encoder_forward.2} parent=5 // pred_fallthru
      _
    %p4278 = scmp.le.s32.totalorder 2, %s19
    // Predicated region
    $region89: #{gru_encoder_forward.2} parent=5 // pred_check
      %p4279 = pneg %p4278
    $region90: #{gru_encoder_forward.2} parent=5 // pred_check_branch
      %4281 = sbr.rel (%p4279) target = $region92
    $region91: #{gru_encoder_forward.2} parent=5 // pred_region
      %s4282 = ssub.s32 %s19, 2
      // Predicated region
      $region93: #{gru_encoder_forward.2} parent=91 // pred_check
        %p4283 = pneg %p249
      $region94: #{gru_encoder_forward.2} parent=91 // pred_check_branch
        %4285 = sbr.rel (%p4283) target = $region96
      $region95: #{gru_encoder_forward.2} parent=91 // pred_region
        %s4286 = smul.u32 16, %s25
        %p4287 = scmp.lt.s32.totalorder %s4286, 47
        %s4288 = scalar_select %p4287, %s4286, 47
        %s4289 = smul.addr %s4288, 4
        %s4290 = scalar_lea.vmem %s9, %s4289
      $region96: #{gru_encoder_forward.2} parent=91 // pred_fallthru
        _
      // Predicated region
      $region97: #{gru_encoder_forward.2} parent=91 // pred_check
        %p4291 = pneg %p277
      $region98: #{gru_encoder_forward.2} parent=91 // pred_check_branch
        %4293 = sbr.rel (%p4291) target = $region100
      $region99: #{gru_encoder_forward.2} parent=91 // pred_region
        %s4294 = ssub.s32 2, %s25
        %s4295 = smul.u32 16, %s4294
        %p4296 = scmp.lt.s32.totalorder %s4295, 47
        %s4297 = scalar_select %p4296, %s4295, 47
        %s4298 = smul.addr %s4297, 4
        %s4299 = scalar_lea.vmem %s10, %s4298
      $region100: #{gru_encoder_forward.2} parent=91 // pred_fallthru
        _
    $region92: #{gru_encoder_forward.2} parent=5 // pred_fallthru
      _
  $region6: #{gru_encoder_forward.2} parent=0 // loop_footer
    %s23 = sadd.s32 1, %s19
  $region7: #{gru_encoder_forward.2} parent=0 // loop_footer_branch
    %18 = sbr.rel target = $region3
  $region8: #{gru_encoder_forward.2} parent=0 // loop_exit
    _

</llo_original>
